<compile_context>
chip_gen: v7x
topology: tpu7x:2x2x1
jax: 0.10.0
libtpu: 0.0.40
codegen_flags: <defaults>
</compile_context>

<pallas_src>
import functools

import jax
import jax.numpy as jnp
from jax.experimental import pallas as pl
from jax.experimental.pallas import tpu as pltpu

VMEM_LIMIT = 32 * 1024 * 1024   # fits every kernel; safe on v5e/v6e/v7x
PATCH = 32                      # backbone stand-in spatial reduction (/32)


def _round_up(x, m):
    return ((x + m - 1) // m) * m


# --------------------------------------------------------------------------
# Kernel 1: dense = matmul + bias (+ optional activation), whole K per step,
# M tiled on a parallel grid axis.  Weights may be bf16 (halved HBM traffic);
# activations are cast to the weight dtype for the MXU, accumulation is f32.
# Used for: backbone stand-in patchify conv (3*32*32 -> 1280, SiLU).
# --------------------------------------------------------------------------
def _dense_kernel(x_ref, w_ref, b_ref, o_ref, *, activation):
    w = w_ref[...]
    y = jnp.dot(x_ref[...].astype(w.dtype), w,
                preferred_element_type=jnp.float32) + b_ref[...]
    if activation == "silu":
        y = y * jax.nn.sigmoid(y)
    elif activation == "relu":
        y = jnp.maximum(y, 0.0)
    elif activation == "sigmoid":
        y = jax.nn.sigmoid(y)
    o_ref[...] = y.astype(o_ref.dtype)


def dense(x, w, b, *, activation=None, tm=128):
    M, K = x.shape
    Kw, Nout = w.shape
    assert K == Kw
    m_pad = _round_up(M, 8)
    tm_eff = min(tm, m_pad)
    m_pad = _round_up(m_pad, tm_eff)
    if m_pad != M:
        x = jnp.pad(x, ((0, m_pad - M), (0, 0)))
    out = pl.pallas_call(
        functools.partial(_dense_kernel, activation=activation),
        out_shape=jax.ShapeDtypeStruct((m_pad, Nout), jnp.float32),
        grid_spec=pltpu.PrefetchScalarGridSpec(
            num_scalar_prefetch=0,
            grid=(m_pad // tm_eff,),
            in_specs=[
                pl.BlockSpec((tm_eff, K), lambda i: (i, 0)),
                pl.BlockSpec((K, Nout), lambda i: (0, 0)),   # fetched once
                pl.BlockSpec((1, Nout), lambda i: (0, 0)),
            ],
            out_specs=pl.BlockSpec((tm_eff, Nout), lambda i: (i, 0)),
        ),
        compiler_params=pltpu.CompilerParams(
            dimension_semantics=("parallel",),
            vmem_limit_bytes=VMEM_LIMIT,
        ),
    )(x, w, b.reshape(1, Nout))
    return out[:M]


# --------------------------------------------------------------------------
# Kernel 2: edge-branch stem, fully fused:
#   Conv2d(1,32,3,pad=1) + BN(32) + ReLU + MaxPool2d(2)
# Input is pre-padded and split into even/odd columns by the wrapper so the
# 2x2 max-pool never needs lane-strided access.  Per grid step (one image)
# the kernel loops over pooled output rows and writes them immediately
# (no big live accumulator).  Layout: channels(32) on sublanes, W on lanes.
# Output: (N, H/2, 32, W/2).
# --------------------------------------------------------------------------
def _edge_conv_pool_kernel(xe_ref, xo_ref, w_ref, scale_ref, shift_ref, o_ref):
    hh = o_ref.shape[1]
    wh = o_ref.shape[3]
    w = w_ref[...]              # (32, 9), tap index = dy*3 + dx
    scale = scale_ref[...]      # (32, 1)  folded BN
    shift = shift_ref[...]      # (32, 1)

    def conv_row(y, s):
        # conv output row `y` (unpooled), columns of parity `s`, + BN + ReLU
        acc = jnp.zeros((w.shape[0], wh), jnp.float32)
        for dy in range(3):
            for dx in range(3):
                t = s + dx
                src = xe_ref if (t % 2 == 0) else xo_ref
                base = t // 2
                row = src[0, pl.ds(y + dy, 1), pl.ds(base, wh)]   # (1, wh)
                acc = acc + w[:, dy * 3 + dx:dy * 3 + dx + 1] * row
        return jnp.maximum(acc * scale + shift, 0.0)

    @pl.loop(0, hh)
    def _(r):
        y0 = 2 * r
        p00 = conv_row(y0, 0)
        p01 = conv_row(y0, 1)
        p10 = conv_row(y0 + 1, 0)
        p11 = conv_row(y0 + 1, 1)
        o_ref[0, r] = jnp.maximum(jnp.maximum(p00, p01),
                                  jnp.maximum(p10, p11))


def edge_conv_pool(xe, xo, w, scale, shift):
    N, hp2, whp1 = xe.shape
    hh = (hp2 - 2) // 2
    wh = whp1 - 1
    cout = w.shape[0]
    return pl.pallas_call(
        _edge_conv_pool_kernel,
        out_shape=jax.ShapeDtypeStruct((N, hh, cout, wh), jnp.float32),
        grid_spec=pltpu.PrefetchScalarGridSpec(
            num_scalar_prefetch=0,
            grid=(N,),
            in_specs=[
                pl.BlockSpec((1, hp2, whp1), lambda n: (n, 0, 0)),
                pl.BlockSpec((1, hp2, whp1), lambda n: (n, 0, 0)),
                pl.BlockSpec((cout, 9), lambda n: (0, 0)),
                pl.BlockSpec((cout, 1), lambda n: (0, 0)),
                pl.BlockSpec((cout, 1), lambda n: (0, 0)),
            ],
            out_specs=pl.BlockSpec((1, hh, cout, wh), lambda n: (n, 0, 0, 0)),
        ),
        compiler_params=pltpu.CompilerParams(
            dimension_semantics=("parallel",), vmem_limit_bytes=VMEM_LIMIT,
        ),
    )(xe, xo, w, scale.reshape(cout, 1), shift.reshape(cout, 1))


# --------------------------------------------------------------------------
# Kernel 3: fused edge 1x1 expand + RobustFusion (attention + mix + BN):
#   edge1280 = edge32 @ e2w + e2b                        (Conv2d(32,1280,1))
#   attn     = sigmoid(rgb @ Wr + edge1280 @ We + b)     (Conv2d(2560,1280,1))
#   out      = bn(attn*rgb + (1-attn)*edge1280)
# Attention weights are bf16-streamed, accumulation f32, M tiled / parallel.
# --------------------------------------------------------------------------
def _fusion_kernel(rgb_ref, e32_ref, e2w_ref, e2b_ref, awr_ref, awe_ref,
                   ab_ref, fs_ref, ft_ref, o_ref):
    rgb = rgb_ref[...]                                          # (tm, 1280) f32
    edge = jnp.dot(e32_ref[...], e2w_ref[...],
                   preferred_element_type=jnp.float32) + e2b_ref[...]
    awr = awr_ref[...]
    awe = awe_ref[...]
    logits = (jnp.dot(rgb.astype(awr.dtype), awr,
                      preferred_element_type=jnp.float32)
              + jnp.dot(edge.astype(awe.dtype), awe,
                        preferred_element_type=jnp.float32)
              + ab_ref[...])
    attn = jax.nn.sigmoid(logits)
    fused = attn * rgb + (1.0 - attn) * edge
    o_ref[...] = fused * fs_ref[...] + ft_ref[...]


def fusion_attention(rgb_feat, edge32, e2w, e2b, awr, awe, ab,
                     fscale, fshift, *, tm=128):
    M, C = rgb_feat.shape
    Ce = edge32.shape[1]
    m_pad = _round_up(M, 8)
    tm_eff = min(tm, m_pad)
    m_pad = _round_up(m_pad, tm_eff)
    if m_pad != M:
        rgb_feat = jnp.pad(rgb_feat, ((0, m_pad - M), (0, 0)))
        edge32 = jnp.pad(edge32, ((0, m_pad - M), (0, 0)))
    out = pl.pallas_call(
        _fusion_kernel,
        out_shape=jax.ShapeDtypeStruct((m_pad, C), jnp.float32),
        grid_spec=pltpu.PrefetchScalarGridSpec(
            num_scalar_prefetch=0,
            grid=(m_pad // tm_eff,),
            in_specs=[
                pl.BlockSpec((tm_eff, C), lambda i: (i, 0)),   # rgb_feat
                pl.BlockSpec((tm_eff, Ce), lambda i: (i, 0)),  # edge32
                pl.BlockSpec((Ce, C), lambda i: (0, 0)),       # e2w
                pl.BlockSpec((1, C), lambda i: (0, 0)),        # e2b
                pl.BlockSpec((C, C), lambda i: (0, 0)),        # att W (rgb half)
                pl.BlockSpec((C, C), lambda i: (0, 0)),        # att W (edge half)
                pl.BlockSpec((1, C), lambda i: (0, 0)),        # att bias
                pl.BlockSpec((1, C), lambda i: (0, 0)),        # fusion BN scale
                pl.BlockSpec((1, C), lambda i: (0, 0)),        # fusion BN shift
            ],
            out_specs=pl.BlockSpec((tm_eff, C), lambda i: (i, 0)),
        ),
        compiler_params=pltpu.CompilerParams(
            dimension_semantics=("parallel",), vmem_limit_bytes=VMEM_LIMIT,
        ),
    )(rgb_feat, edge32, e2w, e2b.reshape(1, C), awr, awe, ab.reshape(1, C),
      fscale.reshape(1, C), fshift.reshape(1, C))
    return out[:M]


# --------------------------------------------------------------------------
# Kernel 4: classifier head (single launch):
#   AdaptiveAvgPool2d(1) -> Flatten -> [Dropout=id] -> Linear(1280,256) ->
#   ReLU -> BatchNorm1d(256) -> [Dropout=id] -> Linear(256,num_classes)
# --------------------------------------------------------------------------
def _classifier_kernel(x_ref, w1_ref, b1_ref, s_ref, t_ref, w2_ref, b2_ref,
                       o_ref):
    pooled = jnp.mean(x_ref[...], axis=1)                       # (N, 1280)
    w1 = w1_ref[...]
    h = jnp.dot(pooled.astype(w1.dtype), w1,
                preferred_element_type=jnp.float32) + b1_ref[...]
    h = jnp.maximum(h, 0.0)
    h = h * s_ref[...] + t_ref[...]
    o_ref[...] = jnp.dot(h, w2_ref[...],
                         preferred_element_type=jnp.float32) + b2_ref[...]


def classifier_head(x, w1, b1, s, t, w2, b2):
    N, S, C = x.shape
    Ch = w1.shape[1]
    Co = w2.shape[1]
    return pl.pallas_call(
        _classifier_kernel,
        out_shape=jax.ShapeDtypeStruct((N, Co), jnp.float32),
        grid_spec=pltpu.PrefetchScalarGridSpec(
            num_scalar_prefetch=0,
            grid=(1,),
            in_specs=[
                pl.BlockSpec((N, S, C), lambda i: (0, 0, 0)),
                pl.BlockSpec((C, Ch), lambda i: (0, 0)),
                pl.BlockSpec((1, Ch), lambda i: (0, 0)),
                pl.BlockSpec((1, Ch), lambda i: (0, 0)),
                pl.BlockSpec((1, Ch), lambda i: (0, 0)),
                pl.BlockSpec((Ch, Co), lambda i: (0, 0)),
                pl.BlockSpec((1, Co), lambda i: (0, 0)),
            ],
            out_specs=pl.BlockSpec((N, Co), lambda i: (0, 0)),
        ),
        compiler_params=pltpu.CompilerParams(
            dimension_semantics=("arbitrary",), vmem_limit_bytes=VMEM_LIMIT,
        ),
    )(x, w1, b1.reshape(1, Ch), s.reshape(1, Ch), t.reshape(1, Ch),
      w2, b2.reshape(1, Co))


# --------------------------------------------------------------------------
# Deterministic parameter initialization (synthetic, not a checkpoint load).
# PyTorch conv/linear weights are stored transposed here (Cin -> Cout order);
# the big streamed weights are kept in bfloat16.
# --------------------------------------------------------------------------
def init_params(key):
    eps = 1e-5
    keys = iter(jax.random.split(key, 32))

    def nrm(shape, std):
        return std * jax.random.normal(next(keys), shape, jnp.float32)

    def uni(shape, lo, hi):
        return jax.random.uniform(next(keys), shape, jnp.float32, lo, hi)

    def bn_fold(c, conv_bias=None):
        gamma = uni((c,), 0.8, 1.2)
        beta = nrm((c,), 0.1)
        mean = nrm((c,), 0.1)
        var = uni((c,), 0.5, 1.5)
        scale = gamma / jnp.sqrt(var + eps)
        shift = beta - scale * mean
        if conv_bias is not None:
            shift = shift + scale * conv_bias
        return scale, shift

    p = {}
    # backbone stand-in (see TODO(synk) at top): stride-32 patchify 3 -> 1280
    p["bb_w"] = nrm((PATCH * PATCH * 3, 1280), 0.02).astype(jnp.bfloat16)
    p["bb_b"] = nrm((1280,), 0.02)
    # edge branch: Conv2d(1,32,3,pad=1)+BN(32)+ReLU, MaxPool(2), Conv2d(32,1280,1)
    w_e1 = nrm((32, 9), 0.2)             # torch weight (32,1,3,3) as (Cout, kh*kw)
    b_e1 = nrm((32,), 0.05)
    p["e1_w"] = w_e1
    p["e1_scale"], p["e1_shift"] = bn_fold(32, b_e1)
    p["e2_w"] = nrm((32, 1280), 0.05)    # torch weight (1280,32,1,1) transposed
    p["e2_b"] = nrm((1280,), 0.02)
    # RobustFusion: Conv2d(2560,1280,1)+Sigmoid attention (split rgb/edge), BN(1280)
    p["att_wr"] = nrm((1280, 1280), 0.02).astype(jnp.bfloat16)
    p["att_we"] = nrm((1280, 1280), 0.02).astype(jnp.bfloat16)
    p["att_b"] = nrm((1280,), 0.02)
    p["fbn_scale"], p["fbn_shift"] = bn_fold(1280)
    # classifier: Linear(1280,256), BN1d(256), Linear(256,2)
    p["c_w1"] = nrm((1280, 256), 0.03).astype(jnp.bfloat16)
    p["c_b1"] = nrm((256,), 0.02)
    p["cbn_scale"], p["cbn_shift"] = bn_fold(256)
    p["c_w2"] = nrm((256, 2), 0.05)
    p["c_b2"] = nrm((2,), 0.02)
    return p


# --------------------------------------------------------------------------
# Forward pass (mirrors OptimizedEfficientNet.forward with edge != None and
# Config.FUSION_TYPE == 'attention').
# --------------------------------------------------------------------------
def forward(params, rgb_nchw, edge_nchw):
    N, _, H, W = rgb_nchw.shape
    assert H % PATCH == 0 and W % PATCH == 0
    Hf, Wf = H // PATCH, W // PATCH
    M = N * Hf * Wf

    rgb = jnp.transpose(rgb_nchw, (0, 2, 3, 1))        # NCHW -> NHWC

    # ---- backbone stand-in: rgb_feat of shape (M=N*Hf*Wf, 1280) ----
    patches = (rgb.reshape(N, Hf, PATCH, Wf, PATCH, 3)
                  .transpose(0, 1, 3, 2, 4, 5)
                  .reshape(M, PATCH * PATCH * 3))
    rgb_feat = dense(patches, params["bb_w"], params["bb_b"], activation="silu")

    # ---- edge branch (LightEdgeExtractor): fused conv+BN+ReLU+pool ----
    edge2d = edge_nchw[:, 0]                           # (N, H, W)
    edge_pad = jnp.pad(edge2d, ((0, 0), (1, 1), (1, 1)))
    xe = edge_pad[:, :, 0::2]                          # even columns
    xo = edge_pad[:, :, 1::2]                          # odd columns
    pooled = edge_conv_pool(xe, xo, params["e1_w"],
                            params["e1_scale"], params["e1_shift"])
    # pooled: (N, H/2, 32, W/2)

    # nearest interpolation to rgb_feat spatial size BEFORE the 1x1 expand:
    # gather only the N*Hf*Wf positions (32 channels each).
    Hh, Wh = H // 2, W // 2
    hi = (jnp.arange(Hf) * Hh) // Hf
    wi = (jnp.arange(Wf) * Wh) // Wf
    e_small = pooled[:, hi][:, :, :, wi]               # (N, Hf, 32, Wf)
    edge32 = jnp.transpose(e_small, (0, 1, 3, 2)).reshape(M, 32)

    # ---- fused: edge 1x1 expand + RobustFusion (attention + mix + BN) ----
    fused = fusion_attention(
        rgb_feat, edge32,
        params["e2_w"], params["e2_b"],
        params["att_wr"], params["att_we"], params["att_b"],
        params["fbn_scale"], params["fbn_shift"],
    )                                                  # (M, 1280)

    # ---- classifier ----
    logits = classifier_head(
        fused.reshape(N, Hf * Wf, 1280),
        params["c_w1"], params["c_b1"],
        params["cbn_scale"], params["cbn_shift"],
        params["c_w2"], params["c_b2"],
    )                                                  # (N, num_classes)
    return logits


if __name__ == "__main__":
    key = jax.random.PRNGKey(0)
    k_p, k_rgb, k_edge = jax.random.split(key, 3)
    params = init_params(k_p)

    # Small deterministic inputs (PyTorch NCHW convention); 64 = small IMG_SIZE
    # divisible by the backbone's /32 spatial reduction.
    rgb = jax.random.normal(k_rgb, (2, 3, 64, 64), jnp.float32)
    edge = jax.random.normal(k_edge, (2, 1, 64, 64), jnp.float32)

    out = forward(params, rgb, edge)
    jax.block_until_ready(out)
    assert out.shape == (2, 2)
    print("KERNEL_OK")
</pallas_src>

<mosaic_0001>
module attributes {stable_mosaic.version = 11 : i64} {
  func.func @_dense_kernel(%arg0: i32, %arg1: memref<8x3072xf32, #tpu.memory_space<vmem>>, %arg2: memref<3072x1280xbf16, #tpu.memory_space<vmem>>, %arg3: memref<1x1280xf32, #tpu.memory_space<vmem>>, %arg4: memref<8x1280xf32, #tpu.memory_space<vmem>>) attributes {dimension_semantics = [#tpu.dimension_semantics<parallel>], iteration_bounds = array<i64: 1>, scalar_prefetch = 0 : i64, scratch_operands = 0 : i64, tpu.core_type = #tpu.core_type<tc>, window_params = [{transform_indices = @transform_0, window_bounds = array<i64: 8, 3072>}, {pipeline_mode = #tpu.pipeline_mode<synchronous>, transform_indices = @transform_1, window_bounds = array<i64: 3072, 1280>}, {pipeline_mode = #tpu.pipeline_mode<synchronous>, transform_indices = @transform_2, window_bounds = array<i64: 1, 1280>}, {transform_indices = @transform_3, window_bounds = array<i64: 8, 1280>}]} {
    %c0 = arith.constant 0 : index
    %c0_0 = arith.constant 0 : index
    %0 = vector.load %arg2[%c0, %c0_0] : memref<3072x1280xbf16, #tpu.memory_space<vmem>>, vector<3072x1280xbf16>
    %c0_1 = arith.constant 0 : index
    %c0_2 = arith.constant 0 : index
    %1 = vector.load %arg1[%c0_1, %c0_2] : memref<8x3072xf32, #tpu.memory_space<vmem>>, vector<8x3072xf32>
    %2 = arith.truncf %1 : vector<8x3072xf32> to vector<8x3072xbf16>
    %cst = arith.constant dense<0.000000e+00> : vector<8x1280xf32>
    %3 = tpu.matmul %2, %0, %cst {dimension_numbers = #tpu.dot_dimension_numbers<[1], [0], [0], [1], [0, 0, 1, 1], [], []>} : vector<8x3072xbf16>, vector<3072x1280xbf16>, vector<8x1280xf32> -> vector<8x1280xf32>
    %c0_3 = arith.constant 0 : index
    %c0_4 = arith.constant 0 : index
    %4 = vector.load %arg3[%c0_3, %c0_4] : memref<1x1280xf32, #tpu.memory_space<vmem>>, vector<1x1280xf32>
    %5 = vector.broadcast %4 : vector<1x1280xf32> to vector<8x1280xf32>
    %6 = arith.addf %3, %5 : vector<8x1280xf32>
    %7 = arith.negf %6 : vector<8x1280xf32>
    %8 = math.exp %7 : vector<8x1280xf32>
    %cst_5 = arith.constant 1.000000e+00 : f32
    %9 = vector.broadcast %cst_5 : f32 to vector<8x1280xf32>
    %10 = arith.addf %9, %8 : vector<8x1280xf32>
    %11 = arith.divf %9, %10 : vector<8x1280xf32>
    %12 = arith.mulf %6, %11 : vector<8x1280xf32>
    %c0_6 = arith.constant 0 : index
    %c0_7 = arith.constant 0 : index
    %13 = vector.load %arg4[%c0_6, %c0_7] : memref<8x1280xf32, #tpu.memory_space<vmem>>, vector<8x1280xf32>
    tpu.vector_store %arg4[%c0_6, %c0_7], %12 {strides = array<i32>} : memref<8x1280xf32, #tpu.memory_space<vmem>>, vector<8x1280xf32>,
    return
  }
  func.func @transform_0(%arg0: i32) -> (i32, i32) {
    %c0_i32 = arith.constant 0 : i32
    %c0_i32_0 = arith.constant 0 : i32
    return %arg0, %c0_i32 : i32, i32
  }
  func.func @transform_1(%arg0: i32) -> (i32, i32) {
    %c0_i32 = arith.constant 0 : i32
    %c0_i32_0 = arith.constant 0 : i32
    %c0_i32_1 = arith.constant 0 : i32
    return %c0_i32, %c0_i32_0 : i32, i32
  }
  func.func @transform_2(%arg0: i32) -> (i32, i32) {
    %c0_i32 = arith.constant 0 : i32
    %c0_i32_0 = arith.constant 0 : i32
    %c0_i32_1 = arith.constant 0 : i32
    return %c0_i32, %c0_i32_0 : i32, i32
  }
  func.func @transform_3(%arg0: i32) -> (i32, i32) {
    %c0_i32 = arith.constant 0 : i32
    %c0_i32_0 = arith.constant 0 : i32
    return %arg0, %c0_i32 : i32, i32
  }
}

</mosaic_0001>

<llo_original>
// kernel: tpu_custom_call.1
$region0: #{tpu_custom_call.1}
  #allocation0 [shape = 'u32[]', space=smem, size = 0x4, offset = 0x4, fixed_abs, tag = 'smem constant byte address 0x4 - core index']
  #allocation1 [shape = 'u32[144,128]{1,0:T(1,128)}', space=vmem, size = 0x12000, scoped, tag = 'internal scratch']
  %s0 = inlined_call_operand.hbm [shape: f32[8,3072], index: 0, kind: input, shape index: {}]
  %s1 = inlined_call_operand.hbm [shape: bf16[3072,1280], index: 1, kind: input, shape index: {}]
  %s2 = inlined_call_operand.hbm [shape: f32[1,1280], index: 2, kind: input, shape index: {}]
  %s3 = inlined_call_operand.hbm [shape: f32[8,1280], index: 3, kind: output, shape index: {}]
  %s4 = sld [smem:[#allocation0]]
  $region34: #{tpu_custom_call.1} parent=0
    _
  %s6 = ssub.s32 1, %s4
  %s7 = scalar_select 0, %s6, %s4
  $region1: #{tpu_custom_call.1} parent=0
    #allocation2 [shape = 'u8[98304]{0}', space=vmem, size = 0x18000, scoped, tag = 'input window, operand 0, single buffered']
    #allocation3 [shape = 's32[1]{0}', space=sflag, size = 0x4, scoped, tag = 'scoped memory for tpu_custom_call.1']
    #allocation4 [shape = 's32[1]{0}', space=sflag, size = 0x4, scoped, tag = 'scoped memory for tpu_custom_call.1']
    #allocation5 [shape = 'u8[7864320]{0}', space=vmem, size = 0x780000, scoped, tag = 'input window, operand 1, single buffered']
    #allocation6 [shape = 's32[1]{0}', space=sflag, size = 0x4, scoped, tag = 'scoped memory for tpu_custom_call.1']
    #allocation7 [shape = 'u8[5120]{0}', space=vmem, size = 0x1400, scoped, tag = 'input window, operand 2, single buffered']
    #allocation8 [shape = 'u8[40960]{0}', space=vmem, size = 0xa000, scoped, tag = 'output window, operand 0, single buffered']
    %8 = vsyncpa [#allocation3], 0
    %9 = vsyncpa [#allocation6], 0
    %10 = vsyncpa [#allocation4], 0
    // Predicated region
    $region2: #{tpu_custom_call.1} parent=1 // pred_check
      _
    $region3: #{tpu_custom_call.1} parent=1 // pred_check_branch
      %12 = sbr.rel (0) target = $region5
    $region4: #{tpu_custom_call.1} parent=1 // pred_region
      %s14 = ssub.s32 3072, 3072
      %15 = vsyncadd [#allocation3], %s14
      %s17 = sshll.u32 [#allocation2], 4
      %s18 = int_to_ptr.vmem [resolvable:$true] %s17
      %20 = dma.hbm_to_vmem [thread:$0]  %s0, 3072, %s18, [#allocation3]
    $region5: #{tpu_custom_call.1} parent=1 // pred_fallthru
      _
    // Predicated region
    $region6: #{tpu_custom_call.1} parent=1 // pred_check
      _
    $region7: #{tpu_custom_call.1} parent=1 // pred_check_branch
      %22 = sbr.rel (0) target = $region9
    $region8: #{tpu_custom_call.1} parent=1 // pred_region
      %s24 = ssub.s32 245760, 245760
      %25 = vsyncadd [#allocation6], %s24
      %s26 = sshll.u32 [#allocation5], 4
      %s27 = int_to_ptr.vmem [resolvable:$true] %s26
      %32 = dma.hbm_to_vmem [thread:$0]  %s1, 245760, %s27, [#allocation6], 640, 640, 40
    $region9: #{tpu_custom_call.1} parent=1 // pred_fallthru
      _
    // Predicated region
    $region10: #{tpu_custom_call.1} parent=1 // pred_check
      _
    $region11: #{tpu_custom_call.1} parent=1 // pred_check_branch
      %34 = sbr.rel (0) target = $region13
    $region12: #{tpu_custom_call.1} parent=1 // pred_region
      %s36 = ssub.s32 160, 160
      %37 = vsyncadd [#allocation6], %s36
      %s39 = sshll.u32 [#allocation7], 4
      %s40 = int_to_ptr.vmem [resolvable:$true] %s39
      %42 = dma.hbm_to_vmem [thread:$0]  %s2, 160, %s40, [#allocation6]
    $region13: #{tpu_custom_call.1} parent=1 // pred_fallthru
      _
    // Predicated region
    $region14: #{tpu_custom_call.1} parent=1 // pred_check
      _
    $region15: #{tpu_custom_call.1} parent=1 // pred_check_branch
      %44 = sbr.rel (0) target = $region17
    $region16: #{tpu_custom_call.1} parent=1 // pred_region
      %45 = dma.done [#allocation3], 3072
    $region17: #{tpu_custom_call.1} parent=1 // pred_fallthru
      _
    // Predicated region
    $region18: #{tpu_custom_call.1} parent=1 // pred_check
      _
    $region19: #{tpu_custom_call.1} parent=1 // pred_check_branch
      %47 = sbr.rel (0) target = $region21
    $region20: #{tpu_custom_call.1} parent=1 // pred_region
      %48 = dma.done [#allocation6], 245760
    $region21: #{tpu_custom_call.1} parent=1 // pred_fallthru
      _
    // Predicated region
    $region22: #{tpu_custom_call.1} parent=1 // pred_check
      _
    $region23: #{tpu_custom_call.1} parent=1 // pred_check_branch
      %50 = sbr.rel (0) target = $region25
    $region24: #{tpu_custom_call.1} parent=1 // pred_region
      %51 = dma.done [#allocation6], 160
    $region25: #{tpu_custom_call.1} parent=1 // pred_fallthru
      _
    %v52 = vld [vmem:[#allocation5] sm:$0xff]
    %v53 = vld [vmem:[#allocation5 + $0x8] sm:$0xff]
    %v54 = vld [vmem:[#allocation5 + $0x10] sm:$0xff]
    %v55 = vld [vmem:[#allocation5 + $0x18] sm:$0xff]
    %v56 = vld [vmem:[#allocation5 + $0x20] sm:$0xff]
    %v57 = vld [vmem:[#allocation5 + $0x28] sm:$0xff]
    %v58 = vld [vmem:[#allocation5 + $0x30] sm:$0xff]
    %v59 = vld [vmem:[#allocation5 + $0x38] sm:$0xff]
    %v60 = vld [vmem:[#allocation5 + $0x40] sm:$0xff]
    %v61 = vld [vmem:[#allocation5 + $0x48] sm:$0xff]
    %v62 = vld [vmem:[#allocation5 + $0x50] sm:$0xff]
    %v63 = vld [vmem:[#allocation5 + $0x58] sm:$0xff]
    %v64 = vld [vmem:[#allocation5 + $0x60] sm:$0xff]
    %v65 = vld [vmem:[#allocation5 + $0x68] sm:$0xff]
    %v66 = vld [vmem:[#allocation5 + $0x70] sm:$0xff]
    %v67 = vld [vmem:[#allocation5 + $0x78] sm:$0xff]
    %v68 = vld [vmem:[#allocation5 + $0x80] sm:$0xff]
    %v69 = vld [vmem:[#allocation5 + $0x88] sm:$0xff]
    %v70 = vld [vmem:[#allocation5 + $0x90] sm:$0xff]
    %v71 = vld [vmem:[#allocation5 + $0x98] sm:$0xff]
    %v72 = vld [vmem:[#allocation5 + $0xa0] sm:$0xff]
    %v73 = vld [vmem:[#allocation5 + $0xa8] sm:$0xff]
    %v74 = vld [vmem:[#allocation5 + $0xb0] sm:$0xff]
    %v75 = vld [vmem:[#allocation5 + $0xb8] sm:$0xff]
    %v76 = vld [vmem:[#allocation5 + $0xc0] sm:$0xff]
    %v77 = vld [vmem:[#allocation5 + $0xc8] sm:$0xff]
    %v78 = vld [vmem:[#allocation5 + $0xd0] sm:$0xff]
    %v79 = vld [vmem:[#allocation5 + $0xd8] sm:$0xff]
    %v80 = vld [vmem:[#allocation5 + $0xe0] sm:$0xff]
    %v81 = vld [vmem:[#allocation5 + $0xe8] sm:$0xff]
    %v82 = vld [vmem:[#allocation5 + $0xf0] sm:$0xff]
    %v83 = vld [vmem:[#allocation5 + $0xf8] sm:$0xff]
    %v84 = vld [vmem:[#allocation5 + $0x100] sm:$0xff]
    %v85 = vld [vmem:[#allocation5 + $0x108] sm:$0xff]
    %v86 = vld [vmem:[#allocation5 + $0x110] sm:$0xff]
    %v87 = vld [vmem:[#allocation5 + $0x118] sm:$0xff]
    %v88 = vld [vmem:[#allocation5 + $0x120] sm:$0xff]
    %v89 = vld [vmem:[#allocation5 + $0x128] sm:$0xff]
    %v90 = vld [vmem:[#allocation5 + $0x130] sm:$0xff]
    %v91 = vld [vmem:[#allocation5 + $0x138] sm:$0xff]
    %v92 = vld [vmem:[#allocation5 + $0x140] sm:$0xff]
    %v93 = vld [vmem:[#allocation5 + $0x148] sm:$0xff]
    %v94 = vld [vmem:[#allocation5 + $0x150] sm:$0xff]
    %v95 = vld [vmem:[#allocation5 + $0x158] sm:$0xff]
    %v96 = vld [vmem:[#allocation5 + $0x160] sm:$0xff]
    %v97 = vld [vmem:[#allocation5 + $0x168] sm:$0xff]
    %v98 = vld [vmem:[#allocation5 + $0x170] sm:$0xff]
    %v99 = vld [vmem:[#allocation5 + $0x178] sm:$0xff]
    %v100 = vld [vmem:[#allocation5 + $0x180] sm:$0xff]
    %v101 = vld [vmem:[#allocation5 + $0x188] sm:$0xff]
    %v102 = vld [vmem:[#allocation5 + $0x190] sm:$0xff]
    %v103 = vld [vmem:[#allocation5 + $0x198] sm:$0xff]
    %v104 = vld [vmem:[#allocation5 + $0x1a0] sm:$0xff]
    %v105 = vld [vmem:[#allocation5 + $0x1a8] sm:$0xff]
    %v106 = vld [vmem:[#allocation5 + $0x1b0] sm:$0xff]
    %v107 = vld [vmem:[#allocation5 + $0x1b8] sm:$0xff]
    %v108 = vld [vmem:[#allocation5 + $0x1c0] sm:$0xff]
    %v109 = vld [vmem:[#allocation5 + $0x1c8] sm:$0xff]
    %v110 = vld [vmem:[#allocation5 + $0x1d0] sm:$0xff]
    %v111 = vld [vmem:[#allocation5 + $0x1d8] sm:$0xff]
    %v112 = vld [vmem:[#allocation5 + $0x1e0] sm:$0xff]
    %v113 = vld [vmem:[#allocation5 + $0x1e8] sm:$0xff]
    %v114 = vld [vmem:[#allocation5 + $0x1f0] sm:$0xff]
    %v115 = vld [vmem:[#allocation5 + $0x1f8] sm:$0xff]
    %v116 = vld [vmem:[#allocation5 + $0x200] sm:$0xff]
    %v117 = vld [vmem:[#allocation5 + $0x208] sm:$0xff]
    %v118 = vld [vmem:[#allocation5 + $0x210] sm:$0xff]
    %v119 = vld [vmem:[#allocation5 + $0x218] sm:$0xff]
    %v120 = vld [vmem:[#allocation5 + $0x220] sm:$0xff]
    %v121 = vld [vmem:[#allocation5 + $0x228] sm:$0xff]
    %v122 = vld [vmem:[#allocation5 + $0x230] sm:$0xff]
    %v123 = vld [vmem:[#allocation5 + $0x238] sm:$0xff]
    %v124 = vld [vmem:[#allocation5 + $0x240] sm:$0xff]
    %v125 = vld [vmem:[#allocation5 + $0x248] sm:$0xff]
    %v126 = vld [vmem:[#allocation5 + $0x250] sm:$0xff]
    %v127 = vld [vmem:[#allocation5 + $0x258] sm:$0xff]
    %v128 = vld [vmem:[#allocation5 + $0x260] sm:$0xff]
    %v129 = vld [vmem:[#allocation5 + $0x268] sm:$0xff]
    %v130 = vld [vmem:[#allocation5 + $0x270] sm:$0xff]
    %v131 = vld [vmem:[#allocation5 + $0x278] sm:$0xff]
    %v132 = vld [vmem:[#allocation5 + $0x280] sm:$0xff]
    %v133 = vld [vmem:[#allocation5 + $0x288] sm:$0xff]
    %v134 = vld [vmem:[#allocation5 + $0x290] sm:$0xff]
    %v135 = vld [vmem:[#allocation5 + $0x298] sm:$0xff]
    %v136 = vld [vmem:[#allocation5 + $0x2a0] sm:$0xff]
    %v137 = vld [vmem:[#allocation5 + $0x2a8] sm:$0xff]
    %v138 = vld [vmem:[#allocation5 + $0x2b0] sm:$0xff]
    %v139 = vld [vmem:[#allocation5 + $0x2b8] sm:$0xff]
    %v140 = vld [vmem:[#allocation5 + $0x2c0] sm:$0xff]
    %v141 = vld [vmem:[#allocation5 + $0x2c8] sm:$0xff]
    %v142 = vld [vmem:[#allocation5 + $0x2d0] sm:$0xff]
    %v143 = vld [vmem:[#allocation5 + $0x2d8] sm:$0xff]
    %v144 = vld [vmem:[#allocation5 + $0x2e0] sm:$0xff]
    %v145 = vld [vmem:[#allocation5 + $0x2e8] sm:$0xff]
    %v146 = vld [vmem:[#allocation5 + $0x2f0] sm:$0xff]
    %v147 = vld [vmem:[#allocation5 + $0x2f8] sm:$0xff]
    %v148 = vld [vmem:[#allocation5 + $0x300] sm:$0xff]
    %v149 = vld [vmem:[#allocation5 + $0x308] sm:$0xff]
    %v150 = vld [vmem:[#allocation5 + $0x310] sm:$0xff]
    %v151 = vld [vmem:[#allocation5 + $0x318] sm:$0xff]
    %v152 = vld [vmem:[#allocation5 + $0x320] sm:$0xff]
    %v153 = vld [vmem:[#allocation5 + $0x328] sm:$0xff]
    %v154 = vld [vmem:[#allocation5 + $0x330] sm:$0xff]
    %v155 = vld [vmem:[#allocation5 + $0x338] sm:$0xff]
    %v156 = vld [vmem:[#allocation5 + $0x340] sm:$0xff]
    %v157 = vld [vmem:[#allocation5 + $0x348] sm:$0xff]
    %v158 = vld [vmem:[#allocation5 + $0x350] sm:$0xff]
    %v159 = vld [vmem:[#allocation5 + $0x358] sm:$0xff]
    %v160 = vld [vmem:[#allocation5 + $0x360] sm:$0xff]
    %v161 = vld [vmem:[#allocation5 + $0x368] sm:$0xff]
    %v162 = vld [vmem:[#allocation5 + $0x370] sm:$0xff]
    %v163 = vld [vmem:[#allocation5 + $0x378] sm:$0xff]
    %v164 = vld [vmem:[#allocation5 + $0x380] sm:$0xff]
    %v165 = vld [vmem:[#allocation5 + $0x388] sm:$0xff]
    %v166 = vld [vmem:[#allocation5 + $0x390] sm:$0xff]
    %v167 = vld [vmem:[#allocation5 + $0x398] sm:$0xff]
    %v168 = vld [vmem:[#allocation5 + $0x3a0] sm:$0xff]
    %v169 = vld [vmem:[#allocation5 + $0x3a8] sm:$0xff]
    %v170 = vld [vmem:[#allocation5 + $0x3b0] sm:$0xff]
    %v171 = vld [vmem:[#allocation5 + $0x3b8] sm:$0xff]
    %v172 = vld [vmem:[#allocation5 + $0x3c0] sm:$0xff]
    %v173 = vld [vmem:[#allocation5 + $0x3c8] sm:$0xff]
    %v174 = vld [vmem:[#allocation5 + $0x3d0] sm:$0xff]
    %v175 = vld [vmem:[#allocation5 + $0x3d8] sm:$0xff]
    %v176 = vld [vmem:[#allocation5 + $0x3e0] sm:$0xff]
    %v177 = vld [vmem:[#allocation5 + $0x3e8] sm:$0xff]
    %v178 = vld [vmem:[#allocation5 + $0x3f0] sm:$0xff]
    %v179 = vld [vmem:[#allocation5 + $0x3f8] sm:$0xff]
    %v180 = vld [vmem:[#allocation5 + $0x400] sm:$0xff]
    %v181 = vld [vmem:[#allocation5 + $0x408] sm:$0xff]
    %v182 = vld [vmem:[#allocation5 + $0x410] sm:$0xff]
    %v183 = vld [vmem:[#allocation5 + $0x418] sm:$0xff]
    %v184 = vld [vmem:[#allocation5 + $0x420] sm:$0xff]
    %v185 = vld [vmem:[#allocation5 + $0x428] sm:$0xff]
    %v186 = vld [vmem:[#allocation5 + $0x430] sm:$0xff]
    %v187 = vld [vmem:[#allocation5 + $0x438] sm:$0xff]
    %v188 = vld [vmem:[#allocation5 + $0x440] sm:$0xff]
    %v189 = vld [vmem:[#allocation5 + $0x448] sm:$0xff]
    %v190 = vld [vmem:[#allocation5 + $0x450] sm:$0xff]
    %v191 = vld [vmem:[#allocation5 + $0x458] sm:$0xff]
    %v192 = vld [vmem:[#allocation5 + $0x460] sm:$0xff]
    %v193 = vld [vmem:[#allocation5 + $0x468] sm:$0xff]
    %v194 = vld [vmem:[#allocation5 + $0x470] sm:$0xff]
    %v195 = vld [vmem:[#allocation5 + $0x478] sm:$0xff]
    %v196 = vld [vmem:[#allocation5 + $0x480] sm:$0xff]
    %v197 = vld [vmem:[#allocation5 + $0x488] sm:$0xff]
    %v198 = vld [vmem:[#allocation5 + $0x490] sm:$0xff]
    %v199 = vld [vmem:[#allocation5 + $0x498] sm:$0xff]
    %v200 = vld [vmem:[#allocation5 + $0x4a0] sm:$0xff]
    %v201 = vld [vmem:[#allocation5 + $0x4a8] sm:$0xff]
    %v202 = vld [vmem:[#allocation5 + $0x4b0] sm:$0xff]
    %v203 = vld [vmem:[#allocation5 + $0x4b8] sm:$0xff]
    %v204 = vld [vmem:[#allocation5 + $0x4c0] sm:$0xff]
    %v205 = vld [vmem:[#allocation5 + $0x4c8] sm:$0xff]
    %v206 = vld [vmem:[#allocation5 + $0x4d0] sm:$0xff]
    %v207 = vld [vmem:[#allocation5 + $0x4d8] sm:$0xff]
    %v208 = vld [vmem:[#allocation5 + $0x4e0] sm:$0xff]
    %v209 = vld [vmem:[#allocation5 + $0x4e8] sm:$0xff]
    %v210 = vld [vmem:[#allocation5 + $0x4f0] sm:$0xff]
    %v211 = vld [vmem:[#allocation5 + $0x4f8] sm:$0xff]
    %v212 = vld [vmem:[#allocation5 + $0x500] sm:$0xff]
    %v213 = vld [vmem:[#allocation5 + $0x508] sm:$0xff]
    %v214 = vld [vmem:[#allocation5 + $0x510] sm:$0xff]
    %v215 = vld [vmem:[#allocation5 + $0x518] sm:$0xff]
    %v216 = vld [vmem:[#allocation5 + $0x520] sm:$0xff]
    %v217 = vld [vmem:[#allocation5 + $0x528] sm:$0xff]
    %v218 = vld [vmem:[#allocation5 + $0x530] sm:$0xff]
    %v219 = vld [vmem:[#allocation5 + $0x538] sm:$0xff]
    %v220 = vld [vmem:[#allocation5 + $0x540] sm:$0xff]
    %v221 = vld [vmem:[#allocation5 + $0x548] sm:$0xff]
    %v222 = vld [vmem:[#allocation5 + $0x550] sm:$0xff]
    %v223 = vld [vmem:[#allocation5 + $0x558] sm:$0xff]
    %v224 = vld [vmem:[#allocation5 + $0x560] sm:$0xff]
    %v225 = vld [vmem:[#allocation5 + $0x568] sm:$0xff]
    %v226 = vld [vmem:[#allocation5 + $0x570] sm:$0xff]
    %v227 = vld [vmem:[#allocation5 + $0x578] sm:$0xff]
    %v228 = vld [vmem:[#allocation5 + $0x580] sm:$0xff]
    %v229 = vld [vmem:[#allocation5 + $0x588] sm:$0xff]
    %v230 = vld [vmem:[#allocation5 + $0x590] sm:$0xff]
    %v231 = vld [vmem:[#allocation5 + $0x598] sm:$0xff]
    %v232 = vld [vmem:[#allocation5 + $0x5a0] sm:$0xff]
    %v233 = vld [vmem:[#allocation5 + $0x5a8] sm:$0xff]
    %v234 = vld [vmem:[#allocation5 + $0x5b0] sm:$0xff]
    %v235 = vld [vmem:[#allocation5 + $0x5b8] sm:$0xff]
    %v236 = vld [vmem:[#allocation5 + $0x5c0] sm:$0xff]
    %v237 = vld [vmem:[#allocation5 + $0x5c8] sm:$0xff]
    %v238 = vld [vmem:[#allocation5 + $0x5d0] sm:$0xff]
    %v239 = vld [vmem:[#allocation5 + $0x5d8] sm:$0xff]
    %v240 = vld [vmem:[#allocation5 + $0x5e0] sm:$0xff]
    %v241 = vld [vmem:[#allocation5 + $0x5e8] sm:$0xff]
    %v242 = vld [vmem:[#allocation5 + $0x5f0] sm:$0xff]
    %v243 = vld [vmem:[#allocation5 + $0x5f8] sm:$0xff]
    %v244 = vld [vmem:[#allocation5 + $0x600] sm:$0xff]
    %v245 = vld [vmem:[#allocation5 + $0x608] sm:$0xff]
    %v246 = vld [vmem:[#allocation5 + $0x610] sm:$0xff]
    %v247 = vld [vmem:[#allocation5 + $0x618] sm:$0xff]
    %v248 = vld [vmem:[#allocation5 + $0x620] sm:$0xff]
    %v249 = vld [vmem:[#allocation5 + $0x628] sm:$0xff]
    %v250 = vld [vmem:[#allocation5 + $0x630] sm:$0xff]
    %v251 = vld [vmem:[#allocation5 + $0x638] sm:$0xff]
    %v252 = vld [vmem:[#allocation5 + $0x640] sm:$0xff]
    %v253 = vld [vmem:[#allocation5 + $0x648] sm:$0xff]
    %v254 = vld [vmem:[#allocation5 + $0x650] sm:$0xff]
    %v255 = vld [vmem:[#allocation5 + $0x658] sm:$0xff]
    %v256 = vld [vmem:[#allocation5 + $0x660] sm:$0xff]
    %v257 = vld [vmem:[#allocation5 + $0x668] sm:$0xff]
    %v258 = vld [vmem:[#allocation5 + $0x670] sm:$0xff]
    %v259 = vld [vmem:[#allocation5 + $0x678] sm:$0xff]
    %v260 = vld [vmem:[#allocation5 + $0x680] sm:$0xff]
    %v261 = vld [vmem:[#allocation5 + $0x688] sm:$0xff]
    %v262 = vld [vmem:[#allocation5 + $0x690] sm:$0xff]
    %v263 = vld [vmem:[#allocation5 + $0x698] sm:$0xff]
    %v264 = vld [vmem:[#allocation5 + $0x6a0] sm:$0xff]
    %v265 = vld [vmem:[#allocation5 + $0x6a8] sm:$0xff]
    %v266 = vld [vmem:[#allocation5 + $0x6b0] sm:$0xff]
    %v267 = vld [vmem:[#allocation5 + $0x6b8] sm:$0xff]
    %v268 = vld [vmem:[#allocation5 + $0x6c0] sm:$0xff]
    %v269 = vld [vmem:[#allocation5 + $0x6c8] sm:$0xff]
    %v270 = vld [vmem:[#allocation5 + $0x6d0] sm:$0xff]
    %v271 = vld [vmem:[#allocation5 + $0x6d8] sm:$0xff]
    %v272 = vld [vmem:[#allocation5 + $0x6e0] sm:$0xff]
    %v273 = vld [vmem:[#allocation5 + $0x6e8] sm:$0xff]
    %v274 = vld [vmem:[#allocation5 + $0x6f0] sm:$0xff]
    %v275 = vld [vmem:[#allocation5 + $0x6f8] sm:$0xff]
    %v276 = vld [vmem:[#allocation5 + $0x700] sm:$0xff]
    %v277 = vld [vmem:[#allocation5 + $0x708] sm:$0xff]
    %v278 = vld [vmem:[#allocation5 + $0x710] sm:$0xff]
    %v279 = vld [vmem:[#allocation5 + $0x718] sm:$0xff]
    %v280 = vld [vmem:[#allocation5 + $0x720] sm:$0xff]
    %v281 = vld [vmem:[#allocation5 + $0x728] sm:$0xff]
    %v282 = vld [vmem:[#allocation5 + $0x730] sm:$0xff]
    %v283 = vld [vmem:[#allocation5 + $0x738] sm:$0xff]
    %v284 = vld [vmem:[#allocation5 + $0x740] sm:$0xff]
    %v285 = vld [vmem:[#allocation5 + $0x748] sm:$0xff]
    %v286 = vld [vmem:[#allocation5 + $0x750] sm:$0xff]
    %v287 = vld [vmem:[#allocation5 + $0x758] sm:$0xff]
    %v288 = vld [vmem:[#allocation5 + $0x760] sm:$0xff]
    %v289 = vld [vmem:[#allocation5 + $0x768] sm:$0xff]
    %v290 = vld [vmem:[#allocation5 + $0x770] sm:$0xff]
    %v291 = vld [vmem:[#allocation5 + $0x778] sm:$0xff]
    %v292 = vld [vmem:[#allocation5 + $0x780] sm:$0xff]
    %v293 = vld [vmem:[#allocation5 + $0x788] sm:$0xff]
    %v294 = vld [vmem:[#allocation5 + $0x790] sm:$0xff]
    %v295 = vld [vmem:[#allocation5 + $0x798] sm:$0xff]
    %v296 = vld [vmem:[#allocation5 + $0x7a0] sm:$0xff]
    %v297 = vld [vmem:[#allocation5 + $0x7a8] sm:$0xff]
    %v298 = vld [vmem:[#allocation5 + $0x7b0] sm:$0xff]
    %v299 = vld [vmem:[#allocation5 + $0x7b8] sm:$0xff]
    %v300 = vld [vmem:[#allocation5 + $0x7c0] sm:$0xff]
    %v301 = vld [vmem:[#allocation5 + $0x7c8] sm:$0xff]
    %v302 = vld [vmem:[#allocation5 + $0x7d0] sm:$0xff]
    %v303 = vld [vmem:[#allocation5 + $0x7d8] sm:$0xff]
    %v304 = vld [vmem:[#allocation5 + $0x7e0] sm:$0xff]
    %v305 = vld [vmem:[#allocation5 + $0x7e8] sm:$0xff]
    %v306 = vld [vmem:[#allocation5 + $0x7f0] sm:$0xff]
    %v307 = vld [vmem:[#allocation5 + $0x7f8] sm:$0xff]
    %v308 = vld [vmem:[#allocation5 + $0x800] sm:$0xff]
    %v309 = vld [vmem:[#allocation5 + $0x808] sm:$0xff]
    %v310 = vld [vmem:[#allocation5 + $0x810] sm:$0xff]
    %v311 = vld [vmem:[#allocation5 + $0x818] sm:$0xff]
    %v312 = vld [vmem:[#allocation5 + $0x820] sm:$0xff]
    %v313 = vld [vmem:[#allocation5 + $0x828] sm:$0xff]
    %v314 = vld [vmem:[#allocation5 + $0x830] sm:$0xff]
    %v315 = vld [vmem:[#allocation5 + $0x838] sm:$0xff]
    %v316 = vld [vmem:[#allocation5 + $0x840] sm:$0xff]
    %v317 = vld [vmem:[#allocation5 + $0x848] sm:$0xff]
    %v318 = vld [vmem:[#allocation5 + $0x850] sm:$0xff]
    %v319 = vld [vmem:[#allocation5 + $0x858] sm:$0xff]
    %v320 = vld [vmem:[#allocation5 + $0x860] sm:$0xff]
    %v321 = vld [vmem:[#allocation5 + $0x868] sm:$0xff]
    %v322 = vld [vmem:[#allocation5 + $0x870] sm:$0xff]
    %v323 = vld [vmem:[#allocation5 + $0x878] sm:$0xff]
    %v324 = vld [vmem:[#allocation5 + $0x880] sm:$0xff]
    %v325 = vld [vmem:[#allocation5 + $0x888] sm:$0xff]
    %v326 = vld [vmem:[#allocation5 + $0x890] sm:$0xff]
    %v327 = vld [vmem:[#allocation5 + $0x898] sm:$0xff]
    %v328 = vld [vmem:[#allocation5 + $0x8a0] sm:$0xff]
    %v329 = vld [vmem:[#allocation5 + $0x8a8] sm:$0xff]
    %v330 = vld [vmem:[#allocation5 + $0x8b0] sm:$0xff]
    %v331 = vld [vmem:[#allocation5 + $0x8b8] sm:$0xff]
    %v332 = vld [vmem:[#allocation5 + $0x8c0] sm:$0xff]
    %v333 = vld [vmem:[#allocation5 + $0x8c8] sm:$0xff]
    %v334 = vld [vmem:[#allocation5 + $0x8d0] sm:$0xff]
    %v335 = vld [vmem:[#allocation5 + $0x8d8] sm:$0xff]
    %v336 = vld [vmem:[#allocation5 + $0x8e0] sm:$0xff]
    %v337 = vld [vmem:[#allocation5 + $0x8e8] sm:$0xff]
    %v338 = vld [vmem:[#allocation5 + $0x8f0] sm:$0xff]
    %v339 = vld [vmem:[#allocation5 + $0x8f8] sm:$0xff]
    %v340 = vld [vmem:[#allocation5 + $0x900] sm:$0xff]
    %v341 = vld [vmem:[#allocation5 + $0x908] sm:$0xff]
    %v342 = vld [vmem:[#allocation5 + $0x910] sm:$0xff]
    %v343 = vld [vmem:[#allocation5 + $0x918] sm:$0xff]
    %v344 = vld [vmem:[#allocation5 + $0x920] sm:$0xff]
    %v345 = vld [vmem:[#allocation5 + $0x928] sm:$0xff]
    %v346 = vld [vmem:[#allocation5 + $0x930] sm:$0xff]
    %v347 = vld [vmem:[#allocation5 + $0x938] sm:$0xff]
    %v348 = vld [vmem:[#allocation5 + $0x940] sm:$0xff]
    %v349 = vld [vmem:[#allocation5 + $0x948] sm:$0xff]
    %v350 = vld [vmem:[#allocation5 + $0x950] sm:$0xff]
    %v351 = vld [vmem:[#allocation5 + $0x958] sm:$0xff]
    %v352 = vld [vmem:[#allocation5 + $0x960] sm:$0xff]
    %v353 = vld [vmem:[#allocation5 + $0x968] sm:$0xff]
    %v354 = vld [vmem:[#allocation5 + $0x970] sm:$0xff]
    %v355 = vld [vmem:[#allocation5 + $0x978] sm:$0xff]
    %v356 = vld [vmem:[#allocation5 + $0x980] sm:$0xff]
    %v357 = vld [vmem:[#allocation5 + $0x988] sm:$0xff]
    %v358 = vld [vmem:[#allocation5 + $0x990] sm:$0xff]
    %v359 = vld [vmem:[#allocation5 + $0x998] sm:$0xff]
    %v360 = vld [vmem:[#allocation5 + $0x9a0] sm:$0xff]
    %v361 = vld [vmem:[#allocation5 + $0x9a8] sm:$0xff]
    %v362 = vld [vmem:[#allocation5 + $0x9b0] sm:$0xff]
    %v363 = vld [vmem:[#allocation5 + $0x9b8] sm:$0xff]
    %v364 = vld [vmem:[#allocation5 + $0x9c0] sm:$0xff]
    %v365 = vld [vmem:[#allocation5 + $0x9c8] sm:$0xff]
    %v366 = vld [vmem:[#allocation5 + $0x9d0] sm:$0xff]
    %v367 = vld [vmem:[#allocation5 + $0x9d8] sm:$0xff]
    %v368 = vld [vmem:[#allocation5 + $0x9e0] sm:$0xff]
    %v369 = vld [vmem:[#allocation5 + $0x9e8] sm:$0xff]
    %v370 = vld [vmem:[#allocation5 + $0x9f0] sm:$0xff]
    %v371 = vld [vmem:[#allocation5 + $0x9f8] sm:$0xff]
    %v372 = vld [vmem:[#allocation5 + $0xa00] sm:$0xff]
    %v373 = vld [vmem:[#allocation5 + $0xa08] sm:$0xff]
    %v374 = vld [vmem:[#allocation5 + $0xa10] sm:$0xff]
    %v375 = vld [vmem:[#allocation5 + $0xa18] sm:$0xff]
    %v376 = vld [vmem:[#allocation5 + $0xa20] sm:$0xff]
    %v377 = vld [vmem:[#allocation5 + $0xa28] sm:$0xff]
    %v378 = vld [vmem:[#allocation5 + $0xa30] sm:$0xff]
    %v379 = vld [vmem:[#allocation5 + $0xa38] sm:$0xff]
    %v380 = vld [vmem:[#allocation5 + $0xa40] sm:$0xff]
    %v381 = vld [vmem:[#allocation5 + $0xa48] sm:$0xff]
    %v382 = vld [vmem:[#allocation5 + $0xa50] sm:$0xff]
    %v383 = vld [vmem:[#allocation5 + $0xa58] sm:$0xff]
    %v384 = vld [vmem:[#allocation5 + $0xa60] sm:$0xff]
    %v385 = vld [vmem:[#allocation5 + $0xa68] sm:$0xff]
    %v386 = vld [vmem:[#allocation5 + $0xa70] sm:$0xff]
    %v387 = vld [vmem:[#allocation5 + $0xa78] sm:$0xff]
    %v388 = vld [vmem:[#allocation5 + $0xa80] sm:$0xff]
    %v389 = vld [vmem:[#allocation5 + $0xa88] sm:$0xff]
    %v390 = vld [vmem:[#allocation5 + $0xa90] sm:$0xff]
    %v391 = vld [vmem:[#allocation5 + $0xa98] sm:$0xff]
    %v392 = vld [vmem:[#allocation5 + $0xaa0] sm:$0xff]
    %v393 = vld [vmem:[#allocation5 + $0xaa8] sm:$0xff]
    %v394 = vld [vmem:[#allocation5 + $0xab0] sm:$0xff]
    %v395 = vld [vmem:[#allocation5 + $0xab8] sm:$0xff]
    %v396 = vld [vmem:[#allocation5 + $0xac0] sm:$0xff]
    %v397 = vld [vmem:[#allocation5 + $0xac8] sm:$0xff]
    %v398 = vld [vmem:[#allocation5 + $0xad0] sm:$0xff]
    %v399 = vld [vmem:[#allocation5 + $0xad8] sm:$0xff]
    %v400 = vld [vmem:[#allocation5 + $0xae0] sm:$0xff]
    %v401 = vld [vmem:[#allocation5 + $0xae8] sm:$0xff]
    %v402 = vld [vmem:[#allocation5 + $0xaf0] sm:$0xff]
    %v403 = vld [vmem:[#allocation5 + $0xaf8] sm:$0xff]
    %v404 = vld [vmem:[#allocation5 + $0xb00] sm:$0xff]
    %v405 = vld [vmem:[#allocation5 + $0xb08] sm:$0xff]
    %v406 = vld [vmem:[#allocation5 + $0xb10] sm:$0xff]
    %v407 = vld [vmem:[#allocation5 + $0xb18] sm:$0xff]
    %v408 = vld [vmem:[#allocation5 + $0xb20] sm:$0xff]
    %v409 = vld [vmem:[#allocation5 + $0xb28] sm:$0xff]
    %v410 = vld [vmem:[#allocation5 + $0xb30] sm:$0xff]
    %v411 = vld [vmem:[#allocation5 + $0xb38] sm:$0xff]
    %v412 = vld [vmem:[#allocation5 + $0xb40] sm:$0xff]
    %v413 = vld [vmem:[#allocation5 + $0xb48] sm:$0xff]
    %v414 = vld [vmem:[#allocation5 + $0xb50] sm:$0xff]
    %v415 = vld [vmem:[#allocation5 + $0xb58] sm:$0xff]
    %v416 = vld [vmem:[#allocation5 + $0xb60] sm:$0xff]
    %v417 = vld [vmem:[#allocation5 + $0xb68] sm:$0xff]
    %v418 = vld [vmem:[#allocation5 + $0xb70] sm:$0xff]
    %v419 = vld [vmem:[#allocation5 + $0xb78] sm:$0xff]
    %v420 = vld [vmem:[#allocation5 + $0xb80] sm:$0xff]
    %v421 = vld [vmem:[#allocation5 + $0xb88] sm:$0xff]
    %v422 = vld [vmem:[#allocation5 + $0xb90] sm:$0xff]
    %v423 = vld [vmem:[#allocation5 + $0xb98] sm:$0xff]
    %v424 = vld [vmem:[#allocation5 + $0xba0] sm:$0xff]
    %v425 = vld [vmem:[#allocation5 + $0xba8] sm:$0xff]
    %v426 = vld [vmem:[#allocation5 + $0xbb0] sm:$0xff]
    %v427 = vld [vmem:[#allocation5 + $0xbb8] sm:$0xff]
    %v428 = vld [vmem:[#allocation5 + $0xbc0] sm:$0xff]
    %v429 = vld [vmem:[#allocation5 + $0xbc8] sm:$0xff]
    %v430 = vld [vmem:[#allocation5 + $0xbd0] sm:$0xff]
    %v431 = vld [vmem:[#allocation5 + $0xbd8] sm:$0xff]
    %v432 = vld [vmem:[#allocation5 + $0xbe0] sm:$0xff]
    %v433 = vld [vmem:[#allocation5 + $0xbe8] sm:$0xff]
    %v434 = vld [vmem:[#allocation5 + $0xbf0] sm:$0xff]
    %v435 = vld [vmem:[#allocation5 + $0xbf8] sm:$0xff]
    %v436 = vld [vmem:[#allocation5 + $0xc00] sm:$0xff]
    %v437 = vld [vmem:[#allocation5 + $0xc08] sm:$0xff]
    %v438 = vld [vmem:[#allocation5 + $0xc10] sm:$0xff]
    %v439 = vld [vmem:[#allocation5 + $0xc18] sm:$0xff]
    %v440 = vld [vmem:[#allocation5 + $0xc20] sm:$0xff]
    %v441 = vld [vmem:[#allocation5 + $0xc28] sm:$0xff]
    %v442 = vld [vmem:[#allocation5 + $0xc30] sm:$0xff]
    %v443 = vld [vmem:[#allocation5 + $0xc38] sm:$0xff]
    %v444 = vld [vmem:[#allocation5 + $0xc40] sm:$0xff]
    %v445 = vld [vmem:[#allocation5 + $0xc48] sm:$0xff]
    %v446 = vld [vmem:[#allocation5 + $0xc50] sm:$0xff]
    %v447 = vld [vmem:[#allocation5 + $0xc58] sm:$0xff]
    %v448 = vld [vmem:[#allocation5 + $0xc60] sm:$0xff]
    %v449 = vld [vmem:[#allocation5 + $0xc68] sm:$0xff]
    %v450 = vld [vmem:[#allocation5 + $0xc70] sm:$0xff]
    %v451 = vld [vmem:[#allocation5 + $0xc78] sm:$0xff]
    %v452 = vld [vmem:[#allocation5 + $0xc80] sm:$0xff]
    %v453 = vld [vmem:[#allocation5 + $0xc88] sm:$0xff]
    %v454 = vld [vmem:[#allocation5 + $0xc90] sm:$0xff]
    %v455 = vld [vmem:[#allocation5 + $0xc98] sm:$0xff]
    %v456 = vld [vmem:[#allocation5 + $0xca0] sm:$0xff]
    %v457 = vld [vmem:[#allocation5 + $0xca8] sm:$0xff]
    %v458 = vld [vmem:[#allocation5 + $0xcb0] sm:$0xff]
    %v459 = vld [vmem:[#allocation5 + $0xcb8] sm:$0xff]
    %v460 = vld [vmem:[#allocation5 + $0xcc0] sm:$0xff]
    %v461 = vld [vmem:[#allocation5 + $0xcc8] sm:$0xff]
    %v462 = vld [vmem:[#allocation5 + $0xcd0] sm:$0xff]
    %v463 = vld [vmem:[#allocation5 + $0xcd8] sm:$0xff]
    %v464 = vld [vmem:[#allocation5 + $0xce0] sm:$0xff]
    %v465 = vld [vmem:[#allocation5 + $0xce8] sm:$0xff]
    %v466 = vld [vmem:[#allocation5 + $0xcf0] sm:$0xff]
    %v467 = vld [vmem:[#allocation5 + $0xcf8] sm:$0xff]
    %v468 = vld [vmem:[#allocation5 + $0xd00] sm:$0xff]
    %v469 = vld [vmem:[#allocation5 + $0xd08] sm:$0xff]
    %v470 = vld [vmem:[#allocation5 + $0xd10] sm:$0xff]
    %v471 = vld [vmem:[#allocation5 + $0xd18] sm:$0xff]
    %v472 = vld [vmem:[#allocation5 + $0xd20] sm:$0xff]
    %v473 = vld [vmem:[#allocation5 + $0xd28] sm:$0xff]
    %v474 = vld [vmem:[#allocation5 + $0xd30] sm:$0xff]
    %v475 = vld [vmem:[#allocation5 + $0xd38] sm:$0xff]
    %v476 = vld [vmem:[#allocation5 + $0xd40] sm:$0xff]
    %v477 = vld [vmem:[#allocation5 + $0xd48] sm:$0xff]
    %v478 = vld [vmem:[#allocation5 + $0xd50] sm:$0xff]
    %v479 = vld [vmem:[#allocation5 + $0xd58] sm:$0xff]
    %v480 = vld [vmem:[#allocation5 + $0xd60] sm:$0xff]
    %v481 = vld [vmem:[#allocation5 + $0xd68] sm:$0xff]
    %v482 = vld [vmem:[#allocation5 + $0xd70] sm:$0xff]
    %v483 = vld [vmem:[#allocation5 + $0xd78] sm:$0xff]
    %v484 = vld [vmem:[#allocation5 + $0xd80] sm:$0xff]
    %v485 = vld [vmem:[#allocation5 + $0xd88] sm:$0xff]
    %v486 = vld [vmem:[#allocation5 + $0xd90] sm:$0xff]
    %v487 = vld [vmem:[#allocation5 + $0xd98] sm:$0xff]
    %v488 = vld [vmem:[#allocation5 + $0xda0] sm:$0xff]
    %v489 = vld [vmem:[#allocation5 + $0xda8] sm:$0xff]
    %v490 = vld [vmem:[#allocation5 + $0xdb0] sm:$0xff]
    %v491 = vld [vmem:[#allocation5 + $0xdb8] sm:$0xff]
    %v492 = vld [vmem:[#allocation5 + $0xdc0] sm:$0xff]
    %v493 = vld [vmem:[#allocation5 + $0xdc8] sm:$0xff]
    %v494 = vld [vmem:[#allocation5 + $0xdd0] sm:$0xff]
    %v495 = vld [vmem:[#allocation5 + $0xdd8] sm:$0xff]
    %v496 = vld [vmem:[#allocation5 + $0xde0] sm:$0xff]
    %v497 = vld [vmem:[#allocation5 + $0xde8] sm:$0xff]
    %v498 = vld [vmem:[#allocation5 + $0xdf0] sm:$0xff]
    %v499 = vld [vmem:[#allocation5 + $0xdf8] sm:$0xff]
    %v500 = vld [vmem:[#allocation5 + $0xe00] sm:$0xff]
    %v501 = vld [vmem:[#allocation5 + $0xe08] sm:$0xff]
    %v502 = vld [vmem:[#allocation5 + $0xe10] sm:$0xff]
    %v503 = vld [vmem:[#allocation5 + $0xe18] sm:$0xff]
    %v504 = vld [vmem:[#allocation5 + $0xe20] sm:$0xff]
    %v505 = vld [vmem:[#allocation5 + $0xe28] sm:$0xff]
    %v506 = vld [vmem:[#allocation5 + $0xe30] sm:$0xff]
    %v507 = vld [vmem:[#allocation5 + $0xe38] sm:$0xff]
    %v508 = vld [vmem:[#allocation5 + $0xe40] sm:$0xff]
    %v509 = vld [vmem:[#allocation5 + $0xe48] sm:$0xff]
    %v510 = vld [vmem:[#allocation5 + $0xe50] sm:$0xff]
    %v511 = vld [vmem:[#allocation5 + $0xe58] sm:$0xff]
    %v512 = vld [vmem:[#allocation5 + $0xe60] sm:$0xff]
    %v513 = vld [vmem:[#allocation5 + $0xe68] sm:$0xff]
    %v514 = vld [vmem:[#allocation5 + $0xe70] sm:$0xff]
    %v515 = vld [vmem:[#allocation5 + $0xe78] sm:$0xff]
    %v516 = vld [vmem:[#allocation5 + $0xe80] sm:$0xff]
    %v517 = vld [vmem:[#allocation5 + $0xe88] sm:$0xff]
    %v518 = vld [vmem:[#allocation5 + $0xe90] sm:$0xff]
    %v519 = vld [vmem:[#allocation5 + $0xe98] sm:$0xff]
    %v520 = vld [vmem:[#allocation5 + $0xea0] sm:$0xff]
    %v521 = vld [vmem:[#allocation5 + $0xea8] sm:$0xff]
    %v522 = vld [vmem:[#allocation5 + $0xeb0] sm:$0xff]
    %v523 = vld [vmem:[#allocation5 + $0xeb8] sm:$0xff]
    %v524 = vld [vmem:[#allocation5 + $0xec0] sm:$0xff]
    %v525 = vld [vmem:[#allocation5 + $0xec8] sm:$0xff]
    %v526 = vld [vmem:[#allocation5 + $0xed0] sm:$0xff]
    %v527 = vld [vmem:[#allocation5 + $0xed8] sm:$0xff]
    %v528 = vld [vmem:[#allocation5 + $0xee0] sm:$0xff]
    %v529 = vld [vmem:[#allocation5 + $0xee8] sm:$0xff]
    %v530 = vld [vmem:[#allocation5 + $0xef0] sm:$0xff]
    %v531 = vld [vmem:[#allocation5 + $0xef8] sm:$0xff]
    %v532 = vld [vmem:[#allocation5 + $0xf00] sm:$0xff]
    %v533 = vld [vmem:[#allocation5 + $0xf08] sm:$0xff]
    %v534 = vld [vmem:[#allocation5 + $0xf10] sm:$0xff]
    %v535 = vld [vmem:[#allocation5 + $0xf18] sm:$0xff]
    %v536 = vld [vmem:[#allocation5 + $0xf20] sm:$0xff]
    %v537 = vld [vmem:[#allocation5 + $0xf28] sm:$0xff]
    %v538 = vld [vmem:[#allocation5 + $0xf30] sm:$0xff]
    %v539 = vld [vmem:[#allocation5 + $0xf38] sm:$0xff]
    %v540 = vld [vmem:[#allocation5 + $0xf40] sm:$0xff]
    %v541 = vld [vmem:[#allocation5 + $0xf48] sm:$0xff]
    %v542 = vld [vmem:[#allocation5 + $0xf50] sm:$0xff]
    %v543 = vld [vmem:[#allocation5 + $0xf58] sm:$0xff]
    %v544 = vld [vmem:[#allocation5 + $0xf60] sm:$0xff]
    %v545 = vld [vmem:[#allocation5 + $0xf68] sm:$0xff]
    %v546 = vld [vmem:[#allocation5 + $0xf70] sm:$0xff]
    %v547 = vld [vmem:[#allocation5 + $0xf78] sm:$0xff]
    %v548 = vld [vmem:[#allocation5 + $0xf80] sm:$0xff]
    %v549 = vld [vmem:[#allocation5 + $0xf88] sm:$0xff]
    %v550 = vld [vmem:[#allocation5 + $0xf90] sm:$0xff]
    %v551 = vld [vmem:[#allocation5 + $0xf98] sm:$0xff]
    %v552 = vld [vmem:[#allocation5 + $0xfa0] sm:$0xff]
    %v553 = vld [vmem:[#allocation5 + $0xfa8] sm:$0xff]
    %v554 = vld [vmem:[#allocation5 + $0xfb0] sm:$0xff]
    %v555 = vld [vmem:[#allocation5 + $0xfb8] sm:$0xff]
    %v556 = vld [vmem:[#allocation5 + $0xfc0] sm:$0xff]
    %v557 = vld [vmem:[#allocation5 + $0xfc8] sm:$0xff]
    %v558 = vld [vmem:[#allocation5 + $0xfd0] sm:$0xff]
    %v559 = vld [vmem:[#allocation5 + $0xfd8] sm:$0xff]
    %v560 = vld [vmem:[#allocation5 + $0xfe0] sm:$0xff]
    %v561 = vld [vmem:[#allocation5 + $0xfe8] sm:$0xff]
    %v562 = vld [vmem:[#allocation5 + $0xff0] sm:$0xff]
    %v563 = vld [vmem:[#allocation5 + $0xff8] sm:$0xff]
    %v564 = vld [vmem:[#allocation5 + $0x1000] sm:$0xff]
    %v565 = vld [vmem:[#allocation5 + $0x1008] sm:$0xff]
    %v566 = vld [vmem:[#allocation5 + $0x1010] sm:$0xff]
    %v567 = vld [vmem:[#allocation5 + $0x1018] sm:$0xff]
    %v568 = vld [vmem:[#allocation5 + $0x1020] sm:$0xff]
    %v569 = vld [vmem:[#allocation5 + $0x1028] sm:$0xff]
    %v570 = vld [vmem:[#allocation5 + $0x1030] sm:$0xff]
    %v571 = vld [vmem:[#allocation5 + $0x1038] sm:$0xff]
    %v572 = vld [vmem:[#allocation5 + $0x1040] sm:$0xff]
    %v573 = vld [vmem:[#allocation5 + $0x1048] sm:$0xff]
    %v574 = vld [vmem:[#allocation5 + $0x1050] sm:$0xff]
    %v575 = vld [vmem:[#allocation5 + $0x1058] sm:$0xff]
    %v576 = vld [vmem:[#allocation5 + $0x1060] sm:$0xff]
    %v577 = vld [vmem:[#allocation5 + $0x1068] sm:$0xff]
    %v578 = vld [vmem:[#allocation5 + $0x1070] sm:$0xff]
    %v579 = vld [vmem:[#allocation5 + $0x1078] sm:$0xff]
    %v580 = vld [vmem:[#allocation5 + $0x1080] sm:$0xff]
    %v581 = vld [vmem:[#allocation5 + $0x1088] sm:$0xff]
    %v582 = vld [vmem:[#allocation5 + $0x1090] sm:$0xff]
    %v583 = vld [vmem:[#allocation5 + $0x1098] sm:$0xff]
    %v584 = vld [vmem:[#allocation5 + $0x10a0] sm:$0xff]
    %v585 = vld [vmem:[#allocation5 + $0x10a8] sm:$0xff]
    %v586 = vld [vmem:[#allocation5 + $0x10b0] sm:$0xff]
    %v587 = vld [vmem:[#allocation5 + $0x10b8] sm:$0xff]
    %v588 = vld [vmem:[#allocation5 + $0x10c0] sm:$0xff]
    %v589 = vld [vmem:[#allocation5 + $0x10c8] sm:$0xff]
    %v590 = vld [vmem:[#allocation5 + $0x10d0] sm:$0xff]
    %v591 = vld [vmem:[#allocation5 + $0x10d8] sm:$0xff]
    %v592 = vld [vmem:[#allocation5 + $0x10e0] sm:$0xff]
    %v593 = vld [vmem:[#allocation5 + $0x10e8] sm:$0xff]
    %v594 = vld [vmem:[#allocation5 + $0x10f0] sm:$0xff]
    %v595 = vld [vmem:[#allocation5 + $0x10f8] sm:$0xff]
    %v596 = vld [vmem:[#allocation5 + $0x1100] sm:$0xff]
    %v597 = vld [vmem:[#allocation5 + $0x1108] sm:$0xff]
    %v598 = vld [vmem:[#allocation5 + $0x1110] sm:$0xff]
    %v599 = vld [vmem:[#allocation5 + $0x1118] sm:$0xff]
    %v600 = vld [vmem:[#allocation5 + $0x1120] sm:$0xff]
    %v601 = vld [vmem:[#allocation5 + $0x1128] sm:$0xff]
    %v602 = vld [vmem:[#allocation5 + $0x1130] sm:$0xff]
    %v603 = vld [vmem:[#allocation5 + $0x1138] sm:$0xff]
    %v604 = vld [vmem:[#allocation5 + $0x1140] sm:$0xff]
    %v605 = vld [vmem:[#allocation5 + $0x1148] sm:$0xff]
    %v606 = vld [vmem:[#allocation5 + $0x1150] sm:$0xff]
    %v607 = vld [vmem:[#allocation5 + $0x1158] sm:$0xff]
    %v608 = vld [vmem:[#allocation5 + $0x1160] sm:$0xff]
    %v609 = vld [vmem:[#allocation5 + $0x1168] sm:$0xff]
    %v610 = vld [vmem:[#allocation5 + $0x1170] sm:$0xff]
    %v611 = vld [vmem:[#allocation5 + $0x1178] sm:$0xff]
    %v612 = vld [vmem:[#allocation5 + $0x1180] sm:$0xff]
    %v613 = vld [vmem:[#allocation5 + $0x1188] sm:$0xff]
    %v614 = vld [vmem:[#allocation5 + $0x1190] sm:$0xff]
    %v615 = vld [vmem:[#allocation5 + $0x1198] sm:$0xff]
    %v616 = vld [vmem:[#allocation5 + $0x11a0] sm:$0xff]
    %v617 = vld [vmem:[#allocation5 + $0x11a8] sm:$0xff]
    %v618 = vld [vmem:[#allocation5 + $0x11b0] sm:$0xff]
    %v619 = vld [vmem:[#allocation5 + $0x11b8] sm:$0xff]
    %v620 = vld [vmem:[#allocation5 + $0x11c0] sm:$0xff]
    %v621 = vld [vmem:[#allocation5 + $0x11c8] sm:$0xff]
    %v622 = vld [vmem:[#allocation5 + $0x11d0] sm:$0xff]
    %v623 = vld [vmem:[#allocation5 + $0x11d8] sm:$0xff]
    %v624 = vld [vmem:[#allocation5 + $0x11e0] sm:$0xff]
    %v625 = vld [vmem:[#allocation5 + $0x11e8] sm:$0xff]
    %v626 = vld [vmem:[#allocation5 + $0x11f0] sm:$0xff]
    %v627 = vld [vmem:[#allocation5 + $0x11f8] sm:$0xff]
    %v628 = vld [vmem:[#allocation5 + $0x1200] sm:$0xff]
    %v629 = vld [vmem:[#allocation5 + $0x1208] sm:$0xff]
    %v630 = vld [vmem:[#allocation5 + $0x1210] sm:$0xff]
    %v631 = vld [vmem:[#allocation5 + $0x1218] sm:$0xff]
    %v632 = vld [vmem:[#allocation5 + $0x1220] sm:$0xff]
    %v633 = vld [vmem:[#allocation5 + $0x1228] sm:$0xff]
    %v634 = vld [vmem:[#allocation5 + $0x1230] sm:$0xff]
    %v635 = vld [vmem:[#allocation5 + $0x1238] sm:$0xff]
    %v636 = vld [vmem:[#allocation5 + $0x1240] sm:$0xff]
    %v637 = vld [vmem:[#allocation5 + $0x1248] sm:$0xff]
    %v638 = vld [vmem:[#allocation5 + $0x1250] sm:$0xff]
    %v639 = vld [vmem:[#allocation5 + $0x1258] sm:$0xff]
    %v640 = vld [vmem:[#allocation5 + $0x1260] sm:$0xff]
    %v641 = vld [vmem:[#allocation5 + $0x1268] sm:$0xff]
    %v642 = vld [vmem:[#allocation5 + $0x1270] sm:$0xff]
    %v643 = vld [vmem:[#allocation5 + $0x1278] sm:$0xff]
    %v644 = vld [vmem:[#allocation5 + $0x1280] sm:$0xff]
    %v645 = vld [vmem:[#allocation5 + $0x1288] sm:$0xff]
    %v646 = vld [vmem:[#allocation5 + $0x1290] sm:$0xff]
    %v647 = vld [vmem:[#allocation5 + $0x1298] sm:$0xff]
    %v648 = vld [vmem:[#allocation5 + $0x12a0] sm:$0xff]
    %v649 = vld [vmem:[#allocation5 + $0x12a8] sm:$0xff]
    %v650 = vld [vmem:[#allocation5 + $0x12b0] sm:$0xff]
    %v651 = vld [vmem:[#allocation5 + $0x12b8] sm:$0xff]
    %v652 = vld [vmem:[#allocation5 + $0x12c0] sm:$0xff]
    %v653 = vld [vmem:[#allocation5 + $0x12c8] sm:$0xff]
    %v654 = vld [vmem:[#allocation5 + $0x12d0] sm:$0xff]
    %v655 = vld [vmem:[#allocation5 + $0x12d8] sm:$0xff]
    %v656 = vld [vmem:[#allocation5 + $0x12e0] sm:$0xff]
    %v657 = vld [vmem:[#allocation5 + $0x12e8] sm:$0xff]
    %v658 = vld [vmem:[#allocation5 + $0x12f0] sm:$0xff]
    %v659 = vld [vmem:[#allocation5 + $0x12f8] sm:$0xff]
    %v660 = vld [vmem:[#allocation5 + $0x1300] sm:$0xff]
    %v661 = vld [vmem:[#allocation5 + $0x1308] sm:$0xff]
    %v662 = vld [vmem:[#allocation5 + $0x1310] sm:$0xff]
    %v663 = vld [vmem:[#allocation5 + $0x1318] sm:$0xff]
    %v664 = vld [vmem:[#allocation5 + $0x1320] sm:$0xff]
    %v665 = vld [vmem:[#allocation5 + $0x1328] sm:$0xff]
    %v666 = vld [vmem:[#allocation5 + $0x1330] sm:$0xff]
    %v667 = vld [vmem:[#allocation5 + $0x1338] sm:$0xff]
    %v668 = vld [vmem:[#allocation5 + $0x1340] sm:$0xff]
    %v669 = vld [vmem:[#allocation5 + $0x1348] sm:$0xff]
    %v670 = vld [vmem:[#allocation5 + $0x1350] sm:$0xff]
    %v671 = vld [vmem:[#allocation5 + $0x1358] sm:$0xff]
    %v672 = vld [vmem:[#allocation5 + $0x1360] sm:$0xff]
    %v673 = vld [vmem:[#allocation5 + $0x1368] sm:$0xff]
    %v674 = vld [vmem:[#allocation5 + $0x1370] sm:$0xff]
    %v675 = vld [vmem:[#allocation5 + $0x1378] sm:$0xff]
    %v676 = vld [vmem:[#allocation5 + $0x1380] sm:$0xff]
    %v677 = vld [vmem:[#allocation5 + $0x1388] sm:$0xff]
    %v678 = vld [vmem:[#allocation5 + $0x1390] sm:$0xff]
    %v679 = vld [vmem:[#allocation5 + $0x1398] sm:$0xff]
    %v680 = vld [vmem:[#allocation5 + $0x13a0] sm:$0xff]
    %v681 = vld [vmem:[#allocation5 + $0x13a8] sm:$0xff]
    %v682 = vld [vmem:[#allocation5 + $0x13b0] sm:$0xff]
    %v683 = vld [vmem:[#allocation5 + $0x13b8] sm:$0xff]
    %v684 = vld [vmem:[#allocation5 + $0x13c0] sm:$0xff]
    %v685 = vld [vmem:[#allocation5 + $0x13c8] sm:$0xff]
    %v686 = vld [vmem:[#allocation5 + $0x13d0] sm:$0xff]
    %v687 = vld [vmem:[#allocation5 + $0x13d8] sm:$0xff]
    %v688 = vld [vmem:[#allocation5 + $0x13e0] sm:$0xff]
    %v689 = vld [vmem:[#allocation5 + $0x13e8] sm:$0xff]
    %v690 = vld [vmem:[#allocation5 + $0x13f0] sm:$0xff]
    %v691 = vld [vmem:[#allocation5 + $0x13f8] sm:$0xff]
    %v692 = vld [vmem:[#allocation5 + $0x1400] sm:$0xff]
    %v693 = vld [vmem:[#allocation5 + $0x1408] sm:$0xff]
    %v694 = vld [vmem:[#allocation5 + $0x1410] sm:$0xff]
    %v695 = vld [vmem:[#allocation5 + $0x1418] sm:$0xff]
    %v696 = vld [vmem:[#allocation5 + $0x1420] sm:$0xff]
    %v697 = vld [vmem:[#allocation5 + $0x1428] sm:$0xff]
    %v698 = vld [vmem:[#allocation5 + $0x1430] sm:$0xff]
    %v699 = vld [vmem:[#allocation5 + $0x1438] sm:$0xff]
    %v700 = vld [vmem:[#allocation5 + $0x1440] sm:$0xff]
    %v701 = vld [vmem:[#allocation5 + $0x1448] sm:$0xff]
    %v702 = vld [vmem:[#allocation5 + $0x1450] sm:$0xff]
    %v703 = vld [vmem:[#allocation5 + $0x1458] sm:$0xff]
    %v704 = vld [vmem:[#allocation5 + $0x1460] sm:$0xff]
    %v705 = vld [vmem:[#allocation5 + $0x1468] sm:$0xff]
    %v706 = vld [vmem:[#allocation5 + $0x1470] sm:$0xff]
    %v707 = vld [vmem:[#allocation5 + $0x1478] sm:$0xff]
    %v708 = vld [vmem:[#allocation5 + $0x1480] sm:$0xff]
    %v709 = vld [vmem:[#allocation5 + $0x1488] sm:$0xff]
    %v710 = vld [vmem:[#allocation5 + $0x1490] sm:$0xff]
    %v711 = vld [vmem:[#allocation5 + $0x1498] sm:$0xff]
    %v712 = vld [vmem:[#allocation5 + $0x14a0] sm:$0xff]
    %v713 = vld [vmem:[#allocation5 + $0x14a8] sm:$0xff]
    %v714 = vld [vmem:[#allocation5 + $0x14b0] sm:$0xff]
    %v715 = vld [vmem:[#allocation5 + $0x14b8] sm:$0xff]
    %v716 = vld [vmem:[#allocation5 + $0x14c0] sm:$0xff]
    %v717 = vld [vmem:[#allocation5 + $0x14c8] sm:$0xff]
    %v718 = vld [vmem:[#allocation5 + $0x14d0] sm:$0xff]
    %v719 = vld [vmem:[#allocation5 + $0x14d8] sm:$0xff]
    %v720 = vld [vmem:[#allocation5 + $0x14e0] sm:$0xff]
    %v721 = vld [vmem:[#allocation5 + $0x14e8] sm:$0xff]
    %v722 = vld [vmem:[#allocation5 + $0x14f0] sm:$0xff]
    %v723 = vld [vmem:[#allocation5 + $0x14f8] sm:$0xff]
    %v724 = vld [vmem:[#allocation5 + $0x1500] sm:$0xff]
    %v725 = vld [vmem:[#allocation5 + $0x1508] sm:$0xff]
    %v726 = vld [vmem:[#allocation5 + $0x1510] sm:$0xff]
    %v727 = vld [vmem:[#allocation5 + $0x1518] sm:$0xff]
    %v728 = vld [vmem:[#allocation5 + $0x1520] sm:$0xff]
    %v729 = vld [vmem:[#allocation5 + $0x1528] sm:$0xff]
    %v730 = vld [vmem:[#allocation5 + $0x1530] sm:$0xff]
    %v731 = vld [vmem:[#allocation5 + $0x1538] sm:$0xff]
    %v732 = vld [vmem:[#allocation5 + $0x1540] sm:$0xff]
    %v733 = vld [vmem:[#allocation5 + $0x1548] sm:$0xff]
    %v734 = vld [vmem:[#allocation5 + $0x1550] sm:$0xff]
    %v735 = vld [vmem:[#allocation5 + $0x1558] sm:$0xff]
    %v736 = vld [vmem:[#allocation5 + $0x1560] sm:$0xff]
    %v737 = vld [vmem:[#allocation5 + $0x1568] sm:$0xff]
    %v738 = vld [vmem:[#allocation5 + $0x1570] sm:$0xff]
    %v739 = vld [vmem:[#allocation5 + $0x1578] sm:$0xff]
    %v740 = vld [vmem:[#allocation5 + $0x1580] sm:$0xff]
    %v741 = vld [vmem:[#allocation5 + $0x1588] sm:$0xff]
    %v742 = vld [vmem:[#allocation5 + $0x1590] sm:$0xff]
    %v743 = vld [vmem:[#allocation5 + $0x1598] sm:$0xff]
    %v744 = vld [vmem:[#allocation5 + $0x15a0] sm:$0xff]
    %v745 = vld [vmem:[#allocation5 + $0x15a8] sm:$0xff]
    %v746 = vld [vmem:[#allocation5 + $0x15b0] sm:$0xff]
    %v747 = vld [vmem:[#allocation5 + $0x15b8] sm:$0xff]
    %v748 = vld [vmem:[#allocation5 + $0x15c0] sm:$0xff]
    %v749 = vld [vmem:[#allocation5 + $0x15c8] sm:$0xff]
    %v750 = vld [vmem:[#allocation5 + $0x15d0] sm:$0xff]
    %v751 = vld [vmem:[#allocation5 + $0x15d8] sm:$0xff]
    %v752 = vld [vmem:[#allocation5 + $0x15e0] sm:$0xff]
    %v753 = vld [vmem:[#allocation5 + $0x15e8] sm:$0xff]
    %v754 = vld [vmem:[#allocation5 + $0x15f0] sm:$0xff]
    %v755 = vld [vmem:[#allocation5 + $0x15f8] sm:$0xff]
    %v756 = vld [vmem:[#allocation5 + $0x1600] sm:$0xff]
    %v757 = vld [vmem:[#allocation5 + $0x1608] sm:$0xff]
    %v758 = vld [vmem:[#allocation5 + $0x1610] sm:$0xff]
    %v759 = vld [vmem:[#allocation5 + $0x1618] sm:$0xff]
    %v760 = vld [vmem:[#allocation5 + $0x1620] sm:$0xff]
    %v761 = vld [vmem:[#allocation5 + $0x1628] sm:$0xff]
    %v762 = vld [vmem:[#allocation5 + $0x1630] sm:$0xff]
    %v763 = vld [vmem:[#allocation5 + $0x1638] sm:$0xff]
    %v764 = vld [vmem:[#allocation5 + $0x1640] sm:$0xff]
    %v765 = vld [vmem:[#allocation5 + $0x1648] sm:$0xff]
    %v766 = vld [vmem:[#allocation5 + $0x1650] sm:$0xff]
    %v767 = vld [vmem:[#allocation5 + $0x1658] sm:$0xff]
    %v768 = vld [vmem:[#allocation5 + $0x1660] sm:$0xff]
    %v769 = vld [vmem:[#allocation5 + $0x1668] sm:$0xff]
    %v770 = vld [vmem:[#allocation5 + $0x1670] sm:$0xff]
    %v771 = vld [vmem:[#allocation5 + $0x1678] sm:$0xff]
    %v772 = vld [vmem:[#allocation5 + $0x1680] sm:$0xff]
    %v773 = vld [vmem:[#allocation5 + $0x1688] sm:$0xff]
    %v774 = vld [vmem:[#allocation5 + $0x1690] sm:$0xff]
    %v775 = vld [vmem:[#allocation5 + $0x1698] sm:$0xff]
    %v776 = vld [vmem:[#allocation5 + $0x16a0] sm:$0xff]
    %v777 = vld [vmem:[#allocation5 + $0x16a8] sm:$0xff]
    %v778 = vld [vmem:[#allocation5 + $0x16b0] sm:$0xff]
    %v779 = vld [vmem:[#allocation5 + $0x16b8] sm:$0xff]
    %v780 = vld [vmem:[#allocation5 + $0x16c0] sm:$0xff]
    %v781 = vld [vmem:[#allocation5 + $0x16c8] sm:$0xff]
    %v782 = vld [vmem:[#allocation5 + $0x16d0] sm:$0xff]
    %v783 = vld [vmem:[#allocation5 + $0x16d8] sm:$0xff]
    %v784 = vld [vmem:[#allocation5 + $0x16e0] sm:$0xff]
    %v785 = vld [vmem:[#allocation5 + $0x16e8] sm:$0xff]
    %v786 = vld [vmem:[#allocation5 + $0x16f0] sm:$0xff]
    %v787 = vld [vmem:[#allocation5 + $0x16f8] sm:$0xff]
    %v788 = vld [vmem:[#allocation5 + $0x1700] sm:$0xff]
    %v789 = vld [vmem:[#allocation5 + $0x1708] sm:$0xff]
    %v790 = vld [vmem:[#allocation5 + $0x1710] sm:$0xff]
    %v791 = vld [vmem:[#allocation5 + $0x1718] sm:$0xff]
    %v792 = vld [vmem:[#allocation5 + $0x1720] sm:$0xff]
    %v793 = vld [vmem:[#allocation5 + $0x1728] sm:$0xff]
    %v794 = vld [vmem:[#allocation5 + $0x1730] sm:$0xff]
    %v795 = vld [vmem:[#allocation5 + $0x1738] sm:$0xff]
    %v796 = vld [vmem:[#allocation5 + $0x1740] sm:$0xff]
    %v797 = vld [vmem:[#allocation5 + $0x1748] sm:$0xff]
    %v798 = vld [vmem:[#allocation5 + $0x1750] sm:$0xff]
    %v799 = vld [vmem:[#allocation5 + $0x1758] sm:$0xff]
    %v800 = vld [vmem:[#allocation5 + $0x1760] sm:$0xff]
    %v801 = vld [vmem:[#allocation5 + $0x1768] sm:$0xff]
    %v802 = vld [vmem:[#allocation5 + $0x1770] sm:$0xff]
    %v803 = vld [vmem:[#allocation5 + $0x1778] sm:$0xff]
    %v804 = vld [vmem:[#allocation5 + $0x1780] sm:$0xff]
    %v805 = vld [vmem:[#allocation5 + $0x1788] sm:$0xff]
    %v806 = vld [vmem:[#allocation5 + $0x1790] sm:$0xff]
    %v807 = vld [vmem:[#allocation5 + $0x1798] sm:$0xff]
    %v808 = vld [vmem:[#allocation5 + $0x17a0] sm:$0xff]
    %v809 = vld [vmem:[#allocation5 + $0x17a8] sm:$0xff]
    %v810 = vld [vmem:[#allocation5 + $0x17b0] sm:$0xff]
    %v811 = vld [vmem:[#allocation5 + $0x17b8] sm:$0xff]
    %v812 = vld [vmem:[#allocation5 + $0x17c0] sm:$0xff]
    %v813 = vld [vmem:[#allocation5 + $0x17c8] sm:$0xff]
    %v814 = vld [vmem:[#allocation5 + $0x17d0] sm:$0xff]
    %v815 = vld [vmem:[#allocation5 + $0x17d8] sm:$0xff]
    %v816 = vld [vmem:[#allocation5 + $0x17e0] sm:$0xff]
    %v817 = vld [vmem:[#allocation5 + $0x17e8] sm:$0xff]
    %v818 = vld [vmem:[#allocation5 + $0x17f0] sm:$0xff]
    %v819 = vld [vmem:[#allocation5 + $0x17f8] sm:$0xff]
    %v820 = vld [vmem:[#allocation5 + $0x1800] sm:$0xff]
    %v821 = vld [vmem:[#allocation5 + $0x1808] sm:$0xff]
    %v822 = vld [vmem:[#allocation5 + $0x1810] sm:$0xff]
    %v823 = vld [vmem:[#allocation5 + $0x1818] sm:$0xff]
    %v824 = vld [vmem:[#allocation5 + $0x1820] sm:$0xff]
    %v825 = vld [vmem:[#allocation5 + $0x1828] sm:$0xff]
    %v826 = vld [vmem:[#allocation5 + $0x1830] sm:$0xff]
    %v827 = vld [vmem:[#allocation5 + $0x1838] sm:$0xff]
    %v828 = vld [vmem:[#allocation5 + $0x1840] sm:$0xff]
    %v829 = vld [vmem:[#allocation5 + $0x1848] sm:$0xff]
    %v830 = vld [vmem:[#allocation5 + $0x1850] sm:$0xff]
    %v831 = vld [vmem:[#allocation5 + $0x1858] sm:$0xff]
    %v832 = vld [vmem:[#allocation5 + $0x1860] sm:$0xff]
    %v833 = vld [vmem:[#allocation5 + $0x1868] sm:$0xff]
    %v834 = vld [vmem:[#allocation5 + $0x1870] sm:$0xff]
    %v835 = vld [vmem:[#allocation5 + $0x1878] sm:$0xff]
    %v836 = vld [vmem:[#allocation5 + $0x1880] sm:$0xff]
    %v837 = vld [vmem:[#allocation5 + $0x1888] sm:$0xff]
    %v838 = vld [vmem:[#allocation5 + $0x1890] sm:$0xff]
    %v839 = vld [vmem:[#allocation5 + $0x1898] sm:$0xff]
    %v840 = vld [vmem:[#allocation5 + $0x18a0] sm:$0xff]
    %v841 = vld [vmem:[#allocation5 + $0x18a8] sm:$0xff]
    %v842 = vld [vmem:[#allocation5 + $0x18b0] sm:$0xff]
    %v843 = vld [vmem:[#allocation5 + $0x18b8] sm:$0xff]
    %v844 = vld [vmem:[#allocation5 + $0x18c0] sm:$0xff]
    %v845 = vld [vmem:[#allocation5 + $0x18c8] sm:$0xff]
    %v846 = vld [vmem:[#allocation5 + $0x18d0] sm:$0xff]
    %v847 = vld [vmem:[#allocation5 + $0x18d8] sm:$0xff]
    %v848 = vld [vmem:[#allocation5 + $0x18e0] sm:$0xff]
    %v849 = vld [vmem:[#allocation5 + $0x18e8] sm:$0xff]
    %v850 = vld [vmem:[#allocation5 + $0x18f0] sm:$0xff]
    %v851 = vld [vmem:[#allocation5 + $0x18f8] sm:$0xff]
    %v852 = vld [vmem:[#allocation5 + $0x1900] sm:$0xff]
    %v853 = vld [vmem:[#allocation5 + $0x1908] sm:$0xff]
    %v854 = vld [vmem:[#allocation5 + $0x1910] sm:$0xff]
    %v855 = vld [vmem:[#allocation5 + $0x1918] sm:$0xff]
    %v856 = vld [vmem:[#allocation5 + $0x1920] sm:$0xff]
    %v857 = vld [vmem:[#allocation5 + $0x1928] sm:$0xff]
    %v858 = vld [vmem:[#allocation5 + $0x1930] sm:$0xff]
    %v859 = vld [vmem:[#allocation5 + $0x1938] sm:$0xff]
    %v860 = vld [vmem:[#allocation5 + $0x1940] sm:$0xff]
    %v861 = vld [vmem:[#allocation5 + $0x1948] sm:$0xff]
    %v862 = vld [vmem:[#allocation5 + $0x1950] sm:$0xff]
    %v863 = vld [vmem:[#allocation5 + $0x1958] sm:$0xff]
    %v864 = vld [vmem:[#allocation5 + $0x1960] sm:$0xff]
    %v865 = vld [vmem:[#allocation5 + $0x1968] sm:$0xff]
    %v866 = vld [vmem:[#allocation5 + $0x1970] sm:$0xff]
    %v867 = vld [vmem:[#allocation5 + $0x1978] sm:$0xff]
    %v868 = vld [vmem:[#allocation5 + $0x1980] sm:$0xff]
    %v869 = vld [vmem:[#allocation5 + $0x1988] sm:$0xff]
    %v870 = vld [vmem:[#allocation5 + $0x1990] sm:$0xff]
    %v871 = vld [vmem:[#allocation5 + $0x1998] sm:$0xff]
    %v872 = vld [vmem:[#allocation5 + $0x19a0] sm:$0xff]
    %v873 = vld [vmem:[#allocation5 + $0x19a8] sm:$0xff]
    %v874 = vld [vmem:[#allocation5 + $0x19b0] sm:$0xff]
    %v875 = vld [vmem:[#allocation5 + $0x19b8] sm:$0xff]
    %v876 = vld [vmem:[#allocation5 + $0x19c0] sm:$0xff]
    %v877 = vld [vmem:[#allocation5 + $0x19c8] sm:$0xff]
    %v878 = vld [vmem:[#allocation5 + $0x19d0] sm:$0xff]
    %v879 = vld [vmem:[#allocation5 + $0x19d8] sm:$0xff]
    %v880 = vld [vmem:[#allocation5 + $0x19e0] sm:$0xff]
    %v881 = vld [vmem:[#allocation5 + $0x19e8] sm:$0xff]
    %v882 = vld [vmem:[#allocation5 + $0x19f0] sm:$0xff]
    %v883 = vld [vmem:[#allocation5 + $0x19f8] sm:$0xff]
    %v884 = vld [vmem:[#allocation5 + $0x1a00] sm:$0xff]
    %v885 = vld [vmem:[#allocation5 + $0x1a08] sm:$0xff]
    %v886 = vld [vmem:[#allocation5 + $0x1a10] sm:$0xff]
    %v887 = vld [vmem:[#allocation5 + $0x1a18] sm:$0xff]
    %v888 = vld [vmem:[#allocation5 + $0x1a20] sm:$0xff]
    %v889 = vld [vmem:[#allocation5 + $0x1a28] sm:$0xff]
    %v890 = vld [vmem:[#allocation5 + $0x1a30] sm:$0xff]
    %v891 = vld [vmem:[#allocation5 + $0x1a38] sm:$0xff]
    %v892 = vld [vmem:[#allocation5 + $0x1a40] sm:$0xff]
    %v893 = vld [vmem:[#allocation5 + $0x1a48] sm:$0xff]
    %v894 = vld [vmem:[#allocation5 + $0x1a50] sm:$0xff]
    %v895 = vld [vmem:[#allocation5 + $0x1a58] sm:$0xff]
    %v896 = vld [vmem:[#allocation5 + $0x1a60] sm:$0xff]
    %v897 = vld [vmem:[#allocation5 + $0x1a68] sm:$0xff]
    %v898 = vld [vmem:[#allocation5 + $0x1a70] sm:$0xff]
    %v899 = vld [vmem:[#allocation5 + $0x1a78] sm:$0xff]
    %v900 = vld [vmem:[#allocation5 + $0x1a80] sm:$0xff]
    %v901 = vld [vmem:[#allocation5 + $0x1a88] sm:$0xff]
    %v902 = vld [vmem:[#allocation5 + $0x1a90] sm:$0xff]
    %v903 = vld [vmem:[#allocation5 + $0x1a98] sm:$0xff]
    %v904 = vld [vmem:[#allocation5 + $0x1aa0] sm:$0xff]
    %v905 = vld [vmem:[#allocation5 + $0x1aa8] sm:$0xff]
    %v906 = vld [vmem:[#allocation5 + $0x1ab0] sm:$0xff]
    %v907 = vld [vmem:[#allocation5 + $0x1ab8] sm:$0xff]
    %v908 = vld [vmem:[#allocation5 + $0x1ac0] sm:$0xff]
    %v909 = vld [vmem:[#allocation5 + $0x1ac8] sm:$0xff]
    %v910 = vld [vmem:[#allocation5 + $0x1ad0] sm:$0xff]
    %v911 = vld [vmem:[#allocation5 + $0x1ad8] sm:$0xff]
    %v912 = vld [vmem:[#allocation5 + $0x1ae0] sm:$0xff]
    %v913 = vld [vmem:[#allocation5 + $0x1ae8] sm:$0xff]
    %v914 = vld [vmem:[#allocation5 + $0x1af0] sm:$0xff]
    %v915 = vld [vmem:[#allocation5 + $0x1af8] sm:$0xff]
    %v916 = vld [vmem:[#allocation5 + $0x1b00] sm:$0xff]
    %v917 = vld [vmem:[#allocation5 + $0x1b08] sm:$0xff]
    %v918 = vld [vmem:[#allocation5 + $0x1b10] sm:$0xff]
    %v919 = vld [vmem:[#allocation5 + $0x1b18] sm:$0xff]
    %v920 = vld [vmem:[#allocation5 + $0x1b20] sm:$0xff]
    %v921 = vld [vmem:[#allocation5 + $0x1b28] sm:$0xff]
    %v922 = vld [vmem:[#allocation5 + $0x1b30] sm:$0xff]
    %v923 = vld [vmem:[#allocation5 + $0x1b38] sm:$0xff]
    %v924 = vld [vmem:[#allocation5 + $0x1b40] sm:$0xff]
    %v925 = vld [vmem:[#allocation5 + $0x1b48] sm:$0xff]
    %v926 = vld [vmem:[#allocation5 + $0x1b50] sm:$0xff]
    %v927 = vld [vmem:[#allocation5 + $0x1b58] sm:$0xff]
    %v928 = vld [vmem:[#allocation5 + $0x1b60] sm:$0xff]
    %v929 = vld [vmem:[#allocation5 + $0x1b68] sm:$0xff]
    %v930 = vld [vmem:[#allocation5 + $0x1b70] sm:$0xff]
    %v931 = vld [vmem:[#allocation5 + $0x1b78] sm:$0xff]
    %v932 = vld [vmem:[#allocation5 + $0x1b80] sm:$0xff]
    %v933 = vld [vmem:[#allocation5 + $0x1b88] sm:$0xff]
    %v934 = vld [vmem:[#allocation5 + $0x1b90] sm:$0xff]
    %v935 = vld [vmem:[#allocation5 + $0x1b98] sm:$0xff]
    %v936 = vld [vmem:[#allocation5 + $0x1ba0] sm:$0xff]
    %v937 = vld [vmem:[#allocation5 + $0x1ba8] sm:$0xff]
    %v938 = vld [vmem:[#allocation5 + $0x1bb0] sm:$0xff]
    %v939 = vld [vmem:[#allocation5 + $0x1bb8] sm:$0xff]
    %v940 = vld [vmem:[#allocation5 + $0x1bc0] sm:$0xff]
    %v941 = vld [vmem:[#allocation5 + $0x1bc8] sm:$0xff]
    %v942 = vld [vmem:[#allocation5 + $0x1bd0] sm:$0xff]
    %v943 = vld [vmem:[#allocation5 + $0x1bd8] sm:$0xff]
    %v944 = vld [vmem:[#allocation5 + $0x1be0] sm:$0xff]
    %v945 = vld [vmem:[#allocation5 + $0x1be8] sm:$0xff]
    %v946 = vld [vmem:[#allocation5 + $0x1bf0] sm:$0xff]
    %v947 = vld [vmem:[#allocation5 + $0x1bf8] sm:$0xff]
    %v948 = vld [vmem:[#allocation5 + $0x1c00] sm:$0xff]
    %v949 = vld [vmem:[#allocation5 + $0x1c08] sm:$0xff]
    %v950 = vld [vmem:[#allocation5 + $0x1c10] sm:$0xff]
    %v951 = vld [vmem:[#allocation5 + $0x1c18] sm:$0xff]
    %v952 = vld [vmem:[#allocation5 + $0x1c20] sm:$0xff]
    %v953 = vld [vmem:[#allocation5 + $0x1c28] sm:$0xff]
    %v954 = vld [vmem:[#allocation5 + $0x1c30] sm:$0xff]
    %v955 = vld [vmem:[#allocation5 + $0x1c38] sm:$0xff]
    %v956 = vld [vmem:[#allocation5 + $0x1c40] sm:$0xff]
    %v957 = vld [vmem:[#allocation5 + $0x1c48] sm:$0xff]
    %v958 = vld [vmem:[#allocation5 + $0x1c50] sm:$0xff]
    %v959 = vld [vmem:[#allocation5 + $0x1c58] sm:$0xff]
    %v960 = vld [vmem:[#allocation5 + $0x1c60] sm:$0xff]
    %v961 = vld [vmem:[#allocation5 + $0x1c68] sm:$0xff]
    %v962 = vld [vmem:[#allocation5 + $0x1c70] sm:$0xff]
    %v963 = vld [vmem:[#allocation5 + $0x1c78] sm:$0xff]
    %v964 = vld [vmem:[#allocation5 + $0x1c80] sm:$0xff]
    %v965 = vld [vmem:[#allocation5 + $0x1c88] sm:$0xff]
    %v966 = vld [vmem:[#allocation5 + $0x1c90] sm:$0xff]
    %v967 = vld [vmem:[#allocation5 + $0x1c98] sm:$0xff]
    %v968 = vld [vmem:[#allocation5 + $0x1ca0] sm:$0xff]
    %v969 = vld [vmem:[#allocation5 + $0x1ca8] sm:$0xff]
    %v970 = vld [vmem:[#allocation5 + $0x1cb0] sm:$0xff]
    %v971 = vld [vmem:[#allocation5 + $0x1cb8] sm:$0xff]
    %v972 = vld [vmem:[#allocation5 + $0x1cc0] sm:$0xff]
    %v973 = vld [vmem:[#allocation5 + $0x1cc8] sm:$0xff]
    %v974 = vld [vmem:[#allocation5 + $0x1cd0] sm:$0xff]
    %v975 = vld [vmem:[#allocation5 + $0x1cd8] sm:$0xff]
    %v976 = vld [vmem:[#allocation5 + $0x1ce0] sm:$0xff]
    %v977 = vld [vmem:[#allocation5 + $0x1ce8] sm:$0xff]
    %v978 = vld [vmem:[#allocation5 + $0x1cf0] sm:$0xff]
    %v979 = vld [vmem:[#allocation5 + $0x1cf8] sm:$0xff]
    %v980 = vld [vmem:[#allocation5 + $0x1d00] sm:$0xff]
    %v981 = vld [vmem:[#allocation5 + $0x1d08] sm:$0xff]
    %v982 = vld [vmem:[#allocation5 + $0x1d10] sm:$0xff]
    %v983 = vld [vmem:[#allocation5 + $0x1d18] sm:$0xff]
    %v984 = vld [vmem:[#allocation5 + $0x1d20] sm:$0xff]
    %v985 = vld [vmem:[#allocation5 + $0x1d28] sm:$0xff]
    %v986 = vld [vmem:[#allocation5 + $0x1d30] sm:$0xff]
    %v987 = vld [vmem:[#allocation5 + $0x1d38] sm:$0xff]
    %v988 = vld [vmem:[#allocation5 + $0x1d40] sm:$0xff]
    %v989 = vld [vmem:[#allocation5 + $0x1d48] sm:$0xff]
    %v990 = vld [vmem:[#allocation5 + $0x1d50] sm:$0xff]
    %v991 = vld [vmem:[#allocation5 + $0x1d58] sm:$0xff]
    %v992 = vld [vmem:[#allocation5 + $0x1d60] sm:$0xff]
    %v993 = vld [vmem:[#allocation5 + $0x1d68] sm:$0xff]
    %v994 = vld [vmem:[#allocation5 + $0x1d70] sm:$0xff]
    %v995 = vld [vmem:[#allocation5 + $0x1d78] sm:$0xff]
    %v996 = vld [vmem:[#allocation5 + $0x1d80] sm:$0xff]
    %v997 = vld [vmem:[#allocation5 + $0x1d88] sm:$0xff]
    %v998 = vld [vmem:[#allocation5 + $0x1d90] sm:$0xff]
    %v999 = vld [vmem:[#allocation5 + $0x1d98] sm:$0xff]
    %v1000 = vld [vmem:[#allocation5 + $0x1da0] sm:$0xff]
    %v1001 = vld [vmem:[#allocation5 + $0x1da8] sm:$0xff]
    %v1002 = vld [vmem:[#allocation5 + $0x1db0] sm:$0xff]
    %v1003 = vld [vmem:[#allocation5 + $0x1db8] sm:$0xff]
    %v1004 = vld [vmem:[#allocation5 + $0x1dc0] sm:$0xff]
    %v1005 = vld [vmem:[#allocation5 + $0x1dc8] sm:$0xff]
    %v1006 = vld [vmem:[#allocation5 + $0x1dd0] sm:$0xff]
    %v1007 = vld [vmem:[#allocation5 + $0x1dd8] sm:$0xff]
    %v1008 = vld [vmem:[#allocation5 + $0x1de0] sm:$0xff]
    %v1009 = vld [vmem:[#allocation5 + $0x1de8] sm:$0xff]
    %v1010 = vld [vmem:[#allocation5 + $0x1df0] sm:$0xff]
    %v1011 = vld [vmem:[#allocation5 + $0x1df8] sm:$0xff]
    %v1012 = vld [vmem:[#allocation5 + $0x1e00] sm:$0xff]
    %v1013 = vld [vmem:[#allocation5 + $0x1e08] sm:$0xff]
    %v1014 = vld [vmem:[#allocation5 + $0x1e10] sm:$0xff]
    %v1015 = vld [vmem:[#allocation5 + $0x1e18] sm:$0xff]
    %v1016 = vld [vmem:[#allocation5 + $0x1e20] sm:$0xff]
    %v1017 = vld [vmem:[#allocation5 + $0x1e28] sm:$0xff]
    %v1018 = vld [vmem:[#allocation5 + $0x1e30] sm:$0xff]
    %v1019 = vld [vmem:[#allocation5 + $0x1e38] sm:$0xff]
    %v1020 = vld [vmem:[#allocation5 + $0x1e40] sm:$0xff]
    %v1021 = vld [vmem:[#allocation5 + $0x1e48] sm:$0xff]
    %v1022 = vld [vmem:[#allocation5 + $0x1e50] sm:$0xff]
    %v1023 = vld [vmem:[#allocation5 + $0x1e58] sm:$0xff]
    %v1024 = vld [vmem:[#allocation5 + $0x1e60] sm:$0xff]
    %v1025 = vld [vmem:[#allocation5 + $0x1e68] sm:$0xff]
    %v1026 = vld [vmem:[#allocation5 + $0x1e70] sm:$0xff]
    %v1027 = vld [vmem:[#allocation5 + $0x1e78] sm:$0xff]
    %v1028 = vld [vmem:[#allocation5 + $0x1e80] sm:$0xff]
    %v1029 = vld [vmem:[#allocation5 + $0x1e88] sm:$0xff]
    %v1030 = vld [vmem:[#allocation5 + $0x1e90] sm:$0xff]
    %v1031 = vld [vmem:[#allocation5 + $0x1e98] sm:$0xff]
    %v1032 = vld [vmem:[#allocation5 + $0x1ea0] sm:$0xff]
    %v1033 = vld [vmem:[#allocation5 + $0x1ea8] sm:$0xff]
    %v1034 = vld [vmem:[#allocation5 + $0x1eb0] sm:$0xff]
    %v1035 = vld [vmem:[#allocation5 + $0x1eb8] sm:$0xff]
    %v1036 = vld [vmem:[#allocation5 + $0x1ec0] sm:$0xff]
    %v1037 = vld [vmem:[#allocation5 + $0x1ec8] sm:$0xff]
    %v1038 = vld [vmem:[#allocation5 + $0x1ed0] sm:$0xff]
    %v1039 = vld [vmem:[#allocation5 + $0x1ed8] sm:$0xff]
    %v1040 = vld [vmem:[#allocation5 + $0x1ee0] sm:$0xff]
    %v1041 = vld [vmem:[#allocation5 + $0x1ee8] sm:$0xff]
    %v1042 = vld [vmem:[#allocation5 + $0x1ef0] sm:$0xff]
    %v1043 = vld [vmem:[#allocation5 + $0x1ef8] sm:$0xff]
    %v1044 = vld [vmem:[#allocation5 + $0x1f00] sm:$0xff]
    %v1045 = vld [vmem:[#allocation5 + $0x1f08] sm:$0xff]
    %v1046 = vld [vmem:[#allocation5 + $0x1f10] sm:$0xff]
    %v1047 = vld [vmem:[#allocation5 + $0x1f18] sm:$0xff]
    %v1048 = vld [vmem:[#allocation5 + $0x1f20] sm:$0xff]
    %v1049 = vld [vmem:[#allocation5 + $0x1f28] sm:$0xff]
    %v1050 = vld [vmem:[#allocation5 + $0x1f30] sm:$0xff]
    %v1051 = vld [vmem:[#allocation5 + $0x1f38] sm:$0xff]
    %v1052 = vld [vmem:[#allocation5 + $0x1f40] sm:$0xff]
    %v1053 = vld [vmem:[#allocation5 + $0x1f48] sm:$0xff]
    %v1054 = vld [vmem:[#allocation5 + $0x1f50] sm:$0xff]
    %v1055 = vld [vmem:[#allocation5 + $0x1f58] sm:$0xff]
    %v1056 = vld [vmem:[#allocation5 + $0x1f60] sm:$0xff]
    %v1057 = vld [vmem:[#allocation5 + $0x1f68] sm:$0xff]
    %v1058 = vld [vmem:[#allocation5 + $0x1f70] sm:$0xff]
    %v1059 = vld [vmem:[#allocation5 + $0x1f78] sm:$0xff]
    %v1060 = vld [vmem:[#allocation5 + $0x1f80] sm:$0xff]
    %v1061 = vld [vmem:[#allocation5 + $0x1f88] sm:$0xff]
    %v1062 = vld [vmem:[#allocation5 + $0x1f90] sm:$0xff]
    %v1063 = vld [vmem:[#allocation5 + $0x1f98] sm:$0xff]
    %v1064 = vld [vmem:[#allocation5 + $0x1fa0] sm:$0xff]
    %v1065 = vld [vmem:[#allocation5 + $0x1fa8] sm:$0xff]
    %v1066 = vld [vmem:[#allocation5 + $0x1fb0] sm:$0xff]
    %v1067 = vld [vmem:[#allocation5 + $0x1fb8] sm:$0xff]
    %v1068 = vld [vmem:[#allocation5 + $0x1fc0] sm:$0xff]
    %v1069 = vld [vmem:[#allocation5 + $0x1fc8] sm:$0xff]
    %v1070 = vld [vmem:[#allocation5 + $0x1fd0] sm:$0xff]
    %v1071 = vld [vmem:[#allocation5 + $0x1fd8] sm:$0xff]
    %v1072 = vld [vmem:[#allocation5 + $0x1fe0] sm:$0xff]
    %v1073 = vld [vmem:[#allocation5 + $0x1fe8] sm:$0xff]
    %v1074 = vld [vmem:[#allocation5 + $0x1ff0] sm:$0xff]
    %v1075 = vld [vmem:[#allocation5 + $0x1ff8] sm:$0xff]
    %v1076 = vld [vmem:[#allocation5 + $0x2000] sm:$0xff]
    %v1077 = vld [vmem:[#allocation5 + $0x2008] sm:$0xff]
    %v1078 = vld [vmem:[#allocation5 + $0x2010] sm:$0xff]
    %v1079 = vld [vmem:[#allocation5 + $0x2018] sm:$0xff]
    %v1080 = vld [vmem:[#allocation5 + $0x2020] sm:$0xff]
    %v1081 = vld [vmem:[#allocation5 + $0x2028] sm:$0xff]
    %v1082 = vld [vmem:[#allocation5 + $0x2030] sm:$0xff]
    %v1083 = vld [vmem:[#allocation5 + $0x2038] sm:$0xff]
    %v1084 = vld [vmem:[#allocation5 + $0x2040] sm:$0xff]
    %v1085 = vld [vmem:[#allocation5 + $0x2048] sm:$0xff]
    %v1086 = vld [vmem:[#allocation5 + $0x2050] sm:$0xff]
    %v1087 = vld [vmem:[#allocation5 + $0x2058] sm:$0xff]
    %v1088 = vld [vmem:[#allocation5 + $0x2060] sm:$0xff]
    %v1089 = vld [vmem:[#allocation5 + $0x2068] sm:$0xff]
    %v1090 = vld [vmem:[#allocation5 + $0x2070] sm:$0xff]
    %v1091 = vld [vmem:[#allocation5 + $0x2078] sm:$0xff]
    %v1092 = vld [vmem:[#allocation5 + $0x2080] sm:$0xff]
    %v1093 = vld [vmem:[#allocation5 + $0x2088] sm:$0xff]
    %v1094 = vld [vmem:[#allocation5 + $0x2090] sm:$0xff]
    %v1095 = vld [vmem:[#allocation5 + $0x2098] sm:$0xff]
    %v1096 = vld [vmem:[#allocation5 + $0x20a0] sm:$0xff]
    %v1097 = vld [vmem:[#allocation5 + $0x20a8] sm:$0xff]
    %v1098 = vld [vmem:[#allocation5 + $0x20b0] sm:$0xff]
    %v1099 = vld [vmem:[#allocation5 + $0x20b8] sm:$0xff]
    %v1100 = vld [vmem:[#allocation5 + $0x20c0] sm:$0xff]
    %v1101 = vld [vmem:[#allocation5 + $0x20c8] sm:$0xff]
    %v1102 = vld [vmem:[#allocation5 + $0x20d0] sm:$0xff]
    %v1103 = vld [vmem:[#allocation5 + $0x20d8] sm:$0xff]
    %v1104 = vld [vmem:[#allocation5 + $0x20e0] sm:$0xff]
    %v1105 = vld [vmem:[#allocation5 + $0x20e8] sm:$0xff]
    %v1106 = vld [vmem:[#allocation5 + $0x20f0] sm:$0xff]
    %v1107 = vld [vmem:[#allocation5 + $0x20f8] sm:$0xff]
    %v1108 = vld [vmem:[#allocation5 + $0x2100] sm:$0xff]
    %v1109 = vld [vmem:[#allocation5 + $0x2108] sm:$0xff]
    %v1110 = vld [vmem:[#allocation5 + $0x2110] sm:$0xff]
    %v1111 = vld [vmem:[#allocation5 + $0x2118] sm:$0xff]
    %v1112 = vld [vmem:[#allocation5 + $0x2120] sm:$0xff]
    %v1113 = vld [vmem:[#allocation5 + $0x2128] sm:$0xff]
    %v1114 = vld [vmem:[#allocation5 + $0x2130] sm:$0xff]
    %v1115 = vld [vmem:[#allocation5 + $0x2138] sm:$0xff]
    %v1116 = vld [vmem:[#allocation5 + $0x2140] sm:$0xff]
    %v1117 = vld [vmem:[#allocation5 + $0x2148] sm:$0xff]
    %v1118 = vld [vmem:[#allocation5 + $0x2150] sm:$0xff]
    %v1119 = vld [vmem:[#allocation5 + $0x2158] sm:$0xff]
    %v1120 = vld [vmem:[#allocation5 + $0x2160] sm:$0xff]
    %v1121 = vld [vmem:[#allocation5 + $0x2168] sm:$0xff]
    %v1122 = vld [vmem:[#allocation5 + $0x2170] sm:$0xff]
    %v1123 = vld [vmem:[#allocation5 + $0x2178] sm:$0xff]
    %v1124 = vld [vmem:[#allocation5 + $0x2180] sm:$0xff]
    %v1125 = vld [vmem:[#allocation5 + $0x2188] sm:$0xff]
    %v1126 = vld [vmem:[#allocation5 + $0x2190] sm:$0xff]
    %v1127 = vld [vmem:[#allocation5 + $0x2198] sm:$0xff]
    %v1128 = vld [vmem:[#allocation5 + $0x21a0] sm:$0xff]
    %v1129 = vld [vmem:[#allocation5 + $0x21a8] sm:$0xff]
    %v1130 = vld [vmem:[#allocation5 + $0x21b0] sm:$0xff]
    %v1131 = vld [vmem:[#allocation5 + $0x21b8] sm:$0xff]
    %v1132 = vld [vmem:[#allocation5 + $0x21c0] sm:$0xff]
    %v1133 = vld [vmem:[#allocation5 + $0x21c8] sm:$0xff]
    %v1134 = vld [vmem:[#allocation5 + $0x21d0] sm:$0xff]
    %v1135 = vld [vmem:[#allocation5 + $0x21d8] sm:$0xff]
    %v1136 = vld [vmem:[#allocation5 + $0x21e0] sm:$0xff]
    %v1137 = vld [vmem:[#allocation5 + $0x21e8] sm:$0xff]
    %v1138 = vld [vmem:[#allocation5 + $0x21f0] sm:$0xff]
    %v1139 = vld [vmem:[#allocation5 + $0x21f8] sm:$0xff]
    %v1140 = vld [vmem:[#allocation5 + $0x2200] sm:$0xff]
    %v1141 = vld [vmem:[#allocation5 + $0x2208] sm:$0xff]
    %v1142 = vld [vmem:[#allocation5 + $0x2210] sm:$0xff]
    %v1143 = vld [vmem:[#allocation5 + $0x2218] sm:$0xff]
    %v1144 = vld [vmem:[#allocation5 + $0x2220] sm:$0xff]
    %v1145 = vld [vmem:[#allocation5 + $0x2228] sm:$0xff]
    %v1146 = vld [vmem:[#allocation5 + $0x2230] sm:$0xff]
    %v1147 = vld [vmem:[#allocation5 + $0x2238] sm:$0xff]
    %v1148 = vld [vmem:[#allocation5 + $0x2240] sm:$0xff]
    %v1149 = vld [vmem:[#allocation5 + $0x2248] sm:$0xff]
    %v1150 = vld [vmem:[#allocation5 + $0x2250] sm:$0xff]
    %v1151 = vld [vmem:[#allocation5 + $0x2258] sm:$0xff]
    %v1152 = vld [vmem:[#allocation5 + $0x2260] sm:$0xff]
    %v1153 = vld [vmem:[#allocation5 + $0x2268] sm:$0xff]
    %v1154 = vld [vmem:[#allocation5 + $0x2270] sm:$0xff]
    %v1155 = vld [vmem:[#allocation5 + $0x2278] sm:$0xff]
    %v1156 = vld [vmem:[#allocation5 + $0x2280] sm:$0xff]
    %v1157 = vld [vmem:[#allocation5 + $0x2288] sm:$0xff]
    %v1158 = vld [vmem:[#allocation5 + $0x2290] sm:$0xff]
    %v1159 = vld [vmem:[#allocation5 + $0x2298] sm:$0xff]
    %v1160 = vld [vmem:[#allocation5 + $0x22a0] sm:$0xff]
    %v1161 = vld [vmem:[#allocation5 + $0x22a8] sm:$0xff]
    %v1162 = vld [vmem:[#allocation5 + $0x22b0] sm:$0xff]
    %v1163 = vld [vmem:[#allocation5 + $0x22b8] sm:$0xff]
    %v1164 = vld [vmem:[#allocation5 + $0x22c0] sm:$0xff]
    %v1165 = vld [vmem:[#allocation5 + $0x22c8] sm:$0xff]
    %v1166 = vld [vmem:[#allocation5 + $0x22d0] sm:$0xff]
    %v1167 = vld [vmem:[#allocation5 + $0x22d8] sm:$0xff]
    %v1168 = vld [vmem:[#allocation5 + $0x22e0] sm:$0xff]
    %v1169 = vld [vmem:[#allocation5 + $0x22e8] sm:$0xff]
    %v1170 = vld [vmem:[#allocation5 + $0x22f0] sm:$0xff]
    %v1171 = vld [vmem:[#allocation5 + $0x22f8] sm:$0xff]
    %v1172 = vld [vmem:[#allocation5 + $0x2300] sm:$0xff]
    %v1173 = vld [vmem:[#allocation5 + $0x2308] sm:$0xff]
    %v1174 = vld [vmem:[#allocation5 + $0x2310] sm:$0xff]
    %v1175 = vld [vmem:[#allocation5 + $0x2318] sm:$0xff]
    %v1176 = vld [vmem:[#allocation5 + $0x2320] sm:$0xff]
    %v1177 = vld [vmem:[#allocation5 + $0x2328] sm:$0xff]
    %v1178 = vld [vmem:[#allocation5 + $0x2330] sm:$0xff]
    %v1179 = vld [vmem:[#allocation5 + $0x2338] sm:$0xff]
    %v1180 = vld [vmem:[#allocation5 + $0x2340] sm:$0xff]
    %v1181 = vld [vmem:[#allocation5 + $0x2348] sm:$0xff]
    %v1182 = vld [vmem:[#allocation5 + $0x2350] sm:$0xff]
    %v1183 = vld [vmem:[#allocation5 + $0x2358] sm:$0xff]
    %v1184 = vld [vmem:[#allocation5 + $0x2360] sm:$0xff]
    %v1185 = vld [vmem:[#allocation5 + $0x2368] sm:$0xff]
    %v1186 = vld [vmem:[#allocation5 + $0x2370] sm:$0xff]
    %v1187 = vld [vmem:[#allocation5 + $0x2378] sm:$0xff]
    %v1188 = vld [vmem:[#allocation5 + $0x2380] sm:$0xff]
    %v1189 = vld [vmem:[#allocation5 + $0x2388] sm:$0xff]
    %v1190 = vld [vmem:[#allocation5 + $0x2390] sm:$0xff]
    %v1191 = vld [vmem:[#allocation5 + $0x2398] sm:$0xff]
    %v1192 = vld [vmem:[#allocation5 + $0x23a0] sm:$0xff]
    %v1193 = vld [vmem:[#allocation5 + $0x23a8] sm:$0xff]
    %v1194 = vld [vmem:[#allocation5 + $0x23b0] sm:$0xff]
    %v1195 = vld [vmem:[#allocation5 + $0x23b8] sm:$0xff]
    %v1196 = vld [vmem:[#allocation5 + $0x23c0] sm:$0xff]
    %v1197 = vld [vmem:[#allocation5 + $0x23c8] sm:$0xff]
    %v1198 = vld [vmem:[#allocation5 + $0x23d0] sm:$0xff]
    %v1199 = vld [vmem:[#allocation5 + $0x23d8] sm:$0xff]
    %v1200 = vld [vmem:[#allocation5 + $0x23e0] sm:$0xff]
    %v1201 = vld [vmem:[#allocation5 + $0x23e8] sm:$0xff]
    %v1202 = vld [vmem:[#allocation5 + $0x23f0] sm:$0xff]
    %v1203 = vld [vmem:[#allocation5 + $0x23f8] sm:$0xff]
    %v1204 = vld [vmem:[#allocation5 + $0x2400] sm:$0xff]
    %v1205 = vld [vmem:[#allocation5 + $0x2408] sm:$0xff]
    %v1206 = vld [vmem:[#allocation5 + $0x2410] sm:$0xff]
    %v1207 = vld [vmem:[#allocation5 + $0x2418] sm:$0xff]
    %v1208 = vld [vmem:[#allocation5 + $0x2420] sm:$0xff]
    %v1209 = vld [vmem:[#allocation5 + $0x2428] sm:$0xff]
    %v1210 = vld [vmem:[#allocation5 + $0x2430] sm:$0xff]
    %v1211 = vld [vmem:[#allocation5 + $0x2438] sm:$0xff]
    %v1212 = vld [vmem:[#allocation5 + $0x2440] sm:$0xff]
    %v1213 = vld [vmem:[#allocation5 + $0x2448] sm:$0xff]
    %v1214 = vld [vmem:[#allocation5 + $0x2450] sm:$0xff]
    %v1215 = vld [vmem:[#allocation5 + $0x2458] sm:$0xff]
    %v1216 = vld [vmem:[#allocation5 + $0x2460] sm:$0xff]
    %v1217 = vld [vmem:[#allocation5 + $0x2468] sm:$0xff]
    %v1218 = vld [vmem:[#allocation5 + $0x2470] sm:$0xff]
    %v1219 = vld [vmem:[#allocation5 + $0x2478] sm:$0xff]
    %v1220 = vld [vmem:[#allocation5 + $0x2480] sm:$0xff]
    %v1221 = vld [vmem:[#allocation5 + $0x2488] sm:$0xff]
    %v1222 = vld [vmem:[#allocation5 + $0x2490] sm:$0xff]
    %v1223 = vld [vmem:[#allocation5 + $0x2498] sm:$0xff]
    %v1224 = vld [vmem:[#allocation5 + $0x24a0] sm:$0xff]
    %v1225 = vld [vmem:[#allocation5 + $0x24a8] sm:$0xff]
    %v1226 = vld [vmem:[#allocation5 + $0x24b0] sm:$0xff]
    %v1227 = vld [vmem:[#allocation5 + $0x24b8] sm:$0xff]
    %v1228 = vld [vmem:[#allocation5 + $0x24c0] sm:$0xff]
    %v1229 = vld [vmem:[#allocation5 + $0x24c8] sm:$0xff]
    %v1230 = vld [vmem:[#allocation5 + $0x24d0] sm:$0xff]
    %v1231 = vld [vmem:[#allocation5 + $0x24d8] sm:$0xff]
    %v1232 = vld [vmem:[#allocation5 + $0x24e0] sm:$0xff]
    %v1233 = vld [vmem:[#allocation5 + $0x24e8] sm:$0xff]
    %v1234 = vld [vmem:[#allocation5 + $0x24f0] sm:$0xff]
    %v1235 = vld [vmem:[#allocation5 + $0x24f8] sm:$0xff]
    %v1236 = vld [vmem:[#allocation5 + $0x2500] sm:$0xff]
    %v1237 = vld [vmem:[#allocation5 + $0x2508] sm:$0xff]
    %v1238 = vld [vmem:[#allocation5 + $0x2510] sm:$0xff]
    %v1239 = vld [vmem:[#allocation5 + $0x2518] sm:$0xff]
    %v1240 = vld [vmem:[#allocation5 + $0x2520] sm:$0xff]
    %v1241 = vld [vmem:[#allocation5 + $0x2528] sm:$0xff]
    %v1242 = vld [vmem:[#allocation5 + $0x2530] sm:$0xff]
    %v1243 = vld [vmem:[#allocation5 + $0x2538] sm:$0xff]
    %v1244 = vld [vmem:[#allocation5 + $0x2540] sm:$0xff]
    %v1245 = vld [vmem:[#allocation5 + $0x2548] sm:$0xff]
    %v1246 = vld [vmem:[#allocation5 + $0x2550] sm:$0xff]
    %v1247 = vld [vmem:[#allocation5 + $0x2558] sm:$0xff]
    %v1248 = vld [vmem:[#allocation5 + $0x2560] sm:$0xff]
    %v1249 = vld [vmem:[#allocation5 + $0x2568] sm:$0xff]
    %v1250 = vld [vmem:[#allocation5 + $0x2570] sm:$0xff]
    %v1251 = vld [vmem:[#allocation5 + $0x2578] sm:$0xff]
    %v1252 = vld [vmem:[#allocation5 + $0x2580] sm:$0xff]
    %v1253 = vld [vmem:[#allocation5 + $0x2588] sm:$0xff]
    %v1254 = vld [vmem:[#allocation5 + $0x2590] sm:$0xff]
    %v1255 = vld [vmem:[#allocation5 + $0x2598] sm:$0xff]
    %v1256 = vld [vmem:[#allocation5 + $0x25a0] sm:$0xff]
    %v1257 = vld [vmem:[#allocation5 + $0x25a8] sm:$0xff]
    %v1258 = vld [vmem:[#allocation5 + $0x25b0] sm:$0xff]
    %v1259 = vld [vmem:[#allocation5 + $0x25b8] sm:$0xff]
    %v1260 = vld [vmem:[#allocation5 + $0x25c0] sm:$0xff]
    %v1261 = vld [vmem:[#allocation5 + $0x25c8] sm:$0xff]
    %v1262 = vld [vmem:[#allocation5 + $0x25d0] sm:$0xff]
    %v1263 = vld [vmem:[#allocation5 + $0x25d8] sm:$0xff]
    %v1264 = vld [vmem:[#allocation5 + $0x25e0] sm:$0xff]
    %v1265 = vld [vmem:[#allocation5 + $0x25e8] sm:$0xff]
    %v1266 = vld [vmem:[#allocation5 + $0x25f0] sm:$0xff]
    %v1267 = vld [vmem:[#allocation5 + $0x25f8] sm:$0xff]
    %v1268 = vld [vmem:[#allocation5 + $0x2600] sm:$0xff]
    %v1269 = vld [vmem:[#allocation5 + $0x2608] sm:$0xff]
    %v1270 = vld [vmem:[#allocation5 + $0x2610] sm:$0xff]
    %v1271 = vld [vmem:[#allocation5 + $0x2618] sm:$0xff]
    %v1272 = vld [vmem:[#allocation5 + $0x2620] sm:$0xff]
    %v1273 = vld [vmem:[#allocation5 + $0x2628] sm:$0xff]
    %v1274 = vld [vmem:[#allocation5 + $0x2630] sm:$0xff]
    %v1275 = vld [vmem:[#allocation5 + $0x2638] sm:$0xff]
    %v1276 = vld [vmem:[#allocation5 + $0x2640] sm:$0xff]
    %v1277 = vld [vmem:[#allocation5 + $0x2648] sm:$0xff]
    %v1278 = vld [vmem:[#allocation5 + $0x2650] sm:$0xff]
    %v1279 = vld [vmem:[#allocation5 + $0x2658] sm:$0xff]
    %v1280 = vld [vmem:[#allocation5 + $0x2660] sm:$0xff]
    %v1281 = vld [vmem:[#allocation5 + $0x2668] sm:$0xff]
    %v1282 = vld [vmem:[#allocation5 + $0x2670] sm:$0xff]
    %v1283 = vld [vmem:[#allocation5 + $0x2678] sm:$0xff]
    %v1284 = vld [vmem:[#allocation5 + $0x2680] sm:$0xff]
    %v1285 = vld [vmem:[#allocation5 + $0x2688] sm:$0xff]
    %v1286 = vld [vmem:[#allocation5 + $0x2690] sm:$0xff]
    %v1287 = vld [vmem:[#allocation5 + $0x2698] sm:$0xff]
    %v1288 = vld [vmem:[#allocation5 + $0x26a0] sm:$0xff]
    %v1289 = vld [vmem:[#allocation5 + $0x26a8] sm:$0xff]
    %v1290 = vld [vmem:[#allocation5 + $0x26b0] sm:$0xff]
    %v1291 = vld [vmem:[#allocation5 + $0x26b8] sm:$0xff]
    %v1292 = vld [vmem:[#allocation5 + $0x26c0] sm:$0xff]
    %v1293 = vld [vmem:[#allocation5 + $0x26c8] sm:$0xff]
    %v1294 = vld [vmem:[#allocation5 + $0x26d0] sm:$0xff]
    %v1295 = vld [vmem:[#allocation5 + $0x26d8] sm:$0xff]
    %v1296 = vld [vmem:[#allocation5 + $0x26e0] sm:$0xff]
    %v1297 = vld [vmem:[#allocation5 + $0x26e8] sm:$0xff]
    %v1298 = vld [vmem:[#allocation5 + $0x26f0] sm:$0xff]
    %v1299 = vld [vmem:[#allocation5 + $0x26f8] sm:$0xff]
    %v1300 = vld [vmem:[#allocation5 + $0x2700] sm:$0xff]
    %v1301 = vld [vmem:[#allocation5 + $0x2708] sm:$0xff]
    %v1302 = vld [vmem:[#allocation5 + $0x2710] sm:$0xff]
    %v1303 = vld [vmem:[#allocation5 + $0x2718] sm:$0xff]
    %v1304 = vld [vmem:[#allocation5 + $0x2720] sm:$0xff]
    %v1305 = vld [vmem:[#allocation5 + $0x2728] sm:$0xff]
    %v1306 = vld [vmem:[#allocation5 + $0x2730] sm:$0xff]
    %v1307 = vld [vmem:[#allocation5 + $0x2738] sm:$0xff]
    %v1308 = vld [vmem:[#allocation5 + $0x2740] sm:$0xff]
    %v1309 = vld [vmem:[#allocation5 + $0x2748] sm:$0xff]
    %v1310 = vld [vmem:[#allocation5 + $0x2750] sm:$0xff]
    %v1311 = vld [vmem:[#allocation5 + $0x2758] sm:$0xff]
    %v1312 = vld [vmem:[#allocation5 + $0x2760] sm:$0xff]
    %v1313 = vld [vmem:[#allocation5 + $0x2768] sm:$0xff]
    %v1314 = vld [vmem:[#allocation5 + $0x2770] sm:$0xff]
    %v1315 = vld [vmem:[#allocation5 + $0x2778] sm:$0xff]
    %v1316 = vld [vmem:[#allocation5 + $0x2780] sm:$0xff]
    %v1317 = vld [vmem:[#allocation5 + $0x2788] sm:$0xff]
    %v1318 = vld [vmem:[#allocation5 + $0x2790] sm:$0xff]
    %v1319 = vld [vmem:[#allocation5 + $0x2798] sm:$0xff]
    %v1320 = vld [vmem:[#allocation5 + $0x27a0] sm:$0xff]
    %v1321 = vld [vmem:[#allocation5 + $0x27a8] sm:$0xff]
    %v1322 = vld [vmem:[#allocation5 + $0x27b0] sm:$0xff]
    %v1323 = vld [vmem:[#allocation5 + $0x27b8] sm:$0xff]
    %v1324 = vld [vmem:[#allocation5 + $0x27c0] sm:$0xff]
    %v1325 = vld [vmem:[#allocation5 + $0x27c8] sm:$0xff]
    %v1326 = vld [vmem:[#allocation5 + $0x27d0] sm:$0xff]
    %v1327 = vld [vmem:[#allocation5 + $0x27d8] sm:$0xff]
    %v1328 = vld [vmem:[#allocation5 + $0x27e0] sm:$0xff]
    %v1329 = vld [vmem:[#allocation5 + $0x27e8] sm:$0xff]
    %v1330 = vld [vmem:[#allocation5 + $0x27f0] sm:$0xff]
    %v1331 = vld [vmem:[#allocation5 + $0x27f8] sm:$0xff]
    %v1332 = vld [vmem:[#allocation5 + $0x2800] sm:$0xff]
    %v1333 = vld [vmem:[#allocation5 + $0x2808] sm:$0xff]
    %v1334 = vld [vmem:[#allocation5 + $0x2810] sm:$0xff]
    %v1335 = vld [vmem:[#allocation5 + $0x2818] sm:$0xff]
    %v1336 = vld [vmem:[#allocation5 + $0x2820] sm:$0xff]
    %v1337 = vld [vmem:[#allocation5 + $0x2828] sm:$0xff]
    %v1338 = vld [vmem:[#allocation5 + $0x2830] sm:$0xff]
    %v1339 = vld [vmem:[#allocation5 + $0x2838] sm:$0xff]
    %v1340 = vld [vmem:[#allocation5 + $0x2840] sm:$0xff]
    %v1341 = vld [vmem:[#allocation5 + $0x2848] sm:$0xff]
    %v1342 = vld [vmem:[#allocation5 + $0x2850] sm:$0xff]
    %v1343 = vld [vmem:[#allocation5 + $0x2858] sm:$0xff]
    %v1344 = vld [vmem:[#allocation5 + $0x2860] sm:$0xff]
    %v1345 = vld [vmem:[#allocation5 + $0x2868] sm:$0xff]
    %v1346 = vld [vmem:[#allocation5 + $0x2870] sm:$0xff]
    %v1347 = vld [vmem:[#allocation5 + $0x2878] sm:$0xff]
    %v1348 = vld [vmem:[#allocation5 + $0x2880] sm:$0xff]
    %v1349 = vld [vmem:[#allocation5 + $0x2888] sm:$0xff]
    %v1350 = vld [vmem:[#allocation5 + $0x2890] sm:$0xff]
    %v1351 = vld [vmem:[#allocation5 + $0x2898] sm:$0xff]
    %v1352 = vld [vmem:[#allocation5 + $0x28a0] sm:$0xff]
    %v1353 = vld [vmem:[#allocation5 + $0x28a8] sm:$0xff]
    %v1354 = vld [vmem:[#allocation5 + $0x28b0] sm:$0xff]
    %v1355 = vld [vmem:[#allocation5 + $0x28b8] sm:$0xff]
    %v1356 = vld [vmem:[#allocation5 + $0x28c0] sm:$0xff]
    %v1357 = vld [vmem:[#allocation5 + $0x28c8] sm:$0xff]
    %v1358 = vld [vmem:[#allocation5 + $0x28d0] sm:$0xff]
    %v1359 = vld [vmem:[#allocation5 + $0x28d8] sm:$0xff]
    %v1360 = vld [vmem:[#allocation5 + $0x28e0] sm:$0xff]
    %v1361 = vld [vmem:[#allocation5 + $0x28e8] sm:$0xff]
    %v1362 = vld [vmem:[#allocation5 + $0x28f0] sm:$0xff]
    %v1363 = vld [vmem:[#allocation5 + $0x28f8] sm:$0xff]
    %v1364 = vld [vmem:[#allocation5 + $0x2900] sm:$0xff]
    %v1365 = vld [vmem:[#allocation5 + $0x2908] sm:$0xff]
    %v1366 = vld [vmem:[#allocation5 + $0x2910] sm:$0xff]
    %v1367 = vld [vmem:[#allocation5 + $0x2918] sm:$0xff]
    %v1368 = vld [vmem:[#allocation5 + $0x2920] sm:$0xff]
    %v1369 = vld [vmem:[#allocation5 + $0x2928] sm:$0xff]
    %v1370 = vld [vmem:[#allocation5 + $0x2930] sm:$0xff]
    %v1371 = vld [vmem:[#allocation5 + $0x2938] sm:$0xff]
    %v1372 = vld [vmem:[#allocation5 + $0x2940] sm:$0xff]
    %v1373 = vld [vmem:[#allocation5 + $0x2948] sm:$0xff]
    %v1374 = vld [vmem:[#allocation5 + $0x2950] sm:$0xff]
    %v1375 = vld [vmem:[#allocation5 + $0x2958] sm:$0xff]
    %v1376 = vld [vmem:[#allocation5 + $0x2960] sm:$0xff]
    %v1377 = vld [vmem:[#allocation5 + $0x2968] sm:$0xff]
    %v1378 = vld [vmem:[#allocation5 + $0x2970] sm:$0xff]
    %v1379 = vld [vmem:[#allocation5 + $0x2978] sm:$0xff]
    %v1380 = vld [vmem:[#allocation5 + $0x2980] sm:$0xff]
    %v1381 = vld [vmem:[#allocation5 + $0x2988] sm:$0xff]
    %v1382 = vld [vmem:[#allocation5 + $0x2990] sm:$0xff]
    %v1383 = vld [vmem:[#allocation5 + $0x2998] sm:$0xff]
    %v1384 = vld [vmem:[#allocation5 + $0x29a0] sm:$0xff]
    %v1385 = vld [vmem:[#allocation5 + $0x29a8] sm:$0xff]
    %v1386 = vld [vmem:[#allocation5 + $0x29b0] sm:$0xff]
    %v1387 = vld [vmem:[#allocation5 + $0x29b8] sm:$0xff]
    %v1388 = vld [vmem:[#allocation5 + $0x29c0] sm:$0xff]
    %v1389 = vld [vmem:[#allocation5 + $0x29c8] sm:$0xff]
    %v1390 = vld [vmem:[#allocation5 + $0x29d0] sm:$0xff]
    %v1391 = vld [vmem:[#allocation5 + $0x29d8] sm:$0xff]
    %v1392 = vld [vmem:[#allocation5 + $0x29e0] sm:$0xff]
    %v1393 = vld [vmem:[#allocation5 + $0x29e8] sm:$0xff]
    %v1394 = vld [vmem:[#allocation5 + $0x29f0] sm:$0xff]
    %v1395 = vld [vmem:[#allocation5 + $0x29f8] sm:$0xff]
    %v1396 = vld [vmem:[#allocation5 + $0x2a00] sm:$0xff]
    %v1397 = vld [vmem:[#allocation5 + $0x2a08] sm:$0xff]
    %v1398 = vld [vmem:[#allocation5 + $0x2a10] sm:$0xff]
    %v1399 = vld [vmem:[#allocation5 + $0x2a18] sm:$0xff]
    %v1400 = vld [vmem:[#allocation5 + $0x2a20] sm:$0xff]
    %v1401 = vld [vmem:[#allocation5 + $0x2a28] sm:$0xff]
    %v1402 = vld [vmem:[#allocation5 + $0x2a30] sm:$0xff]
    %v1403 = vld [vmem:[#allocation5 + $0x2a38] sm:$0xff]
    %v1404 = vld [vmem:[#allocation5 + $0x2a40] sm:$0xff]
    %v1405 = vld [vmem:[#allocation5 + $0x2a48] sm:$0xff]
    %v1406 = vld [vmem:[#allocation5 + $0x2a50] sm:$0xff]
    %v1407 = vld [vmem:[#allocation5 + $0x2a58] sm:$0xff]
    %v1408 = vld [vmem:[#allocation5 + $0x2a60] sm:$0xff]
    %v1409 = vld [vmem:[#allocation5 + $0x2a68] sm:$0xff]
    %v1410 = vld [vmem:[#allocation5 + $0x2a70] sm:$0xff]
    %v1411 = vld [vmem:[#allocation5 + $0x2a78] sm:$0xff]
    %v1412 = vld [vmem:[#allocation5 + $0x2a80] sm:$0xff]
    %v1413 = vld [vmem:[#allocation5 + $0x2a88] sm:$0xff]
    %v1414 = vld [vmem:[#allocation5 + $0x2a90] sm:$0xff]
    %v1415 = vld [vmem:[#allocation5 + $0x2a98] sm:$0xff]
    %v1416 = vld [vmem:[#allocation5 + $0x2aa0] sm:$0xff]
    %v1417 = vld [vmem:[#allocation5 + $0x2aa8] sm:$0xff]
    %v1418 = vld [vmem:[#allocation5 + $0x2ab0] sm:$0xff]
    %v1419 = vld [vmem:[#allocation5 + $0x2ab8] sm:$0xff]
    %v1420 = vld [vmem:[#allocation5 + $0x2ac0] sm:$0xff]
    %v1421 = vld [vmem:[#allocation5 + $0x2ac8] sm:$0xff]
    %v1422 = vld [vmem:[#allocation5 + $0x2ad0] sm:$0xff]
    %v1423 = vld [vmem:[#allocation5 + $0x2ad8] sm:$0xff]
    %v1424 = vld [vmem:[#allocation5 + $0x2ae0] sm:$0xff]
    %v1425 = vld [vmem:[#allocation5 + $0x2ae8] sm:$0xff]
    %v1426 = vld [vmem:[#allocation5 + $0x2af0] sm:$0xff]
    %v1427 = vld [vmem:[#allocation5 + $0x2af8] sm:$0xff]
    %v1428 = vld [vmem:[#allocation5 + $0x2b00] sm:$0xff]
    %v1429 = vld [vmem:[#allocation5 + $0x2b08] sm:$0xff]
    %v1430 = vld [vmem:[#allocation5 + $0x2b10] sm:$0xff]
    %v1431 = vld [vmem:[#allocation5 + $0x2b18] sm:$0xff]
    %v1432 = vld [vmem:[#allocation5 + $0x2b20] sm:$0xff]
    %v1433 = vld [vmem:[#allocation5 + $0x2b28] sm:$0xff]
    %v1434 = vld [vmem:[#allocation5 + $0x2b30] sm:$0xff]
    %v1435 = vld [vmem:[#allocation5 + $0x2b38] sm:$0xff]
    %v1436 = vld [vmem:[#allocation5 + $0x2b40] sm:$0xff]
    %v1437 = vld [vmem:[#allocation5 + $0x2b48] sm:$0xff]
    %v1438 = vld [vmem:[#allocation5 + $0x2b50] sm:$0xff]
    %v1439 = vld [vmem:[#allocation5 + $0x2b58] sm:$0xff]
    %v1440 = vld [vmem:[#allocation5 + $0x2b60] sm:$0xff]
    %v1441 = vld [vmem:[#allocation5 + $0x2b68] sm:$0xff]
    %v1442 = vld [vmem:[#allocation5 + $0x2b70] sm:$0xff]
    %v1443 = vld [vmem:[#allocation5 + $0x2b78] sm:$0xff]
    %v1444 = vld [vmem:[#allocation5 + $0x2b80] sm:$0xff]
    %v1445 = vld [vmem:[#allocation5 + $0x2b88] sm:$0xff]
    %v1446 = vld [vmem:[#allocation5 + $0x2b90] sm:$0xff]
    %v1447 = vld [vmem:[#allocation5 + $0x2b98] sm:$0xff]
    %v1448 = vld [vmem:[#allocation5 + $0x2ba0] sm:$0xff]
    %v1449 = vld [vmem:[#allocation5 + $0x2ba8] sm:$0xff]
    %v1450 = vld [vmem:[#allocation5 + $0x2bb0] sm:$0xff]
    %v1451 = vld [vmem:[#allocation5 + $0x2bb8] sm:$0xff]
    %v1452 = vld [vmem:[#allocation5 + $0x2bc0] sm:$0xff]
    %v1453 = vld [vmem:[#allocation5 + $0x2bc8] sm:$0xff]
    %v1454 = vld [vmem:[#allocation5 + $0x2bd0] sm:$0xff]
    %v1455 = vld [vmem:[#allocation5 + $0x2bd8] sm:$0xff]
    %v1456 = vld [vmem:[#allocation5 + $0x2be0] sm:$0xff]
    %v1457 = vld [vmem:[#allocation5 + $0x2be8] sm:$0xff]
    %v1458 = vld [vmem:[#allocation5 + $0x2bf0] sm:$0xff]
    %v1459 = vld [vmem:[#allocation5 + $0x2bf8] sm:$0xff]
    %v1460 = vld [vmem:[#allocation5 + $0x2c00] sm:$0xff]
    %v1461 = vld [vmem:[#allocation5 + $0x2c08] sm:$0xff]
    %v1462 = vld [vmem:[#allocation5 + $0x2c10] sm:$0xff]
    %v1463 = vld [vmem:[#allocation5 + $0x2c18] sm:$0xff]
    %v1464 = vld [vmem:[#allocation5 + $0x2c20] sm:$0xff]
    %v1465 = vld [vmem:[#allocation5 + $0x2c28] sm:$0xff]
    %v1466 = vld [vmem:[#allocation5 + $0x2c30] sm:$0xff]
    %v1467 = vld [vmem:[#allocation5 + $0x2c38] sm:$0xff]
    %v1468 = vld [vmem:[#allocation5 + $0x2c40] sm:$0xff]
    %v1469 = vld [vmem:[#allocation5 + $0x2c48] sm:$0xff]
    %v1470 = vld [vmem:[#allocation5 + $0x2c50] sm:$0xff]
    %v1471 = vld [vmem:[#allocation5 + $0x2c58] sm:$0xff]
    %v1472 = vld [vmem:[#allocation5 + $0x2c60] sm:$0xff]
    %v1473 = vld [vmem:[#allocation5 + $0x2c68] sm:$0xff]
    %v1474 = vld [vmem:[#allocation5 + $0x2c70] sm:$0xff]
    %v1475 = vld [vmem:[#allocation5 + $0x2c78] sm:$0xff]
    %v1476 = vld [vmem:[#allocation5 + $0x2c80] sm:$0xff]
    %v1477 = vld [vmem:[#allocation5 + $0x2c88] sm:$0xff]
    %v1478 = vld [vmem:[#allocation5 + $0x2c90] sm:$0xff]
    %v1479 = vld [vmem:[#allocation5 + $0x2c98] sm:$0xff]
    %v1480 = vld [vmem:[#allocation5 + $0x2ca0] sm:$0xff]
    %v1481 = vld [vmem:[#allocation5 + $0x2ca8] sm:$0xff]
    %v1482 = vld [vmem:[#allocation5 + $0x2cb0] sm:$0xff]
    %v1483 = vld [vmem:[#allocation5 + $0x2cb8] sm:$0xff]
    %v1484 = vld [vmem:[#allocation5 + $0x2cc0] sm:$0xff]
    %v1485 = vld [vmem:[#allocation5 + $0x2cc8] sm:$0xff]
    %v1486 = vld [vmem:[#allocation5 + $0x2cd0] sm:$0xff]
    %v1487 = vld [vmem:[#allocation5 + $0x2cd8] sm:$0xff]
    %v1488 = vld [vmem:[#allocation5 + $0x2ce0] sm:$0xff]
    %v1489 = vld [vmem:[#allocation5 + $0x2ce8] sm:$0xff]
    %v1490 = vld [vmem:[#allocation5 + $0x2cf0] sm:$0xff]
    %v1491 = vld [vmem:[#allocation5 + $0x2cf8] sm:$0xff]
    %v1492 = vld [vmem:[#allocation5 + $0x2d00] sm:$0xff]
    %v1493 = vld [vmem:[#allocation5 + $0x2d08] sm:$0xff]
    %v1494 = vld [vmem:[#allocation5 + $0x2d10] sm:$0xff]
    %v1495 = vld [vmem:[#allocation5 + $0x2d18] sm:$0xff]
    %v1496 = vld [vmem:[#allocation5 + $0x2d20] sm:$0xff]
    %v1497 = vld [vmem:[#allocation5 + $0x2d28] sm:$0xff]
    %v1498 = vld [vmem:[#allocation5 + $0x2d30] sm:$0xff]
    %v1499 = vld [vmem:[#allocation5 + $0x2d38] sm:$0xff]
    %v1500 = vld [vmem:[#allocation5 + $0x2d40] sm:$0xff]
    %v1501 = vld [vmem:[#allocation5 + $0x2d48] sm:$0xff]
    %v1502 = vld [vmem:[#allocation5 + $0x2d50] sm:$0xff]
    %v1503 = vld [vmem:[#allocation5 + $0x2d58] sm:$0xff]
    %v1504 = vld [vmem:[#allocation5 + $0x2d60] sm:$0xff]
    %v1505 = vld [vmem:[#allocation5 + $0x2d68] sm:$0xff]
    %v1506 = vld [vmem:[#allocation5 + $0x2d70] sm:$0xff]
    %v1507 = vld [vmem:[#allocation5 + $0x2d78] sm:$0xff]
    %v1508 = vld [vmem:[#allocation5 + $0x2d80] sm:$0xff]
    %v1509 = vld [vmem:[#allocation5 + $0x2d88] sm:$0xff]
    %v1510 = vld [vmem:[#allocation5 + $0x2d90] sm:$0xff]
    %v1511 = vld [vmem:[#allocation5 + $0x2d98] sm:$0xff]
    %v1512 = vld [vmem:[#allocation5 + $0x2da0] sm:$0xff]
    %v1513 = vld [vmem:[#allocation5 + $0x2da8] sm:$0xff]
    %v1514 = vld [vmem:[#allocation5 + $0x2db0] sm:$0xff]
    %v1515 = vld [vmem:[#allocation5 + $0x2db8] sm:$0xff]
    %v1516 = vld [vmem:[#allocation5 + $0x2dc0] sm:$0xff]
    %v1517 = vld [vmem:[#allocation5 + $0x2dc8] sm:$0xff]
    %v1518 = vld [vmem:[#allocation5 + $0x2dd0] sm:$0xff]
    %v1519 = vld [vmem:[#allocation5 + $0x2dd8] sm:$0xff]
    %v1520 = vld [vmem:[#allocation5 + $0x2de0] sm:$0xff]
    %v1521 = vld [vmem:[#allocation5 + $0x2de8] sm:$0xff]
    %v1522 = vld [vmem:[#allocation5 + $0x2df0] sm:$0xff]
    %v1523 = vld [vmem:[#allocation5 + $0x2df8] sm:$0xff]
    %v1524 = vld [vmem:[#allocation5 + $0x2e00] sm:$0xff]
    %v1525 = vld [vmem:[#allocation5 + $0x2e08] sm:$0xff]
    %v1526 = vld [vmem:[#allocation5 + $0x2e10] sm:$0xff]
    %v1527 = vld [vmem:[#allocation5 + $0x2e18] sm:$0xff]
    %v1528 = vld [vmem:[#allocation5 + $0x2e20] sm:$0xff]
    %v1529 = vld [vmem:[#allocation5 + $0x2e28] sm:$0xff]
    %v1530 = vld [vmem:[#allocation5 + $0x2e30] sm:$0xff]
    %v1531 = vld [vmem:[#allocation5 + $0x2e38] sm:$0xff]
    %v1532 = vld [vmem:[#allocation5 + $0x2e40] sm:$0xff]
    %v1533 = vld [vmem:[#allocation5 + $0x2e48] sm:$0xff]
    %v1534 = vld [vmem:[#allocation5 + $0x2e50] sm:$0xff]
    %v1535 = vld [vmem:[#allocation5 + $0x2e58] sm:$0xff]
    %v1536 = vld [vmem:[#allocation5 + $0x2e60] sm:$0xff]
    %v1537 = vld [vmem:[#allocation5 + $0x2e68] sm:$0xff]
    %v1538 = vld [vmem:[#allocation5 + $0x2e70] sm:$0xff]
    %v1539 = vld [vmem:[#allocation5 + $0x2e78] sm:$0xff]
    %v1540 = vld [vmem:[#allocation5 + $0x2e80] sm:$0xff]
    %v1541 = vld [vmem:[#allocation5 + $0x2e88] sm:$0xff]
    %v1542 = vld [vmem:[#allocation5 + $0x2e90] sm:$0xff]
    %v1543 = vld [vmem:[#allocation5 + $0x2e98] sm:$0xff]
    %v1544 = vld [vmem:[#allocation5 + $0x2ea0] sm:$0xff]
    %v1545 = vld [vmem:[#allocation5 + $0x2ea8] sm:$0xff]
    %v1546 = vld [vmem:[#allocation5 + $0x2eb0] sm:$0xff]
    %v1547 = vld [vmem:[#allocation5 + $0x2eb8] sm:$0xff]
    %v1548 = vld [vmem:[#allocation5 + $0x2ec0] sm:$0xff]
    %v1549 = vld [vmem:[#allocation5 + $0x2ec8] sm:$0xff]
    %v1550 = vld [vmem:[#allocation5 + $0x2ed0] sm:$0xff]
    %v1551 = vld [vmem:[#allocation5 + $0x2ed8] sm:$0xff]
    %v1552 = vld [vmem:[#allocation5 + $0x2ee0] sm:$0xff]
    %v1553 = vld [vmem:[#allocation5 + $0x2ee8] sm:$0xff]
    %v1554 = vld [vmem:[#allocation5 + $0x2ef0] sm:$0xff]
    %v1555 = vld [vmem:[#allocation5 + $0x2ef8] sm:$0xff]
    %v1556 = vld [vmem:[#allocation5 + $0x2f00] sm:$0xff]
    %v1557 = vld [vmem:[#allocation5 + $0x2f08] sm:$0xff]
    %v1558 = vld [vmem:[#allocation5 + $0x2f10] sm:$0xff]
    %v1559 = vld [vmem:[#allocation5 + $0x2f18] sm:$0xff]
    %v1560 = vld [vmem:[#allocation5 + $0x2f20] sm:$0xff]
    %v1561 = vld [vmem:[#allocation5 + $0x2f28] sm:$0xff]
    %v1562 = vld [vmem:[#allocation5 + $0x2f30] sm:$0xff]
    %v1563 = vld [vmem:[#allocation5 + $0x2f38] sm:$0xff]
    %v1564 = vld [vmem:[#allocation5 + $0x2f40] sm:$0xff]
    %v1565 = vld [vmem:[#allocation5 + $0x2f48] sm:$0xff]
    %v1566 = vld [vmem:[#allocation5 + $0x2f50] sm:$0xff]
    %v1567 = vld [vmem:[#allocation5 + $0x2f58] sm:$0xff]
    %v1568 = vld [vmem:[#allocation5 + $0x2f60] sm:$0xff]
    %v1569 = vld [vmem:[#allocation5 + $0x2f68] sm:$0xff]
    %v1570 = vld [vmem:[#allocation5 + $0x2f70] sm:$0xff]
    %v1571 = vld [vmem:[#allocation5 + $0x2f78] sm:$0xff]
    %v1572 = vld [vmem:[#allocation5 + $0x2f80] sm:$0xff]
    %v1573 = vld [vmem:[#allocation5 + $0x2f88] sm:$0xff]
    %v1574 = vld [vmem:[#allocation5 + $0x2f90] sm:$0xff]
    %v1575 = vld [vmem:[#allocation5 + $0x2f98] sm:$0xff]
    %v1576 = vld [vmem:[#allocation5 + $0x2fa0] sm:$0xff]
    %v1577 = vld [vmem:[#allocation5 + $0x2fa8] sm:$0xff]
    %v1578 = vld [vmem:[#allocation5 + $0x2fb0] sm:$0xff]
    %v1579 = vld [vmem:[#allocation5 + $0x2fb8] sm:$0xff]
    %v1580 = vld [vmem:[#allocation5 + $0x2fc0] sm:$0xff]
    %v1581 = vld [vmem:[#allocation5 + $0x2fc8] sm:$0xff]
    %v1582 = vld [vmem:[#allocation5 + $0x2fd0] sm:$0xff]
    %v1583 = vld [vmem:[#allocation5 + $0x2fd8] sm:$0xff]
    %v1584 = vld [vmem:[#allocation5 + $0x2fe0] sm:$0xff]
    %v1585 = vld [vmem:[#allocation5 + $0x2fe8] sm:$0xff]
    %v1586 = vld [vmem:[#allocation5 + $0x2ff0] sm:$0xff]
    %v1587 = vld [vmem:[#allocation5 + $0x2ff8] sm:$0xff]
    %v1588 = vld [vmem:[#allocation5 + $0x3000] sm:$0xff]
    %v1589 = vld [vmem:[#allocation5 + $0x3008] sm:$0xff]
    %v1590 = vld [vmem:[#allocation5 + $0x3010] sm:$0xff]
    %v1591 = vld [vmem:[#allocation5 + $0x3018] sm:$0xff]
    %v1592 = vld [vmem:[#allocation5 + $0x3020] sm:$0xff]
    %v1593 = vld [vmem:[#allocation5 + $0x3028] sm:$0xff]
    %v1594 = vld [vmem:[#allocation5 + $0x3030] sm:$0xff]
    %v1595 = vld [vmem:[#allocation5 + $0x3038] sm:$0xff]
    %v1596 = vld [vmem:[#allocation5 + $0x3040] sm:$0xff]
    %v1597 = vld [vmem:[#allocation5 + $0x3048] sm:$0xff]
    %v1598 = vld [vmem:[#allocation5 + $0x3050] sm:$0xff]
    %v1599 = vld [vmem:[#allocation5 + $0x3058] sm:$0xff]
    %v1600 = vld [vmem:[#allocation5 + $0x3060] sm:$0xff]
    %v1601 = vld [vmem:[#allocation5 + $0x3068] sm:$0xff]
    %v1602 = vld [vmem:[#allocation5 + $0x3070] sm:$0xff]
    %v1603 = vld [vmem:[#allocation5 + $0x3078] sm:$0xff]
    %v1604 = vld [vmem:[#allocation5 + $0x3080] sm:$0xff]
    %v1605 = vld [vmem:[#allocation5 + $0x3088] sm:$0xff]
    %v1606 = vld [vmem:[#allocation5 + $0x3090] sm:$0xff]
    %v1607 = vld [vmem:[#allocation5 + $0x3098] sm:$0xff]
    %v1608 = vld [vmem:[#allocation5 + $0x30a0] sm:$0xff]
    %v1609 = vld [vmem:[#allocation5 + $0x30a8] sm:$0xff]
    %v1610 = vld [vmem:[#allocation5 + $0x30b0] sm:$0xff]
    %v1611 = vld [vmem:[#allocation5 + $0x30b8] sm:$0xff]
    %v1612 = vld [vmem:[#allocation5 + $0x30c0] sm:$0xff]
    %v1613 = vld [vmem:[#allocation5 + $0x30c8] sm:$0xff]
    %v1614 = vld [vmem:[#allocation5 + $0x30d0] sm:$0xff]
    %v1615 = vld [vmem:[#allocation5 + $0x30d8] sm:$0xff]
    %v1616 = vld [vmem:[#allocation5 + $0x30e0] sm:$0xff]
    %v1617 = vld [vmem:[#allocation5 + $0x30e8] sm:$0xff]
    %v1618 = vld [vmem:[#allocation5 + $0x30f0] sm:$0xff]
    %v1619 = vld [vmem:[#allocation5 + $0x30f8] sm:$0xff]
    %v1620 = vld [vmem:[#allocation5 + $0x3100] sm:$0xff]
    %v1621 = vld [vmem:[#allocation5 + $0x3108] sm:$0xff]
    %v1622 = vld [vmem:[#allocation5 + $0x3110] sm:$0xff]
    %v1623 = vld [vmem:[#allocation5 + $0x3118] sm:$0xff]
    %v1624 = vld [vmem:[#allocation5 + $0x3120] sm:$0xff]
    %v1625 = vld [vmem:[#allocation5 + $0x3128] sm:$0xff]
    %v1626 = vld [vmem:[#allocation5 + $0x3130] sm:$0xff]
    %v1627 = vld [vmem:[#allocation5 + $0x3138] sm:$0xff]
    %v1628 = vld [vmem:[#allocation5 + $0x3140] sm:$0xff]
    %v1629 = vld [vmem:[#allocation5 + $0x3148] sm:$0xff]
    %v1630 = vld [vmem:[#allocation5 + $0x3150] sm:$0xff]
    %v1631 = vld [vmem:[#allocation5 + $0x3158] sm:$0xff]
    %v1632 = vld [vmem:[#allocation5 + $0x3160] sm:$0xff]
    %v1633 = vld [vmem:[#allocation5 + $0x3168] sm:$0xff]
    %v1634 = vld [vmem:[#allocation5 + $0x3170] sm:$0xff]
    %v1635 = vld [vmem:[#allocation5 + $0x3178] sm:$0xff]
    %v1636 = vld [vmem:[#allocation5 + $0x3180] sm:$0xff]
    %v1637 = vld [vmem:[#allocation5 + $0x3188] sm:$0xff]
    %v1638 = vld [vmem:[#allocation5 + $0x3190] sm:$0xff]
    %v1639 = vld [vmem:[#allocation5 + $0x3198] sm:$0xff]
    %v1640 = vld [vmem:[#allocation5 + $0x31a0] sm:$0xff]
    %v1641 = vld [vmem:[#allocation5 + $0x31a8] sm:$0xff]
    %v1642 = vld [vmem:[#allocation5 + $0x31b0] sm:$0xff]
    %v1643 = vld [vmem:[#allocation5 + $0x31b8] sm:$0xff]
    %v1644 = vld [vmem:[#allocation5 + $0x31c0] sm:$0xff]
    %v1645 = vld [vmem:[#allocation5 + $0x31c8] sm:$0xff]
    %v1646 = vld [vmem:[#allocation5 + $0x31d0] sm:$0xff]
    %v1647 = vld [vmem:[#allocation5 + $0x31d8] sm:$0xff]
    %v1648 = vld [vmem:[#allocation5 + $0x31e0] sm:$0xff]
    %v1649 = vld [vmem:[#allocation5 + $0x31e8] sm:$0xff]
    %v1650 = vld [vmem:[#allocation5 + $0x31f0] sm:$0xff]
    %v1651 = vld [vmem:[#allocation5 + $0x31f8] sm:$0xff]
    %v1652 = vld [vmem:[#allocation5 + $0x3200] sm:$0xff]
    %v1653 = vld [vmem:[#allocation5 + $0x3208] sm:$0xff]
    %v1654 = vld [vmem:[#allocation5 + $0x3210] sm:$0xff]
    %v1655 = vld [vmem:[#allocation5 + $0x3218] sm:$0xff]
    %v1656 = vld [vmem:[#allocation5 + $0x3220] sm:$0xff]
    %v1657 = vld [vmem:[#allocation5 + $0x3228] sm:$0xff]
    %v1658 = vld [vmem:[#allocation5 + $0x3230] sm:$0xff]
    %v1659 = vld [vmem:[#allocation5 + $0x3238] sm:$0xff]
    %v1660 = vld [vmem:[#allocation5 + $0x3240] sm:$0xff]
    %v1661 = vld [vmem:[#allocation5 + $0x3248] sm:$0xff]
    %v1662 = vld [vmem:[#allocation5 + $0x3250] sm:$0xff]
    %v1663 = vld [vmem:[#allocation5 + $0x3258] sm:$0xff]
    %v1664 = vld [vmem:[#allocation5 + $0x3260] sm:$0xff]
    %v1665 = vld [vmem:[#allocation5 + $0x3268] sm:$0xff]
    %v1666 = vld [vmem:[#allocation5 + $0x3270] sm:$0xff]
    %v1667 = vld [vmem:[#allocation5 + $0x3278] sm:$0xff]
    %v1668 = vld [vmem:[#allocation5 + $0x3280] sm:$0xff]
    %v1669 = vld [vmem:[#allocation5 + $0x3288] sm:$0xff]
    %v1670 = vld [vmem:[#allocation5 + $0x3290] sm:$0xff]
    %v1671 = vld [vmem:[#allocation5 + $0x3298] sm:$0xff]
    %v1672 = vld [vmem:[#allocation5 + $0x32a0] sm:$0xff]
    %v1673 = vld [vmem:[#allocation5 + $0x32a8] sm:$0xff]
    %v1674 = vld [vmem:[#allocation5 + $0x32b0] sm:$0xff]
    %v1675 = vld [vmem:[#allocation5 + $0x32b8] sm:$0xff]
    %v1676 = vld [vmem:[#allocation5 + $0x32c0] sm:$0xff]
    %v1677 = vld [vmem:[#allocation5 + $0x32c8] sm:$0xff]
    %v1678 = vld [vmem:[#allocation5 + $0x32d0] sm:$0xff]
    %v1679 = vld [vmem:[#allocation5 + $0x32d8] sm:$0xff]
    %v1680 = vld [vmem:[#allocation5 + $0x32e0] sm:$0xff]
    %v1681 = vld [vmem:[#allocation5 + $0x32e8] sm:$0xff]
    %v1682 = vld [vmem:[#allocation5 + $0x32f0] sm:$0xff]
    %v1683 = vld [vmem:[#allocation5 + $0x32f8] sm:$0xff]
    %v1684 = vld [vmem:[#allocation5 + $0x3300] sm:$0xff]
    %v1685 = vld [vmem:[#allocation5 + $0x3308] sm:$0xff]
    %v1686 = vld [vmem:[#allocation5 + $0x3310] sm:$0xff]
    %v1687 = vld [vmem:[#allocation5 + $0x3318] sm:$0xff]
    %v1688 = vld [vmem:[#allocation5 + $0x3320] sm:$0xff]
    %v1689 = vld [vmem:[#allocation5 + $0x3328] sm:$0xff]
    %v1690 = vld [vmem:[#allocation5 + $0x3330] sm:$0xff]
    %v1691 = vld [vmem:[#allocation5 + $0x3338] sm:$0xff]
    %v1692 = vld [vmem:[#allocation5 + $0x3340] sm:$0xff]
    %v1693 = vld [vmem:[#allocation5 + $0x3348] sm:$0xff]
    %v1694 = vld [vmem:[#allocation5 + $0x3350] sm:$0xff]
    %v1695 = vld [vmem:[#allocation5 + $0x3358] sm:$0xff]
    %v1696 = vld [vmem:[#allocation5 + $0x3360] sm:$0xff]
    %v1697 = vld [vmem:[#allocation5 + $0x3368] sm:$0xff]
    %v1698 = vld [vmem:[#allocation5 + $0x3370] sm:$0xff]
    %v1699 = vld [vmem:[#allocation5 + $0x3378] sm:$0xff]
    %v1700 = vld [vmem:[#allocation5 + $0x3380] sm:$0xff]
    %v1701 = vld [vmem:[#allocation5 + $0x3388] sm:$0xff]
    %v1702 = vld [vmem:[#allocation5 + $0x3390] sm:$0xff]
    %v1703 = vld [vmem:[#allocation5 + $0x3398] sm:$0xff]
    %v1704 = vld [vmem:[#allocation5 + $0x33a0] sm:$0xff]
    %v1705 = vld [vmem:[#allocation5 + $0x33a8] sm:$0xff]
    %v1706 = vld [vmem:[#allocation5 + $0x33b0] sm:$0xff]
    %v1707 = vld [vmem:[#allocation5 + $0x33b8] sm:$0xff]
    %v1708 = vld [vmem:[#allocation5 + $0x33c0] sm:$0xff]
    %v1709 = vld [vmem:[#allocation5 + $0x33c8] sm:$0xff]
    %v1710 = vld [vmem:[#allocation5 + $0x33d0] sm:$0xff]
    %v1711 = vld [vmem:[#allocation5 + $0x33d8] sm:$0xff]
    %v1712 = vld [vmem:[#allocation5 + $0x33e0] sm:$0xff]
    %v1713 = vld [vmem:[#allocation5 + $0x33e8] sm:$0xff]
    %v1714 = vld [vmem:[#allocation5 + $0x33f0] sm:$0xff]
    %v1715 = vld [vmem:[#allocation5 + $0x33f8] sm:$0xff]
    %v1716 = vld [vmem:[#allocation5 + $0x3400] sm:$0xff]
    %v1717 = vld [vmem:[#allocation5 + $0x3408] sm:$0xff]
    %v1718 = vld [vmem:[#allocation5 + $0x3410] sm:$0xff]
    %v1719 = vld [vmem:[#allocation5 + $0x3418] sm:$0xff]
    %v1720 = vld [vmem:[#allocation5 + $0x3420] sm:$0xff]
    %v1721 = vld [vmem:[#allocation5 + $0x3428] sm:$0xff]
    %v1722 = vld [vmem:[#allocation5 + $0x3430] sm:$0xff]
    %v1723 = vld [vmem:[#allocation5 + $0x3438] sm:$0xff]
    %v1724 = vld [vmem:[#allocation5 + $0x3440] sm:$0xff]
    %v1725 = vld [vmem:[#allocation5 + $0x3448] sm:$0xff]
    %v1726 = vld [vmem:[#allocation5 + $0x3450] sm:$0xff]
    %v1727 = vld [vmem:[#allocation5 + $0x3458] sm:$0xff]
    %v1728 = vld [vmem:[#allocation5 + $0x3460] sm:$0xff]
    %v1729 = vld [vmem:[#allocation5 + $0x3468] sm:$0xff]
    %v1730 = vld [vmem:[#allocation5 + $0x3470] sm:$0xff]
    %v1731 = vld [vmem:[#allocation5 + $0x3478] sm:$0xff]
    %v1732 = vld [vmem:[#allocation5 + $0x3480] sm:$0xff]
    %v1733 = vld [vmem:[#allocation5 + $0x3488] sm:$0xff]
    %v1734 = vld [vmem:[#allocation5 + $0x3490] sm:$0xff]
    %v1735 = vld [vmem:[#allocation5 + $0x3498] sm:$0xff]
    %v1736 = vld [vmem:[#allocation5 + $0x34a0] sm:$0xff]
    %v1737 = vld [vmem:[#allocation5 + $0x34a8] sm:$0xff]
    %v1738 = vld [vmem:[#allocation5 + $0x34b0] sm:$0xff]
    %v1739 = vld [vmem:[#allocation5 + $0x34b8] sm:$0xff]
    %v1740 = vld [vmem:[#allocation5 + $0x34c0] sm:$0xff]
    %v1741 = vld [vmem:[#allocation5 + $0x34c8] sm:$0xff]
    %v1742 = vld [vmem:[#allocation5 + $0x34d0] sm:$0xff]
    %v1743 = vld [vmem:[#allocation5 + $0x34d8] sm:$0xff]
    %v1744 = vld [vmem:[#allocation5 + $0x34e0] sm:$0xff]
    %v1745 = vld [vmem:[#allocation5 + $0x34e8] sm:$0xff]
    %v1746 = vld [vmem:[#allocation5 + $0x34f0] sm:$0xff]
    %v1747 = vld [vmem:[#allocation5 + $0x34f8] sm:$0xff]
    %v1748 = vld [vmem:[#allocation5 + $0x3500] sm:$0xff]
    %v1749 = vld [vmem:[#allocation5 + $0x3508] sm:$0xff]
    %v1750 = vld [vmem:[#allocation5 + $0x3510] sm:$0xff]
    %v1751 = vld [vmem:[#allocation5 + $0x3518] sm:$0xff]
    %v1752 = vld [vmem:[#allocation5 + $0x3520] sm:$0xff]
    %v1753 = vld [vmem:[#allocation5 + $0x3528] sm:$0xff]
    %v1754 = vld [vmem:[#allocation5 + $0x3530] sm:$0xff]
    %v1755 = vld [vmem:[#allocation5 + $0x3538] sm:$0xff]
    %v1756 = vld [vmem:[#allocation5 + $0x3540] sm:$0xff]
    %v1757 = vld [vmem:[#allocation5 + $0x3548] sm:$0xff]
    %v1758 = vld [vmem:[#allocation5 + $0x3550] sm:$0xff]
    %v1759 = vld [vmem:[#allocation5 + $0x3558] sm:$0xff]
    %v1760 = vld [vmem:[#allocation5 + $0x3560] sm:$0xff]
    %v1761 = vld [vmem:[#allocation5 + $0x3568] sm:$0xff]
    %v1762 = vld [vmem:[#allocation5 + $0x3570] sm:$0xff]
    %v1763 = vld [vmem:[#allocation5 + $0x3578] sm:$0xff]
    %v1764 = vld [vmem:[#allocation5 + $0x3580] sm:$0xff]
    %v1765 = vld [vmem:[#allocation5 + $0x3588] sm:$0xff]
    %v1766 = vld [vmem:[#allocation5 + $0x3590] sm:$0xff]
    %v1767 = vld [vmem:[#allocation5 + $0x3598] sm:$0xff]
    %v1768 = vld [vmem:[#allocation5 + $0x35a0] sm:$0xff]
    %v1769 = vld [vmem:[#allocation5 + $0x35a8] sm:$0xff]
    %v1770 = vld [vmem:[#allocation5 + $0x35b0] sm:$0xff]
    %v1771 = vld [vmem:[#allocation5 + $0x35b8] sm:$0xff]
    %v1772 = vld [vmem:[#allocation5 + $0x35c0] sm:$0xff]
    %v1773 = vld [vmem:[#allocation5 + $0x35c8] sm:$0xff]
    %v1774 = vld [vmem:[#allocation5 + $0x35d0] sm:$0xff]
    %v1775 = vld [vmem:[#allocation5 + $0x35d8] sm:$0xff]
    %v1776 = vld [vmem:[#allocation5 + $0x35e0] sm:$0xff]
    %v1777 = vld [vmem:[#allocation5 + $0x35e8] sm:$0xff]
    %v1778 = vld [vmem:[#allocation5 + $0x35f0] sm:$0xff]
    %v1779 = vld [vmem:[#allocation5 + $0x35f8] sm:$0xff]
    %v1780 = vld [vmem:[#allocation5 + $0x3600] sm:$0xff]
    %v1781 = vld [vmem:[#allocation5 + $0x3608] sm:$0xff]
    %v1782 = vld [vmem:[#allocation5 + $0x3610] sm:$0xff]
    %v1783 = vld [vmem:[#allocation5 + $0x3618] sm:$0xff]
    %v1784 = vld [vmem:[#allocation5 + $0x3620] sm:$0xff]
    %v1785 = vld [vmem:[#allocation5 + $0x3628] sm:$0xff]
    %v1786 = vld [vmem:[#allocation5 + $0x3630] sm:$0xff]
    %v1787 = vld [vmem:[#allocation5 + $0x3638] sm:$0xff]
    %v1788 = vld [vmem:[#allocation5 + $0x3640] sm:$0xff]
    %v1789 = vld [vmem:[#allocation5 + $0x3648] sm:$0xff]
    %v1790 = vld [vmem:[#allocation5 + $0x3650] sm:$0xff]
    %v1791 = vld [vmem:[#allocation5 + $0x3658] sm:$0xff]
    %v1792 = vld [vmem:[#allocation5 + $0x3660] sm:$0xff]
    %v1793 = vld [vmem:[#allocation5 + $0x3668] sm:$0xff]
    %v1794 = vld [vmem:[#allocation5 + $0x3670] sm:$0xff]
    %v1795 = vld [vmem:[#allocation5 + $0x3678] sm:$0xff]
    %v1796 = vld [vmem:[#allocation5 + $0x3680] sm:$0xff]
    %v1797 = vld [vmem:[#allocation5 + $0x3688] sm:$0xff]
    %v1798 = vld [vmem:[#allocation5 + $0x3690] sm:$0xff]
    %v1799 = vld [vmem:[#allocation5 + $0x3698] sm:$0xff]
    %v1800 = vld [vmem:[#allocation5 + $0x36a0] sm:$0xff]
    %v1801 = vld [vmem:[#allocation5 + $0x36a8] sm:$0xff]
    %v1802 = vld [vmem:[#allocation5 + $0x36b0] sm:$0xff]
    %v1803 = vld [vmem:[#allocation5 + $0x36b8] sm:$0xff]
    %v1804 = vld [vmem:[#allocation5 + $0x36c0] sm:$0xff]
    %v1805 = vld [vmem:[#allocation5 + $0x36c8] sm:$0xff]
    %v1806 = vld [vmem:[#allocation5 + $0x36d0] sm:$0xff]
    %v1807 = vld [vmem:[#allocation5 + $0x36d8] sm:$0xff]
    %v1808 = vld [vmem:[#allocation5 + $0x36e0] sm:$0xff]
    %v1809 = vld [vmem:[#allocation5 + $0x36e8] sm:$0xff]
    %v1810 = vld [vmem:[#allocation5 + $0x36f0] sm:$0xff]
    %v1811 = vld [vmem:[#allocation5 + $0x36f8] sm:$0xff]
    %v1812 = vld [vmem:[#allocation5 + $0x3700] sm:$0xff]
    %v1813 = vld [vmem:[#allocation5 + $0x3708] sm:$0xff]
    %v1814 = vld [vmem:[#allocation5 + $0x3710] sm:$0xff]
    %v1815 = vld [vmem:[#allocation5 + $0x3718] sm:$0xff]
    %v1816 = vld [vmem:[#allocation5 + $0x3720] sm:$0xff]
    %v1817 = vld [vmem:[#allocation5 + $0x3728] sm:$0xff]
    %v1818 = vld [vmem:[#allocation5 + $0x3730] sm:$0xff]
    %v1819 = vld [vmem:[#allocation5 + $0x3738] sm:$0xff]
    %v1820 = vld [vmem:[#allocation5 + $0x3740] sm:$0xff]
    %v1821 = vld [vmem:[#allocation5 + $0x3748] sm:$0xff]
    %v1822 = vld [vmem:[#allocation5 + $0x3750] sm:$0xff]
    %v1823 = vld [vmem:[#allocation5 + $0x3758] sm:$0xff]
    %v1824 = vld [vmem:[#allocation5 + $0x3760] sm:$0xff]
    %v1825 = vld [vmem:[#allocation5 + $0x3768] sm:$0xff]
    %v1826 = vld [vmem:[#allocation5 + $0x3770] sm:$0xff]
    %v1827 = vld [vmem:[#allocation5 + $0x3778] sm:$0xff]
    %v1828 = vld [vmem:[#allocation5 + $0x3780] sm:$0xff]
    %v1829 = vld [vmem:[#allocation5 + $0x3788] sm:$0xff]
    %v1830 = vld [vmem:[#allocation5 + $0x3790] sm:$0xff]
    %v1831 = vld [vmem:[#allocation5 + $0x3798] sm:$0xff]
    %v1832 = vld [vmem:[#allocation5 + $0x37a0] sm:$0xff]
    %v1833 = vld [vmem:[#allocation5 + $0x37a8] sm:$0xff]
    %v1834 = vld [vmem:[#allocation5 + $0x37b0] sm:$0xff]
    %v1835 = vld [vmem:[#allocation5 + $0x37b8] sm:$0xff]
    %v1836 = vld [vmem:[#allocation5 + $0x37c0] sm:$0xff]
    %v1837 = vld [vmem:[#allocation5 + $0x37c8] sm:$0xff]
    %v1838 = vld [vmem:[#allocation5 + $0x37d0] sm:$0xff]
    %v1839 = vld [vmem:[#allocation5 + $0x37d8] sm:$0xff]
    %v1840 = vld [vmem:[#allocation5 + $0x37e0] sm:$0xff]
    %v1841 = vld [vmem:[#allocation5 + $0x37e8] sm:$0xff]
    %v1842 = vld [vmem:[#allocation5 + $0x37f0] sm:$0xff]
    %v1843 = vld [vmem:[#allocation5 + $0x37f8] sm:$0xff]
    %v1844 = vld [vmem:[#allocation5 + $0x3800] sm:$0xff]
    %v1845 = vld [vmem:[#allocation5 + $0x3808] sm:$0xff]
    %v1846 = vld [vmem:[#allocation5 + $0x3810] sm:$0xff]
    %v1847 = vld [vmem:[#allocation5 + $0x3818] sm:$0xff]
    %v1848 = vld [vmem:[#allocation5 + $0x3820] sm:$0xff]
    %v1849 = vld [vmem:[#allocation5 + $0x3828] sm:$0xff]
    %v1850 = vld [vmem:[#allocation5 + $0x3830] sm:$0xff]
    %v1851 = vld [vmem:[#allocation5 + $0x3838] sm:$0xff]
    %v1852 = vld [vmem:[#allocation5 + $0x3840] sm:$0xff]
    %v1853 = vld [vmem:[#allocation5 + $0x3848] sm:$0xff]
    %v1854 = vld [vmem:[#allocation5 + $0x3850] sm:$0xff]
    %v1855 = vld [vmem:[#allocation5 + $0x3858] sm:$0xff]
    %v1856 = vld [vmem:[#allocation5 + $0x3860] sm:$0xff]
    %v1857 = vld [vmem:[#allocation5 + $0x3868] sm:$0xff]
    %v1858 = vld [vmem:[#allocation5 + $0x3870] sm:$0xff]
    %v1859 = vld [vmem:[#allocation5 + $0x3878] sm:$0xff]
    %v1860 = vld [vmem:[#allocation5 + $0x3880] sm:$0xff]
    %v1861 = vld [vmem:[#allocation5 + $0x3888] sm:$0xff]
    %v1862 = vld [vmem:[#allocation5 + $0x3890] sm:$0xff]
    %v1863 = vld [vmem:[#allocation5 + $0x3898] sm:$0xff]
    %v1864 = vld [vmem:[#allocation5 + $0x38a0] sm:$0xff]
    %v1865 = vld [vmem:[#allocation5 + $0x38a8] sm:$0xff]
    %v1866 = vld [vmem:[#allocation5 + $0x38b0] sm:$0xff]
    %v1867 = vld [vmem:[#allocation5 + $0x38b8] sm:$0xff]
    %v1868 = vld [vmem:[#allocation5 + $0x38c0] sm:$0xff]
    %v1869 = vld [vmem:[#allocation5 + $0x38c8] sm:$0xff]
    %v1870 = vld [vmem:[#allocation5 + $0x38d0] sm:$0xff]
    %v1871 = vld [vmem:[#allocation5 + $0x38d8] sm:$0xff]
    %v1872 = vld [vmem:[#allocation5 + $0x38e0] sm:$0xff]
    %v1873 = vld [vmem:[#allocation5 + $0x38e8] sm:$0xff]
    %v1874 = vld [vmem:[#allocation5 + $0x38f0] sm:$0xff]
    %v1875 = vld [vmem:[#allocation5 + $0x38f8] sm:$0xff]
    %v1876 = vld [vmem:[#allocation5 + $0x3900] sm:$0xff]
    %v1877 = vld [vmem:[#allocation5 + $0x3908] sm:$0xff]
    %v1878 = vld [vmem:[#allocation5 + $0x3910] sm:$0xff]
    %v1879 = vld [vmem:[#allocation5 + $0x3918] sm:$0xff]
    %v1880 = vld [vmem:[#allocation5 + $0x3920] sm:$0xff]
    %v1881 = vld [vmem:[#allocation5 + $0x3928] sm:$0xff]
    %v1882 = vld [vmem:[#allocation5 + $0x3930] sm:$0xff]
    %v1883 = vld [vmem:[#allocation5 + $0x3938] sm:$0xff]
    %v1884 = vld [vmem:[#allocation5 + $0x3940] sm:$0xff]
    %v1885 = vld [vmem:[#allocation5 + $0x3948] sm:$0xff]
    %v1886 = vld [vmem:[#allocation5 + $0x3950] sm:$0xff]
    %v1887 = vld [vmem:[#allocation5 + $0x3958] sm:$0xff]
    %v1888 = vld [vmem:[#allocation5 + $0x3960] sm:$0xff]
    %v1889 = vld [vmem:[#allocation5 + $0x3968] sm:$0xff]
    %v1890 = vld [vmem:[#allocation5 + $0x3970] sm:$0xff]
    %v1891 = vld [vmem:[#allocation5 + $0x3978] sm:$0xff]
    %v1892 = vld [vmem:[#allocation5 + $0x3980] sm:$0xff]
    %v1893 = vld [vmem:[#allocation5 + $0x3988] sm:$0xff]
    %v1894 = vld [vmem:[#allocation5 + $0x3990] sm:$0xff]
    %v1895 = vld [vmem:[#allocation5 + $0x3998] sm:$0xff]
    %v1896 = vld [vmem:[#allocation5 + $0x39a0] sm:$0xff]
    %v1897 = vld [vmem:[#allocation5 + $0x39a8] sm:$0xff]
    %v1898 = vld [vmem:[#allocation5 + $0x39b0] sm:$0xff]
    %v1899 = vld [vmem:[#allocation5 + $0x39b8] sm:$0xff]
    %v1900 = vld [vmem:[#allocation5 + $0x39c0] sm:$0xff]
    %v1901 = vld [vmem:[#allocation5 + $0x39c8] sm:$0xff]
    %v1902 = vld [vmem:[#allocation5 + $0x39d0] sm:$0xff]
    %v1903 = vld [vmem:[#allocation5 + $0x39d8] sm:$0xff]
    %v1904 = vld [vmem:[#allocation5 + $0x39e0] sm:$0xff]
    %v1905 = vld [vmem:[#allocation5 + $0x39e8] sm:$0xff]
    %v1906 = vld [vmem:[#allocation5 + $0x39f0] sm:$0xff]
    %v1907 = vld [vmem:[#allocation5 + $0x39f8] sm:$0xff]
    %v1908 = vld [vmem:[#allocation5 + $0x3a00] sm:$0xff]
    %v1909 = vld [vmem:[#allocation5 + $0x3a08] sm:$0xff]
    %v1910 = vld [vmem:[#allocation5 + $0x3a10] sm:$0xff]
    %v1911 = vld [vmem:[#allocation5 + $0x3a18] sm:$0xff]
    %v1912 = vld [vmem:[#allocation5 + $0x3a20] sm:$0xff]
    %v1913 = vld [vmem:[#allocation5 + $0x3a28] sm:$0xff]
    %v1914 = vld [vmem:[#allocation5 + $0x3a30] sm:$0xff]
    %v1915 = vld [vmem:[#allocation5 + $0x3a38] sm:$0xff]
    %v1916 = vld [vmem:[#allocation5 + $0x3a40] sm:$0xff]
    %v1917 = vld [vmem:[#allocation5 + $0x3a48] sm:$0xff]
    %v1918 = vld [vmem:[#allocation5 + $0x3a50] sm:$0xff]
    %v1919 = vld [vmem:[#allocation5 + $0x3a58] sm:$0xff]
    %v1920 = vld [vmem:[#allocation5 + $0x3a60] sm:$0xff]
    %v1921 = vld [vmem:[#allocation5 + $0x3a68] sm:$0xff]
    %v1922 = vld [vmem:[#allocation5 + $0x3a70] sm:$0xff]
    %v1923 = vld [vmem:[#allocation5 + $0x3a78] sm:$0xff]
    %v1924 = vld [vmem:[#allocation5 + $0x3a80] sm:$0xff]
    %v1925 = vld [vmem:[#allocation5 + $0x3a88] sm:$0xff]
    %v1926 = vld [vmem:[#allocation5 + $0x3a90] sm:$0xff]
    %v1927 = vld [vmem:[#allocation5 + $0x3a98] sm:$0xff]
    %v1928 = vld [vmem:[#allocation5 + $0x3aa0] sm:$0xff]
    %v1929 = vld [vmem:[#allocation5 + $0x3aa8] sm:$0xff]
    %v1930 = vld [vmem:[#allocation5 + $0x3ab0] sm:$0xff]
    %v1931 = vld [vmem:[#allocation5 + $0x3ab8] sm:$0xff]
    %v1932 = vld [vmem:[#allocation5 + $0x3ac0] sm:$0xff]
    %v1933 = vld [vmem:[#allocation5 + $0x3ac8] sm:$0xff]
    %v1934 = vld [vmem:[#allocation5 + $0x3ad0] sm:$0xff]
    %v1935 = vld [vmem:[#allocation5 + $0x3ad8] sm:$0xff]
    %v1936 = vld [vmem:[#allocation5 + $0x3ae0] sm:$0xff]
    %v1937 = vld [vmem:[#allocation5 + $0x3ae8] sm:$0xff]
    %v1938 = vld [vmem:[#allocation5 + $0x3af0] sm:$0xff]
    %v1939 = vld [vmem:[#allocation5 + $0x3af8] sm:$0xff]
    %v1940 = vld [vmem:[#allocation5 + $0x3b00] sm:$0xff]
    %v1941 = vld [vmem:[#allocation5 + $0x3b08] sm:$0xff]
    %v1942 = vld [vmem:[#allocation5 + $0x3b10] sm:$0xff]
    %v1943 = vld [vmem:[#allocation5 + $0x3b18] sm:$0xff]
    %v1944 = vld [vmem:[#allocation5 + $0x3b20] sm:$0xff]
    %v1945 = vld [vmem:[#allocation5 + $0x3b28] sm:$0xff]
    %v1946 = vld [vmem:[#allocation5 + $0x3b30] sm:$0xff]
    %v1947 = vld [vmem:[#allocation5 + $0x3b38] sm:$0xff]
    %v1948 = vld [vmem:[#allocation5 + $0x3b40] sm:$0xff]
    %v1949 = vld [vmem:[#allocation5 + $0x3b48] sm:$0xff]
    %v1950 = vld [vmem:[#allocation5 + $0x3b50] sm:$0xff]
    %v1951 = vld [vmem:[#allocation5 + $0x3b58] sm:$0xff]
    %v1952 = vld [vmem:[#allocation5 + $0x3b60] sm:$0xff]
    %v1953 = vld [vmem:[#allocation5 + $0x3b68] sm:$0xff]
    %v1954 = vld [vmem:[#allocation5 + $0x3b70] sm:$0xff]
    %v1955 = vld [vmem:[#allocation5 + $0x3b78] sm:$0xff]
    %v1956 = vld [vmem:[#allocation5 + $0x3b80] sm:$0xff]
    %v1957 = vld [vmem:[#allocation5 + $0x3b88] sm:$0xff]
    %v1958 = vld [vmem:[#allocation5 + $0x3b90] sm:$0xff]
    %v1959 = vld [vmem:[#allocation5 + $0x3b98] sm:$0xff]
    %v1960 = vld [vmem:[#allocation5 + $0x3ba0] sm:$0xff]
    %v1961 = vld [vmem:[#allocation5 + $0x3ba8] sm:$0xff]
    %v1962 = vld [vmem:[#allocation5 + $0x3bb0] sm:$0xff]
    %v1963 = vld [vmem:[#allocation5 + $0x3bb8] sm:$0xff]
    %v1964 = vld [vmem:[#allocation5 + $0x3bc0] sm:$0xff]
    %v1965 = vld [vmem:[#allocation5 + $0x3bc8] sm:$0xff]
    %v1966 = vld [vmem:[#allocation5 + $0x3bd0] sm:$0xff]
    %v1967 = vld [vmem:[#allocation5 + $0x3bd8] sm:$0xff]
    %v1968 = vld [vmem:[#allocation5 + $0x3be0] sm:$0xff]
    %v1969 = vld [vmem:[#allocation5 + $0x3be8] sm:$0xff]
    %v1970 = vld [vmem:[#allocation5 + $0x3bf0] sm:$0xff]
    %v1971 = vld [vmem:[#allocation5 + $0x3bf8] sm:$0xff]
    %v1972 = vld [vmem:[#allocation2] sm:$0xff]
    %v1973 = vld [vmem:[#allocation2 + $0x8] sm:$0xff]
    %v1974 = vld [vmem:[#allocation2 + $0x10] sm:$0xff]
    %v1975 = vld [vmem:[#allocation2 + $0x18] sm:$0xff]
    %v1976 = vld [vmem:[#allocation2 + $0x20] sm:$0xff]
    %v1977 = vld [vmem:[#allocation2 + $0x28] sm:$0xff]
    %v1978 = vld [vmem:[#allocation2 + $0x30] sm:$0xff]
    %v1979 = vld [vmem:[#allocation2 + $0x38] sm:$0xff]
    %v1980 = vld [vmem:[#allocation2 + $0x40] sm:$0xff]
    %v1981 = vld [vmem:[#allocation2 + $0x48] sm:$0xff]
    %v1982 = vld [vmem:[#allocation2 + $0x50] sm:$0xff]
    %v1983 = vld [vmem:[#allocation2 + $0x58] sm:$0xff]
    %v1984 = vld [vmem:[#allocation2 + $0x60] sm:$0xff]
    %v1985 = vld [vmem:[#allocation2 + $0x68] sm:$0xff]
    %v1986 = vld [vmem:[#allocation2 + $0x70] sm:$0xff]
    %v1987 = vld [vmem:[#allocation2 + $0x78] sm:$0xff]
    %v1988 = vld [vmem:[#allocation2 + $0x80] sm:$0xff]
    %v1989 = vld [vmem:[#allocation2 + $0x88] sm:$0xff]
    %v1990 = vld [vmem:[#allocation2 + $0x90] sm:$0xff]
    %v1991 = vld [vmem:[#allocation2 + $0x98] sm:$0xff]
    %v1992 = vld [vmem:[#allocation2 + $0xa0] sm:$0xff]
    %v1993 = vld [vmem:[#allocation2 + $0xa8] sm:$0xff]
    %v1994 = vld [vmem:[#allocation2 + $0xb0] sm:$0xff]
    %v1995 = vld [vmem:[#allocation2 + $0xb8] sm:$0xff]
    %v1996 = vpack.c.bf16 %v1972, %v1972
    %v1997 = vpack.c.bf16 %v1973, %v1973
    %v1998 = vpack.c.bf16 %v1974, %v1974
    %v1999 = vpack.c.bf16 %v1975, %v1975
    %v2000 = vpack.c.bf16 %v1976, %v1976
    %v2001 = vpack.c.bf16 %v1977, %v1977
    %v2002 = vpack.c.bf16 %v1978, %v1978
    %v2003 = vpack.c.bf16 %v1979, %v1979
    %v2004 = vpack.c.bf16 %v1980, %v1980
    %v2005 = vpack.c.bf16 %v1981, %v1981
    %v2006 = vpack.c.bf16 %v1982, %v1982
    %v2007 = vpack.c.bf16 %v1983, %v1983
    %v2008 = vpack.c.bf16 %v1984, %v1984
    %v2009 = vpack.c.bf16 %v1985, %v1985
    %v2010 = vpack.c.bf16 %v1986, %v1986
    %v2011 = vpack.c.bf16 %v1987, %v1987
    %v2012 = vpack.c.bf16 %v1988, %v1988
    %v2013 = vpack.c.bf16 %v1989, %v1989
    %v2014 = vpack.c.bf16 %v1990, %v1990
    %v2015 = vpack.c.bf16 %v1991, %v1991
    %v2016 = vpack.c.bf16 %v1992, %v1992
    %v2017 = vpack.c.bf16 %v1993, %v1993
    %v2018 = vpack.c.bf16 %v1994, %v1994
    %v2019 = vpack.c.bf16 %v1995, %v1995
    %v2020 = vld [vmem:[#allocation7] sm:$0xff]
    %v2021 = vld [vmem:[#allocation7 + $0x8] sm:$0x3]
    %v2024 = vlaneseq
    %v2025 = vshrl.u32 %v2024, 7
    %v2026 = vsub.s32 0, %v2025
    %v2027 = vrot.slane %v2020, %v2026
    %v2028 = vlaneseq
    %v2029 = vshrl.u32 %v2028, 7
    %v2030 = vsub.s32 1, %v2029
    %v2031 = vrot.slane %v2020, %v2030
    %v2032 = vlaneseq
    %v2033 = vshrl.u32 %v2032, 7
    %v2034 = vsub.s32 2, %v2033
    %v2035 = vrot.slane %v2020, %v2034
    %v2036 = vlaneseq
    %v2037 = vshrl.u32 %v2036, 7
    %v2038 = vsub.s32 3, %v2037
    %v2039 = vrot.slane %v2020, %v2038
    %v2040 = vlaneseq
    %v2041 = vshrl.u32 %v2040, 7
    %v2042 = vsub.s32 4, %v2041
    %v2043 = vrot.slane %v2020, %v2042
    %v2044 = vlaneseq
    %v2045 = vshrl.u32 %v2044, 7
    %v2046 = vsub.s32 5, %v2045
    %v2047 = vrot.slane %v2020, %v2046
    %v2048 = vlaneseq
    %v2049 = vshrl.u32 %v2048, 7
    %v2050 = vsub.s32 6, %v2049
    %v2051 = vrot.slane %v2020, %v2050
    %v2052 = vlaneseq
    %v2053 = vshrl.u32 %v2052, 7
    %v2054 = vsub.s32 7, %v2053
    %v2055 = vrot.slane %v2020, %v2054
    %v2056 = vlaneseq
    %v2057 = vshrl.u32 %v2056, 7
    %v2058 = vsub.s32 0, %v2057
    %v2059 = vrot.slane %v2021, %v2058
    %v2060 = vlaneseq
    %v2061 = vshrl.u32 %v2060, 7
    %v2062 = vsub.s32 1, %v2061
    %v2063 = vrot.slane %v2021, %v2062
    %v3994 = vunpack.c.l.b16 %v52
    %v3995 = vunpack.c.h.b16 %v52
    %v3996 = vunpack.c.l.b16 %v53
    %v3997 = vunpack.c.h.b16 %v53
    %v3998 = vunpack.c.l.b16 %v54
    %v3999 = vunpack.c.h.b16 %v54
    %v4000 = vunpack.c.l.b16 %v55
    %v4001 = vunpack.c.h.b16 %v55
    %v4002 = vunpack.c.l.b16 %v56
    %v4003 = vunpack.c.h.b16 %v56
    %v4004 = vunpack.c.l.b16 %v57
    %v4005 = vunpack.c.h.b16 %v57
    %v4006 = vunpack.c.l.b16 %v58
    %v4007 = vunpack.c.h.b16 %v58
    %v4008 = vunpack.c.l.b16 %v59
    %v4009 = vunpack.c.h.b16 %v59
    %v4010 = vunpack.c.l.b16 %v60
    %v4011 = vunpack.c.h.b16 %v60
    %v4012 = vunpack.c.l.b16 %v61
    %v4013 = vunpack.c.h.b16 %v61
    %v4014 = vunpack.c.l.b16 %v62
    %v4015 = vunpack.c.h.b16 %v62
    %v4016 = vunpack.c.l.b16 %v63
    %v4017 = vunpack.c.h.b16 %v63
    %v4018 = vunpack.c.l.b16 %v64
    %v4019 = vunpack.c.h.b16 %v64
    %v4020 = vunpack.c.l.b16 %v65
    %v4021 = vunpack.c.h.b16 %v65
    %v4022 = vunpack.c.l.b16 %v66
    %v4023 = vunpack.c.h.b16 %v66
    %v4024 = vunpack.c.l.b16 %v67
    %v4025 = vunpack.c.h.b16 %v67
    %v4026 = vunpack.c.l.b16 %v68
    %v4027 = vunpack.c.h.b16 %v68
    %v4028 = vunpack.c.l.b16 %v69
    %v4029 = vunpack.c.h.b16 %v69
    %v4030 = vunpack.c.l.b16 %v70
    %v4031 = vunpack.c.h.b16 %v70
    %v4032 = vunpack.c.l.b16 %v71
    %v4033 = vunpack.c.h.b16 %v71
    %v4034 = vunpack.c.l.b16 %v72
    %v4035 = vunpack.c.h.b16 %v72
    %v4036 = vunpack.c.l.b16 %v73
    %v4037 = vunpack.c.h.b16 %v73
    %v4038 = vunpack.c.l.b16 %v74
    %v4039 = vunpack.c.h.b16 %v74
    %v4040 = vunpack.c.l.b16 %v75
    %v4041 = vunpack.c.h.b16 %v75
    %v4042 = vunpack.c.l.b16 %v76
    %v4043 = vunpack.c.h.b16 %v76
    %v4044 = vunpack.c.l.b16 %v77
    %v4045 = vunpack.c.h.b16 %v77
    %v4046 = vunpack.c.l.b16 %v78
    %v4047 = vunpack.c.h.b16 %v78
    %v4048 = vunpack.c.l.b16 %v79
    %v4049 = vunpack.c.h.b16 %v79
    %v4050 = vunpack.c.l.b16 %v80
    %v4051 = vunpack.c.h.b16 %v80
    %v4052 = vunpack.c.l.b16 %v81
    %v4053 = vunpack.c.h.b16 %v81
    %v4054 = vunpack.c.l.b16 %v82
    %v4055 = vunpack.c.h.b16 %v82
    %v4056 = vunpack.c.l.b16 %v83
    %v4057 = vunpack.c.h.b16 %v83
    %v4058 = vunpack.c.l.b16 %v84
    %v4059 = vunpack.c.h.b16 %v84
    %v4060 = vunpack.c.l.b16 %v85
    %v4061 = vunpack.c.h.b16 %v85
    %v4062 = vunpack.c.l.b16 %v86
    %v4063 = vunpack.c.h.b16 %v86
    %v4064 = vunpack.c.l.b16 %v87
    %v4065 = vunpack.c.h.b16 %v87
    %v4066 = vunpack.c.l.b16 %v88
    %v4067 = vunpack.c.h.b16 %v88
    %v4068 = vunpack.c.l.b16 %v89
    %v4069 = vunpack.c.h.b16 %v89
    %v4070 = vunpack.c.l.b16 %v90
    %v4071 = vunpack.c.h.b16 %v90
    %v4072 = vunpack.c.l.b16 %v91
    %v4073 = vunpack.c.h.b16 %v91
    %v4074 = vunpack.c.l.b16 %v92
    %v4075 = vunpack.c.h.b16 %v92
    %v4076 = vunpack.c.l.b16 %v93
    %v4077 = vunpack.c.h.b16 %v93
    %v4078 = vunpack.c.l.b16 %v94
    %v4079 = vunpack.c.h.b16 %v94
    %v4080 = vunpack.c.l.b16 %v95
    %v4081 = vunpack.c.h.b16 %v95
    %v4082 = vunpack.c.l.b16 %v96
    %v4083 = vunpack.c.h.b16 %v96
    %v4084 = vunpack.c.l.b16 %v97
    %v4085 = vunpack.c.h.b16 %v97
    %v4086 = vunpack.c.l.b16 %v98
    %v4087 = vunpack.c.h.b16 %v98
    %v4088 = vunpack.c.l.b16 %v99
    %v4089 = vunpack.c.h.b16 %v99
    %v4090 = vunpack.c.l.b16 %v100
    %v4091 = vunpack.c.h.b16 %v100
    %v4092 = vunpack.c.l.b16 %v101
    %v4093 = vunpack.c.h.b16 %v101
    %v4094 = vunpack.c.l.b16 %v102
    %v4095 = vunpack.c.h.b16 %v102
    %v4096 = vunpack.c.l.b16 %v103
    %v4097 = vunpack.c.h.b16 %v103
    %v4098 = vunpack.c.l.b16 %v104
    %v4099 = vunpack.c.h.b16 %v104
    %v4100 = vunpack.c.l.b16 %v105
    %v4101 = vunpack.c.h.b16 %v105
    %v4102 = vunpack.c.l.b16 %v106
    %v4103 = vunpack.c.h.b16 %v106
    %v4104 = vunpack.c.l.b16 %v107
    %v4105 = vunpack.c.h.b16 %v107
    %v4106 = vunpack.c.l.b16 %v108
    %v4107 = vunpack.c.h.b16 %v108
    %v4108 = vunpack.c.l.b16 %v109
    %v4109 = vunpack.c.h.b16 %v109
    %v4110 = vunpack.c.l.b16 %v110
    %v4111 = vunpack.c.h.b16 %v110
    %v4112 = vunpack.c.l.b16 %v111
    %v4113 = vunpack.c.h.b16 %v111
    %v4114 = vunpack.c.l.b16 %v112
    %v4115 = vunpack.c.h.b16 %v112
    %v4116 = vunpack.c.l.b16 %v113
    %v4117 = vunpack.c.h.b16 %v113
    %v4118 = vunpack.c.l.b16 %v114
    %v4119 = vunpack.c.h.b16 %v114
    %v4120 = vunpack.c.l.b16 %v115
    %v4121 = vunpack.c.h.b16 %v115
    %v4122 = vunpack.c.l.b16 %v116
    %v4123 = vunpack.c.h.b16 %v116
    %v4124 = vunpack.c.l.b16 %v117
    %v4125 = vunpack.c.h.b16 %v117
    %v4126 = vunpack.c.l.b16 %v118
    %v4127 = vunpack.c.h.b16 %v118
    %v4128 = vunpack.c.l.b16 %v119
    %v4129 = vunpack.c.h.b16 %v119
    %v4130 = vunpack.c.l.b16 %v120
    %v4131 = vunpack.c.h.b16 %v120
    %v4132 = vunpack.c.l.b16 %v121
    %v4133 = vunpack.c.h.b16 %v121
    %v4134 = vunpack.c.l.b16 %v122
    %v4135 = vunpack.c.h.b16 %v122
    %v4136 = vunpack.c.l.b16 %v123
    %v4137 = vunpack.c.h.b16 %v123
    %v4138 = vunpack.c.l.b16 %v124
    %v4139 = vunpack.c.h.b16 %v124
    %v4140 = vunpack.c.l.b16 %v125
    %v4141 = vunpack.c.h.b16 %v125
    %v4142 = vunpack.c.l.b16 %v126
    %v4143 = vunpack.c.h.b16 %v126
    %v4144 = vunpack.c.l.b16 %v127
    %v4145 = vunpack.c.h.b16 %v127
    %v4146 = vunpack.c.l.b16 %v128
    %v4147 = vunpack.c.h.b16 %v128
    %v4148 = vunpack.c.l.b16 %v129
    %v4149 = vunpack.c.h.b16 %v129
    %v4150 = vunpack.c.l.b16 %v130
    %v4151 = vunpack.c.h.b16 %v130
    %v4152 = vunpack.c.l.b16 %v131
    %v4153 = vunpack.c.h.b16 %v131
    %v4154 = vunpack.c.l.b16 %v132
    %v4155 = vunpack.c.h.b16 %v132
    %v4156 = vunpack.c.l.b16 %v133
    %v4157 = vunpack.c.h.b16 %v133
    %v4158 = vunpack.c.l.b16 %v134
    %v4159 = vunpack.c.h.b16 %v134
    %v4160 = vunpack.c.l.b16 %v135
    %v4161 = vunpack.c.h.b16 %v135
    %v4162 = vunpack.c.l.b16 %v136
    %v4163 = vunpack.c.h.b16 %v136
    %v4164 = vunpack.c.l.b16 %v137
    %v4165 = vunpack.c.h.b16 %v137
    %v4166 = vunpack.c.l.b16 %v138
    %v4167 = vunpack.c.h.b16 %v138
    %v4168 = vunpack.c.l.b16 %v139
    %v4169 = vunpack.c.h.b16 %v139
    %v4170 = vunpack.c.l.b16 %v140
    %v4171 = vunpack.c.h.b16 %v140
    %v4172 = vunpack.c.l.b16 %v141
    %v4173 = vunpack.c.h.b16 %v141
    %v4174 = vunpack.c.l.b16 %v142
    %v4175 = vunpack.c.h.b16 %v142
    %v4176 = vunpack.c.l.b16 %v143
    %v4177 = vunpack.c.h.b16 %v143
    %v4178 = vunpack.c.l.b16 %v144
    %v4179 = vunpack.c.h.b16 %v144
    %v4180 = vunpack.c.l.b16 %v145
    %v4181 = vunpack.c.h.b16 %v145
    %v4182 = vunpack.c.l.b16 %v146
    %v4183 = vunpack.c.h.b16 %v146
    %v4184 = vunpack.c.l.b16 %v147
    %v4185 = vunpack.c.h.b16 %v147
    %v4186 = vunpack.c.l.b16 %v148
    %v4187 = vunpack.c.h.b16 %v148
    %v4188 = vunpack.c.l.b16 %v149
    %v4189 = vunpack.c.h.b16 %v149
    %v4190 = vunpack.c.l.b16 %v150
    %v4191 = vunpack.c.h.b16 %v150
    %v4192 = vunpack.c.l.b16 %v151
    %v4193 = vunpack.c.h.b16 %v151
    %v4194 = vunpack.c.l.b16 %v152
    %v4195 = vunpack.c.h.b16 %v152
    %v4196 = vunpack.c.l.b16 %v153
    %v4197 = vunpack.c.h.b16 %v153
    %v4198 = vunpack.c.l.b16 %v154
    %v4199 = vunpack.c.h.b16 %v154
    %v4200 = vunpack.c.l.b16 %v155
    %v4201 = vunpack.c.h.b16 %v155
    %v4202 = vunpack.c.l.b16 %v156
    %v4203 = vunpack.c.h.b16 %v156
    %v4204 = vunpack.c.l.b16 %v157
    %v4205 = vunpack.c.h.b16 %v157
    %v4206 = vunpack.c.l.b16 %v158
    %v4207 = vunpack.c.h.b16 %v158
    %v4208 = vunpack.c.l.b16 %v159
    %v4209 = vunpack.c.h.b16 %v159
    %v4210 = vunpack.c.l.b16 %v160
    %v4211 = vunpack.c.h.b16 %v160
    %v4212 = vunpack.c.l.b16 %v161
    %v4213 = vunpack.c.h.b16 %v161
    %v4214 = vunpack.c.l.b16 %v162
    %v4215 = vunpack.c.h.b16 %v162
    %v4216 = vunpack.c.l.b16 %v163
    %v4217 = vunpack.c.h.b16 %v163
    %v4218 = vunpack.c.l.b16 %v164
    %v4219 = vunpack.c.h.b16 %v164
    %v4220 = vunpack.c.l.b16 %v165
    %v4221 = vunpack.c.h.b16 %v165
    %v4222 = vunpack.c.l.b16 %v166
    %v4223 = vunpack.c.h.b16 %v166
    %v4224 = vunpack.c.l.b16 %v167
    %v4225 = vunpack.c.h.b16 %v167
    %v4226 = vunpack.c.l.b16 %v168
    %v4227 = vunpack.c.h.b16 %v168
    %v4228 = vunpack.c.l.b16 %v169
    %v4229 = vunpack.c.h.b16 %v169
    %v4230 = vunpack.c.l.b16 %v170
    %v4231 = vunpack.c.h.b16 %v170
    %v4232 = vunpack.c.l.b16 %v171
    %v4233 = vunpack.c.h.b16 %v171
    %v4234 = vunpack.c.l.b16 %v172
    %v4235 = vunpack.c.h.b16 %v172
    %v4236 = vunpack.c.l.b16 %v173
    %v4237 = vunpack.c.h.b16 %v173
    %v4238 = vunpack.c.l.b16 %v174
    %v4239 = vunpack.c.h.b16 %v174
    %v4240 = vunpack.c.l.b16 %v175
    %v4241 = vunpack.c.h.b16 %v175
    %v4242 = vunpack.c.l.b16 %v176
    %v4243 = vunpack.c.h.b16 %v176
    %v4244 = vunpack.c.l.b16 %v177
    %v4245 = vunpack.c.h.b16 %v177
    %v4246 = vunpack.c.l.b16 %v178
    %v4247 = vunpack.c.h.b16 %v178
    %v4248 = vunpack.c.l.b16 %v179
    %v4249 = vunpack.c.h.b16 %v179
    %v4250 = vunpack.c.l.b16 %v180
    %v4251 = vunpack.c.h.b16 %v180
    %v4252 = vunpack.c.l.b16 %v181
    %v4253 = vunpack.c.h.b16 %v181
    %v4254 = vunpack.c.l.b16 %v182
    %v4255 = vunpack.c.h.b16 %v182
    %v4256 = vunpack.c.l.b16 %v183
    %v4257 = vunpack.c.h.b16 %v183
    %v4258 = vunpack.c.l.b16 %v184
    %v4259 = vunpack.c.h.b16 %v184
    %v4260 = vunpack.c.l.b16 %v185
    %v4261 = vunpack.c.h.b16 %v185
    %v4262 = vunpack.c.l.b16 %v186
    %v4263 = vunpack.c.h.b16 %v186
    %v4264 = vunpack.c.l.b16 %v187
    %v4265 = vunpack.c.h.b16 %v187
    %v4266 = vunpack.c.l.b16 %v188
    %v4267 = vunpack.c.h.b16 %v188
    %v4268 = vunpack.c.l.b16 %v189
    %v4269 = vunpack.c.h.b16 %v189
    %v4270 = vunpack.c.l.b16 %v190
    %v4271 = vunpack.c.h.b16 %v190
    %v4272 = vunpack.c.l.b16 %v191
    %v4273 = vunpack.c.h.b16 %v191
    %v4274 = vunpack.c.l.b16 %v192
    %v4275 = vunpack.c.h.b16 %v192
    %v4276 = vunpack.c.l.b16 %v193
    %v4277 = vunpack.c.h.b16 %v193
    %v4278 = vunpack.c.l.b16 %v194
    %v4279 = vunpack.c.h.b16 %v194
    %v4280 = vunpack.c.l.b16 %v195
    %v4281 = vunpack.c.h.b16 %v195
    %v4282 = vunpack.c.l.b16 %v196
    %v4283 = vunpack.c.h.b16 %v196
    %v4284 = vunpack.c.l.b16 %v197
    %v4285 = vunpack.c.h.b16 %v197
    %v4286 = vunpack.c.l.b16 %v198
    %v4287 = vunpack.c.h.b16 %v198
    %v4288 = vunpack.c.l.b16 %v199
    %v4289 = vunpack.c.h.b16 %v199
    %v4290 = vunpack.c.l.b16 %v200
    %v4291 = vunpack.c.h.b16 %v200
    %v4292 = vunpack.c.l.b16 %v201
    %v4293 = vunpack.c.h.b16 %v201
    %v4294 = vunpack.c.l.b16 %v202
    %v4295 = vunpack.c.h.b16 %v202
    %v4296 = vunpack.c.l.b16 %v203
    %v4297 = vunpack.c.h.b16 %v203
    %v4298 = vunpack.c.l.b16 %v204
    %v4299 = vunpack.c.h.b16 %v204
    %v4300 = vunpack.c.l.b16 %v205
    %v4301 = vunpack.c.h.b16 %v205
    %v4302 = vunpack.c.l.b16 %v206
    %v4303 = vunpack.c.h.b16 %v206
    %v4304 = vunpack.c.l.b16 %v207
    %v4305 = vunpack.c.h.b16 %v207
    %v4306 = vunpack.c.l.b16 %v208
    %v4307 = vunpack.c.h.b16 %v208
    %v4308 = vunpack.c.l.b16 %v209
    %v4309 = vunpack.c.h.b16 %v209
    %v4310 = vunpack.c.l.b16 %v210
    %v4311 = vunpack.c.h.b16 %v210
    %v4312 = vunpack.c.l.b16 %v211
    %v4313 = vunpack.c.h.b16 %v211
    %v4314 = vunpack.c.l.b16 %v212
    %v4315 = vunpack.c.h.b16 %v212
    %v4316 = vunpack.c.l.b16 %v213
    %v4317 = vunpack.c.h.b16 %v213
    %v4318 = vunpack.c.l.b16 %v214
    %v4319 = vunpack.c.h.b16 %v214
    %v4320 = vunpack.c.l.b16 %v215
    %v4321 = vunpack.c.h.b16 %v215
    %v4322 = vunpack.c.l.b16 %v216
    %v4323 = vunpack.c.h.b16 %v216
    %v4324 = vunpack.c.l.b16 %v217
    %v4325 = vunpack.c.h.b16 %v217
    %v4326 = vunpack.c.l.b16 %v218
    %v4327 = vunpack.c.h.b16 %v218
    %v4328 = vunpack.c.l.b16 %v219
    %v4329 = vunpack.c.h.b16 %v219
    %v4330 = vunpack.c.l.b16 %v220
    %v4331 = vunpack.c.h.b16 %v220
    %v4332 = vunpack.c.l.b16 %v221
    %v4333 = vunpack.c.h.b16 %v221
    %v4334 = vunpack.c.l.b16 %v222
    %v4335 = vunpack.c.h.b16 %v222
    %v4336 = vunpack.c.l.b16 %v223
    %v4337 = vunpack.c.h.b16 %v223
    %v4338 = vunpack.c.l.b16 %v224
    %v4339 = vunpack.c.h.b16 %v224
    %v4340 = vunpack.c.l.b16 %v225
    %v4341 = vunpack.c.h.b16 %v225
    %v4342 = vunpack.c.l.b16 %v226
    %v4343 = vunpack.c.h.b16 %v226
    %v4344 = vunpack.c.l.b16 %v227
    %v4345 = vunpack.c.h.b16 %v227
    %v4346 = vunpack.c.l.b16 %v228
    %v4347 = vunpack.c.h.b16 %v228
    %v4348 = vunpack.c.l.b16 %v229
    %v4349 = vunpack.c.h.b16 %v229
    %v4350 = vunpack.c.l.b16 %v230
    %v4351 = vunpack.c.h.b16 %v230
    %v4352 = vunpack.c.l.b16 %v231
    %v4353 = vunpack.c.h.b16 %v231
    %v4354 = vunpack.c.l.b16 %v232
    %v4355 = vunpack.c.h.b16 %v232
    %v4356 = vunpack.c.l.b16 %v233
    %v4357 = vunpack.c.h.b16 %v233
    %v4358 = vunpack.c.l.b16 %v234
    %v4359 = vunpack.c.h.b16 %v234
    %v4360 = vunpack.c.l.b16 %v235
    %v4361 = vunpack.c.h.b16 %v235
    %v4362 = vunpack.c.l.b16 %v236
    %v4363 = vunpack.c.h.b16 %v236
    %v4364 = vunpack.c.l.b16 %v237
    %v4365 = vunpack.c.h.b16 %v237
    %v4366 = vunpack.c.l.b16 %v238
    %v4367 = vunpack.c.h.b16 %v238
    %v4368 = vunpack.c.l.b16 %v239
    %v4369 = vunpack.c.h.b16 %v239
    %v4370 = vunpack.c.l.b16 %v240
    %v4371 = vunpack.c.h.b16 %v240
    %v4372 = vunpack.c.l.b16 %v241
    %v4373 = vunpack.c.h.b16 %v241
    %v4374 = vunpack.c.l.b16 %v242
    %v4375 = vunpack.c.h.b16 %v242
    %v4376 = vunpack.c.l.b16 %v243
    %v4377 = vunpack.c.h.b16 %v243
    %v4378 = vunpack.c.l.b16 %v244
    %v4379 = vunpack.c.h.b16 %v244
    %v4380 = vunpack.c.l.b16 %v245
    %v4381 = vunpack.c.h.b16 %v245
    %v4382 = vunpack.c.l.b16 %v246
    %v4383 = vunpack.c.h.b16 %v246
    %v4384 = vunpack.c.l.b16 %v247
    %v4385 = vunpack.c.h.b16 %v247
    %v4386 = vunpack.c.l.b16 %v248
    %v4387 = vunpack.c.h.b16 %v248
    %v4388 = vunpack.c.l.b16 %v249
    %v4389 = vunpack.c.h.b16 %v249
    %v4390 = vunpack.c.l.b16 %v250
    %v4391 = vunpack.c.h.b16 %v250
    %v4392 = vunpack.c.l.b16 %v251
    %v4393 = vunpack.c.h.b16 %v251
    %v4394 = vunpack.c.l.b16 %v252
    %v4395 = vunpack.c.h.b16 %v252
    %v4396 = vunpack.c.l.b16 %v253
    %v4397 = vunpack.c.h.b16 %v253
    %v4398 = vunpack.c.l.b16 %v254
    %v4399 = vunpack.c.h.b16 %v254
    %v4400 = vunpack.c.l.b16 %v255
    %v4401 = vunpack.c.h.b16 %v255
    %v4402 = vunpack.c.l.b16 %v256
    %v4403 = vunpack.c.h.b16 %v256
    %v4404 = vunpack.c.l.b16 %v257
    %v4405 = vunpack.c.h.b16 %v257
    %v4406 = vunpack.c.l.b16 %v258
    %v4407 = vunpack.c.h.b16 %v258
    %v4408 = vunpack.c.l.b16 %v259
    %v4409 = vunpack.c.h.b16 %v259
    %v4410 = vunpack.c.l.b16 %v260
    %v4411 = vunpack.c.h.b16 %v260
    %v4412 = vunpack.c.l.b16 %v261
    %v4413 = vunpack.c.h.b16 %v261
    %v4414 = vunpack.c.l.b16 %v262
    %v4415 = vunpack.c.h.b16 %v262
    %v4416 = vunpack.c.l.b16 %v263
    %v4417 = vunpack.c.h.b16 %v263
    %v4418 = vunpack.c.l.b16 %v264
    %v4419 = vunpack.c.h.b16 %v264
    %v4420 = vunpack.c.l.b16 %v265
    %v4421 = vunpack.c.h.b16 %v265
    %v4422 = vunpack.c.l.b16 %v266
    %v4423 = vunpack.c.h.b16 %v266
    %v4424 = vunpack.c.l.b16 %v267
    %v4425 = vunpack.c.h.b16 %v267
    %v4426 = vunpack.c.l.b16 %v268
    %v4427 = vunpack.c.h.b16 %v268
    %v4428 = vunpack.c.l.b16 %v269
    %v4429 = vunpack.c.h.b16 %v269
    %v4430 = vunpack.c.l.b16 %v270
    %v4431 = vunpack.c.h.b16 %v270
    %v4432 = vunpack.c.l.b16 %v271
    %v4433 = vunpack.c.h.b16 %v271
    %v4434 = vunpack.c.l.b16 %v272
    %v4435 = vunpack.c.h.b16 %v272
    %v4436 = vunpack.c.l.b16 %v273
    %v4437 = vunpack.c.h.b16 %v273
    %v4438 = vunpack.c.l.b16 %v274
    %v4439 = vunpack.c.h.b16 %v274
    %v4440 = vunpack.c.l.b16 %v275
    %v4441 = vunpack.c.h.b16 %v275
    %v4442 = vunpack.c.l.b16 %v276
    %v4443 = vunpack.c.h.b16 %v276
    %v4444 = vunpack.c.l.b16 %v277
    %v4445 = vunpack.c.h.b16 %v277
    %v4446 = vunpack.c.l.b16 %v278
    %v4447 = vunpack.c.h.b16 %v278
    %v4448 = vunpack.c.l.b16 %v279
    %v4449 = vunpack.c.h.b16 %v279
    %v4450 = vunpack.c.l.b16 %v280
    %v4451 = vunpack.c.h.b16 %v280
    %v4452 = vunpack.c.l.b16 %v281
    %v4453 = vunpack.c.h.b16 %v281
    %v4454 = vunpack.c.l.b16 %v282
    %v4455 = vunpack.c.h.b16 %v282
    %v4456 = vunpack.c.l.b16 %v283
    %v4457 = vunpack.c.h.b16 %v283
    %v4458 = vunpack.c.l.b16 %v284
    %v4459 = vunpack.c.h.b16 %v284
    %v4460 = vunpack.c.l.b16 %v285
    %v4461 = vunpack.c.h.b16 %v285
    %v4462 = vunpack.c.l.b16 %v286
    %v4463 = vunpack.c.h.b16 %v286
    %v4464 = vunpack.c.l.b16 %v287
    %v4465 = vunpack.c.h.b16 %v287
    %v4466 = vunpack.c.l.b16 %v288
    %v4467 = vunpack.c.h.b16 %v288
    %v4468 = vunpack.c.l.b16 %v289
    %v4469 = vunpack.c.h.b16 %v289
    %v4470 = vunpack.c.l.b16 %v290
    %v4471 = vunpack.c.h.b16 %v290
    %v4472 = vunpack.c.l.b16 %v291
    %v4473 = vunpack.c.h.b16 %v291
    %v4474 = vunpack.c.l.b16 %v292
    %v4475 = vunpack.c.h.b16 %v292
    %v4476 = vunpack.c.l.b16 %v293
    %v4477 = vunpack.c.h.b16 %v293
    %v4478 = vunpack.c.l.b16 %v294
    %v4479 = vunpack.c.h.b16 %v294
    %v4480 = vunpack.c.l.b16 %v295
    %v4481 = vunpack.c.h.b16 %v295
    %v4482 = vunpack.c.l.b16 %v296
    %v4483 = vunpack.c.h.b16 %v296
    %v4484 = vunpack.c.l.b16 %v297
    %v4485 = vunpack.c.h.b16 %v297
    %v4486 = vunpack.c.l.b16 %v298
    %v4487 = vunpack.c.h.b16 %v298
    %v4488 = vunpack.c.l.b16 %v299
    %v4489 = vunpack.c.h.b16 %v299
    %v4490 = vunpack.c.l.b16 %v300
    %v4491 = vunpack.c.h.b16 %v300
    %v4492 = vunpack.c.l.b16 %v301
    %v4493 = vunpack.c.h.b16 %v301
    %v4494 = vunpack.c.l.b16 %v302
    %v4495 = vunpack.c.h.b16 %v302
    %v4496 = vunpack.c.l.b16 %v303
    %v4497 = vunpack.c.h.b16 %v303
    %v4498 = vunpack.c.l.b16 %v304
    %v4499 = vunpack.c.h.b16 %v304
    %v4500 = vunpack.c.l.b16 %v305
    %v4501 = vunpack.c.h.b16 %v305
    %v4502 = vunpack.c.l.b16 %v306
    %v4503 = vunpack.c.h.b16 %v306
    %v4504 = vunpack.c.l.b16 %v307
    %v4505 = vunpack.c.h.b16 %v307
    %v4506 = vunpack.c.l.b16 %v308
    %v4507 = vunpack.c.h.b16 %v308
    %v4508 = vunpack.c.l.b16 %v309
    %v4509 = vunpack.c.h.b16 %v309
    %v4510 = vunpack.c.l.b16 %v310
    %v4511 = vunpack.c.h.b16 %v310
    %v4512 = vunpack.c.l.b16 %v311
    %v4513 = vunpack.c.h.b16 %v311
    %v4514 = vunpack.c.l.b16 %v312
    %v4515 = vunpack.c.h.b16 %v312
    %v4516 = vunpack.c.l.b16 %v313
    %v4517 = vunpack.c.h.b16 %v313
    %v4518 = vunpack.c.l.b16 %v314
    %v4519 = vunpack.c.h.b16 %v314
    %v4520 = vunpack.c.l.b16 %v315
    %v4521 = vunpack.c.h.b16 %v315
    %v4522 = vunpack.c.l.b16 %v316
    %v4523 = vunpack.c.h.b16 %v316
    %v4524 = vunpack.c.l.b16 %v317
    %v4525 = vunpack.c.h.b16 %v317
    %v4526 = vunpack.c.l.b16 %v318
    %v4527 = vunpack.c.h.b16 %v318
    %v4528 = vunpack.c.l.b16 %v319
    %v4529 = vunpack.c.h.b16 %v319
    %v4530 = vunpack.c.l.b16 %v320
    %v4531 = vunpack.c.h.b16 %v320
    %v4532 = vunpack.c.l.b16 %v321
    %v4533 = vunpack.c.h.b16 %v321
    %v4534 = vunpack.c.l.b16 %v322
    %v4535 = vunpack.c.h.b16 %v322
    %v4536 = vunpack.c.l.b16 %v323
    %v4537 = vunpack.c.h.b16 %v323
    %v4538 = vunpack.c.l.b16 %v324
    %v4539 = vunpack.c.h.b16 %v324
    %v4540 = vunpack.c.l.b16 %v325
    %v4541 = vunpack.c.h.b16 %v325
    %v4542 = vunpack.c.l.b16 %v326
    %v4543 = vunpack.c.h.b16 %v326
    %v4544 = vunpack.c.l.b16 %v327
    %v4545 = vunpack.c.h.b16 %v327
    %v4546 = vunpack.c.l.b16 %v328
    %v4547 = vunpack.c.h.b16 %v328
    %v4548 = vunpack.c.l.b16 %v329
    %v4549 = vunpack.c.h.b16 %v329
    %v4550 = vunpack.c.l.b16 %v330
    %v4551 = vunpack.c.h.b16 %v330
    %v4552 = vunpack.c.l.b16 %v331
    %v4553 = vunpack.c.h.b16 %v331
    %v4554 = vunpack.c.l.b16 %v332
    %v4555 = vunpack.c.h.b16 %v332
    %v4556 = vunpack.c.l.b16 %v333
    %v4557 = vunpack.c.h.b16 %v333
    %v4558 = vunpack.c.l.b16 %v334
    %v4559 = vunpack.c.h.b16 %v334
    %v4560 = vunpack.c.l.b16 %v335
    %v4561 = vunpack.c.h.b16 %v335
    %v4562 = vunpack.c.l.b16 %v336
    %v4563 = vunpack.c.h.b16 %v336
    %v4564 = vunpack.c.l.b16 %v337
    %v4565 = vunpack.c.h.b16 %v337
    %v4566 = vunpack.c.l.b16 %v338
    %v4567 = vunpack.c.h.b16 %v338
    %v4568 = vunpack.c.l.b16 %v339
    %v4569 = vunpack.c.h.b16 %v339
    %v4570 = vunpack.c.l.b16 %v340
    %v4571 = vunpack.c.h.b16 %v340
    %v4572 = vunpack.c.l.b16 %v341
    %v4573 = vunpack.c.h.b16 %v341
    %v4574 = vunpack.c.l.b16 %v342
    %v4575 = vunpack.c.h.b16 %v342
    %v4576 = vunpack.c.l.b16 %v343
    %v4577 = vunpack.c.h.b16 %v343
    %v4578 = vunpack.c.l.b16 %v344
    %v4579 = vunpack.c.h.b16 %v344
    %v4580 = vunpack.c.l.b16 %v345
    %v4581 = vunpack.c.h.b16 %v345
    %v4582 = vunpack.c.l.b16 %v346
    %v4583 = vunpack.c.h.b16 %v346
    %v4584 = vunpack.c.l.b16 %v347
    %v4585 = vunpack.c.h.b16 %v347
    %v4586 = vunpack.c.l.b16 %v348
    %v4587 = vunpack.c.h.b16 %v348
    %v4588 = vunpack.c.l.b16 %v349
    %v4589 = vunpack.c.h.b16 %v349
    %v4590 = vunpack.c.l.b16 %v350
    %v4591 = vunpack.c.h.b16 %v350
    %v4592 = vunpack.c.l.b16 %v351
    %v4593 = vunpack.c.h.b16 %v351
    %v4594 = vunpack.c.l.b16 %v352
    %v4595 = vunpack.c.h.b16 %v352
    %v4596 = vunpack.c.l.b16 %v353
    %v4597 = vunpack.c.h.b16 %v353
    %v4598 = vunpack.c.l.b16 %v354
    %v4599 = vunpack.c.h.b16 %v354
    %v4600 = vunpack.c.l.b16 %v355
    %v4601 = vunpack.c.h.b16 %v355
    %v4602 = vunpack.c.l.b16 %v356
    %v4603 = vunpack.c.h.b16 %v356
    %v4604 = vunpack.c.l.b16 %v357
    %v4605 = vunpack.c.h.b16 %v357
    %v4606 = vunpack.c.l.b16 %v358
    %v4607 = vunpack.c.h.b16 %v358
    %v4608 = vunpack.c.l.b16 %v359
    %v4609 = vunpack.c.h.b16 %v359
    %v4610 = vunpack.c.l.b16 %v360
    %v4611 = vunpack.c.h.b16 %v360
    %v4612 = vunpack.c.l.b16 %v361
    %v4613 = vunpack.c.h.b16 %v361
    %v4614 = vunpack.c.l.b16 %v362
    %v4615 = vunpack.c.h.b16 %v362
    %v4616 = vunpack.c.l.b16 %v363
    %v4617 = vunpack.c.h.b16 %v363
    %v4618 = vunpack.c.l.b16 %v364
    %v4619 = vunpack.c.h.b16 %v364
    %v4620 = vunpack.c.l.b16 %v365
    %v4621 = vunpack.c.h.b16 %v365
    %v4622 = vunpack.c.l.b16 %v366
    %v4623 = vunpack.c.h.b16 %v366
    %v4624 = vunpack.c.l.b16 %v367
    %v4625 = vunpack.c.h.b16 %v367
    %v4626 = vunpack.c.l.b16 %v368
    %v4627 = vunpack.c.h.b16 %v368
    %v4628 = vunpack.c.l.b16 %v369
    %v4629 = vunpack.c.h.b16 %v369
    %v4630 = vunpack.c.l.b16 %v370
    %v4631 = vunpack.c.h.b16 %v370
    %v4632 = vunpack.c.l.b16 %v371
    %v4633 = vunpack.c.h.b16 %v371
    %v4634 = vunpack.c.l.b16 %v372
    %v4635 = vunpack.c.h.b16 %v372
    %v4636 = vunpack.c.l.b16 %v373
    %v4637 = vunpack.c.h.b16 %v373
    %v4638 = vunpack.c.l.b16 %v374
    %v4639 = vunpack.c.h.b16 %v374
    %v4640 = vunpack.c.l.b16 %v375
    %v4641 = vunpack.c.h.b16 %v375
    %v4642 = vunpack.c.l.b16 %v376
    %v4643 = vunpack.c.h.b16 %v376
    %v4644 = vunpack.c.l.b16 %v377
    %v4645 = vunpack.c.h.b16 %v377
    %v4646 = vunpack.c.l.b16 %v378
    %v4647 = vunpack.c.h.b16 %v378
    %v4648 = vunpack.c.l.b16 %v379
    %v4649 = vunpack.c.h.b16 %v379
    %v4650 = vunpack.c.l.b16 %v380
    %v4651 = vunpack.c.h.b16 %v380
    %v4652 = vunpack.c.l.b16 %v381
    %v4653 = vunpack.c.h.b16 %v381
    %v4654 = vunpack.c.l.b16 %v382
    %v4655 = vunpack.c.h.b16 %v382
    %v4656 = vunpack.c.l.b16 %v383
    %v4657 = vunpack.c.h.b16 %v383
    %v4658 = vunpack.c.l.b16 %v384
    %v4659 = vunpack.c.h.b16 %v384
    %v4660 = vunpack.c.l.b16 %v385
    %v4661 = vunpack.c.h.b16 %v385
    %v4662 = vunpack.c.l.b16 %v386
    %v4663 = vunpack.c.h.b16 %v386
    %v4664 = vunpack.c.l.b16 %v387
    %v4665 = vunpack.c.h.b16 %v387
    %v4666 = vunpack.c.l.b16 %v388
    %v4667 = vunpack.c.h.b16 %v388
    %v4668 = vunpack.c.l.b16 %v389
    %v4669 = vunpack.c.h.b16 %v389
    %v4670 = vunpack.c.l.b16 %v390
    %v4671 = vunpack.c.h.b16 %v390
    %v4672 = vunpack.c.l.b16 %v391
    %v4673 = vunpack.c.h.b16 %v391
    %v4674 = vunpack.c.l.b16 %v392
    %v4675 = vunpack.c.h.b16 %v392
    %v4676 = vunpack.c.l.b16 %v393
    %v4677 = vunpack.c.h.b16 %v393
    %v4678 = vunpack.c.l.b16 %v394
    %v4679 = vunpack.c.h.b16 %v394
    %v4680 = vunpack.c.l.b16 %v395
    %v4681 = vunpack.c.h.b16 %v395
    %v4682 = vunpack.c.l.b16 %v396
    %v4683 = vunpack.c.h.b16 %v396
    %v4684 = vunpack.c.l.b16 %v397
    %v4685 = vunpack.c.h.b16 %v397
    %v4686 = vunpack.c.l.b16 %v398
    %v4687 = vunpack.c.h.b16 %v398
    %v4688 = vunpack.c.l.b16 %v399
    %v4689 = vunpack.c.h.b16 %v399
    %v4690 = vunpack.c.l.b16 %v400
    %v4691 = vunpack.c.h.b16 %v400
    %v4692 = vunpack.c.l.b16 %v401
    %v4693 = vunpack.c.h.b16 %v401
    %v4694 = vunpack.c.l.b16 %v402
    %v4695 = vunpack.c.h.b16 %v402
    %v4696 = vunpack.c.l.b16 %v403
    %v4697 = vunpack.c.h.b16 %v403
    %v4698 = vunpack.c.l.b16 %v404
    %v4699 = vunpack.c.h.b16 %v404
    %v4700 = vunpack.c.l.b16 %v405
    %v4701 = vunpack.c.h.b16 %v405
    %v4702 = vunpack.c.l.b16 %v406
    %v4703 = vunpack.c.h.b16 %v406
    %v4704 = vunpack.c.l.b16 %v407
    %v4705 = vunpack.c.h.b16 %v407
    %v4706 = vunpack.c.l.b16 %v408
    %v4707 = vunpack.c.h.b16 %v408
    %v4708 = vunpack.c.l.b16 %v409
    %v4709 = vunpack.c.h.b16 %v409
    %v4710 = vunpack.c.l.b16 %v410
    %v4711 = vunpack.c.h.b16 %v410
    %v4712 = vunpack.c.l.b16 %v411
    %v4713 = vunpack.c.h.b16 %v411
    %v4714 = vunpack.c.l.b16 %v412
    %v4715 = vunpack.c.h.b16 %v412
    %v4716 = vunpack.c.l.b16 %v413
    %v4717 = vunpack.c.h.b16 %v413
    %v4718 = vunpack.c.l.b16 %v414
    %v4719 = vunpack.c.h.b16 %v414
    %v4720 = vunpack.c.l.b16 %v415
    %v4721 = vunpack.c.h.b16 %v415
    %v4722 = vunpack.c.l.b16 %v416
    %v4723 = vunpack.c.h.b16 %v416
    %v4724 = vunpack.c.l.b16 %v417
    %v4725 = vunpack.c.h.b16 %v417
    %v4726 = vunpack.c.l.b16 %v418
    %v4727 = vunpack.c.h.b16 %v418
    %v4728 = vunpack.c.l.b16 %v419
    %v4729 = vunpack.c.h.b16 %v419
    %v4730 = vunpack.c.l.b16 %v420
    %v4731 = vunpack.c.h.b16 %v420
    %v4732 = vunpack.c.l.b16 %v421
    %v4733 = vunpack.c.h.b16 %v421
    %v4734 = vunpack.c.l.b16 %v422
    %v4735 = vunpack.c.h.b16 %v422
    %v4736 = vunpack.c.l.b16 %v423
    %v4737 = vunpack.c.h.b16 %v423
    %v4738 = vunpack.c.l.b16 %v424
    %v4739 = vunpack.c.h.b16 %v424
    %v4740 = vunpack.c.l.b16 %v425
    %v4741 = vunpack.c.h.b16 %v425
    %v4742 = vunpack.c.l.b16 %v426
    %v4743 = vunpack.c.h.b16 %v426
    %v4744 = vunpack.c.l.b16 %v427
    %v4745 = vunpack.c.h.b16 %v427
    %v4746 = vunpack.c.l.b16 %v428
    %v4747 = vunpack.c.h.b16 %v428
    %v4748 = vunpack.c.l.b16 %v429
    %v4749 = vunpack.c.h.b16 %v429
    %v4750 = vunpack.c.l.b16 %v430
    %v4751 = vunpack.c.h.b16 %v430
    %v4752 = vunpack.c.l.b16 %v431
    %v4753 = vunpack.c.h.b16 %v431
    %v4754 = vunpack.c.l.b16 %v432
    %v4755 = vunpack.c.h.b16 %v432
    %v4756 = vunpack.c.l.b16 %v433
    %v4757 = vunpack.c.h.b16 %v433
    %v4758 = vunpack.c.l.b16 %v434
    %v4759 = vunpack.c.h.b16 %v434
    %v4760 = vunpack.c.l.b16 %v435
    %v4761 = vunpack.c.h.b16 %v435
    %v4762 = vunpack.c.l.b16 %v436
    %v4763 = vunpack.c.h.b16 %v436
    %v4764 = vunpack.c.l.b16 %v437
    %v4765 = vunpack.c.h.b16 %v437
    %v4766 = vunpack.c.l.b16 %v438
    %v4767 = vunpack.c.h.b16 %v438
    %v4768 = vunpack.c.l.b16 %v439
    %v4769 = vunpack.c.h.b16 %v439
    %v4770 = vunpack.c.l.b16 %v440
    %v4771 = vunpack.c.h.b16 %v440
    %v4772 = vunpack.c.l.b16 %v441
    %v4773 = vunpack.c.h.b16 %v441
    %v4774 = vunpack.c.l.b16 %v442
    %v4775 = vunpack.c.h.b16 %v442
    %v4776 = vunpack.c.l.b16 %v443
    %v4777 = vunpack.c.h.b16 %v443
    %v4778 = vunpack.c.l.b16 %v444
    %v4779 = vunpack.c.h.b16 %v444
    %v4780 = vunpack.c.l.b16 %v445
    %v4781 = vunpack.c.h.b16 %v445
    %v4782 = vunpack.c.l.b16 %v446
    %v4783 = vunpack.c.h.b16 %v446
    %v4784 = vunpack.c.l.b16 %v447
    %v4785 = vunpack.c.h.b16 %v447
    %v4786 = vunpack.c.l.b16 %v448
    %v4787 = vunpack.c.h.b16 %v448
    %v4788 = vunpack.c.l.b16 %v449
    %v4789 = vunpack.c.h.b16 %v449
    %v4790 = vunpack.c.l.b16 %v450
    %v4791 = vunpack.c.h.b16 %v450
    %v4792 = vunpack.c.l.b16 %v451
    %v4793 = vunpack.c.h.b16 %v451
    %v4794 = vunpack.c.l.b16 %v452
    %v4795 = vunpack.c.h.b16 %v452
    %v4796 = vunpack.c.l.b16 %v453
    %v4797 = vunpack.c.h.b16 %v453
    %v4798 = vunpack.c.l.b16 %v454
    %v4799 = vunpack.c.h.b16 %v454
    %v4800 = vunpack.c.l.b16 %v455
    %v4801 = vunpack.c.h.b16 %v455
    %v4802 = vunpack.c.l.b16 %v456
    %v4803 = vunpack.c.h.b16 %v456
    %v4804 = vunpack.c.l.b16 %v457
    %v4805 = vunpack.c.h.b16 %v457
    %v4806 = vunpack.c.l.b16 %v458
    %v4807 = vunpack.c.h.b16 %v458
    %v4808 = vunpack.c.l.b16 %v459
    %v4809 = vunpack.c.h.b16 %v459
    %v4810 = vunpack.c.l.b16 %v460
    %v4811 = vunpack.c.h.b16 %v460
    %v4812 = vunpack.c.l.b16 %v461
    %v4813 = vunpack.c.h.b16 %v461
    %v4814 = vunpack.c.l.b16 %v462
    %v4815 = vunpack.c.h.b16 %v462
    %v4816 = vunpack.c.l.b16 %v463
    %v4817 = vunpack.c.h.b16 %v463
    %v4818 = vunpack.c.l.b16 %v464
    %v4819 = vunpack.c.h.b16 %v464
    %v4820 = vunpack.c.l.b16 %v465
    %v4821 = vunpack.c.h.b16 %v465
    %v4822 = vunpack.c.l.b16 %v466
    %v4823 = vunpack.c.h.b16 %v466
    %v4824 = vunpack.c.l.b16 %v467
    %v4825 = vunpack.c.h.b16 %v467
    %v4826 = vunpack.c.l.b16 %v468
    %v4827 = vunpack.c.h.b16 %v468
    %v4828 = vunpack.c.l.b16 %v469
    %v4829 = vunpack.c.h.b16 %v469
    %v4830 = vunpack.c.l.b16 %v470
    %v4831 = vunpack.c.h.b16 %v470
    %v4832 = vunpack.c.l.b16 %v471
    %v4833 = vunpack.c.h.b16 %v471
    %v4834 = vunpack.c.l.b16 %v472
    %v4835 = vunpack.c.h.b16 %v472
    %v4836 = vunpack.c.l.b16 %v473
    %v4837 = vunpack.c.h.b16 %v473
    %v4838 = vunpack.c.l.b16 %v474
    %v4839 = vunpack.c.h.b16 %v474
    %v4840 = vunpack.c.l.b16 %v475
    %v4841 = vunpack.c.h.b16 %v475
    %v4842 = vunpack.c.l.b16 %v476
    %v4843 = vunpack.c.h.b16 %v476
    %v4844 = vunpack.c.l.b16 %v477
    %v4845 = vunpack.c.h.b16 %v477
    %v4846 = vunpack.c.l.b16 %v478
    %v4847 = vunpack.c.h.b16 %v478
    %v4848 = vunpack.c.l.b16 %v479
    %v4849 = vunpack.c.h.b16 %v479
    %v4850 = vunpack.c.l.b16 %v480
    %v4851 = vunpack.c.h.b16 %v480
    %v4852 = vunpack.c.l.b16 %v481
    %v4853 = vunpack.c.h.b16 %v481
    %v4854 = vunpack.c.l.b16 %v482
    %v4855 = vunpack.c.h.b16 %v482
    %v4856 = vunpack.c.l.b16 %v483
    %v4857 = vunpack.c.h.b16 %v483
    %v4858 = vunpack.c.l.b16 %v484
    %v4859 = vunpack.c.h.b16 %v484
    %v4860 = vunpack.c.l.b16 %v485
    %v4861 = vunpack.c.h.b16 %v485
    %v4862 = vunpack.c.l.b16 %v486
    %v4863 = vunpack.c.h.b16 %v486
    %v4864 = vunpack.c.l.b16 %v487
    %v4865 = vunpack.c.h.b16 %v487
    %v4866 = vunpack.c.l.b16 %v488
    %v4867 = vunpack.c.h.b16 %v488
    %v4868 = vunpack.c.l.b16 %v489
    %v4869 = vunpack.c.h.b16 %v489
    %v4870 = vunpack.c.l.b16 %v490
    %v4871 = vunpack.c.h.b16 %v490
    %v4872 = vunpack.c.l.b16 %v491
    %v4873 = vunpack.c.h.b16 %v491
    %v4874 = vunpack.c.l.b16 %v492
    %v4875 = vunpack.c.h.b16 %v492
    %v4876 = vunpack.c.l.b16 %v493
    %v4877 = vunpack.c.h.b16 %v493
    %v4878 = vunpack.c.l.b16 %v494
    %v4879 = vunpack.c.h.b16 %v494
    %v4880 = vunpack.c.l.b16 %v495
    %v4881 = vunpack.c.h.b16 %v495
    %v4882 = vunpack.c.l.b16 %v496
    %v4883 = vunpack.c.h.b16 %v496
    %v4884 = vunpack.c.l.b16 %v497
    %v4885 = vunpack.c.h.b16 %v497
    %v4886 = vunpack.c.l.b16 %v498
    %v4887 = vunpack.c.h.b16 %v498
    %v4888 = vunpack.c.l.b16 %v499
    %v4889 = vunpack.c.h.b16 %v499
    %v4890 = vunpack.c.l.b16 %v500
    %v4891 = vunpack.c.h.b16 %v500
    %v4892 = vunpack.c.l.b16 %v501
    %v4893 = vunpack.c.h.b16 %v501
    %v4894 = vunpack.c.l.b16 %v502
    %v4895 = vunpack.c.h.b16 %v502
    %v4896 = vunpack.c.l.b16 %v503
    %v4897 = vunpack.c.h.b16 %v503
    %v4898 = vunpack.c.l.b16 %v504
    %v4899 = vunpack.c.h.b16 %v504
    %v4900 = vunpack.c.l.b16 %v505
    %v4901 = vunpack.c.h.b16 %v505
    %v4902 = vunpack.c.l.b16 %v506
    %v4903 = vunpack.c.h.b16 %v506
    %v4904 = vunpack.c.l.b16 %v507
    %v4905 = vunpack.c.h.b16 %v507
    %v4906 = vunpack.c.l.b16 %v508
    %v4907 = vunpack.c.h.b16 %v508
    %v4908 = vunpack.c.l.b16 %v509
    %v4909 = vunpack.c.h.b16 %v509
    %v4910 = vunpack.c.l.b16 %v510
    %v4911 = vunpack.c.h.b16 %v510
    %v4912 = vunpack.c.l.b16 %v511
    %v4913 = vunpack.c.h.b16 %v511
    %v4914 = vunpack.c.l.b16 %v512
    %v4915 = vunpack.c.h.b16 %v512
    %v4916 = vunpack.c.l.b16 %v513
    %v4917 = vunpack.c.h.b16 %v513
    %v4918 = vunpack.c.l.b16 %v514
    %v4919 = vunpack.c.h.b16 %v514
    %v4920 = vunpack.c.l.b16 %v515
    %v4921 = vunpack.c.h.b16 %v515
    %v4922 = vunpack.c.l.b16 %v516
    %v4923 = vunpack.c.h.b16 %v516
    %v4924 = vunpack.c.l.b16 %v517
    %v4925 = vunpack.c.h.b16 %v517
    %v4926 = vunpack.c.l.b16 %v518
    %v4927 = vunpack.c.h.b16 %v518
    %v4928 = vunpack.c.l.b16 %v519
    %v4929 = vunpack.c.h.b16 %v519
    %v4930 = vunpack.c.l.b16 %v520
    %v4931 = vunpack.c.h.b16 %v520
    %v4932 = vunpack.c.l.b16 %v521
    %v4933 = vunpack.c.h.b16 %v521
    %v4934 = vunpack.c.l.b16 %v522
    %v4935 = vunpack.c.h.b16 %v522
    %v4936 = vunpack.c.l.b16 %v523
    %v4937 = vunpack.c.h.b16 %v523
    %v4938 = vunpack.c.l.b16 %v524
    %v4939 = vunpack.c.h.b16 %v524
    %v4940 = vunpack.c.l.b16 %v525
    %v4941 = vunpack.c.h.b16 %v525
    %v4942 = vunpack.c.l.b16 %v526
    %v4943 = vunpack.c.h.b16 %v526
    %v4944 = vunpack.c.l.b16 %v527
    %v4945 = vunpack.c.h.b16 %v527
    %v4946 = vunpack.c.l.b16 %v528
    %v4947 = vunpack.c.h.b16 %v528
    %v4948 = vunpack.c.l.b16 %v529
    %v4949 = vunpack.c.h.b16 %v529
    %v4950 = vunpack.c.l.b16 %v530
    %v4951 = vunpack.c.h.b16 %v530
    %v4952 = vunpack.c.l.b16 %v531
    %v4953 = vunpack.c.h.b16 %v531
    %v4954 = vunpack.c.l.b16 %v532
    %v4955 = vunpack.c.h.b16 %v532
    %v4956 = vunpack.c.l.b16 %v533
    %v4957 = vunpack.c.h.b16 %v533
    %v4958 = vunpack.c.l.b16 %v534
    %v4959 = vunpack.c.h.b16 %v534
    %v4960 = vunpack.c.l.b16 %v535
    %v4961 = vunpack.c.h.b16 %v535
    %v4962 = vunpack.c.l.b16 %v536
    %v4963 = vunpack.c.h.b16 %v536
    %v4964 = vunpack.c.l.b16 %v537
    %v4965 = vunpack.c.h.b16 %v537
    %v4966 = vunpack.c.l.b16 %v538
    %v4967 = vunpack.c.h.b16 %v538
    %v4968 = vunpack.c.l.b16 %v539
    %v4969 = vunpack.c.h.b16 %v539
    %v4970 = vunpack.c.l.b16 %v540
    %v4971 = vunpack.c.h.b16 %v540
    %v4972 = vunpack.c.l.b16 %v541
    %v4973 = vunpack.c.h.b16 %v541
    %v4974 = vunpack.c.l.b16 %v542
    %v4975 = vunpack.c.h.b16 %v542
    %v4976 = vunpack.c.l.b16 %v543
    %v4977 = vunpack.c.h.b16 %v543
    %v4978 = vunpack.c.l.b16 %v544
    %v4979 = vunpack.c.h.b16 %v544
    %v4980 = vunpack.c.l.b16 %v545
    %v4981 = vunpack.c.h.b16 %v545
    %v4982 = vunpack.c.l.b16 %v546
    %v4983 = vunpack.c.h.b16 %v546
    %v4984 = vunpack.c.l.b16 %v547
    %v4985 = vunpack.c.h.b16 %v547
    %v4986 = vunpack.c.l.b16 %v548
    %v4987 = vunpack.c.h.b16 %v548
    %v4988 = vunpack.c.l.b16 %v549
    %v4989 = vunpack.c.h.b16 %v549
    %v4990 = vunpack.c.l.b16 %v550
    %v4991 = vunpack.c.h.b16 %v550
    %v4992 = vunpack.c.l.b16 %v551
    %v4993 = vunpack.c.h.b16 %v551
    %v4994 = vunpack.c.l.b16 %v552
    %v4995 = vunpack.c.h.b16 %v552
    %v4996 = vunpack.c.l.b16 %v553
    %v4997 = vunpack.c.h.b16 %v553
    %v4998 = vunpack.c.l.b16 %v554
    %v4999 = vunpack.c.h.b16 %v554
    %v5000 = vunpack.c.l.b16 %v555
    %v5001 = vunpack.c.h.b16 %v555
    %v5002 = vunpack.c.l.b16 %v556
    %v5003 = vunpack.c.h.b16 %v556
    %v5004 = vunpack.c.l.b16 %v557
    %v5005 = vunpack.c.h.b16 %v557
    %v5006 = vunpack.c.l.b16 %v558
    %v5007 = vunpack.c.h.b16 %v558
    %v5008 = vunpack.c.l.b16 %v559
    %v5009 = vunpack.c.h.b16 %v559
    %v5010 = vunpack.c.l.b16 %v560
    %v5011 = vunpack.c.h.b16 %v560
    %v5012 = vunpack.c.l.b16 %v561
    %v5013 = vunpack.c.h.b16 %v561
    %v5014 = vunpack.c.l.b16 %v562
    %v5015 = vunpack.c.h.b16 %v562
    %v5016 = vunpack.c.l.b16 %v563
    %v5017 = vunpack.c.h.b16 %v563
    %v5018 = vunpack.c.l.b16 %v564
    %v5019 = vunpack.c.h.b16 %v564
    %v5020 = vunpack.c.l.b16 %v565
    %v5021 = vunpack.c.h.b16 %v565
    %v5022 = vunpack.c.l.b16 %v566
    %v5023 = vunpack.c.h.b16 %v566
    %v5024 = vunpack.c.l.b16 %v567
    %v5025 = vunpack.c.h.b16 %v567
    %v5026 = vunpack.c.l.b16 %v568
    %v5027 = vunpack.c.h.b16 %v568
    %v5028 = vunpack.c.l.b16 %v569
    %v5029 = vunpack.c.h.b16 %v569
    %v5030 = vunpack.c.l.b16 %v570
    %v5031 = vunpack.c.h.b16 %v570
    %v5032 = vunpack.c.l.b16 %v571
    %v5033 = vunpack.c.h.b16 %v571
    %v5034 = vunpack.c.l.b16 %v572
    %v5035 = vunpack.c.h.b16 %v572
    %v5036 = vunpack.c.l.b16 %v573
    %v5037 = vunpack.c.h.b16 %v573
    %v5038 = vunpack.c.l.b16 %v574
    %v5039 = vunpack.c.h.b16 %v574
    %v5040 = vunpack.c.l.b16 %v575
    %v5041 = vunpack.c.h.b16 %v575
    %v5042 = vunpack.c.l.b16 %v576
    %v5043 = vunpack.c.h.b16 %v576
    %v5044 = vunpack.c.l.b16 %v577
    %v5045 = vunpack.c.h.b16 %v577
    %v5046 = vunpack.c.l.b16 %v578
    %v5047 = vunpack.c.h.b16 %v578
    %v5048 = vunpack.c.l.b16 %v579
    %v5049 = vunpack.c.h.b16 %v579
    %v5050 = vunpack.c.l.b16 %v580
    %v5051 = vunpack.c.h.b16 %v580
    %v5052 = vunpack.c.l.b16 %v581
    %v5053 = vunpack.c.h.b16 %v581
    %v5054 = vunpack.c.l.b16 %v582
    %v5055 = vunpack.c.h.b16 %v582
    %v5056 = vunpack.c.l.b16 %v583
    %v5057 = vunpack.c.h.b16 %v583
    %v5058 = vunpack.c.l.b16 %v584
    %v5059 = vunpack.c.h.b16 %v584
    %v5060 = vunpack.c.l.b16 %v585
    %v5061 = vunpack.c.h.b16 %v585
    %v5062 = vunpack.c.l.b16 %v586
    %v5063 = vunpack.c.h.b16 %v586
    %v5064 = vunpack.c.l.b16 %v587
    %v5065 = vunpack.c.h.b16 %v587
    %v5066 = vunpack.c.l.b16 %v588
    %v5067 = vunpack.c.h.b16 %v588
    %v5068 = vunpack.c.l.b16 %v589
    %v5069 = vunpack.c.h.b16 %v589
    %v5070 = vunpack.c.l.b16 %v590
    %v5071 = vunpack.c.h.b16 %v590
    %v5072 = vunpack.c.l.b16 %v591
    %v5073 = vunpack.c.h.b16 %v591
    %v5074 = vunpack.c.l.b16 %v592
    %v5075 = vunpack.c.h.b16 %v592
    %v5076 = vunpack.c.l.b16 %v593
    %v5077 = vunpack.c.h.b16 %v593
    %v5078 = vunpack.c.l.b16 %v594
    %v5079 = vunpack.c.h.b16 %v594
    %v5080 = vunpack.c.l.b16 %v595
    %v5081 = vunpack.c.h.b16 %v595
    %v5082 = vunpack.c.l.b16 %v596
    %v5083 = vunpack.c.h.b16 %v596
    %v5084 = vunpack.c.l.b16 %v597
    %v5085 = vunpack.c.h.b16 %v597
    %v5086 = vunpack.c.l.b16 %v598
    %v5087 = vunpack.c.h.b16 %v598
    %v5088 = vunpack.c.l.b16 %v599
    %v5089 = vunpack.c.h.b16 %v599
    %v5090 = vunpack.c.l.b16 %v600
    %v5091 = vunpack.c.h.b16 %v600
    %v5092 = vunpack.c.l.b16 %v601
    %v5093 = vunpack.c.h.b16 %v601
    %v5094 = vunpack.c.l.b16 %v602
    %v5095 = vunpack.c.h.b16 %v602
    %v5096 = vunpack.c.l.b16 %v603
    %v5097 = vunpack.c.h.b16 %v603
    %v5098 = vunpack.c.l.b16 %v604
    %v5099 = vunpack.c.h.b16 %v604
    %v5100 = vunpack.c.l.b16 %v605
    %v5101 = vunpack.c.h.b16 %v605
    %v5102 = vunpack.c.l.b16 %v606
    %v5103 = vunpack.c.h.b16 %v606
    %v5104 = vunpack.c.l.b16 %v607
    %v5105 = vunpack.c.h.b16 %v607
    %v5106 = vunpack.c.l.b16 %v608
    %v5107 = vunpack.c.h.b16 %v608
    %v5108 = vunpack.c.l.b16 %v609
    %v5109 = vunpack.c.h.b16 %v609
    %v5110 = vunpack.c.l.b16 %v610
    %v5111 = vunpack.c.h.b16 %v610
    %v5112 = vunpack.c.l.b16 %v611
    %v5113 = vunpack.c.h.b16 %v611
    %v5114 = vunpack.c.l.b16 %v612
    %v5115 = vunpack.c.h.b16 %v612
    %v5116 = vunpack.c.l.b16 %v613
    %v5117 = vunpack.c.h.b16 %v613
    %v5118 = vunpack.c.l.b16 %v614
    %v5119 = vunpack.c.h.b16 %v614
    %v5120 = vunpack.c.l.b16 %v615
    %v5121 = vunpack.c.h.b16 %v615
    %v5122 = vunpack.c.l.b16 %v616
    %v5123 = vunpack.c.h.b16 %v616
    %v5124 = vunpack.c.l.b16 %v617
    %v5125 = vunpack.c.h.b16 %v617
    %v5126 = vunpack.c.l.b16 %v618
    %v5127 = vunpack.c.h.b16 %v618
    %v5128 = vunpack.c.l.b16 %v619
    %v5129 = vunpack.c.h.b16 %v619
    %v5130 = vunpack.c.l.b16 %v620
    %v5131 = vunpack.c.h.b16 %v620
    %v5132 = vunpack.c.l.b16 %v621
    %v5133 = vunpack.c.h.b16 %v621
    %v5134 = vunpack.c.l.b16 %v622
    %v5135 = vunpack.c.h.b16 %v622
    %v5136 = vunpack.c.l.b16 %v623
    %v5137 = vunpack.c.h.b16 %v623
    %v5138 = vunpack.c.l.b16 %v624
    %v5139 = vunpack.c.h.b16 %v624
    %v5140 = vunpack.c.l.b16 %v625
    %v5141 = vunpack.c.h.b16 %v625
    %v5142 = vunpack.c.l.b16 %v626
    %v5143 = vunpack.c.h.b16 %v626
    %v5144 = vunpack.c.l.b16 %v627
    %v5145 = vunpack.c.h.b16 %v627
    %v5146 = vunpack.c.l.b16 %v628
    %v5147 = vunpack.c.h.b16 %v628
    %v5148 = vunpack.c.l.b16 %v629
    %v5149 = vunpack.c.h.b16 %v629
    %v5150 = vunpack.c.l.b16 %v630
    %v5151 = vunpack.c.h.b16 %v630
    %v5152 = vunpack.c.l.b16 %v631
    %v5153 = vunpack.c.h.b16 %v631
    %v5154 = vunpack.c.l.b16 %v632
    %v5155 = vunpack.c.h.b16 %v632
    %v5156 = vunpack.c.l.b16 %v633
    %v5157 = vunpack.c.h.b16 %v633
    %v5158 = vunpack.c.l.b16 %v634
    %v5159 = vunpack.c.h.b16 %v634
    %v5160 = vunpack.c.l.b16 %v635
    %v5161 = vunpack.c.h.b16 %v635
    %v5162 = vunpack.c.l.b16 %v636
    %v5163 = vunpack.c.h.b16 %v636
    %v5164 = vunpack.c.l.b16 %v637
    %v5165 = vunpack.c.h.b16 %v637
    %v5166 = vunpack.c.l.b16 %v638
    %v5167 = vunpack.c.h.b16 %v638
    %v5168 = vunpack.c.l.b16 %v639
    %v5169 = vunpack.c.h.b16 %v639
    %v5170 = vunpack.c.l.b16 %v640
    %v5171 = vunpack.c.h.b16 %v640
    %v5172 = vunpack.c.l.b16 %v641
    %v5173 = vunpack.c.h.b16 %v641
    %v5174 = vunpack.c.l.b16 %v642
    %v5175 = vunpack.c.h.b16 %v642
    %v5176 = vunpack.c.l.b16 %v643
    %v5177 = vunpack.c.h.b16 %v643
    %v5178 = vunpack.c.l.b16 %v644
    %v5179 = vunpack.c.h.b16 %v644
    %v5180 = vunpack.c.l.b16 %v645
    %v5181 = vunpack.c.h.b16 %v645
    %v5182 = vunpack.c.l.b16 %v646
    %v5183 = vunpack.c.h.b16 %v646
    %v5184 = vunpack.c.l.b16 %v647
    %v5185 = vunpack.c.h.b16 %v647
    %v5186 = vunpack.c.l.b16 %v648
    %v5187 = vunpack.c.h.b16 %v648
    %v5188 = vunpack.c.l.b16 %v649
    %v5189 = vunpack.c.h.b16 %v649
    %v5190 = vunpack.c.l.b16 %v650
    %v5191 = vunpack.c.h.b16 %v650
    %v5192 = vunpack.c.l.b16 %v651
    %v5193 = vunpack.c.h.b16 %v651
    %v5194 = vunpack.c.l.b16 %v652
    %v5195 = vunpack.c.h.b16 %v652
    %v5196 = vunpack.c.l.b16 %v653
    %v5197 = vunpack.c.h.b16 %v653
    %v5198 = vunpack.c.l.b16 %v654
    %v5199 = vunpack.c.h.b16 %v654
    %v5200 = vunpack.c.l.b16 %v655
    %v5201 = vunpack.c.h.b16 %v655
    %v5202 = vunpack.c.l.b16 %v656
    %v5203 = vunpack.c.h.b16 %v656
    %v5204 = vunpack.c.l.b16 %v657
    %v5205 = vunpack.c.h.b16 %v657
    %v5206 = vunpack.c.l.b16 %v658
    %v5207 = vunpack.c.h.b16 %v658
    %v5208 = vunpack.c.l.b16 %v659
    %v5209 = vunpack.c.h.b16 %v659
    %v5210 = vunpack.c.l.b16 %v660
    %v5211 = vunpack.c.h.b16 %v660
    %v5212 = vunpack.c.l.b16 %v661
    %v5213 = vunpack.c.h.b16 %v661
    %v5214 = vunpack.c.l.b16 %v662
    %v5215 = vunpack.c.h.b16 %v662
    %v5216 = vunpack.c.l.b16 %v663
    %v5217 = vunpack.c.h.b16 %v663
    %v5218 = vunpack.c.l.b16 %v664
    %v5219 = vunpack.c.h.b16 %v664
    %v5220 = vunpack.c.l.b16 %v665
    %v5221 = vunpack.c.h.b16 %v665
    %v5222 = vunpack.c.l.b16 %v666
    %v5223 = vunpack.c.h.b16 %v666
    %v5224 = vunpack.c.l.b16 %v667
    %v5225 = vunpack.c.h.b16 %v667
    %v5226 = vunpack.c.l.b16 %v668
    %v5227 = vunpack.c.h.b16 %v668
    %v5228 = vunpack.c.l.b16 %v669
    %v5229 = vunpack.c.h.b16 %v669
    %v5230 = vunpack.c.l.b16 %v670
    %v5231 = vunpack.c.h.b16 %v670
    %v5232 = vunpack.c.l.b16 %v671
    %v5233 = vunpack.c.h.b16 %v671
    %v5234 = vunpack.c.l.b16 %v672
    %v5235 = vunpack.c.h.b16 %v672
    %v5236 = vunpack.c.l.b16 %v673
    %v5237 = vunpack.c.h.b16 %v673
    %v5238 = vunpack.c.l.b16 %v674
    %v5239 = vunpack.c.h.b16 %v674
    %v5240 = vunpack.c.l.b16 %v675
    %v5241 = vunpack.c.h.b16 %v675
    %v5242 = vunpack.c.l.b16 %v676
    %v5243 = vunpack.c.h.b16 %v676
    %v5244 = vunpack.c.l.b16 %v677
    %v5245 = vunpack.c.h.b16 %v677
    %v5246 = vunpack.c.l.b16 %v678
    %v5247 = vunpack.c.h.b16 %v678
    %v5248 = vunpack.c.l.b16 %v679
    %v5249 = vunpack.c.h.b16 %v679
    %v5250 = vunpack.c.l.b16 %v680
    %v5251 = vunpack.c.h.b16 %v680
    %v5252 = vunpack.c.l.b16 %v681
    %v5253 = vunpack.c.h.b16 %v681
    %v5254 = vunpack.c.l.b16 %v682
    %v5255 = vunpack.c.h.b16 %v682
    %v5256 = vunpack.c.l.b16 %v683
    %v5257 = vunpack.c.h.b16 %v683
    %v5258 = vunpack.c.l.b16 %v684
    %v5259 = vunpack.c.h.b16 %v684
    %v5260 = vunpack.c.l.b16 %v685
    %v5261 = vunpack.c.h.b16 %v685
    %v5262 = vunpack.c.l.b16 %v686
    %v5263 = vunpack.c.h.b16 %v686
    %v5264 = vunpack.c.l.b16 %v687
    %v5265 = vunpack.c.h.b16 %v687
    %v5266 = vunpack.c.l.b16 %v688
    %v5267 = vunpack.c.h.b16 %v688
    %v5268 = vunpack.c.l.b16 %v689
    %v5269 = vunpack.c.h.b16 %v689
    %v5270 = vunpack.c.l.b16 %v690
    %v5271 = vunpack.c.h.b16 %v690
    %v5272 = vunpack.c.l.b16 %v691
    %v5273 = vunpack.c.h.b16 %v691
    %v5274 = vunpack.c.l.b16 %v692
    %v5275 = vunpack.c.h.b16 %v692
    %v5276 = vunpack.c.l.b16 %v693
    %v5277 = vunpack.c.h.b16 %v693
    %v5278 = vunpack.c.l.b16 %v694
    %v5279 = vunpack.c.h.b16 %v694
    %v5280 = vunpack.c.l.b16 %v695
    %v5281 = vunpack.c.h.b16 %v695
    %v5282 = vunpack.c.l.b16 %v696
    %v5283 = vunpack.c.h.b16 %v696
    %v5284 = vunpack.c.l.b16 %v697
    %v5285 = vunpack.c.h.b16 %v697
    %v5286 = vunpack.c.l.b16 %v698
    %v5287 = vunpack.c.h.b16 %v698
    %v5288 = vunpack.c.l.b16 %v699
    %v5289 = vunpack.c.h.b16 %v699
    %v5290 = vunpack.c.l.b16 %v700
    %v5291 = vunpack.c.h.b16 %v700
    %v5292 = vunpack.c.l.b16 %v701
    %v5293 = vunpack.c.h.b16 %v701
    %v5294 = vunpack.c.l.b16 %v702
    %v5295 = vunpack.c.h.b16 %v702
    %v5296 = vunpack.c.l.b16 %v703
    %v5297 = vunpack.c.h.b16 %v703
    %v5298 = vunpack.c.l.b16 %v704
    %v5299 = vunpack.c.h.b16 %v704
    %v5300 = vunpack.c.l.b16 %v705
    %v5301 = vunpack.c.h.b16 %v705
    %v5302 = vunpack.c.l.b16 %v706
    %v5303 = vunpack.c.h.b16 %v706
    %v5304 = vunpack.c.l.b16 %v707
    %v5305 = vunpack.c.h.b16 %v707
    %v5306 = vunpack.c.l.b16 %v708
    %v5307 = vunpack.c.h.b16 %v708
    %v5308 = vunpack.c.l.b16 %v709
    %v5309 = vunpack.c.h.b16 %v709
    %v5310 = vunpack.c.l.b16 %v710
    %v5311 = vunpack.c.h.b16 %v710
    %v5312 = vunpack.c.l.b16 %v711
    %v5313 = vunpack.c.h.b16 %v711
    %v5314 = vunpack.c.l.b16 %v712
    %v5315 = vunpack.c.h.b16 %v712
    %v5316 = vunpack.c.l.b16 %v713
    %v5317 = vunpack.c.h.b16 %v713
    %v5318 = vunpack.c.l.b16 %v714
    %v5319 = vunpack.c.h.b16 %v714
    %v5320 = vunpack.c.l.b16 %v715
    %v5321 = vunpack.c.h.b16 %v715
    %v5322 = vunpack.c.l.b16 %v716
    %v5323 = vunpack.c.h.b16 %v716
    %v5324 = vunpack.c.l.b16 %v717
    %v5325 = vunpack.c.h.b16 %v717
    %v5326 = vunpack.c.l.b16 %v718
    %v5327 = vunpack.c.h.b16 %v718
    %v5328 = vunpack.c.l.b16 %v719
    %v5329 = vunpack.c.h.b16 %v719
    %v5330 = vunpack.c.l.b16 %v720
    %v5331 = vunpack.c.h.b16 %v720
    %v5332 = vunpack.c.l.b16 %v721
    %v5333 = vunpack.c.h.b16 %v721
    %v5334 = vunpack.c.l.b16 %v722
    %v5335 = vunpack.c.h.b16 %v722
    %v5336 = vunpack.c.l.b16 %v723
    %v5337 = vunpack.c.h.b16 %v723
    %v5338 = vunpack.c.l.b16 %v724
    %v5339 = vunpack.c.h.b16 %v724
    %v5340 = vunpack.c.l.b16 %v725
    %v5341 = vunpack.c.h.b16 %v725
    %v5342 = vunpack.c.l.b16 %v726
    %v5343 = vunpack.c.h.b16 %v726
    %v5344 = vunpack.c.l.b16 %v727
    %v5345 = vunpack.c.h.b16 %v727
    %v5346 = vunpack.c.l.b16 %v728
    %v5347 = vunpack.c.h.b16 %v728
    %v5348 = vunpack.c.l.b16 %v729
    %v5349 = vunpack.c.h.b16 %v729
    %v5350 = vunpack.c.l.b16 %v730
    %v5351 = vunpack.c.h.b16 %v730
    %v5352 = vunpack.c.l.b16 %v731
    %v5353 = vunpack.c.h.b16 %v731
    %v5354 = vunpack.c.l.b16 %v732
    %v5355 = vunpack.c.h.b16 %v732
    %v5356 = vunpack.c.l.b16 %v733
    %v5357 = vunpack.c.h.b16 %v733
    %v5358 = vunpack.c.l.b16 %v734
    %v5359 = vunpack.c.h.b16 %v734
    %v5360 = vunpack.c.l.b16 %v735
    %v5361 = vunpack.c.h.b16 %v735
    %v5362 = vunpack.c.l.b16 %v736
    %v5363 = vunpack.c.h.b16 %v736
    %v5364 = vunpack.c.l.b16 %v737
    %v5365 = vunpack.c.h.b16 %v737
    %v5366 = vunpack.c.l.b16 %v738
    %v5367 = vunpack.c.h.b16 %v738
    %v5368 = vunpack.c.l.b16 %v739
    %v5369 = vunpack.c.h.b16 %v739
    %v5370 = vunpack.c.l.b16 %v740
    %v5371 = vunpack.c.h.b16 %v740
    %v5372 = vunpack.c.l.b16 %v741
    %v5373 = vunpack.c.h.b16 %v741
    %v5374 = vunpack.c.l.b16 %v742
    %v5375 = vunpack.c.h.b16 %v742
    %v5376 = vunpack.c.l.b16 %v743
    %v5377 = vunpack.c.h.b16 %v743
    %v5378 = vunpack.c.l.b16 %v744
    %v5379 = vunpack.c.h.b16 %v744
    %v5380 = vunpack.c.l.b16 %v745
    %v5381 = vunpack.c.h.b16 %v745
    %v5382 = vunpack.c.l.b16 %v746
    %v5383 = vunpack.c.h.b16 %v746
    %v5384 = vunpack.c.l.b16 %v747
    %v5385 = vunpack.c.h.b16 %v747
    %v5386 = vunpack.c.l.b16 %v748
    %v5387 = vunpack.c.h.b16 %v748
    %v5388 = vunpack.c.l.b16 %v749
    %v5389 = vunpack.c.h.b16 %v749
    %v5390 = vunpack.c.l.b16 %v750
    %v5391 = vunpack.c.h.b16 %v750
    %v5392 = vunpack.c.l.b16 %v751
    %v5393 = vunpack.c.h.b16 %v751
    %v5394 = vunpack.c.l.b16 %v752
    %v5395 = vunpack.c.h.b16 %v752
    %v5396 = vunpack.c.l.b16 %v753
    %v5397 = vunpack.c.h.b16 %v753
    %v5398 = vunpack.c.l.b16 %v754
    %v5399 = vunpack.c.h.b16 %v754
    %v5400 = vunpack.c.l.b16 %v755
    %v5401 = vunpack.c.h.b16 %v755
    %v5402 = vunpack.c.l.b16 %v756
    %v5403 = vunpack.c.h.b16 %v756
    %v5404 = vunpack.c.l.b16 %v757
    %v5405 = vunpack.c.h.b16 %v757
    %v5406 = vunpack.c.l.b16 %v758
    %v5407 = vunpack.c.h.b16 %v758
    %v5408 = vunpack.c.l.b16 %v759
    %v5409 = vunpack.c.h.b16 %v759
    %v5410 = vunpack.c.l.b16 %v760
    %v5411 = vunpack.c.h.b16 %v760
    %v5412 = vunpack.c.l.b16 %v761
    %v5413 = vunpack.c.h.b16 %v761
    %v5414 = vunpack.c.l.b16 %v762
    %v5415 = vunpack.c.h.b16 %v762
    %v5416 = vunpack.c.l.b16 %v763
    %v5417 = vunpack.c.h.b16 %v763
    %v5418 = vunpack.c.l.b16 %v764
    %v5419 = vunpack.c.h.b16 %v764
    %v5420 = vunpack.c.l.b16 %v765
    %v5421 = vunpack.c.h.b16 %v765
    %v5422 = vunpack.c.l.b16 %v766
    %v5423 = vunpack.c.h.b16 %v766
    %v5424 = vunpack.c.l.b16 %v767
    %v5425 = vunpack.c.h.b16 %v767
    %v5426 = vunpack.c.l.b16 %v768
    %v5427 = vunpack.c.h.b16 %v768
    %v5428 = vunpack.c.l.b16 %v769
    %v5429 = vunpack.c.h.b16 %v769
    %v5430 = vunpack.c.l.b16 %v770
    %v5431 = vunpack.c.h.b16 %v770
    %v5432 = vunpack.c.l.b16 %v771
    %v5433 = vunpack.c.h.b16 %v771
    %v5434 = vunpack.c.l.b16 %v772
    %v5435 = vunpack.c.h.b16 %v772
    %v5436 = vunpack.c.l.b16 %v773
    %v5437 = vunpack.c.h.b16 %v773
    %v5438 = vunpack.c.l.b16 %v774
    %v5439 = vunpack.c.h.b16 %v774
    %v5440 = vunpack.c.l.b16 %v775
    %v5441 = vunpack.c.h.b16 %v775
    %v5442 = vunpack.c.l.b16 %v776
    %v5443 = vunpack.c.h.b16 %v776
    %v5444 = vunpack.c.l.b16 %v777
    %v5445 = vunpack.c.h.b16 %v777
    %v5446 = vunpack.c.l.b16 %v778
    %v5447 = vunpack.c.h.b16 %v778
    %v5448 = vunpack.c.l.b16 %v779
    %v5449 = vunpack.c.h.b16 %v779
    %v5450 = vunpack.c.l.b16 %v780
    %v5451 = vunpack.c.h.b16 %v780
    %v5452 = vunpack.c.l.b16 %v781
    %v5453 = vunpack.c.h.b16 %v781
    %v5454 = vunpack.c.l.b16 %v782
    %v5455 = vunpack.c.h.b16 %v782
    %v5456 = vunpack.c.l.b16 %v783
    %v5457 = vunpack.c.h.b16 %v783
    %v5458 = vunpack.c.l.b16 %v784
    %v5459 = vunpack.c.h.b16 %v784
    %v5460 = vunpack.c.l.b16 %v785
    %v5461 = vunpack.c.h.b16 %v785
    %v5462 = vunpack.c.l.b16 %v786
    %v5463 = vunpack.c.h.b16 %v786
    %v5464 = vunpack.c.l.b16 %v787
    %v5465 = vunpack.c.h.b16 %v787
    %v5466 = vunpack.c.l.b16 %v788
    %v5467 = vunpack.c.h.b16 %v788
    %v5468 = vunpack.c.l.b16 %v789
    %v5469 = vunpack.c.h.b16 %v789
    %v5470 = vunpack.c.l.b16 %v790
    %v5471 = vunpack.c.h.b16 %v790
    %v5472 = vunpack.c.l.b16 %v791
    %v5473 = vunpack.c.h.b16 %v791
    %v5474 = vunpack.c.l.b16 %v792
    %v5475 = vunpack.c.h.b16 %v792
    %v5476 = vunpack.c.l.b16 %v793
    %v5477 = vunpack.c.h.b16 %v793
    %v5478 = vunpack.c.l.b16 %v794
    %v5479 = vunpack.c.h.b16 %v794
    %v5480 = vunpack.c.l.b16 %v795
    %v5481 = vunpack.c.h.b16 %v795
    %v5482 = vunpack.c.l.b16 %v796
    %v5483 = vunpack.c.h.b16 %v796
    %v5484 = vunpack.c.l.b16 %v797
    %v5485 = vunpack.c.h.b16 %v797
    %v5486 = vunpack.c.l.b16 %v798
    %v5487 = vunpack.c.h.b16 %v798
    %v5488 = vunpack.c.l.b16 %v799
    %v5489 = vunpack.c.h.b16 %v799
    %v5490 = vunpack.c.l.b16 %v800
    %v5491 = vunpack.c.h.b16 %v800
    %v5492 = vunpack.c.l.b16 %v801
    %v5493 = vunpack.c.h.b16 %v801
    %v5494 = vunpack.c.l.b16 %v802
    %v5495 = vunpack.c.h.b16 %v802
    %v5496 = vunpack.c.l.b16 %v803
    %v5497 = vunpack.c.h.b16 %v803
    %v5498 = vunpack.c.l.b16 %v804
    %v5499 = vunpack.c.h.b16 %v804
    %v5500 = vunpack.c.l.b16 %v805
    %v5501 = vunpack.c.h.b16 %v805
    %v5502 = vunpack.c.l.b16 %v806
    %v5503 = vunpack.c.h.b16 %v806
    %v5504 = vunpack.c.l.b16 %v807
    %v5505 = vunpack.c.h.b16 %v807
    %v5506 = vunpack.c.l.b16 %v808
    %v5507 = vunpack.c.h.b16 %v808
    %v5508 = vunpack.c.l.b16 %v809
    %v5509 = vunpack.c.h.b16 %v809
    %v5510 = vunpack.c.l.b16 %v810
    %v5511 = vunpack.c.h.b16 %v810
    %v5512 = vunpack.c.l.b16 %v811
    %v5513 = vunpack.c.h.b16 %v811
    %v5514 = vunpack.c.l.b16 %v812
    %v5515 = vunpack.c.h.b16 %v812
    %v5516 = vunpack.c.l.b16 %v813
    %v5517 = vunpack.c.h.b16 %v813
    %v5518 = vunpack.c.l.b16 %v814
    %v5519 = vunpack.c.h.b16 %v814
    %v5520 = vunpack.c.l.b16 %v815
    %v5521 = vunpack.c.h.b16 %v815
    %v5522 = vunpack.c.l.b16 %v816
    %v5523 = vunpack.c.h.b16 %v816
    %v5524 = vunpack.c.l.b16 %v817
    %v5525 = vunpack.c.h.b16 %v817
    %v5526 = vunpack.c.l.b16 %v818
    %v5527 = vunpack.c.h.b16 %v818
    %v5528 = vunpack.c.l.b16 %v819
    %v5529 = vunpack.c.h.b16 %v819
    %v5530 = vunpack.c.l.b16 %v820
    %v5531 = vunpack.c.h.b16 %v820
    %v5532 = vunpack.c.l.b16 %v821
    %v5533 = vunpack.c.h.b16 %v821
    %v5534 = vunpack.c.l.b16 %v822
    %v5535 = vunpack.c.h.b16 %v822
    %v5536 = vunpack.c.l.b16 %v823
    %v5537 = vunpack.c.h.b16 %v823
    %v5538 = vunpack.c.l.b16 %v824
    %v5539 = vunpack.c.h.b16 %v824
    %v5540 = vunpack.c.l.b16 %v825
    %v5541 = vunpack.c.h.b16 %v825
    %v5542 = vunpack.c.l.b16 %v826
    %v5543 = vunpack.c.h.b16 %v826
    %v5544 = vunpack.c.l.b16 %v827
    %v5545 = vunpack.c.h.b16 %v827
    %v5546 = vunpack.c.l.b16 %v828
    %v5547 = vunpack.c.h.b16 %v828
    %v5548 = vunpack.c.l.b16 %v829
    %v5549 = vunpack.c.h.b16 %v829
    %v5550 = vunpack.c.l.b16 %v830
    %v5551 = vunpack.c.h.b16 %v830
    %v5552 = vunpack.c.l.b16 %v831
    %v5553 = vunpack.c.h.b16 %v831
    %v5554 = vunpack.c.l.b16 %v832
    %v5555 = vunpack.c.h.b16 %v832
    %v5556 = vunpack.c.l.b16 %v833
    %v5557 = vunpack.c.h.b16 %v833
    %v5558 = vunpack.c.l.b16 %v834
    %v5559 = vunpack.c.h.b16 %v834
    %v5560 = vunpack.c.l.b16 %v835
    %v5561 = vunpack.c.h.b16 %v835
    %v5562 = vunpack.c.l.b16 %v836
    %v5563 = vunpack.c.h.b16 %v836
    %v5564 = vunpack.c.l.b16 %v837
    %v5565 = vunpack.c.h.b16 %v837
    %v5566 = vunpack.c.l.b16 %v838
    %v5567 = vunpack.c.h.b16 %v838
    %v5568 = vunpack.c.l.b16 %v839
    %v5569 = vunpack.c.h.b16 %v839
    %v5570 = vunpack.c.l.b16 %v840
    %v5571 = vunpack.c.h.b16 %v840
    %v5572 = vunpack.c.l.b16 %v841
    %v5573 = vunpack.c.h.b16 %v841
    %v5574 = vunpack.c.l.b16 %v842
    %v5575 = vunpack.c.h.b16 %v842
    %v5576 = vunpack.c.l.b16 %v843
    %v5577 = vunpack.c.h.b16 %v843
    %v5578 = vunpack.c.l.b16 %v844
    %v5579 = vunpack.c.h.b16 %v844
    %v5580 = vunpack.c.l.b16 %v845
    %v5581 = vunpack.c.h.b16 %v845
    %v5582 = vunpack.c.l.b16 %v846
    %v5583 = vunpack.c.h.b16 %v846
    %v5584 = vunpack.c.l.b16 %v847
    %v5585 = vunpack.c.h.b16 %v847
    %v5586 = vunpack.c.l.b16 %v848
    %v5587 = vunpack.c.h.b16 %v848
    %v5588 = vunpack.c.l.b16 %v849
    %v5589 = vunpack.c.h.b16 %v849
    %v5590 = vunpack.c.l.b16 %v850
    %v5591 = vunpack.c.h.b16 %v850
    %v5592 = vunpack.c.l.b16 %v851
    %v5593 = vunpack.c.h.b16 %v851
    %v5594 = vunpack.c.l.b16 %v852
    %v5595 = vunpack.c.h.b16 %v852
    %v5596 = vunpack.c.l.b16 %v853
    %v5597 = vunpack.c.h.b16 %v853
    %v5598 = vunpack.c.l.b16 %v854
    %v5599 = vunpack.c.h.b16 %v854
    %v5600 = vunpack.c.l.b16 %v855
    %v5601 = vunpack.c.h.b16 %v855
    %v5602 = vunpack.c.l.b16 %v856
    %v5603 = vunpack.c.h.b16 %v856
    %v5604 = vunpack.c.l.b16 %v857
    %v5605 = vunpack.c.h.b16 %v857
    %v5606 = vunpack.c.l.b16 %v858
    %v5607 = vunpack.c.h.b16 %v858
    %v5608 = vunpack.c.l.b16 %v859
    %v5609 = vunpack.c.h.b16 %v859
    %v5610 = vunpack.c.l.b16 %v860
    %v5611 = vunpack.c.h.b16 %v860
    %v5612 = vunpack.c.l.b16 %v861
    %v5613 = vunpack.c.h.b16 %v861
    %v5614 = vunpack.c.l.b16 %v862
    %v5615 = vunpack.c.h.b16 %v862
    %v5616 = vunpack.c.l.b16 %v863
    %v5617 = vunpack.c.h.b16 %v863
    %v5618 = vunpack.c.l.b16 %v864
    %v5619 = vunpack.c.h.b16 %v864
    %v5620 = vunpack.c.l.b16 %v865
    %v5621 = vunpack.c.h.b16 %v865
    %v5622 = vunpack.c.l.b16 %v866
    %v5623 = vunpack.c.h.b16 %v866
    %v5624 = vunpack.c.l.b16 %v867
    %v5625 = vunpack.c.h.b16 %v867
    %v5626 = vunpack.c.l.b16 %v868
    %v5627 = vunpack.c.h.b16 %v868
    %v5628 = vunpack.c.l.b16 %v869
    %v5629 = vunpack.c.h.b16 %v869
    %v5630 = vunpack.c.l.b16 %v870
    %v5631 = vunpack.c.h.b16 %v870
    %v5632 = vunpack.c.l.b16 %v871
    %v5633 = vunpack.c.h.b16 %v871
    %v5634 = vunpack.c.l.b16 %v872
    %v5635 = vunpack.c.h.b16 %v872
    %v5636 = vunpack.c.l.b16 %v873
    %v5637 = vunpack.c.h.b16 %v873
    %v5638 = vunpack.c.l.b16 %v874
    %v5639 = vunpack.c.h.b16 %v874
    %v5640 = vunpack.c.l.b16 %v875
    %v5641 = vunpack.c.h.b16 %v875
    %v5642 = vunpack.c.l.b16 %v876
    %v5643 = vunpack.c.h.b16 %v876
    %v5644 = vunpack.c.l.b16 %v877
    %v5645 = vunpack.c.h.b16 %v877
    %v5646 = vunpack.c.l.b16 %v878
    %v5647 = vunpack.c.h.b16 %v878
    %v5648 = vunpack.c.l.b16 %v879
    %v5649 = vunpack.c.h.b16 %v879
    %v5650 = vunpack.c.l.b16 %v880
    %v5651 = vunpack.c.h.b16 %v880
    %v5652 = vunpack.c.l.b16 %v881
    %v5653 = vunpack.c.h.b16 %v881
    %v5654 = vunpack.c.l.b16 %v882
    %v5655 = vunpack.c.h.b16 %v882
    %v5656 = vunpack.c.l.b16 %v883
    %v5657 = vunpack.c.h.b16 %v883
    %v5658 = vunpack.c.l.b16 %v884
    %v5659 = vunpack.c.h.b16 %v884
    %v5660 = vunpack.c.l.b16 %v885
    %v5661 = vunpack.c.h.b16 %v885
    %v5662 = vunpack.c.l.b16 %v886
    %v5663 = vunpack.c.h.b16 %v886
    %v5664 = vunpack.c.l.b16 %v887
    %v5665 = vunpack.c.h.b16 %v887
    %v5666 = vunpack.c.l.b16 %v888
    %v5667 = vunpack.c.h.b16 %v888
    %v5668 = vunpack.c.l.b16 %v889
    %v5669 = vunpack.c.h.b16 %v889
    %v5670 = vunpack.c.l.b16 %v890
    %v5671 = vunpack.c.h.b16 %v890
    %v5672 = vunpack.c.l.b16 %v891
    %v5673 = vunpack.c.h.b16 %v891
    %v5674 = vunpack.c.l.b16 %v892
    %v5675 = vunpack.c.h.b16 %v892
    %v5676 = vunpack.c.l.b16 %v893
    %v5677 = vunpack.c.h.b16 %v893
    %v5678 = vunpack.c.l.b16 %v894
    %v5679 = vunpack.c.h.b16 %v894
    %v5680 = vunpack.c.l.b16 %v895
    %v5681 = vunpack.c.h.b16 %v895
    %v5682 = vunpack.c.l.b16 %v896
    %v5683 = vunpack.c.h.b16 %v896
    %v5684 = vunpack.c.l.b16 %v897
    %v5685 = vunpack.c.h.b16 %v897
    %v5686 = vunpack.c.l.b16 %v898
    %v5687 = vunpack.c.h.b16 %v898
    %v5688 = vunpack.c.l.b16 %v899
    %v5689 = vunpack.c.h.b16 %v899
    %v5690 = vunpack.c.l.b16 %v900
    %v5691 = vunpack.c.h.b16 %v900
    %v5692 = vunpack.c.l.b16 %v901
    %v5693 = vunpack.c.h.b16 %v901
    %v5694 = vunpack.c.l.b16 %v902
    %v5695 = vunpack.c.h.b16 %v902
    %v5696 = vunpack.c.l.b16 %v903
    %v5697 = vunpack.c.h.b16 %v903
    %v5698 = vunpack.c.l.b16 %v904
    %v5699 = vunpack.c.h.b16 %v904
    %v5700 = vunpack.c.l.b16 %v905
    %v5701 = vunpack.c.h.b16 %v905
    %v5702 = vunpack.c.l.b16 %v906
    %v5703 = vunpack.c.h.b16 %v906
    %v5704 = vunpack.c.l.b16 %v907
    %v5705 = vunpack.c.h.b16 %v907
    %v5706 = vunpack.c.l.b16 %v908
    %v5707 = vunpack.c.h.b16 %v908
    %v5708 = vunpack.c.l.b16 %v909
    %v5709 = vunpack.c.h.b16 %v909
    %v5710 = vunpack.c.l.b16 %v910
    %v5711 = vunpack.c.h.b16 %v910
    %v5712 = vunpack.c.l.b16 %v911
    %v5713 = vunpack.c.h.b16 %v911
    %v5714 = vunpack.c.l.b16 %v912
    %v5715 = vunpack.c.h.b16 %v912
    %v5716 = vunpack.c.l.b16 %v913
    %v5717 = vunpack.c.h.b16 %v913
    %v5718 = vunpack.c.l.b16 %v914
    %v5719 = vunpack.c.h.b16 %v914
    %v5720 = vunpack.c.l.b16 %v915
    %v5721 = vunpack.c.h.b16 %v915
    %v5722 = vunpack.c.l.b16 %v916
    %v5723 = vunpack.c.h.b16 %v916
    %v5724 = vunpack.c.l.b16 %v917
    %v5725 = vunpack.c.h.b16 %v917
    %v5726 = vunpack.c.l.b16 %v918
    %v5727 = vunpack.c.h.b16 %v918
    %v5728 = vunpack.c.l.b16 %v919
    %v5729 = vunpack.c.h.b16 %v919
    %v5730 = vunpack.c.l.b16 %v920
    %v5731 = vunpack.c.h.b16 %v920
    %v5732 = vunpack.c.l.b16 %v921
    %v5733 = vunpack.c.h.b16 %v921
    %v5734 = vunpack.c.l.b16 %v922
    %v5735 = vunpack.c.h.b16 %v922
    %v5736 = vunpack.c.l.b16 %v923
    %v5737 = vunpack.c.h.b16 %v923
    %v5738 = vunpack.c.l.b16 %v924
    %v5739 = vunpack.c.h.b16 %v924
    %v5740 = vunpack.c.l.b16 %v925
    %v5741 = vunpack.c.h.b16 %v925
    %v5742 = vunpack.c.l.b16 %v926
    %v5743 = vunpack.c.h.b16 %v926
    %v5744 = vunpack.c.l.b16 %v927
    %v5745 = vunpack.c.h.b16 %v927
    %v5746 = vunpack.c.l.b16 %v928
    %v5747 = vunpack.c.h.b16 %v928
    %v5748 = vunpack.c.l.b16 %v929
    %v5749 = vunpack.c.h.b16 %v929
    %v5750 = vunpack.c.l.b16 %v930
    %v5751 = vunpack.c.h.b16 %v930
    %v5752 = vunpack.c.l.b16 %v931
    %v5753 = vunpack.c.h.b16 %v931
    %v5754 = vunpack.c.l.b16 %v932
    %v5755 = vunpack.c.h.b16 %v932
    %v5756 = vunpack.c.l.b16 %v933
    %v5757 = vunpack.c.h.b16 %v933
    %v5758 = vunpack.c.l.b16 %v934
    %v5759 = vunpack.c.h.b16 %v934
    %v5760 = vunpack.c.l.b16 %v935
    %v5761 = vunpack.c.h.b16 %v935
    %v5762 = vunpack.c.l.b16 %v936
    %v5763 = vunpack.c.h.b16 %v936
    %v5764 = vunpack.c.l.b16 %v937
    %v5765 = vunpack.c.h.b16 %v937
    %v5766 = vunpack.c.l.b16 %v938
    %v5767 = vunpack.c.h.b16 %v938
    %v5768 = vunpack.c.l.b16 %v939
    %v5769 = vunpack.c.h.b16 %v939
    %v5770 = vunpack.c.l.b16 %v940
    %v5771 = vunpack.c.h.b16 %v940
    %v5772 = vunpack.c.l.b16 %v941
    %v5773 = vunpack.c.h.b16 %v941
    %v5774 = vunpack.c.l.b16 %v942
    %v5775 = vunpack.c.h.b16 %v942
    %v5776 = vunpack.c.l.b16 %v943
    %v5777 = vunpack.c.h.b16 %v943
    %v5778 = vunpack.c.l.b16 %v944
    %v5779 = vunpack.c.h.b16 %v944
    %v5780 = vunpack.c.l.b16 %v945
    %v5781 = vunpack.c.h.b16 %v945
    %v5782 = vunpack.c.l.b16 %v946
    %v5783 = vunpack.c.h.b16 %v946
    %v5784 = vunpack.c.l.b16 %v947
    %v5785 = vunpack.c.h.b16 %v947
    %v5786 = vunpack.c.l.b16 %v948
    %v5787 = vunpack.c.h.b16 %v948
    %v5788 = vunpack.c.l.b16 %v949
    %v5789 = vunpack.c.h.b16 %v949
    %v5790 = vunpack.c.l.b16 %v950
    %v5791 = vunpack.c.h.b16 %v950
    %v5792 = vunpack.c.l.b16 %v951
    %v5793 = vunpack.c.h.b16 %v951
    %v5794 = vunpack.c.l.b16 %v952
    %v5795 = vunpack.c.h.b16 %v952
    %v5796 = vunpack.c.l.b16 %v953
    %v5797 = vunpack.c.h.b16 %v953
    %v5798 = vunpack.c.l.b16 %v954
    %v5799 = vunpack.c.h.b16 %v954
    %v5800 = vunpack.c.l.b16 %v955
    %v5801 = vunpack.c.h.b16 %v955
    %v5802 = vunpack.c.l.b16 %v956
    %v5803 = vunpack.c.h.b16 %v956
    %v5804 = vunpack.c.l.b16 %v957
    %v5805 = vunpack.c.h.b16 %v957
    %v5806 = vunpack.c.l.b16 %v958
    %v5807 = vunpack.c.h.b16 %v958
    %v5808 = vunpack.c.l.b16 %v959
    %v5809 = vunpack.c.h.b16 %v959
    %v5810 = vunpack.c.l.b16 %v960
    %v5811 = vunpack.c.h.b16 %v960
    %v5812 = vunpack.c.l.b16 %v961
    %v5813 = vunpack.c.h.b16 %v961
    %v5814 = vunpack.c.l.b16 %v962
    %v5815 = vunpack.c.h.b16 %v962
    %v5816 = vunpack.c.l.b16 %v963
    %v5817 = vunpack.c.h.b16 %v963
    %v5818 = vunpack.c.l.b16 %v964
    %v5819 = vunpack.c.h.b16 %v964
    %v5820 = vunpack.c.l.b16 %v965
    %v5821 = vunpack.c.h.b16 %v965
    %v5822 = vunpack.c.l.b16 %v966
    %v5823 = vunpack.c.h.b16 %v966
    %v5824 = vunpack.c.l.b16 %v967
    %v5825 = vunpack.c.h.b16 %v967
    %v5826 = vunpack.c.l.b16 %v968
    %v5827 = vunpack.c.h.b16 %v968
    %v5828 = vunpack.c.l.b16 %v969
    %v5829 = vunpack.c.h.b16 %v969
    %v5830 = vunpack.c.l.b16 %v970
    %v5831 = vunpack.c.h.b16 %v970
    %v5832 = vunpack.c.l.b16 %v971
    %v5833 = vunpack.c.h.b16 %v971
    %v5834 = vunpack.c.l.b16 %v972
    %v5835 = vunpack.c.h.b16 %v972
    %v5836 = vunpack.c.l.b16 %v973
    %v5837 = vunpack.c.h.b16 %v973
    %v5838 = vunpack.c.l.b16 %v974
    %v5839 = vunpack.c.h.b16 %v974
    %v5840 = vunpack.c.l.b16 %v975
    %v5841 = vunpack.c.h.b16 %v975
    %v5842 = vunpack.c.l.b16 %v976
    %v5843 = vunpack.c.h.b16 %v976
    %v5844 = vunpack.c.l.b16 %v977
    %v5845 = vunpack.c.h.b16 %v977
    %v5846 = vunpack.c.l.b16 %v978
    %v5847 = vunpack.c.h.b16 %v978
    %v5848 = vunpack.c.l.b16 %v979
    %v5849 = vunpack.c.h.b16 %v979
    %v5850 = vunpack.c.l.b16 %v980
    %v5851 = vunpack.c.h.b16 %v980
    %v5852 = vunpack.c.l.b16 %v981
    %v5853 = vunpack.c.h.b16 %v981
    %v5854 = vunpack.c.l.b16 %v982
    %v5855 = vunpack.c.h.b16 %v982
    %v5856 = vunpack.c.l.b16 %v983
    %v5857 = vunpack.c.h.b16 %v983
    %v5858 = vunpack.c.l.b16 %v984
    %v5859 = vunpack.c.h.b16 %v984
    %v5860 = vunpack.c.l.b16 %v985
    %v5861 = vunpack.c.h.b16 %v985
    %v5862 = vunpack.c.l.b16 %v986
    %v5863 = vunpack.c.h.b16 %v986
    %v5864 = vunpack.c.l.b16 %v987
    %v5865 = vunpack.c.h.b16 %v987
    %v5866 = vunpack.c.l.b16 %v988
    %v5867 = vunpack.c.h.b16 %v988
    %v5868 = vunpack.c.l.b16 %v989
    %v5869 = vunpack.c.h.b16 %v989
    %v5870 = vunpack.c.l.b16 %v990
    %v5871 = vunpack.c.h.b16 %v990
    %v5872 = vunpack.c.l.b16 %v991
    %v5873 = vunpack.c.h.b16 %v991
    %v5874 = vunpack.c.l.b16 %v992
    %v5875 = vunpack.c.h.b16 %v992
    %v5876 = vunpack.c.l.b16 %v993
    %v5877 = vunpack.c.h.b16 %v993
    %v5878 = vunpack.c.l.b16 %v994
    %v5879 = vunpack.c.h.b16 %v994
    %v5880 = vunpack.c.l.b16 %v995
    %v5881 = vunpack.c.h.b16 %v995
    %v5882 = vunpack.c.l.b16 %v996
    %v5883 = vunpack.c.h.b16 %v996
    %v5884 = vunpack.c.l.b16 %v997
    %v5885 = vunpack.c.h.b16 %v997
    %v5886 = vunpack.c.l.b16 %v998
    %v5887 = vunpack.c.h.b16 %v998
    %v5888 = vunpack.c.l.b16 %v999
    %v5889 = vunpack.c.h.b16 %v999
    %v5890 = vunpack.c.l.b16 %v1000
    %v5891 = vunpack.c.h.b16 %v1000
    %v5892 = vunpack.c.l.b16 %v1001
    %v5893 = vunpack.c.h.b16 %v1001
    %v5894 = vunpack.c.l.b16 %v1002
    %v5895 = vunpack.c.h.b16 %v1002
    %v5896 = vunpack.c.l.b16 %v1003
    %v5897 = vunpack.c.h.b16 %v1003
    %v5898 = vunpack.c.l.b16 %v1004
    %v5899 = vunpack.c.h.b16 %v1004
    %v5900 = vunpack.c.l.b16 %v1005
    %v5901 = vunpack.c.h.b16 %v1005
    %v5902 = vunpack.c.l.b16 %v1006
    %v5903 = vunpack.c.h.b16 %v1006
    %v5904 = vunpack.c.l.b16 %v1007
    %v5905 = vunpack.c.h.b16 %v1007
    %v5906 = vunpack.c.l.b16 %v1008
    %v5907 = vunpack.c.h.b16 %v1008
    %v5908 = vunpack.c.l.b16 %v1009
    %v5909 = vunpack.c.h.b16 %v1009
    %v5910 = vunpack.c.l.b16 %v1010
    %v5911 = vunpack.c.h.b16 %v1010
    %v5912 = vunpack.c.l.b16 %v1011
    %v5913 = vunpack.c.h.b16 %v1011
    %v5914 = vunpack.c.l.b16 %v1012
    %v5915 = vunpack.c.h.b16 %v1012
    %v5916 = vunpack.c.l.b16 %v1013
    %v5917 = vunpack.c.h.b16 %v1013
    %v5918 = vunpack.c.l.b16 %v1014
    %v5919 = vunpack.c.h.b16 %v1014
    %v5920 = vunpack.c.l.b16 %v1015
    %v5921 = vunpack.c.h.b16 %v1015
    %v5922 = vunpack.c.l.b16 %v1016
    %v5923 = vunpack.c.h.b16 %v1016
    %v5924 = vunpack.c.l.b16 %v1017
    %v5925 = vunpack.c.h.b16 %v1017
    %v5926 = vunpack.c.l.b16 %v1018
    %v5927 = vunpack.c.h.b16 %v1018
    %v5928 = vunpack.c.l.b16 %v1019
    %v5929 = vunpack.c.h.b16 %v1019
    %v5930 = vunpack.c.l.b16 %v1020
    %v5931 = vunpack.c.h.b16 %v1020
    %v5932 = vunpack.c.l.b16 %v1021
    %v5933 = vunpack.c.h.b16 %v1021
    %v5934 = vunpack.c.l.b16 %v1022
    %v5935 = vunpack.c.h.b16 %v1022
    %v5936 = vunpack.c.l.b16 %v1023
    %v5937 = vunpack.c.h.b16 %v1023
    %v5938 = vunpack.c.l.b16 %v1024
    %v5939 = vunpack.c.h.b16 %v1024
    %v5940 = vunpack.c.l.b16 %v1025
    %v5941 = vunpack.c.h.b16 %v1025
    %v5942 = vunpack.c.l.b16 %v1026
    %v5943 = vunpack.c.h.b16 %v1026
    %v5944 = vunpack.c.l.b16 %v1027
    %v5945 = vunpack.c.h.b16 %v1027
    %v5946 = vunpack.c.l.b16 %v1028
    %v5947 = vunpack.c.h.b16 %v1028
    %v5948 = vunpack.c.l.b16 %v1029
    %v5949 = vunpack.c.h.b16 %v1029
    %v5950 = vunpack.c.l.b16 %v1030
    %v5951 = vunpack.c.h.b16 %v1030
    %v5952 = vunpack.c.l.b16 %v1031
    %v5953 = vunpack.c.h.b16 %v1031
    %v5954 = vunpack.c.l.b16 %v1032
    %v5955 = vunpack.c.h.b16 %v1032
    %v5956 = vunpack.c.l.b16 %v1033
    %v5957 = vunpack.c.h.b16 %v1033
    %v5958 = vunpack.c.l.b16 %v1034
    %v5959 = vunpack.c.h.b16 %v1034
    %v5960 = vunpack.c.l.b16 %v1035
    %v5961 = vunpack.c.h.b16 %v1035
    %v5962 = vunpack.c.l.b16 %v1036
    %v5963 = vunpack.c.h.b16 %v1036
    %v5964 = vunpack.c.l.b16 %v1037
    %v5965 = vunpack.c.h.b16 %v1037
    %v5966 = vunpack.c.l.b16 %v1038
    %v5967 = vunpack.c.h.b16 %v1038
    %v5968 = vunpack.c.l.b16 %v1039
    %v5969 = vunpack.c.h.b16 %v1039
    %v5970 = vunpack.c.l.b16 %v1040
    %v5971 = vunpack.c.h.b16 %v1040
    %v5972 = vunpack.c.l.b16 %v1041
    %v5973 = vunpack.c.h.b16 %v1041
    %v5974 = vunpack.c.l.b16 %v1042
    %v5975 = vunpack.c.h.b16 %v1042
    %v5976 = vunpack.c.l.b16 %v1043
    %v5977 = vunpack.c.h.b16 %v1043
    %v5978 = vunpack.c.l.b16 %v1044
    %v5979 = vunpack.c.h.b16 %v1044
    %v5980 = vunpack.c.l.b16 %v1045
    %v5981 = vunpack.c.h.b16 %v1045
    %v5982 = vunpack.c.l.b16 %v1046
    %v5983 = vunpack.c.h.b16 %v1046
    %v5984 = vunpack.c.l.b16 %v1047
    %v5985 = vunpack.c.h.b16 %v1047
    %v5986 = vunpack.c.l.b16 %v1048
    %v5987 = vunpack.c.h.b16 %v1048
    %v5988 = vunpack.c.l.b16 %v1049
    %v5989 = vunpack.c.h.b16 %v1049
    %v5990 = vunpack.c.l.b16 %v1050
    %v5991 = vunpack.c.h.b16 %v1050
    %v5992 = vunpack.c.l.b16 %v1051
    %v5993 = vunpack.c.h.b16 %v1051
    %v5994 = vunpack.c.l.b16 %v1052
    %v5995 = vunpack.c.h.b16 %v1052
    %v5996 = vunpack.c.l.b16 %v1053
    %v5997 = vunpack.c.h.b16 %v1053
    %v5998 = vunpack.c.l.b16 %v1054
    %v5999 = vunpack.c.h.b16 %v1054
    %v6000 = vunpack.c.l.b16 %v1055
    %v6001 = vunpack.c.h.b16 %v1055
    %v6002 = vunpack.c.l.b16 %v1056
    %v6003 = vunpack.c.h.b16 %v1056
    %v6004 = vunpack.c.l.b16 %v1057
    %v6005 = vunpack.c.h.b16 %v1057
    %v6006 = vunpack.c.l.b16 %v1058
    %v6007 = vunpack.c.h.b16 %v1058
    %v6008 = vunpack.c.l.b16 %v1059
    %v6009 = vunpack.c.h.b16 %v1059
    %v6010 = vunpack.c.l.b16 %v1060
    %v6011 = vunpack.c.h.b16 %v1060
    %v6012 = vunpack.c.l.b16 %v1061
    %v6013 = vunpack.c.h.b16 %v1061
    %v6014 = vunpack.c.l.b16 %v1062
    %v6015 = vunpack.c.h.b16 %v1062
    %v6016 = vunpack.c.l.b16 %v1063
    %v6017 = vunpack.c.h.b16 %v1063
    %v6018 = vunpack.c.l.b16 %v1064
    %v6019 = vunpack.c.h.b16 %v1064
    %v6020 = vunpack.c.l.b16 %v1065
    %v6021 = vunpack.c.h.b16 %v1065
    %v6022 = vunpack.c.l.b16 %v1066
    %v6023 = vunpack.c.h.b16 %v1066
    %v6024 = vunpack.c.l.b16 %v1067
    %v6025 = vunpack.c.h.b16 %v1067
    %v6026 = vunpack.c.l.b16 %v1068
    %v6027 = vunpack.c.h.b16 %v1068
    %v6028 = vunpack.c.l.b16 %v1069
    %v6029 = vunpack.c.h.b16 %v1069
    %v6030 = vunpack.c.l.b16 %v1070
    %v6031 = vunpack.c.h.b16 %v1070
    %v6032 = vunpack.c.l.b16 %v1071
    %v6033 = vunpack.c.h.b16 %v1071
    %v6034 = vunpack.c.l.b16 %v1072
    %v6035 = vunpack.c.h.b16 %v1072
    %v6036 = vunpack.c.l.b16 %v1073
    %v6037 = vunpack.c.h.b16 %v1073
    %v6038 = vunpack.c.l.b16 %v1074
    %v6039 = vunpack.c.h.b16 %v1074
    %v6040 = vunpack.c.l.b16 %v1075
    %v6041 = vunpack.c.h.b16 %v1075
    %v6042 = vunpack.c.l.b16 %v1076
    %v6043 = vunpack.c.h.b16 %v1076
    %v6044 = vunpack.c.l.b16 %v1077
    %v6045 = vunpack.c.h.b16 %v1077
    %v6046 = vunpack.c.l.b16 %v1078
    %v6047 = vunpack.c.h.b16 %v1078
    %v6048 = vunpack.c.l.b16 %v1079
    %v6049 = vunpack.c.h.b16 %v1079
    %v6050 = vunpack.c.l.b16 %v1080
    %v6051 = vunpack.c.h.b16 %v1080
    %v6052 = vunpack.c.l.b16 %v1081
    %v6053 = vunpack.c.h.b16 %v1081
    %v6054 = vunpack.c.l.b16 %v1082
    %v6055 = vunpack.c.h.b16 %v1082
    %v6056 = vunpack.c.l.b16 %v1083
    %v6057 = vunpack.c.h.b16 %v1083
    %v6058 = vunpack.c.l.b16 %v1084
    %v6059 = vunpack.c.h.b16 %v1084
    %v6060 = vunpack.c.l.b16 %v1085
    %v6061 = vunpack.c.h.b16 %v1085
    %v6062 = vunpack.c.l.b16 %v1086
    %v6063 = vunpack.c.h.b16 %v1086
    %v6064 = vunpack.c.l.b16 %v1087
    %v6065 = vunpack.c.h.b16 %v1087
    %v6066 = vunpack.c.l.b16 %v1088
    %v6067 = vunpack.c.h.b16 %v1088
    %v6068 = vunpack.c.l.b16 %v1089
    %v6069 = vunpack.c.h.b16 %v1089
    %v6070 = vunpack.c.l.b16 %v1090
    %v6071 = vunpack.c.h.b16 %v1090
    %v6072 = vunpack.c.l.b16 %v1091
    %v6073 = vunpack.c.h.b16 %v1091
    %v6074 = vunpack.c.l.b16 %v1092
    %v6075 = vunpack.c.h.b16 %v1092
    %v6076 = vunpack.c.l.b16 %v1093
    %v6077 = vunpack.c.h.b16 %v1093
    %v6078 = vunpack.c.l.b16 %v1094
    %v6079 = vunpack.c.h.b16 %v1094
    %v6080 = vunpack.c.l.b16 %v1095
    %v6081 = vunpack.c.h.b16 %v1095
    %v6082 = vunpack.c.l.b16 %v1096
    %v6083 = vunpack.c.h.b16 %v1096
    %v6084 = vunpack.c.l.b16 %v1097
    %v6085 = vunpack.c.h.b16 %v1097
    %v6086 = vunpack.c.l.b16 %v1098
    %v6087 = vunpack.c.h.b16 %v1098
    %v6088 = vunpack.c.l.b16 %v1099
    %v6089 = vunpack.c.h.b16 %v1099
    %v6090 = vunpack.c.l.b16 %v1100
    %v6091 = vunpack.c.h.b16 %v1100
    %v6092 = vunpack.c.l.b16 %v1101
    %v6093 = vunpack.c.h.b16 %v1101
    %v6094 = vunpack.c.l.b16 %v1102
    %v6095 = vunpack.c.h.b16 %v1102
    %v6096 = vunpack.c.l.b16 %v1103
    %v6097 = vunpack.c.h.b16 %v1103
    %v6098 = vunpack.c.l.b16 %v1104
    %v6099 = vunpack.c.h.b16 %v1104
    %v6100 = vunpack.c.l.b16 %v1105
    %v6101 = vunpack.c.h.b16 %v1105
    %v6102 = vunpack.c.l.b16 %v1106
    %v6103 = vunpack.c.h.b16 %v1106
    %v6104 = vunpack.c.l.b16 %v1107
    %v6105 = vunpack.c.h.b16 %v1107
    %v6106 = vunpack.c.l.b16 %v1108
    %v6107 = vunpack.c.h.b16 %v1108
    %v6108 = vunpack.c.l.b16 %v1109
    %v6109 = vunpack.c.h.b16 %v1109
    %v6110 = vunpack.c.l.b16 %v1110
    %v6111 = vunpack.c.h.b16 %v1110
    %v6112 = vunpack.c.l.b16 %v1111
    %v6113 = vunpack.c.h.b16 %v1111
    %v6114 = vunpack.c.l.b16 %v1112
    %v6115 = vunpack.c.h.b16 %v1112
    %v6116 = vunpack.c.l.b16 %v1113
    %v6117 = vunpack.c.h.b16 %v1113
    %v6118 = vunpack.c.l.b16 %v1114
    %v6119 = vunpack.c.h.b16 %v1114
    %v6120 = vunpack.c.l.b16 %v1115
    %v6121 = vunpack.c.h.b16 %v1115
    %v6122 = vunpack.c.l.b16 %v1116
    %v6123 = vunpack.c.h.b16 %v1116
    %v6124 = vunpack.c.l.b16 %v1117
    %v6125 = vunpack.c.h.b16 %v1117
    %v6126 = vunpack.c.l.b16 %v1118
    %v6127 = vunpack.c.h.b16 %v1118
    %v6128 = vunpack.c.l.b16 %v1119
    %v6129 = vunpack.c.h.b16 %v1119
    %v6130 = vunpack.c.l.b16 %v1120
    %v6131 = vunpack.c.h.b16 %v1120
    %v6132 = vunpack.c.l.b16 %v1121
    %v6133 = vunpack.c.h.b16 %v1121
    %v6134 = vunpack.c.l.b16 %v1122
    %v6135 = vunpack.c.h.b16 %v1122
    %v6136 = vunpack.c.l.b16 %v1123
    %v6137 = vunpack.c.h.b16 %v1123
    %v6138 = vunpack.c.l.b16 %v1124
    %v6139 = vunpack.c.h.b16 %v1124
    %v6140 = vunpack.c.l.b16 %v1125
    %v6141 = vunpack.c.h.b16 %v1125
    %v6142 = vunpack.c.l.b16 %v1126
    %v6143 = vunpack.c.h.b16 %v1126
    %v6144 = vunpack.c.l.b16 %v1127
    %v6145 = vunpack.c.h.b16 %v1127
    %v6146 = vunpack.c.l.b16 %v1128
    %v6147 = vunpack.c.h.b16 %v1128
    %v6148 = vunpack.c.l.b16 %v1129
    %v6149 = vunpack.c.h.b16 %v1129
    %v6150 = vunpack.c.l.b16 %v1130
    %v6151 = vunpack.c.h.b16 %v1130
    %v6152 = vunpack.c.l.b16 %v1131
    %v6153 = vunpack.c.h.b16 %v1131
    %v6154 = vunpack.c.l.b16 %v1132
    %v6155 = vunpack.c.h.b16 %v1132
    %v6156 = vunpack.c.l.b16 %v1133
    %v6157 = vunpack.c.h.b16 %v1133
    %v6158 = vunpack.c.l.b16 %v1134
    %v6159 = vunpack.c.h.b16 %v1134
    %v6160 = vunpack.c.l.b16 %v1135
    %v6161 = vunpack.c.h.b16 %v1135
    %v6162 = vunpack.c.l.b16 %v1136
    %v6163 = vunpack.c.h.b16 %v1136
    %v6164 = vunpack.c.l.b16 %v1137
    %v6165 = vunpack.c.h.b16 %v1137
    %v6166 = vunpack.c.l.b16 %v1138
    %v6167 = vunpack.c.h.b16 %v1138
    %v6168 = vunpack.c.l.b16 %v1139
    %v6169 = vunpack.c.h.b16 %v1139
    %v6170 = vunpack.c.l.b16 %v1140
    %v6171 = vunpack.c.h.b16 %v1140
    %v6172 = vunpack.c.l.b16 %v1141
    %v6173 = vunpack.c.h.b16 %v1141
    %v6174 = vunpack.c.l.b16 %v1142
    %v6175 = vunpack.c.h.b16 %v1142
    %v6176 = vunpack.c.l.b16 %v1143
    %v6177 = vunpack.c.h.b16 %v1143
    %v6178 = vunpack.c.l.b16 %v1144
    %v6179 = vunpack.c.h.b16 %v1144
    %v6180 = vunpack.c.l.b16 %v1145
    %v6181 = vunpack.c.h.b16 %v1145
    %v6182 = vunpack.c.l.b16 %v1146
    %v6183 = vunpack.c.h.b16 %v1146
    %v6184 = vunpack.c.l.b16 %v1147
    %v6185 = vunpack.c.h.b16 %v1147
    %v6186 = vunpack.c.l.b16 %v1148
    %v6187 = vunpack.c.h.b16 %v1148
    %v6188 = vunpack.c.l.b16 %v1149
    %v6189 = vunpack.c.h.b16 %v1149
    %v6190 = vunpack.c.l.b16 %v1150
    %v6191 = vunpack.c.h.b16 %v1150
    %v6192 = vunpack.c.l.b16 %v1151
    %v6193 = vunpack.c.h.b16 %v1151
    %v6194 = vunpack.c.l.b16 %v1152
    %v6195 = vunpack.c.h.b16 %v1152
    %v6196 = vunpack.c.l.b16 %v1153
    %v6197 = vunpack.c.h.b16 %v1153
    %v6198 = vunpack.c.l.b16 %v1154
    %v6199 = vunpack.c.h.b16 %v1154
    %v6200 = vunpack.c.l.b16 %v1155
    %v6201 = vunpack.c.h.b16 %v1155
    %v6202 = vunpack.c.l.b16 %v1156
    %v6203 = vunpack.c.h.b16 %v1156
    %v6204 = vunpack.c.l.b16 %v1157
    %v6205 = vunpack.c.h.b16 %v1157
    %v6206 = vunpack.c.l.b16 %v1158
    %v6207 = vunpack.c.h.b16 %v1158
    %v6208 = vunpack.c.l.b16 %v1159
    %v6209 = vunpack.c.h.b16 %v1159
    %v6210 = vunpack.c.l.b16 %v1160
    %v6211 = vunpack.c.h.b16 %v1160
    %v6212 = vunpack.c.l.b16 %v1161
    %v6213 = vunpack.c.h.b16 %v1161
    %v6214 = vunpack.c.l.b16 %v1162
    %v6215 = vunpack.c.h.b16 %v1162
    %v6216 = vunpack.c.l.b16 %v1163
    %v6217 = vunpack.c.h.b16 %v1163
    %v6218 = vunpack.c.l.b16 %v1164
    %v6219 = vunpack.c.h.b16 %v1164
    %v6220 = vunpack.c.l.b16 %v1165
    %v6221 = vunpack.c.h.b16 %v1165
    %v6222 = vunpack.c.l.b16 %v1166
    %v6223 = vunpack.c.h.b16 %v1166
    %v6224 = vunpack.c.l.b16 %v1167
    %v6225 = vunpack.c.h.b16 %v1167
    %v6226 = vunpack.c.l.b16 %v1168
    %v6227 = vunpack.c.h.b16 %v1168
    %v6228 = vunpack.c.l.b16 %v1169
    %v6229 = vunpack.c.h.b16 %v1169
    %v6230 = vunpack.c.l.b16 %v1170
    %v6231 = vunpack.c.h.b16 %v1170
    %v6232 = vunpack.c.l.b16 %v1171
    %v6233 = vunpack.c.h.b16 %v1171
    %v6234 = vunpack.c.l.b16 %v1172
    %v6235 = vunpack.c.h.b16 %v1172
    %v6236 = vunpack.c.l.b16 %v1173
    %v6237 = vunpack.c.h.b16 %v1173
    %v6238 = vunpack.c.l.b16 %v1174
    %v6239 = vunpack.c.h.b16 %v1174
    %v6240 = vunpack.c.l.b16 %v1175
    %v6241 = vunpack.c.h.b16 %v1175
    %v6242 = vunpack.c.l.b16 %v1176
    %v6243 = vunpack.c.h.b16 %v1176
    %v6244 = vunpack.c.l.b16 %v1177
    %v6245 = vunpack.c.h.b16 %v1177
    %v6246 = vunpack.c.l.b16 %v1178
    %v6247 = vunpack.c.h.b16 %v1178
    %v6248 = vunpack.c.l.b16 %v1179
    %v6249 = vunpack.c.h.b16 %v1179
    %v6250 = vunpack.c.l.b16 %v1180
    %v6251 = vunpack.c.h.b16 %v1180
    %v6252 = vunpack.c.l.b16 %v1181
    %v6253 = vunpack.c.h.b16 %v1181
    %v6254 = vunpack.c.l.b16 %v1182
    %v6255 = vunpack.c.h.b16 %v1182
    %v6256 = vunpack.c.l.b16 %v1183
    %v6257 = vunpack.c.h.b16 %v1183
    %v6258 = vunpack.c.l.b16 %v1184
    %v6259 = vunpack.c.h.b16 %v1184
    %v6260 = vunpack.c.l.b16 %v1185
    %v6261 = vunpack.c.h.b16 %v1185
    %v6262 = vunpack.c.l.b16 %v1186
    %v6263 = vunpack.c.h.b16 %v1186
    %v6264 = vunpack.c.l.b16 %v1187
    %v6265 = vunpack.c.h.b16 %v1187
    %v6266 = vunpack.c.l.b16 %v1188
    %v6267 = vunpack.c.h.b16 %v1188
    %v6268 = vunpack.c.l.b16 %v1189
    %v6269 = vunpack.c.h.b16 %v1189
    %v6270 = vunpack.c.l.b16 %v1190
    %v6271 = vunpack.c.h.b16 %v1190
    %v6272 = vunpack.c.l.b16 %v1191
    %v6273 = vunpack.c.h.b16 %v1191
    %v6274 = vunpack.c.l.b16 %v1192
    %v6275 = vunpack.c.h.b16 %v1192
    %v6276 = vunpack.c.l.b16 %v1193
    %v6277 = vunpack.c.h.b16 %v1193
    %v6278 = vunpack.c.l.b16 %v1194
    %v6279 = vunpack.c.h.b16 %v1194
    %v6280 = vunpack.c.l.b16 %v1195
    %v6281 = vunpack.c.h.b16 %v1195
    %v6282 = vunpack.c.l.b16 %v1196
    %v6283 = vunpack.c.h.b16 %v1196
    %v6284 = vunpack.c.l.b16 %v1197
    %v6285 = vunpack.c.h.b16 %v1197
    %v6286 = vunpack.c.l.b16 %v1198
    %v6287 = vunpack.c.h.b16 %v1198
    %v6288 = vunpack.c.l.b16 %v1199
    %v6289 = vunpack.c.h.b16 %v1199
    %v6290 = vunpack.c.l.b16 %v1200
    %v6291 = vunpack.c.h.b16 %v1200
    %v6292 = vunpack.c.l.b16 %v1201
    %v6293 = vunpack.c.h.b16 %v1201
    %v6294 = vunpack.c.l.b16 %v1202
    %v6295 = vunpack.c.h.b16 %v1202
    %v6296 = vunpack.c.l.b16 %v1203
    %v6297 = vunpack.c.h.b16 %v1203
    %v6298 = vunpack.c.l.b16 %v1204
    %v6299 = vunpack.c.h.b16 %v1204
    %v6300 = vunpack.c.l.b16 %v1205
    %v6301 = vunpack.c.h.b16 %v1205
    %v6302 = vunpack.c.l.b16 %v1206
    %v6303 = vunpack.c.h.b16 %v1206
    %v6304 = vunpack.c.l.b16 %v1207
    %v6305 = vunpack.c.h.b16 %v1207
    %v6306 = vunpack.c.l.b16 %v1208
    %v6307 = vunpack.c.h.b16 %v1208
    %v6308 = vunpack.c.l.b16 %v1209
    %v6309 = vunpack.c.h.b16 %v1209
    %v6310 = vunpack.c.l.b16 %v1210
    %v6311 = vunpack.c.h.b16 %v1210
    %v6312 = vunpack.c.l.b16 %v1211
    %v6313 = vunpack.c.h.b16 %v1211
    %v6314 = vunpack.c.l.b16 %v1212
    %v6315 = vunpack.c.h.b16 %v1212
    %v6316 = vunpack.c.l.b16 %v1213
    %v6317 = vunpack.c.h.b16 %v1213
    %v6318 = vunpack.c.l.b16 %v1214
    %v6319 = vunpack.c.h.b16 %v1214
    %v6320 = vunpack.c.l.b16 %v1215
    %v6321 = vunpack.c.h.b16 %v1215
    %v6322 = vunpack.c.l.b16 %v1216
    %v6323 = vunpack.c.h.b16 %v1216
    %v6324 = vunpack.c.l.b16 %v1217
    %v6325 = vunpack.c.h.b16 %v1217
    %v6326 = vunpack.c.l.b16 %v1218
    %v6327 = vunpack.c.h.b16 %v1218
    %v6328 = vunpack.c.l.b16 %v1219
    %v6329 = vunpack.c.h.b16 %v1219
    %v6330 = vunpack.c.l.b16 %v1220
    %v6331 = vunpack.c.h.b16 %v1220
    %v6332 = vunpack.c.l.b16 %v1221
    %v6333 = vunpack.c.h.b16 %v1221
    %v6334 = vunpack.c.l.b16 %v1222
    %v6335 = vunpack.c.h.b16 %v1222
    %v6336 = vunpack.c.l.b16 %v1223
    %v6337 = vunpack.c.h.b16 %v1223
    %v6338 = vunpack.c.l.b16 %v1224
    %v6339 = vunpack.c.h.b16 %v1224
    %v6340 = vunpack.c.l.b16 %v1225
    %v6341 = vunpack.c.h.b16 %v1225
    %v6342 = vunpack.c.l.b16 %v1226
    %v6343 = vunpack.c.h.b16 %v1226
    %v6344 = vunpack.c.l.b16 %v1227
    %v6345 = vunpack.c.h.b16 %v1227
    %v6346 = vunpack.c.l.b16 %v1228
    %v6347 = vunpack.c.h.b16 %v1228
    %v6348 = vunpack.c.l.b16 %v1229
    %v6349 = vunpack.c.h.b16 %v1229
    %v6350 = vunpack.c.l.b16 %v1230
    %v6351 = vunpack.c.h.b16 %v1230
    %v6352 = vunpack.c.l.b16 %v1231
    %v6353 = vunpack.c.h.b16 %v1231
    %v6354 = vunpack.c.l.b16 %v1232
    %v6355 = vunpack.c.h.b16 %v1232
    %v6356 = vunpack.c.l.b16 %v1233
    %v6357 = vunpack.c.h.b16 %v1233
    %v6358 = vunpack.c.l.b16 %v1234
    %v6359 = vunpack.c.h.b16 %v1234
    %v6360 = vunpack.c.l.b16 %v1235
    %v6361 = vunpack.c.h.b16 %v1235
    %v6362 = vunpack.c.l.b16 %v1236
    %v6363 = vunpack.c.h.b16 %v1236
    %v6364 = vunpack.c.l.b16 %v1237
    %v6365 = vunpack.c.h.b16 %v1237
    %v6366 = vunpack.c.l.b16 %v1238
    %v6367 = vunpack.c.h.b16 %v1238
    %v6368 = vunpack.c.l.b16 %v1239
    %v6369 = vunpack.c.h.b16 %v1239
    %v6370 = vunpack.c.l.b16 %v1240
    %v6371 = vunpack.c.h.b16 %v1240
    %v6372 = vunpack.c.l.b16 %v1241
    %v6373 = vunpack.c.h.b16 %v1241
    %v6374 = vunpack.c.l.b16 %v1242
    %v6375 = vunpack.c.h.b16 %v1242
    %v6376 = vunpack.c.l.b16 %v1243
    %v6377 = vunpack.c.h.b16 %v1243
    %v6378 = vunpack.c.l.b16 %v1244
    %v6379 = vunpack.c.h.b16 %v1244
    %v6380 = vunpack.c.l.b16 %v1245
    %v6381 = vunpack.c.h.b16 %v1245
    %v6382 = vunpack.c.l.b16 %v1246
    %v6383 = vunpack.c.h.b16 %v1246
    %v6384 = vunpack.c.l.b16 %v1247
    %v6385 = vunpack.c.h.b16 %v1247
    %v6386 = vunpack.c.l.b16 %v1248
    %v6387 = vunpack.c.h.b16 %v1248
    %v6388 = vunpack.c.l.b16 %v1249
    %v6389 = vunpack.c.h.b16 %v1249
    %v6390 = vunpack.c.l.b16 %v1250
    %v6391 = vunpack.c.h.b16 %v1250
    %v6392 = vunpack.c.l.b16 %v1251
    %v6393 = vunpack.c.h.b16 %v1251
    %v6394 = vunpack.c.l.b16 %v1252
    %v6395 = vunpack.c.h.b16 %v1252
    %v6396 = vunpack.c.l.b16 %v1253
    %v6397 = vunpack.c.h.b16 %v1253
    %v6398 = vunpack.c.l.b16 %v1254
    %v6399 = vunpack.c.h.b16 %v1254
    %v6400 = vunpack.c.l.b16 %v1255
    %v6401 = vunpack.c.h.b16 %v1255
    %v6402 = vunpack.c.l.b16 %v1256
    %v6403 = vunpack.c.h.b16 %v1256
    %v6404 = vunpack.c.l.b16 %v1257
    %v6405 = vunpack.c.h.b16 %v1257
    %v6406 = vunpack.c.l.b16 %v1258
    %v6407 = vunpack.c.h.b16 %v1258
    %v6408 = vunpack.c.l.b16 %v1259
    %v6409 = vunpack.c.h.b16 %v1259
    %v6410 = vunpack.c.l.b16 %v1260
    %v6411 = vunpack.c.h.b16 %v1260
    %v6412 = vunpack.c.l.b16 %v1261
    %v6413 = vunpack.c.h.b16 %v1261
    %v6414 = vunpack.c.l.b16 %v1262
    %v6415 = vunpack.c.h.b16 %v1262
    %v6416 = vunpack.c.l.b16 %v1263
    %v6417 = vunpack.c.h.b16 %v1263
    %v6418 = vunpack.c.l.b16 %v1264
    %v6419 = vunpack.c.h.b16 %v1264
    %v6420 = vunpack.c.l.b16 %v1265
    %v6421 = vunpack.c.h.b16 %v1265
    %v6422 = vunpack.c.l.b16 %v1266
    %v6423 = vunpack.c.h.b16 %v1266
    %v6424 = vunpack.c.l.b16 %v1267
    %v6425 = vunpack.c.h.b16 %v1267
    %v6426 = vunpack.c.l.b16 %v1268
    %v6427 = vunpack.c.h.b16 %v1268
    %v6428 = vunpack.c.l.b16 %v1269
    %v6429 = vunpack.c.h.b16 %v1269
    %v6430 = vunpack.c.l.b16 %v1270
    %v6431 = vunpack.c.h.b16 %v1270
    %v6432 = vunpack.c.l.b16 %v1271
    %v6433 = vunpack.c.h.b16 %v1271
    %v6434 = vunpack.c.l.b16 %v1272
    %v6435 = vunpack.c.h.b16 %v1272
    %v6436 = vunpack.c.l.b16 %v1273
    %v6437 = vunpack.c.h.b16 %v1273
    %v6438 = vunpack.c.l.b16 %v1274
    %v6439 = vunpack.c.h.b16 %v1274
    %v6440 = vunpack.c.l.b16 %v1275
    %v6441 = vunpack.c.h.b16 %v1275
    %v6442 = vunpack.c.l.b16 %v1276
    %v6443 = vunpack.c.h.b16 %v1276
    %v6444 = vunpack.c.l.b16 %v1277
    %v6445 = vunpack.c.h.b16 %v1277
    %v6446 = vunpack.c.l.b16 %v1278
    %v6447 = vunpack.c.h.b16 %v1278
    %v6448 = vunpack.c.l.b16 %v1279
    %v6449 = vunpack.c.h.b16 %v1279
    %v6450 = vunpack.c.l.b16 %v1280
    %v6451 = vunpack.c.h.b16 %v1280
    %v6452 = vunpack.c.l.b16 %v1281
    %v6453 = vunpack.c.h.b16 %v1281
    %v6454 = vunpack.c.l.b16 %v1282
    %v6455 = vunpack.c.h.b16 %v1282
    %v6456 = vunpack.c.l.b16 %v1283
    %v6457 = vunpack.c.h.b16 %v1283
    %v6458 = vunpack.c.l.b16 %v1284
    %v6459 = vunpack.c.h.b16 %v1284
    %v6460 = vunpack.c.l.b16 %v1285
    %v6461 = vunpack.c.h.b16 %v1285
    %v6462 = vunpack.c.l.b16 %v1286
    %v6463 = vunpack.c.h.b16 %v1286
    %v6464 = vunpack.c.l.b16 %v1287
    %v6465 = vunpack.c.h.b16 %v1287
    %v6466 = vunpack.c.l.b16 %v1288
    %v6467 = vunpack.c.h.b16 %v1288
    %v6468 = vunpack.c.l.b16 %v1289
    %v6469 = vunpack.c.h.b16 %v1289
    %v6470 = vunpack.c.l.b16 %v1290
    %v6471 = vunpack.c.h.b16 %v1290
    %v6472 = vunpack.c.l.b16 %v1291
    %v6473 = vunpack.c.h.b16 %v1291
    %v6474 = vunpack.c.l.b16 %v1292
    %v6475 = vunpack.c.h.b16 %v1292
    %v6476 = vunpack.c.l.b16 %v1293
    %v6477 = vunpack.c.h.b16 %v1293
    %v6478 = vunpack.c.l.b16 %v1294
    %v6479 = vunpack.c.h.b16 %v1294
    %v6480 = vunpack.c.l.b16 %v1295
    %v6481 = vunpack.c.h.b16 %v1295
    %v6482 = vunpack.c.l.b16 %v1296
    %v6483 = vunpack.c.h.b16 %v1296
    %v6484 = vunpack.c.l.b16 %v1297
    %v6485 = vunpack.c.h.b16 %v1297
    %v6486 = vunpack.c.l.b16 %v1298
    %v6487 = vunpack.c.h.b16 %v1298
    %v6488 = vunpack.c.l.b16 %v1299
    %v6489 = vunpack.c.h.b16 %v1299
    %v6490 = vunpack.c.l.b16 %v1300
    %v6491 = vunpack.c.h.b16 %v1300
    %v6492 = vunpack.c.l.b16 %v1301
    %v6493 = vunpack.c.h.b16 %v1301
    %v6494 = vunpack.c.l.b16 %v1302
    %v6495 = vunpack.c.h.b16 %v1302
    %v6496 = vunpack.c.l.b16 %v1303
    %v6497 = vunpack.c.h.b16 %v1303
    %v6498 = vunpack.c.l.b16 %v1304
    %v6499 = vunpack.c.h.b16 %v1304
    %v6500 = vunpack.c.l.b16 %v1305
    %v6501 = vunpack.c.h.b16 %v1305
    %v6502 = vunpack.c.l.b16 %v1306
    %v6503 = vunpack.c.h.b16 %v1306
    %v6504 = vunpack.c.l.b16 %v1307
    %v6505 = vunpack.c.h.b16 %v1307
    %v6506 = vunpack.c.l.b16 %v1308
    %v6507 = vunpack.c.h.b16 %v1308
    %v6508 = vunpack.c.l.b16 %v1309
    %v6509 = vunpack.c.h.b16 %v1309
    %v6510 = vunpack.c.l.b16 %v1310
    %v6511 = vunpack.c.h.b16 %v1310
    %v6512 = vunpack.c.l.b16 %v1311
    %v6513 = vunpack.c.h.b16 %v1311
    %v6514 = vunpack.c.l.b16 %v1312
    %v6515 = vunpack.c.h.b16 %v1312
    %v6516 = vunpack.c.l.b16 %v1313
    %v6517 = vunpack.c.h.b16 %v1313
    %v6518 = vunpack.c.l.b16 %v1314
    %v6519 = vunpack.c.h.b16 %v1314
    %v6520 = vunpack.c.l.b16 %v1315
    %v6521 = vunpack.c.h.b16 %v1315
    %v6522 = vunpack.c.l.b16 %v1316
    %v6523 = vunpack.c.h.b16 %v1316
    %v6524 = vunpack.c.l.b16 %v1317
    %v6525 = vunpack.c.h.b16 %v1317
    %v6526 = vunpack.c.l.b16 %v1318
    %v6527 = vunpack.c.h.b16 %v1318
    %v6528 = vunpack.c.l.b16 %v1319
    %v6529 = vunpack.c.h.b16 %v1319
    %v6530 = vunpack.c.l.b16 %v1320
    %v6531 = vunpack.c.h.b16 %v1320
    %v6532 = vunpack.c.l.b16 %v1321
    %v6533 = vunpack.c.h.b16 %v1321
    %v6534 = vunpack.c.l.b16 %v1322
    %v6535 = vunpack.c.h.b16 %v1322
    %v6536 = vunpack.c.l.b16 %v1323
    %v6537 = vunpack.c.h.b16 %v1323
    %v6538 = vunpack.c.l.b16 %v1324
    %v6539 = vunpack.c.h.b16 %v1324
    %v6540 = vunpack.c.l.b16 %v1325
    %v6541 = vunpack.c.h.b16 %v1325
    %v6542 = vunpack.c.l.b16 %v1326
    %v6543 = vunpack.c.h.b16 %v1326
    %v6544 = vunpack.c.l.b16 %v1327
    %v6545 = vunpack.c.h.b16 %v1327
    %v6546 = vunpack.c.l.b16 %v1328
    %v6547 = vunpack.c.h.b16 %v1328
    %v6548 = vunpack.c.l.b16 %v1329
    %v6549 = vunpack.c.h.b16 %v1329
    %v6550 = vunpack.c.l.b16 %v1330
    %v6551 = vunpack.c.h.b16 %v1330
    %v6552 = vunpack.c.l.b16 %v1331
    %v6553 = vunpack.c.h.b16 %v1331
    %v6554 = vunpack.c.l.b16 %v1332
    %v6555 = vunpack.c.h.b16 %v1332
    %v6556 = vunpack.c.l.b16 %v1333
    %v6557 = vunpack.c.h.b16 %v1333
    %v6558 = vunpack.c.l.b16 %v1334
    %v6559 = vunpack.c.h.b16 %v1334
    %v6560 = vunpack.c.l.b16 %v1335
    %v6561 = vunpack.c.h.b16 %v1335
    %v6562 = vunpack.c.l.b16 %v1336
    %v6563 = vunpack.c.h.b16 %v1336
    %v6564 = vunpack.c.l.b16 %v1337
    %v6565 = vunpack.c.h.b16 %v1337
    %v6566 = vunpack.c.l.b16 %v1338
    %v6567 = vunpack.c.h.b16 %v1338
    %v6568 = vunpack.c.l.b16 %v1339
    %v6569 = vunpack.c.h.b16 %v1339
    %v6570 = vunpack.c.l.b16 %v1340
    %v6571 = vunpack.c.h.b16 %v1340
    %v6572 = vunpack.c.l.b16 %v1341
    %v6573 = vunpack.c.h.b16 %v1341
    %v6574 = vunpack.c.l.b16 %v1342
    %v6575 = vunpack.c.h.b16 %v1342
    %v6576 = vunpack.c.l.b16 %v1343
    %v6577 = vunpack.c.h.b16 %v1343
    %v6578 = vunpack.c.l.b16 %v1344
    %v6579 = vunpack.c.h.b16 %v1344
    %v6580 = vunpack.c.l.b16 %v1345
    %v6581 = vunpack.c.h.b16 %v1345
    %v6582 = vunpack.c.l.b16 %v1346
    %v6583 = vunpack.c.h.b16 %v1346
    %v6584 = vunpack.c.l.b16 %v1347
    %v6585 = vunpack.c.h.b16 %v1347
    %v6586 = vunpack.c.l.b16 %v1348
    %v6587 = vunpack.c.h.b16 %v1348
    %v6588 = vunpack.c.l.b16 %v1349
    %v6589 = vunpack.c.h.b16 %v1349
    %v6590 = vunpack.c.l.b16 %v1350
    %v6591 = vunpack.c.h.b16 %v1350
    %v6592 = vunpack.c.l.b16 %v1351
    %v6593 = vunpack.c.h.b16 %v1351
    %v6594 = vunpack.c.l.b16 %v1352
    %v6595 = vunpack.c.h.b16 %v1352
    %v6596 = vunpack.c.l.b16 %v1353
    %v6597 = vunpack.c.h.b16 %v1353
    %v6598 = vunpack.c.l.b16 %v1354
    %v6599 = vunpack.c.h.b16 %v1354
    %v6600 = vunpack.c.l.b16 %v1355
    %v6601 = vunpack.c.h.b16 %v1355
    %v6602 = vunpack.c.l.b16 %v1356
    %v6603 = vunpack.c.h.b16 %v1356
    %v6604 = vunpack.c.l.b16 %v1357
    %v6605 = vunpack.c.h.b16 %v1357
    %v6606 = vunpack.c.l.b16 %v1358
    %v6607 = vunpack.c.h.b16 %v1358
    %v6608 = vunpack.c.l.b16 %v1359
    %v6609 = vunpack.c.h.b16 %v1359
    %v6610 = vunpack.c.l.b16 %v1360
    %v6611 = vunpack.c.h.b16 %v1360
    %v6612 = vunpack.c.l.b16 %v1361
    %v6613 = vunpack.c.h.b16 %v1361
    %v6614 = vunpack.c.l.b16 %v1362
    %v6615 = vunpack.c.h.b16 %v1362
    %v6616 = vunpack.c.l.b16 %v1363
    %v6617 = vunpack.c.h.b16 %v1363
    %v6618 = vunpack.c.l.b16 %v1364
    %v6619 = vunpack.c.h.b16 %v1364
    %v6620 = vunpack.c.l.b16 %v1365
    %v6621 = vunpack.c.h.b16 %v1365
    %v6622 = vunpack.c.l.b16 %v1366
    %v6623 = vunpack.c.h.b16 %v1366
    %v6624 = vunpack.c.l.b16 %v1367
    %v6625 = vunpack.c.h.b16 %v1367
    %v6626 = vunpack.c.l.b16 %v1368
    %v6627 = vunpack.c.h.b16 %v1368
    %v6628 = vunpack.c.l.b16 %v1369
    %v6629 = vunpack.c.h.b16 %v1369
    %v6630 = vunpack.c.l.b16 %v1370
    %v6631 = vunpack.c.h.b16 %v1370
    %v6632 = vunpack.c.l.b16 %v1371
    %v6633 = vunpack.c.h.b16 %v1371
    %v6634 = vunpack.c.l.b16 %v1372
    %v6635 = vunpack.c.h.b16 %v1372
    %v6636 = vunpack.c.l.b16 %v1373
    %v6637 = vunpack.c.h.b16 %v1373
    %v6638 = vunpack.c.l.b16 %v1374
    %v6639 = vunpack.c.h.b16 %v1374
    %v6640 = vunpack.c.l.b16 %v1375
    %v6641 = vunpack.c.h.b16 %v1375
    %v6642 = vunpack.c.l.b16 %v1376
    %v6643 = vunpack.c.h.b16 %v1376
    %v6644 = vunpack.c.l.b16 %v1377
    %v6645 = vunpack.c.h.b16 %v1377
    %v6646 = vunpack.c.l.b16 %v1378
    %v6647 = vunpack.c.h.b16 %v1378
    %v6648 = vunpack.c.l.b16 %v1379
    %v6649 = vunpack.c.h.b16 %v1379
    %v6650 = vunpack.c.l.b16 %v1380
    %v6651 = vunpack.c.h.b16 %v1380
    %v6652 = vunpack.c.l.b16 %v1381
    %v6653 = vunpack.c.h.b16 %v1381
    %v6654 = vunpack.c.l.b16 %v1382
    %v6655 = vunpack.c.h.b16 %v1382
    %v6656 = vunpack.c.l.b16 %v1383
    %v6657 = vunpack.c.h.b16 %v1383
    %v6658 = vunpack.c.l.b16 %v1384
    %v6659 = vunpack.c.h.b16 %v1384
    %v6660 = vunpack.c.l.b16 %v1385
    %v6661 = vunpack.c.h.b16 %v1385
    %v6662 = vunpack.c.l.b16 %v1386
    %v6663 = vunpack.c.h.b16 %v1386
    %v6664 = vunpack.c.l.b16 %v1387
    %v6665 = vunpack.c.h.b16 %v1387
    %v6666 = vunpack.c.l.b16 %v1388
    %v6667 = vunpack.c.h.b16 %v1388
    %v6668 = vunpack.c.l.b16 %v1389
    %v6669 = vunpack.c.h.b16 %v1389
    %v6670 = vunpack.c.l.b16 %v1390
    %v6671 = vunpack.c.h.b16 %v1390
    %v6672 = vunpack.c.l.b16 %v1391
    %v6673 = vunpack.c.h.b16 %v1391
    %v6674 = vunpack.c.l.b16 %v1392
    %v6675 = vunpack.c.h.b16 %v1392
    %v6676 = vunpack.c.l.b16 %v1393
    %v6677 = vunpack.c.h.b16 %v1393
    %v6678 = vunpack.c.l.b16 %v1394
    %v6679 = vunpack.c.h.b16 %v1394
    %v6680 = vunpack.c.l.b16 %v1395
    %v6681 = vunpack.c.h.b16 %v1395
    %v6682 = vunpack.c.l.b16 %v1396
    %v6683 = vunpack.c.h.b16 %v1396
    %v6684 = vunpack.c.l.b16 %v1397
    %v6685 = vunpack.c.h.b16 %v1397
    %v6686 = vunpack.c.l.b16 %v1398
    %v6687 = vunpack.c.h.b16 %v1398
    %v6688 = vunpack.c.l.b16 %v1399
    %v6689 = vunpack.c.h.b16 %v1399
    %v6690 = vunpack.c.l.b16 %v1400
    %v6691 = vunpack.c.h.b16 %v1400
    %v6692 = vunpack.c.l.b16 %v1401
    %v6693 = vunpack.c.h.b16 %v1401
    %v6694 = vunpack.c.l.b16 %v1402
    %v6695 = vunpack.c.h.b16 %v1402
    %v6696 = vunpack.c.l.b16 %v1403
    %v6697 = vunpack.c.h.b16 %v1403
    %v6698 = vunpack.c.l.b16 %v1404
    %v6699 = vunpack.c.h.b16 %v1404
    %v6700 = vunpack.c.l.b16 %v1405
    %v6701 = vunpack.c.h.b16 %v1405
    %v6702 = vunpack.c.l.b16 %v1406
    %v6703 = vunpack.c.h.b16 %v1406
    %v6704 = vunpack.c.l.b16 %v1407
    %v6705 = vunpack.c.h.b16 %v1407
    %v6706 = vunpack.c.l.b16 %v1408
    %v6707 = vunpack.c.h.b16 %v1408
    %v6708 = vunpack.c.l.b16 %v1409
    %v6709 = vunpack.c.h.b16 %v1409
    %v6710 = vunpack.c.l.b16 %v1410
    %v6711 = vunpack.c.h.b16 %v1410
    %v6712 = vunpack.c.l.b16 %v1411
    %v6713 = vunpack.c.h.b16 %v1411
    %v6714 = vunpack.c.l.b16 %v1412
    %v6715 = vunpack.c.h.b16 %v1412
    %v6716 = vunpack.c.l.b16 %v1413
    %v6717 = vunpack.c.h.b16 %v1413
    %v6718 = vunpack.c.l.b16 %v1414
    %v6719 = vunpack.c.h.b16 %v1414
    %v6720 = vunpack.c.l.b16 %v1415
    %v6721 = vunpack.c.h.b16 %v1415
    %v6722 = vunpack.c.l.b16 %v1416
    %v6723 = vunpack.c.h.b16 %v1416
    %v6724 = vunpack.c.l.b16 %v1417
    %v6725 = vunpack.c.h.b16 %v1417
    %v6726 = vunpack.c.l.b16 %v1418
    %v6727 = vunpack.c.h.b16 %v1418
    %v6728 = vunpack.c.l.b16 %v1419
    %v6729 = vunpack.c.h.b16 %v1419
    %v6730 = vunpack.c.l.b16 %v1420
    %v6731 = vunpack.c.h.b16 %v1420
    %v6732 = vunpack.c.l.b16 %v1421
    %v6733 = vunpack.c.h.b16 %v1421
    %v6734 = vunpack.c.l.b16 %v1422
    %v6735 = vunpack.c.h.b16 %v1422
    %v6736 = vunpack.c.l.b16 %v1423
    %v6737 = vunpack.c.h.b16 %v1423
    %v6738 = vunpack.c.l.b16 %v1424
    %v6739 = vunpack.c.h.b16 %v1424
    %v6740 = vunpack.c.l.b16 %v1425
    %v6741 = vunpack.c.h.b16 %v1425
    %v6742 = vunpack.c.l.b16 %v1426
    %v6743 = vunpack.c.h.b16 %v1426
    %v6744 = vunpack.c.l.b16 %v1427
    %v6745 = vunpack.c.h.b16 %v1427
    %v6746 = vunpack.c.l.b16 %v1428
    %v6747 = vunpack.c.h.b16 %v1428
    %v6748 = vunpack.c.l.b16 %v1429
    %v6749 = vunpack.c.h.b16 %v1429
    %v6750 = vunpack.c.l.b16 %v1430
    %v6751 = vunpack.c.h.b16 %v1430
    %v6752 = vunpack.c.l.b16 %v1431
    %v6753 = vunpack.c.h.b16 %v1431
    %v6754 = vunpack.c.l.b16 %v1432
    %v6755 = vunpack.c.h.b16 %v1432
    %v6756 = vunpack.c.l.b16 %v1433
    %v6757 = vunpack.c.h.b16 %v1433
    %v6758 = vunpack.c.l.b16 %v1434
    %v6759 = vunpack.c.h.b16 %v1434
    %v6760 = vunpack.c.l.b16 %v1435
    %v6761 = vunpack.c.h.b16 %v1435
    %v6762 = vunpack.c.l.b16 %v1436
    %v6763 = vunpack.c.h.b16 %v1436
    %v6764 = vunpack.c.l.b16 %v1437
    %v6765 = vunpack.c.h.b16 %v1437
    %v6766 = vunpack.c.l.b16 %v1438
    %v6767 = vunpack.c.h.b16 %v1438
    %v6768 = vunpack.c.l.b16 %v1439
    %v6769 = vunpack.c.h.b16 %v1439
    %v6770 = vunpack.c.l.b16 %v1440
    %v6771 = vunpack.c.h.b16 %v1440
    %v6772 = vunpack.c.l.b16 %v1441
    %v6773 = vunpack.c.h.b16 %v1441
    %v6774 = vunpack.c.l.b16 %v1442
    %v6775 = vunpack.c.h.b16 %v1442
    %v6776 = vunpack.c.l.b16 %v1443
    %v6777 = vunpack.c.h.b16 %v1443
    %v6778 = vunpack.c.l.b16 %v1444
    %v6779 = vunpack.c.h.b16 %v1444
    %v6780 = vunpack.c.l.b16 %v1445
    %v6781 = vunpack.c.h.b16 %v1445
    %v6782 = vunpack.c.l.b16 %v1446
    %v6783 = vunpack.c.h.b16 %v1446
    %v6784 = vunpack.c.l.b16 %v1447
    %v6785 = vunpack.c.h.b16 %v1447
    %v6786 = vunpack.c.l.b16 %v1448
    %v6787 = vunpack.c.h.b16 %v1448
    %v6788 = vunpack.c.l.b16 %v1449
    %v6789 = vunpack.c.h.b16 %v1449
    %v6790 = vunpack.c.l.b16 %v1450
    %v6791 = vunpack.c.h.b16 %v1450
    %v6792 = vunpack.c.l.b16 %v1451
    %v6793 = vunpack.c.h.b16 %v1451
    %v6794 = vunpack.c.l.b16 %v1452
    %v6795 = vunpack.c.h.b16 %v1452
    %v6796 = vunpack.c.l.b16 %v1453
    %v6797 = vunpack.c.h.b16 %v1453
    %v6798 = vunpack.c.l.b16 %v1454
    %v6799 = vunpack.c.h.b16 %v1454
    %v6800 = vunpack.c.l.b16 %v1455
    %v6801 = vunpack.c.h.b16 %v1455
    %v6802 = vunpack.c.l.b16 %v1456
    %v6803 = vunpack.c.h.b16 %v1456
    %v6804 = vunpack.c.l.b16 %v1457
    %v6805 = vunpack.c.h.b16 %v1457
    %v6806 = vunpack.c.l.b16 %v1458
    %v6807 = vunpack.c.h.b16 %v1458
    %v6808 = vunpack.c.l.b16 %v1459
    %v6809 = vunpack.c.h.b16 %v1459
    %v6810 = vunpack.c.l.b16 %v1460
    %v6811 = vunpack.c.h.b16 %v1460
    %v6812 = vunpack.c.l.b16 %v1461
    %v6813 = vunpack.c.h.b16 %v1461
    %v6814 = vunpack.c.l.b16 %v1462
    %v6815 = vunpack.c.h.b16 %v1462
    %v6816 = vunpack.c.l.b16 %v1463
    %v6817 = vunpack.c.h.b16 %v1463
    %v6818 = vunpack.c.l.b16 %v1464
    %v6819 = vunpack.c.h.b16 %v1464
    %v6820 = vunpack.c.l.b16 %v1465
    %v6821 = vunpack.c.h.b16 %v1465
    %v6822 = vunpack.c.l.b16 %v1466
    %v6823 = vunpack.c.h.b16 %v1466
    %v6824 = vunpack.c.l.b16 %v1467
    %v6825 = vunpack.c.h.b16 %v1467
    %v6826 = vunpack.c.l.b16 %v1468
    %v6827 = vunpack.c.h.b16 %v1468
    %v6828 = vunpack.c.l.b16 %v1469
    %v6829 = vunpack.c.h.b16 %v1469
    %v6830 = vunpack.c.l.b16 %v1470
    %v6831 = vunpack.c.h.b16 %v1470
    %v6832 = vunpack.c.l.b16 %v1471
    %v6833 = vunpack.c.h.b16 %v1471
    %v6834 = vunpack.c.l.b16 %v1472
    %v6835 = vunpack.c.h.b16 %v1472
    %v6836 = vunpack.c.l.b16 %v1473
    %v6837 = vunpack.c.h.b16 %v1473
    %v6838 = vunpack.c.l.b16 %v1474
    %v6839 = vunpack.c.h.b16 %v1474
    %v6840 = vunpack.c.l.b16 %v1475
    %v6841 = vunpack.c.h.b16 %v1475
    %v6842 = vunpack.c.l.b16 %v1476
    %v6843 = vunpack.c.h.b16 %v1476
    %v6844 = vunpack.c.l.b16 %v1477
    %v6845 = vunpack.c.h.b16 %v1477
    %v6846 = vunpack.c.l.b16 %v1478
    %v6847 = vunpack.c.h.b16 %v1478
    %v6848 = vunpack.c.l.b16 %v1479
    %v6849 = vunpack.c.h.b16 %v1479
    %v6850 = vunpack.c.l.b16 %v1480
    %v6851 = vunpack.c.h.b16 %v1480
    %v6852 = vunpack.c.l.b16 %v1481
    %v6853 = vunpack.c.h.b16 %v1481
    %v6854 = vunpack.c.l.b16 %v1482
    %v6855 = vunpack.c.h.b16 %v1482
    %v6856 = vunpack.c.l.b16 %v1483
    %v6857 = vunpack.c.h.b16 %v1483
    %v6858 = vunpack.c.l.b16 %v1484
    %v6859 = vunpack.c.h.b16 %v1484
    %v6860 = vunpack.c.l.b16 %v1485
    %v6861 = vunpack.c.h.b16 %v1485
    %v6862 = vunpack.c.l.b16 %v1486
    %v6863 = vunpack.c.h.b16 %v1486
    %v6864 = vunpack.c.l.b16 %v1487
    %v6865 = vunpack.c.h.b16 %v1487
    %v6866 = vunpack.c.l.b16 %v1488
    %v6867 = vunpack.c.h.b16 %v1488
    %v6868 = vunpack.c.l.b16 %v1489
    %v6869 = vunpack.c.h.b16 %v1489
    %v6870 = vunpack.c.l.b16 %v1490
    %v6871 = vunpack.c.h.b16 %v1490
    %v6872 = vunpack.c.l.b16 %v1491
    %v6873 = vunpack.c.h.b16 %v1491
    %v6874 = vunpack.c.l.b16 %v1492
    %v6875 = vunpack.c.h.b16 %v1492
    %v6876 = vunpack.c.l.b16 %v1493
    %v6877 = vunpack.c.h.b16 %v1493
    %v6878 = vunpack.c.l.b16 %v1494
    %v6879 = vunpack.c.h.b16 %v1494
    %v6880 = vunpack.c.l.b16 %v1495
    %v6881 = vunpack.c.h.b16 %v1495
    %v6882 = vunpack.c.l.b16 %v1496
    %v6883 = vunpack.c.h.b16 %v1496
    %v6884 = vunpack.c.l.b16 %v1497
    %v6885 = vunpack.c.h.b16 %v1497
    %v6886 = vunpack.c.l.b16 %v1498
    %v6887 = vunpack.c.h.b16 %v1498
    %v6888 = vunpack.c.l.b16 %v1499
    %v6889 = vunpack.c.h.b16 %v1499
    %v6890 = vunpack.c.l.b16 %v1500
    %v6891 = vunpack.c.h.b16 %v1500
    %v6892 = vunpack.c.l.b16 %v1501
    %v6893 = vunpack.c.h.b16 %v1501
    %v6894 = vunpack.c.l.b16 %v1502
    %v6895 = vunpack.c.h.b16 %v1502
    %v6896 = vunpack.c.l.b16 %v1503
    %v6897 = vunpack.c.h.b16 %v1503
    %v6898 = vunpack.c.l.b16 %v1504
    %v6899 = vunpack.c.h.b16 %v1504
    %v6900 = vunpack.c.l.b16 %v1505
    %v6901 = vunpack.c.h.b16 %v1505
    %v6902 = vunpack.c.l.b16 %v1506
    %v6903 = vunpack.c.h.b16 %v1506
    %v6904 = vunpack.c.l.b16 %v1507
    %v6905 = vunpack.c.h.b16 %v1507
    %v6906 = vunpack.c.l.b16 %v1508
    %v6907 = vunpack.c.h.b16 %v1508
    %v6908 = vunpack.c.l.b16 %v1509
    %v6909 = vunpack.c.h.b16 %v1509
    %v6910 = vunpack.c.l.b16 %v1510
    %v6911 = vunpack.c.h.b16 %v1510
    %v6912 = vunpack.c.l.b16 %v1511
    %v6913 = vunpack.c.h.b16 %v1511
    %v6914 = vunpack.c.l.b16 %v1512
    %v6915 = vunpack.c.h.b16 %v1512
    %v6916 = vunpack.c.l.b16 %v1513
    %v6917 = vunpack.c.h.b16 %v1513
    %v6918 = vunpack.c.l.b16 %v1514
    %v6919 = vunpack.c.h.b16 %v1514
    %v6920 = vunpack.c.l.b16 %v1515
    %v6921 = vunpack.c.h.b16 %v1515
    %v6922 = vunpack.c.l.b16 %v1516
    %v6923 = vunpack.c.h.b16 %v1516
    %v6924 = vunpack.c.l.b16 %v1517
    %v6925 = vunpack.c.h.b16 %v1517
    %v6926 = vunpack.c.l.b16 %v1518
    %v6927 = vunpack.c.h.b16 %v1518
    %v6928 = vunpack.c.l.b16 %v1519
    %v6929 = vunpack.c.h.b16 %v1519
    %v6930 = vunpack.c.l.b16 %v1520
    %v6931 = vunpack.c.h.b16 %v1520
    %v6932 = vunpack.c.l.b16 %v1521
    %v6933 = vunpack.c.h.b16 %v1521
    %v6934 = vunpack.c.l.b16 %v1522
    %v6935 = vunpack.c.h.b16 %v1522
    %v6936 = vunpack.c.l.b16 %v1523
    %v6937 = vunpack.c.h.b16 %v1523
    %v6938 = vunpack.c.l.b16 %v1524
    %v6939 = vunpack.c.h.b16 %v1524
    %v6940 = vunpack.c.l.b16 %v1525
    %v6941 = vunpack.c.h.b16 %v1525
    %v6942 = vunpack.c.l.b16 %v1526
    %v6943 = vunpack.c.h.b16 %v1526
    %v6944 = vunpack.c.l.b16 %v1527
    %v6945 = vunpack.c.h.b16 %v1527
    %v6946 = vunpack.c.l.b16 %v1528
    %v6947 = vunpack.c.h.b16 %v1528
    %v6948 = vunpack.c.l.b16 %v1529
    %v6949 = vunpack.c.h.b16 %v1529
    %v6950 = vunpack.c.l.b16 %v1530
    %v6951 = vunpack.c.h.b16 %v1530
    %v6952 = vunpack.c.l.b16 %v1531
    %v6953 = vunpack.c.h.b16 %v1531
    %v6954 = vunpack.c.l.b16 %v1532
    %v6955 = vunpack.c.h.b16 %v1532
    %v6956 = vunpack.c.l.b16 %v1533
    %v6957 = vunpack.c.h.b16 %v1533
    %v6958 = vunpack.c.l.b16 %v1534
    %v6959 = vunpack.c.h.b16 %v1534
    %v6960 = vunpack.c.l.b16 %v1535
    %v6961 = vunpack.c.h.b16 %v1535
    %v6962 = vunpack.c.l.b16 %v1536
    %v6963 = vunpack.c.h.b16 %v1536
    %v6964 = vunpack.c.l.b16 %v1537
    %v6965 = vunpack.c.h.b16 %v1537
    %v6966 = vunpack.c.l.b16 %v1538
    %v6967 = vunpack.c.h.b16 %v1538
    %v6968 = vunpack.c.l.b16 %v1539
    %v6969 = vunpack.c.h.b16 %v1539
    %v6970 = vunpack.c.l.b16 %v1540
    %v6971 = vunpack.c.h.b16 %v1540
    %v6972 = vunpack.c.l.b16 %v1541
    %v6973 = vunpack.c.h.b16 %v1541
    %v6974 = vunpack.c.l.b16 %v1542
    %v6975 = vunpack.c.h.b16 %v1542
    %v6976 = vunpack.c.l.b16 %v1543
    %v6977 = vunpack.c.h.b16 %v1543
    %v6978 = vunpack.c.l.b16 %v1544
    %v6979 = vunpack.c.h.b16 %v1544
    %v6980 = vunpack.c.l.b16 %v1545
    %v6981 = vunpack.c.h.b16 %v1545
    %v6982 = vunpack.c.l.b16 %v1546
    %v6983 = vunpack.c.h.b16 %v1546
    %v6984 = vunpack.c.l.b16 %v1547
    %v6985 = vunpack.c.h.b16 %v1547
    %v6986 = vunpack.c.l.b16 %v1548
    %v6987 = vunpack.c.h.b16 %v1548
    %v6988 = vunpack.c.l.b16 %v1549
    %v6989 = vunpack.c.h.b16 %v1549
    %v6990 = vunpack.c.l.b16 %v1550
    %v6991 = vunpack.c.h.b16 %v1550
    %v6992 = vunpack.c.l.b16 %v1551
    %v6993 = vunpack.c.h.b16 %v1551
    %v6994 = vunpack.c.l.b16 %v1552
    %v6995 = vunpack.c.h.b16 %v1552
    %v6996 = vunpack.c.l.b16 %v1553
    %v6997 = vunpack.c.h.b16 %v1553
    %v6998 = vunpack.c.l.b16 %v1554
    %v6999 = vunpack.c.h.b16 %v1554
    %v7000 = vunpack.c.l.b16 %v1555
    %v7001 = vunpack.c.h.b16 %v1555
    %v7002 = vunpack.c.l.b16 %v1556
    %v7003 = vunpack.c.h.b16 %v1556
    %v7004 = vunpack.c.l.b16 %v1557
    %v7005 = vunpack.c.h.b16 %v1557
    %v7006 = vunpack.c.l.b16 %v1558
    %v7007 = vunpack.c.h.b16 %v1558
    %v7008 = vunpack.c.l.b16 %v1559
    %v7009 = vunpack.c.h.b16 %v1559
    %v7010 = vunpack.c.l.b16 %v1560
    %v7011 = vunpack.c.h.b16 %v1560
    %v7012 = vunpack.c.l.b16 %v1561
    %v7013 = vunpack.c.h.b16 %v1561
    %v7014 = vunpack.c.l.b16 %v1562
    %v7015 = vunpack.c.h.b16 %v1562
    %v7016 = vunpack.c.l.b16 %v1563
    %v7017 = vunpack.c.h.b16 %v1563
    %v7018 = vunpack.c.l.b16 %v1564
    %v7019 = vunpack.c.h.b16 %v1564
    %v7020 = vunpack.c.l.b16 %v1565
    %v7021 = vunpack.c.h.b16 %v1565
    %v7022 = vunpack.c.l.b16 %v1566
    %v7023 = vunpack.c.h.b16 %v1566
    %v7024 = vunpack.c.l.b16 %v1567
    %v7025 = vunpack.c.h.b16 %v1567
    %v7026 = vunpack.c.l.b16 %v1568
    %v7027 = vunpack.c.h.b16 %v1568
    %v7028 = vunpack.c.l.b16 %v1569
    %v7029 = vunpack.c.h.b16 %v1569
    %v7030 = vunpack.c.l.b16 %v1570
    %v7031 = vunpack.c.h.b16 %v1570
    %v7032 = vunpack.c.l.b16 %v1571
    %v7033 = vunpack.c.h.b16 %v1571
    %v7034 = vunpack.c.l.b16 %v1572
    %v7035 = vunpack.c.h.b16 %v1572
    %v7036 = vunpack.c.l.b16 %v1573
    %v7037 = vunpack.c.h.b16 %v1573
    %v7038 = vunpack.c.l.b16 %v1574
    %v7039 = vunpack.c.h.b16 %v1574
    %v7040 = vunpack.c.l.b16 %v1575
    %v7041 = vunpack.c.h.b16 %v1575
    %v7042 = vunpack.c.l.b16 %v1576
    %v7043 = vunpack.c.h.b16 %v1576
    %v7044 = vunpack.c.l.b16 %v1577
    %v7045 = vunpack.c.h.b16 %v1577
    %v7046 = vunpack.c.l.b16 %v1578
    %v7047 = vunpack.c.h.b16 %v1578
    %v7048 = vunpack.c.l.b16 %v1579
    %v7049 = vunpack.c.h.b16 %v1579
    %v7050 = vunpack.c.l.b16 %v1580
    %v7051 = vunpack.c.h.b16 %v1580
    %v7052 = vunpack.c.l.b16 %v1581
    %v7053 = vunpack.c.h.b16 %v1581
    %v7054 = vunpack.c.l.b16 %v1582
    %v7055 = vunpack.c.h.b16 %v1582
    %v7056 = vunpack.c.l.b16 %v1583
    %v7057 = vunpack.c.h.b16 %v1583
    %v7058 = vunpack.c.l.b16 %v1584
    %v7059 = vunpack.c.h.b16 %v1584
    %v7060 = vunpack.c.l.b16 %v1585
    %v7061 = vunpack.c.h.b16 %v1585
    %v7062 = vunpack.c.l.b16 %v1586
    %v7063 = vunpack.c.h.b16 %v1586
    %v7064 = vunpack.c.l.b16 %v1587
    %v7065 = vunpack.c.h.b16 %v1587
    %v7066 = vunpack.c.l.b16 %v1588
    %v7067 = vunpack.c.h.b16 %v1588
    %v7068 = vunpack.c.l.b16 %v1589
    %v7069 = vunpack.c.h.b16 %v1589
    %v7070 = vunpack.c.l.b16 %v1590
    %v7071 = vunpack.c.h.b16 %v1590
    %v7072 = vunpack.c.l.b16 %v1591
    %v7073 = vunpack.c.h.b16 %v1591
    %v7074 = vunpack.c.l.b16 %v1592
    %v7075 = vunpack.c.h.b16 %v1592
    %v7076 = vunpack.c.l.b16 %v1593
    %v7077 = vunpack.c.h.b16 %v1593
    %v7078 = vunpack.c.l.b16 %v1594
    %v7079 = vunpack.c.h.b16 %v1594
    %v7080 = vunpack.c.l.b16 %v1595
    %v7081 = vunpack.c.h.b16 %v1595
    %v7082 = vunpack.c.l.b16 %v1596
    %v7083 = vunpack.c.h.b16 %v1596
    %v7084 = vunpack.c.l.b16 %v1597
    %v7085 = vunpack.c.h.b16 %v1597
    %v7086 = vunpack.c.l.b16 %v1598
    %v7087 = vunpack.c.h.b16 %v1598
    %v7088 = vunpack.c.l.b16 %v1599
    %v7089 = vunpack.c.h.b16 %v1599
    %v7090 = vunpack.c.l.b16 %v1600
    %v7091 = vunpack.c.h.b16 %v1600
    %v7092 = vunpack.c.l.b16 %v1601
    %v7093 = vunpack.c.h.b16 %v1601
    %v7094 = vunpack.c.l.b16 %v1602
    %v7095 = vunpack.c.h.b16 %v1602
    %v7096 = vunpack.c.l.b16 %v1603
    %v7097 = vunpack.c.h.b16 %v1603
    %v7098 = vunpack.c.l.b16 %v1604
    %v7099 = vunpack.c.h.b16 %v1604
    %v7100 = vunpack.c.l.b16 %v1605
    %v7101 = vunpack.c.h.b16 %v1605
    %v7102 = vunpack.c.l.b16 %v1606
    %v7103 = vunpack.c.h.b16 %v1606
    %v7104 = vunpack.c.l.b16 %v1607
    %v7105 = vunpack.c.h.b16 %v1607
    %v7106 = vunpack.c.l.b16 %v1608
    %v7107 = vunpack.c.h.b16 %v1608
    %v7108 = vunpack.c.l.b16 %v1609
    %v7109 = vunpack.c.h.b16 %v1609
    %v7110 = vunpack.c.l.b16 %v1610
    %v7111 = vunpack.c.h.b16 %v1610
    %v7112 = vunpack.c.l.b16 %v1611
    %v7113 = vunpack.c.h.b16 %v1611
    %v7114 = vunpack.c.l.b16 %v1612
    %v7115 = vunpack.c.h.b16 %v1612
    %v7116 = vunpack.c.l.b16 %v1613
    %v7117 = vunpack.c.h.b16 %v1613
    %v7118 = vunpack.c.l.b16 %v1614
    %v7119 = vunpack.c.h.b16 %v1614
    %v7120 = vunpack.c.l.b16 %v1615
    %v7121 = vunpack.c.h.b16 %v1615
    %v7122 = vunpack.c.l.b16 %v1616
    %v7123 = vunpack.c.h.b16 %v1616
    %v7124 = vunpack.c.l.b16 %v1617
    %v7125 = vunpack.c.h.b16 %v1617
    %v7126 = vunpack.c.l.b16 %v1618
    %v7127 = vunpack.c.h.b16 %v1618
    %v7128 = vunpack.c.l.b16 %v1619
    %v7129 = vunpack.c.h.b16 %v1619
    %v7130 = vunpack.c.l.b16 %v1620
    %v7131 = vunpack.c.h.b16 %v1620
    %v7132 = vunpack.c.l.b16 %v1621
    %v7133 = vunpack.c.h.b16 %v1621
    %v7134 = vunpack.c.l.b16 %v1622
    %v7135 = vunpack.c.h.b16 %v1622
    %v7136 = vunpack.c.l.b16 %v1623
    %v7137 = vunpack.c.h.b16 %v1623
    %v7138 = vunpack.c.l.b16 %v1624
    %v7139 = vunpack.c.h.b16 %v1624
    %v7140 = vunpack.c.l.b16 %v1625
    %v7141 = vunpack.c.h.b16 %v1625
    %v7142 = vunpack.c.l.b16 %v1626
    %v7143 = vunpack.c.h.b16 %v1626
    %v7144 = vunpack.c.l.b16 %v1627
    %v7145 = vunpack.c.h.b16 %v1627
    %v7146 = vunpack.c.l.b16 %v1628
    %v7147 = vunpack.c.h.b16 %v1628
    %v7148 = vunpack.c.l.b16 %v1629
    %v7149 = vunpack.c.h.b16 %v1629
    %v7150 = vunpack.c.l.b16 %v1630
    %v7151 = vunpack.c.h.b16 %v1630
    %v7152 = vunpack.c.l.b16 %v1631
    %v7153 = vunpack.c.h.b16 %v1631
    %v7154 = vunpack.c.l.b16 %v1632
    %v7155 = vunpack.c.h.b16 %v1632
    %v7156 = vunpack.c.l.b16 %v1633
    %v7157 = vunpack.c.h.b16 %v1633
    %v7158 = vunpack.c.l.b16 %v1634
    %v7159 = vunpack.c.h.b16 %v1634
    %v7160 = vunpack.c.l.b16 %v1635
    %v7161 = vunpack.c.h.b16 %v1635
    %v7162 = vunpack.c.l.b16 %v1636
    %v7163 = vunpack.c.h.b16 %v1636
    %v7164 = vunpack.c.l.b16 %v1637
    %v7165 = vunpack.c.h.b16 %v1637
    %v7166 = vunpack.c.l.b16 %v1638
    %v7167 = vunpack.c.h.b16 %v1638
    %v7168 = vunpack.c.l.b16 %v1639
    %v7169 = vunpack.c.h.b16 %v1639
    %v7170 = vunpack.c.l.b16 %v1640
    %v7171 = vunpack.c.h.b16 %v1640
    %v7172 = vunpack.c.l.b16 %v1641
    %v7173 = vunpack.c.h.b16 %v1641
    %v7174 = vunpack.c.l.b16 %v1642
    %v7175 = vunpack.c.h.b16 %v1642
    %v7176 = vunpack.c.l.b16 %v1643
    %v7177 = vunpack.c.h.b16 %v1643
    %v7178 = vunpack.c.l.b16 %v1644
    %v7179 = vunpack.c.h.b16 %v1644
    %v7180 = vunpack.c.l.b16 %v1645
    %v7181 = vunpack.c.h.b16 %v1645
    %v7182 = vunpack.c.l.b16 %v1646
    %v7183 = vunpack.c.h.b16 %v1646
    %v7184 = vunpack.c.l.b16 %v1647
    %v7185 = vunpack.c.h.b16 %v1647
    %v7186 = vunpack.c.l.b16 %v1648
    %v7187 = vunpack.c.h.b16 %v1648
    %v7188 = vunpack.c.l.b16 %v1649
    %v7189 = vunpack.c.h.b16 %v1649
    %v7190 = vunpack.c.l.b16 %v1650
    %v7191 = vunpack.c.h.b16 %v1650
    %v7192 = vunpack.c.l.b16 %v1651
    %v7193 = vunpack.c.h.b16 %v1651
    %v7194 = vunpack.c.l.b16 %v1652
    %v7195 = vunpack.c.h.b16 %v1652
    %v7196 = vunpack.c.l.b16 %v1653
    %v7197 = vunpack.c.h.b16 %v1653
    %v7198 = vunpack.c.l.b16 %v1654
    %v7199 = vunpack.c.h.b16 %v1654
    %v7200 = vunpack.c.l.b16 %v1655
    %v7201 = vunpack.c.h.b16 %v1655
    %v7202 = vunpack.c.l.b16 %v1656
    %v7203 = vunpack.c.h.b16 %v1656
    %v7204 = vunpack.c.l.b16 %v1657
    %v7205 = vunpack.c.h.b16 %v1657
    %v7206 = vunpack.c.l.b16 %v1658
    %v7207 = vunpack.c.h.b16 %v1658
    %v7208 = vunpack.c.l.b16 %v1659
    %v7209 = vunpack.c.h.b16 %v1659
    %v7210 = vunpack.c.l.b16 %v1660
    %v7211 = vunpack.c.h.b16 %v1660
    %v7212 = vunpack.c.l.b16 %v1661
    %v7213 = vunpack.c.h.b16 %v1661
    %v7214 = vunpack.c.l.b16 %v1662
    %v7215 = vunpack.c.h.b16 %v1662
    %v7216 = vunpack.c.l.b16 %v1663
    %v7217 = vunpack.c.h.b16 %v1663
    %v7218 = vunpack.c.l.b16 %v1664
    %v7219 = vunpack.c.h.b16 %v1664
    %v7220 = vunpack.c.l.b16 %v1665
    %v7221 = vunpack.c.h.b16 %v1665
    %v7222 = vunpack.c.l.b16 %v1666
    %v7223 = vunpack.c.h.b16 %v1666
    %v7224 = vunpack.c.l.b16 %v1667
    %v7225 = vunpack.c.h.b16 %v1667
    %v7226 = vunpack.c.l.b16 %v1668
    %v7227 = vunpack.c.h.b16 %v1668
    %v7228 = vunpack.c.l.b16 %v1669
    %v7229 = vunpack.c.h.b16 %v1669
    %v7230 = vunpack.c.l.b16 %v1670
    %v7231 = vunpack.c.h.b16 %v1670
    %v7232 = vunpack.c.l.b16 %v1671
    %v7233 = vunpack.c.h.b16 %v1671
    %v7234 = vunpack.c.l.b16 %v1672
    %v7235 = vunpack.c.h.b16 %v1672
    %v7236 = vunpack.c.l.b16 %v1673
    %v7237 = vunpack.c.h.b16 %v1673
    %v7238 = vunpack.c.l.b16 %v1674
    %v7239 = vunpack.c.h.b16 %v1674
    %v7240 = vunpack.c.l.b16 %v1675
    %v7241 = vunpack.c.h.b16 %v1675
    %v7242 = vunpack.c.l.b16 %v1676
    %v7243 = vunpack.c.h.b16 %v1676
    %v7244 = vunpack.c.l.b16 %v1677
    %v7245 = vunpack.c.h.b16 %v1677
    %v7246 = vunpack.c.l.b16 %v1678
    %v7247 = vunpack.c.h.b16 %v1678
    %v7248 = vunpack.c.l.b16 %v1679
    %v7249 = vunpack.c.h.b16 %v1679
    %v7250 = vunpack.c.l.b16 %v1680
    %v7251 = vunpack.c.h.b16 %v1680
    %v7252 = vunpack.c.l.b16 %v1681
    %v7253 = vunpack.c.h.b16 %v1681
    %v7254 = vunpack.c.l.b16 %v1682
    %v7255 = vunpack.c.h.b16 %v1682
    %v7256 = vunpack.c.l.b16 %v1683
    %v7257 = vunpack.c.h.b16 %v1683
    %v7258 = vunpack.c.l.b16 %v1684
    %v7259 = vunpack.c.h.b16 %v1684
    %v7260 = vunpack.c.l.b16 %v1685
    %v7261 = vunpack.c.h.b16 %v1685
    %v7262 = vunpack.c.l.b16 %v1686
    %v7263 = vunpack.c.h.b16 %v1686
    %v7264 = vunpack.c.l.b16 %v1687
    %v7265 = vunpack.c.h.b16 %v1687
    %v7266 = vunpack.c.l.b16 %v1688
    %v7267 = vunpack.c.h.b16 %v1688
    %v7268 = vunpack.c.l.b16 %v1689
    %v7269 = vunpack.c.h.b16 %v1689
    %v7270 = vunpack.c.l.b16 %v1690
    %v7271 = vunpack.c.h.b16 %v1690
    %v7272 = vunpack.c.l.b16 %v1691
    %v7273 = vunpack.c.h.b16 %v1691
    %v7274 = vunpack.c.l.b16 %v1692
    %v7275 = vunpack.c.h.b16 %v1692
    %v7276 = vunpack.c.l.b16 %v1693
    %v7277 = vunpack.c.h.b16 %v1693
    %v7278 = vunpack.c.l.b16 %v1694
    %v7279 = vunpack.c.h.b16 %v1694
    %v7280 = vunpack.c.l.b16 %v1695
    %v7281 = vunpack.c.h.b16 %v1695
    %v7282 = vunpack.c.l.b16 %v1696
    %v7283 = vunpack.c.h.b16 %v1696
    %v7284 = vunpack.c.l.b16 %v1697
    %v7285 = vunpack.c.h.b16 %v1697
    %v7286 = vunpack.c.l.b16 %v1698
    %v7287 = vunpack.c.h.b16 %v1698
    %v7288 = vunpack.c.l.b16 %v1699
    %v7289 = vunpack.c.h.b16 %v1699
    %v7290 = vunpack.c.l.b16 %v1700
    %v7291 = vunpack.c.h.b16 %v1700
    %v7292 = vunpack.c.l.b16 %v1701
    %v7293 = vunpack.c.h.b16 %v1701
    %v7294 = vunpack.c.l.b16 %v1702
    %v7295 = vunpack.c.h.b16 %v1702
    %v7296 = vunpack.c.l.b16 %v1703
    %v7297 = vunpack.c.h.b16 %v1703
    %v7298 = vunpack.c.l.b16 %v1704
    %v7299 = vunpack.c.h.b16 %v1704
    %v7300 = vunpack.c.l.b16 %v1705
    %v7301 = vunpack.c.h.b16 %v1705
    %v7302 = vunpack.c.l.b16 %v1706
    %v7303 = vunpack.c.h.b16 %v1706
    %v7304 = vunpack.c.l.b16 %v1707
    %v7305 = vunpack.c.h.b16 %v1707
    %v7306 = vunpack.c.l.b16 %v1708
    %v7307 = vunpack.c.h.b16 %v1708
    %v7308 = vunpack.c.l.b16 %v1709
    %v7309 = vunpack.c.h.b16 %v1709
    %v7310 = vunpack.c.l.b16 %v1710
    %v7311 = vunpack.c.h.b16 %v1710
    %v7312 = vunpack.c.l.b16 %v1711
    %v7313 = vunpack.c.h.b16 %v1711
    %v7314 = vunpack.c.l.b16 %v1712
    %v7315 = vunpack.c.h.b16 %v1712
    %v7316 = vunpack.c.l.b16 %v1713
    %v7317 = vunpack.c.h.b16 %v1713
    %v7318 = vunpack.c.l.b16 %v1714
    %v7319 = vunpack.c.h.b16 %v1714
    %v7320 = vunpack.c.l.b16 %v1715
    %v7321 = vunpack.c.h.b16 %v1715
    %v7322 = vunpack.c.l.b16 %v1716
    %v7323 = vunpack.c.h.b16 %v1716
    %v7324 = vunpack.c.l.b16 %v1717
    %v7325 = vunpack.c.h.b16 %v1717
    %v7326 = vunpack.c.l.b16 %v1718
    %v7327 = vunpack.c.h.b16 %v1718
    %v7328 = vunpack.c.l.b16 %v1719
    %v7329 = vunpack.c.h.b16 %v1719
    %v7330 = vunpack.c.l.b16 %v1720
    %v7331 = vunpack.c.h.b16 %v1720
    %v7332 = vunpack.c.l.b16 %v1721
    %v7333 = vunpack.c.h.b16 %v1721
    %v7334 = vunpack.c.l.b16 %v1722
    %v7335 = vunpack.c.h.b16 %v1722
    %v7336 = vunpack.c.l.b16 %v1723
    %v7337 = vunpack.c.h.b16 %v1723
    %v7338 = vunpack.c.l.b16 %v1724
    %v7339 = vunpack.c.h.b16 %v1724
    %v7340 = vunpack.c.l.b16 %v1725
    %v7341 = vunpack.c.h.b16 %v1725
    %v7342 = vunpack.c.l.b16 %v1726
    %v7343 = vunpack.c.h.b16 %v1726
    %v7344 = vunpack.c.l.b16 %v1727
    %v7345 = vunpack.c.h.b16 %v1727
    %v7346 = vunpack.c.l.b16 %v1728
    %v7347 = vunpack.c.h.b16 %v1728
    %v7348 = vunpack.c.l.b16 %v1729
    %v7349 = vunpack.c.h.b16 %v1729
    %v7350 = vunpack.c.l.b16 %v1730
    %v7351 = vunpack.c.h.b16 %v1730
    %v7352 = vunpack.c.l.b16 %v1731
    %v7353 = vunpack.c.h.b16 %v1731
    %v7354 = vunpack.c.l.b16 %v1732
    %v7355 = vunpack.c.h.b16 %v1732
    %v7356 = vunpack.c.l.b16 %v1733
    %v7357 = vunpack.c.h.b16 %v1733
    %v7358 = vunpack.c.l.b16 %v1734
    %v7359 = vunpack.c.h.b16 %v1734
    %v7360 = vunpack.c.l.b16 %v1735
    %v7361 = vunpack.c.h.b16 %v1735
    %v7362 = vunpack.c.l.b16 %v1736
    %v7363 = vunpack.c.h.b16 %v1736
    %v7364 = vunpack.c.l.b16 %v1737
    %v7365 = vunpack.c.h.b16 %v1737
    %v7366 = vunpack.c.l.b16 %v1738
    %v7367 = vunpack.c.h.b16 %v1738
    %v7368 = vunpack.c.l.b16 %v1739
    %v7369 = vunpack.c.h.b16 %v1739
    %v7370 = vunpack.c.l.b16 %v1740
    %v7371 = vunpack.c.h.b16 %v1740
    %v7372 = vunpack.c.l.b16 %v1741
    %v7373 = vunpack.c.h.b16 %v1741
    %v7374 = vunpack.c.l.b16 %v1742
    %v7375 = vunpack.c.h.b16 %v1742
    %v7376 = vunpack.c.l.b16 %v1743
    %v7377 = vunpack.c.h.b16 %v1743
    %v7378 = vunpack.c.l.b16 %v1744
    %v7379 = vunpack.c.h.b16 %v1744
    %v7380 = vunpack.c.l.b16 %v1745
    %v7381 = vunpack.c.h.b16 %v1745
    %v7382 = vunpack.c.l.b16 %v1746
    %v7383 = vunpack.c.h.b16 %v1746
    %v7384 = vunpack.c.l.b16 %v1747
    %v7385 = vunpack.c.h.b16 %v1747
    %v7386 = vunpack.c.l.b16 %v1748
    %v7387 = vunpack.c.h.b16 %v1748
    %v7388 = vunpack.c.l.b16 %v1749
    %v7389 = vunpack.c.h.b16 %v1749
    %v7390 = vunpack.c.l.b16 %v1750
    %v7391 = vunpack.c.h.b16 %v1750
    %v7392 = vunpack.c.l.b16 %v1751
    %v7393 = vunpack.c.h.b16 %v1751
    %v7394 = vunpack.c.l.b16 %v1752
    %v7395 = vunpack.c.h.b16 %v1752
    %v7396 = vunpack.c.l.b16 %v1753
    %v7397 = vunpack.c.h.b16 %v1753
    %v7398 = vunpack.c.l.b16 %v1754
    %v7399 = vunpack.c.h.b16 %v1754
    %v7400 = vunpack.c.l.b16 %v1755
    %v7401 = vunpack.c.h.b16 %v1755
    %v7402 = vunpack.c.l.b16 %v1756
    %v7403 = vunpack.c.h.b16 %v1756
    %v7404 = vunpack.c.l.b16 %v1757
    %v7405 = vunpack.c.h.b16 %v1757
    %v7406 = vunpack.c.l.b16 %v1758
    %v7407 = vunpack.c.h.b16 %v1758
    %v7408 = vunpack.c.l.b16 %v1759
    %v7409 = vunpack.c.h.b16 %v1759
    %v7410 = vunpack.c.l.b16 %v1760
    %v7411 = vunpack.c.h.b16 %v1760
    %v7412 = vunpack.c.l.b16 %v1761
    %v7413 = vunpack.c.h.b16 %v1761
    %v7414 = vunpack.c.l.b16 %v1762
    %v7415 = vunpack.c.h.b16 %v1762
    %v7416 = vunpack.c.l.b16 %v1763
    %v7417 = vunpack.c.h.b16 %v1763
    %v7418 = vunpack.c.l.b16 %v1764
    %v7419 = vunpack.c.h.b16 %v1764
    %v7420 = vunpack.c.l.b16 %v1765
    %v7421 = vunpack.c.h.b16 %v1765
    %v7422 = vunpack.c.l.b16 %v1766
    %v7423 = vunpack.c.h.b16 %v1766
    %v7424 = vunpack.c.l.b16 %v1767
    %v7425 = vunpack.c.h.b16 %v1767
    %v7426 = vunpack.c.l.b16 %v1768
    %v7427 = vunpack.c.h.b16 %v1768
    %v7428 = vunpack.c.l.b16 %v1769
    %v7429 = vunpack.c.h.b16 %v1769
    %v7430 = vunpack.c.l.b16 %v1770
    %v7431 = vunpack.c.h.b16 %v1770
    %v7432 = vunpack.c.l.b16 %v1771
    %v7433 = vunpack.c.h.b16 %v1771
    %v7434 = vunpack.c.l.b16 %v1772
    %v7435 = vunpack.c.h.b16 %v1772
    %v7436 = vunpack.c.l.b16 %v1773
    %v7437 = vunpack.c.h.b16 %v1773
    %v7438 = vunpack.c.l.b16 %v1774
    %v7439 = vunpack.c.h.b16 %v1774
    %v7440 = vunpack.c.l.b16 %v1775
    %v7441 = vunpack.c.h.b16 %v1775
    %v7442 = vunpack.c.l.b16 %v1776
    %v7443 = vunpack.c.h.b16 %v1776
    %v7444 = vunpack.c.l.b16 %v1777
    %v7445 = vunpack.c.h.b16 %v1777
    %v7446 = vunpack.c.l.b16 %v1778
    %v7447 = vunpack.c.h.b16 %v1778
    %v7448 = vunpack.c.l.b16 %v1779
    %v7449 = vunpack.c.h.b16 %v1779
    %v7450 = vunpack.c.l.b16 %v1780
    %v7451 = vunpack.c.h.b16 %v1780
    %v7452 = vunpack.c.l.b16 %v1781
    %v7453 = vunpack.c.h.b16 %v1781
    %v7454 = vunpack.c.l.b16 %v1782
    %v7455 = vunpack.c.h.b16 %v1782
    %v7456 = vunpack.c.l.b16 %v1783
    %v7457 = vunpack.c.h.b16 %v1783
    %v7458 = vunpack.c.l.b16 %v1784
    %v7459 = vunpack.c.h.b16 %v1784
    %v7460 = vunpack.c.l.b16 %v1785
    %v7461 = vunpack.c.h.b16 %v1785
    %v7462 = vunpack.c.l.b16 %v1786
    %v7463 = vunpack.c.h.b16 %v1786
    %v7464 = vunpack.c.l.b16 %v1787
    %v7465 = vunpack.c.h.b16 %v1787
    %v7466 = vunpack.c.l.b16 %v1788
    %v7467 = vunpack.c.h.b16 %v1788
    %v7468 = vunpack.c.l.b16 %v1789
    %v7469 = vunpack.c.h.b16 %v1789
    %v7470 = vunpack.c.l.b16 %v1790
    %v7471 = vunpack.c.h.b16 %v1790
    %v7472 = vunpack.c.l.b16 %v1791
    %v7473 = vunpack.c.h.b16 %v1791
    %v7474 = vunpack.c.l.b16 %v1792
    %v7475 = vunpack.c.h.b16 %v1792
    %v7476 = vunpack.c.l.b16 %v1793
    %v7477 = vunpack.c.h.b16 %v1793
    %v7478 = vunpack.c.l.b16 %v1794
    %v7479 = vunpack.c.h.b16 %v1794
    %v7480 = vunpack.c.l.b16 %v1795
    %v7481 = vunpack.c.h.b16 %v1795
    %v7482 = vunpack.c.l.b16 %v1796
    %v7483 = vunpack.c.h.b16 %v1796
    %v7484 = vunpack.c.l.b16 %v1797
    %v7485 = vunpack.c.h.b16 %v1797
    %v7486 = vunpack.c.l.b16 %v1798
    %v7487 = vunpack.c.h.b16 %v1798
    %v7488 = vunpack.c.l.b16 %v1799
    %v7489 = vunpack.c.h.b16 %v1799
    %v7490 = vunpack.c.l.b16 %v1800
    %v7491 = vunpack.c.h.b16 %v1800
    %v7492 = vunpack.c.l.b16 %v1801
    %v7493 = vunpack.c.h.b16 %v1801
    %v7494 = vunpack.c.l.b16 %v1802
    %v7495 = vunpack.c.h.b16 %v1802
    %v7496 = vunpack.c.l.b16 %v1803
    %v7497 = vunpack.c.h.b16 %v1803
    %v7498 = vunpack.c.l.b16 %v1804
    %v7499 = vunpack.c.h.b16 %v1804
    %v7500 = vunpack.c.l.b16 %v1805
    %v7501 = vunpack.c.h.b16 %v1805
    %v7502 = vunpack.c.l.b16 %v1806
    %v7503 = vunpack.c.h.b16 %v1806
    %v7504 = vunpack.c.l.b16 %v1807
    %v7505 = vunpack.c.h.b16 %v1807
    %v7506 = vunpack.c.l.b16 %v1808
    %v7507 = vunpack.c.h.b16 %v1808
    %v7508 = vunpack.c.l.b16 %v1809
    %v7509 = vunpack.c.h.b16 %v1809
    %v7510 = vunpack.c.l.b16 %v1810
    %v7511 = vunpack.c.h.b16 %v1810
    %v7512 = vunpack.c.l.b16 %v1811
    %v7513 = vunpack.c.h.b16 %v1811
    %v7514 = vunpack.c.l.b16 %v1812
    %v7515 = vunpack.c.h.b16 %v1812
    %v7516 = vunpack.c.l.b16 %v1813
    %v7517 = vunpack.c.h.b16 %v1813
    %v7518 = vunpack.c.l.b16 %v1814
    %v7519 = vunpack.c.h.b16 %v1814
    %v7520 = vunpack.c.l.b16 %v1815
    %v7521 = vunpack.c.h.b16 %v1815
    %v7522 = vunpack.c.l.b16 %v1816
    %v7523 = vunpack.c.h.b16 %v1816
    %v7524 = vunpack.c.l.b16 %v1817
    %v7525 = vunpack.c.h.b16 %v1817
    %v7526 = vunpack.c.l.b16 %v1818
    %v7527 = vunpack.c.h.b16 %v1818
    %v7528 = vunpack.c.l.b16 %v1819
    %v7529 = vunpack.c.h.b16 %v1819
    %v7530 = vunpack.c.l.b16 %v1820
    %v7531 = vunpack.c.h.b16 %v1820
    %v7532 = vunpack.c.l.b16 %v1821
    %v7533 = vunpack.c.h.b16 %v1821
    %v7534 = vunpack.c.l.b16 %v1822
    %v7535 = vunpack.c.h.b16 %v1822
    %v7536 = vunpack.c.l.b16 %v1823
    %v7537 = vunpack.c.h.b16 %v1823
    %v7538 = vunpack.c.l.b16 %v1824
    %v7539 = vunpack.c.h.b16 %v1824
    %v7540 = vunpack.c.l.b16 %v1825
    %v7541 = vunpack.c.h.b16 %v1825
    %v7542 = vunpack.c.l.b16 %v1826
    %v7543 = vunpack.c.h.b16 %v1826
    %v7544 = vunpack.c.l.b16 %v1827
    %v7545 = vunpack.c.h.b16 %v1827
    %v7546 = vunpack.c.l.b16 %v1828
    %v7547 = vunpack.c.h.b16 %v1828
    %v7548 = vunpack.c.l.b16 %v1829
    %v7549 = vunpack.c.h.b16 %v1829
    %v7550 = vunpack.c.l.b16 %v1830
    %v7551 = vunpack.c.h.b16 %v1830
    %v7552 = vunpack.c.l.b16 %v1831
    %v7553 = vunpack.c.h.b16 %v1831
    %v7554 = vunpack.c.l.b16 %v1832
    %v7555 = vunpack.c.h.b16 %v1832
    %v7556 = vunpack.c.l.b16 %v1833
    %v7557 = vunpack.c.h.b16 %v1833
    %v7558 = vunpack.c.l.b16 %v1834
    %v7559 = vunpack.c.h.b16 %v1834
    %v7560 = vunpack.c.l.b16 %v1835
    %v7561 = vunpack.c.h.b16 %v1835
    %v7562 = vunpack.c.l.b16 %v1836
    %v7563 = vunpack.c.h.b16 %v1836
    %v7564 = vunpack.c.l.b16 %v1837
    %v7565 = vunpack.c.h.b16 %v1837
    %v7566 = vunpack.c.l.b16 %v1838
    %v7567 = vunpack.c.h.b16 %v1838
    %v7568 = vunpack.c.l.b16 %v1839
    %v7569 = vunpack.c.h.b16 %v1839
    %v7570 = vunpack.c.l.b16 %v1840
    %v7571 = vunpack.c.h.b16 %v1840
    %v7572 = vunpack.c.l.b16 %v1841
    %v7573 = vunpack.c.h.b16 %v1841
    %v7574 = vunpack.c.l.b16 %v1842
    %v7575 = vunpack.c.h.b16 %v1842
    %v7576 = vunpack.c.l.b16 %v1843
    %v7577 = vunpack.c.h.b16 %v1843
    %v7578 = vunpack.c.l.b16 %v1844
    %v7579 = vunpack.c.h.b16 %v1844
    %v7580 = vunpack.c.l.b16 %v1845
    %v7581 = vunpack.c.h.b16 %v1845
    %v7582 = vunpack.c.l.b16 %v1846
    %v7583 = vunpack.c.h.b16 %v1846
    %v7584 = vunpack.c.l.b16 %v1847
    %v7585 = vunpack.c.h.b16 %v1847
    %v7586 = vunpack.c.l.b16 %v1848
    %v7587 = vunpack.c.h.b16 %v1848
    %v7588 = vunpack.c.l.b16 %v1849
    %v7589 = vunpack.c.h.b16 %v1849
    %v7590 = vunpack.c.l.b16 %v1850
    %v7591 = vunpack.c.h.b16 %v1850
    %v7592 = vunpack.c.l.b16 %v1851
    %v7593 = vunpack.c.h.b16 %v1851
    %v7594 = vunpack.c.l.b16 %v1852
    %v7595 = vunpack.c.h.b16 %v1852
    %v7596 = vunpack.c.l.b16 %v1853
    %v7597 = vunpack.c.h.b16 %v1853
    %v7598 = vunpack.c.l.b16 %v1854
    %v7599 = vunpack.c.h.b16 %v1854
    %v7600 = vunpack.c.l.b16 %v1855
    %v7601 = vunpack.c.h.b16 %v1855
    %v7602 = vunpack.c.l.b16 %v1856
    %v7603 = vunpack.c.h.b16 %v1856
    %v7604 = vunpack.c.l.b16 %v1857
    %v7605 = vunpack.c.h.b16 %v1857
    %v7606 = vunpack.c.l.b16 %v1858
    %v7607 = vunpack.c.h.b16 %v1858
    %v7608 = vunpack.c.l.b16 %v1859
    %v7609 = vunpack.c.h.b16 %v1859
    %v7610 = vunpack.c.l.b16 %v1860
    %v7611 = vunpack.c.h.b16 %v1860
    %v7612 = vunpack.c.l.b16 %v1861
    %v7613 = vunpack.c.h.b16 %v1861
    %v7614 = vunpack.c.l.b16 %v1862
    %v7615 = vunpack.c.h.b16 %v1862
    %v7616 = vunpack.c.l.b16 %v1863
    %v7617 = vunpack.c.h.b16 %v1863
    %v7618 = vunpack.c.l.b16 %v1864
    %v7619 = vunpack.c.h.b16 %v1864
    %v7620 = vunpack.c.l.b16 %v1865
    %v7621 = vunpack.c.h.b16 %v1865
    %v7622 = vunpack.c.l.b16 %v1866
    %v7623 = vunpack.c.h.b16 %v1866
    %v7624 = vunpack.c.l.b16 %v1867
    %v7625 = vunpack.c.h.b16 %v1867
    %v7626 = vunpack.c.l.b16 %v1868
    %v7627 = vunpack.c.h.b16 %v1868
    %v7628 = vunpack.c.l.b16 %v1869
    %v7629 = vunpack.c.h.b16 %v1869
    %v7630 = vunpack.c.l.b16 %v1870
    %v7631 = vunpack.c.h.b16 %v1870
    %v7632 = vunpack.c.l.b16 %v1871
    %v7633 = vunpack.c.h.b16 %v1871
    %v7634 = vunpack.c.l.b16 %v1872
    %v7635 = vunpack.c.h.b16 %v1872
    %v7636 = vunpack.c.l.b16 %v1873
    %v7637 = vunpack.c.h.b16 %v1873
    %v7638 = vunpack.c.l.b16 %v1874
    %v7639 = vunpack.c.h.b16 %v1874
    %v7640 = vunpack.c.l.b16 %v1875
    %v7641 = vunpack.c.h.b16 %v1875
    %v7642 = vunpack.c.l.b16 %v1876
    %v7643 = vunpack.c.h.b16 %v1876
    %v7644 = vunpack.c.l.b16 %v1877
    %v7645 = vunpack.c.h.b16 %v1877
    %v7646 = vunpack.c.l.b16 %v1878
    %v7647 = vunpack.c.h.b16 %v1878
    %v7648 = vunpack.c.l.b16 %v1879
    %v7649 = vunpack.c.h.b16 %v1879
    %v7650 = vunpack.c.l.b16 %v1880
    %v7651 = vunpack.c.h.b16 %v1880
    %v7652 = vunpack.c.l.b16 %v1881
    %v7653 = vunpack.c.h.b16 %v1881
    %v7654 = vunpack.c.l.b16 %v1882
    %v7655 = vunpack.c.h.b16 %v1882
    %v7656 = vunpack.c.l.b16 %v1883
    %v7657 = vunpack.c.h.b16 %v1883
    %v7658 = vunpack.c.l.b16 %v1884
    %v7659 = vunpack.c.h.b16 %v1884
    %v7660 = vunpack.c.l.b16 %v1885
    %v7661 = vunpack.c.h.b16 %v1885
    %v7662 = vunpack.c.l.b16 %v1886
    %v7663 = vunpack.c.h.b16 %v1886
    %v7664 = vunpack.c.l.b16 %v1887
    %v7665 = vunpack.c.h.b16 %v1887
    %v7666 = vunpack.c.l.b16 %v1888
    %v7667 = vunpack.c.h.b16 %v1888
    %v7668 = vunpack.c.l.b16 %v1889
    %v7669 = vunpack.c.h.b16 %v1889
    %v7670 = vunpack.c.l.b16 %v1890
    %v7671 = vunpack.c.h.b16 %v1890
    %v7672 = vunpack.c.l.b16 %v1891
    %v7673 = vunpack.c.h.b16 %v1891
    %v7674 = vunpack.c.l.b16 %v1892
    %v7675 = vunpack.c.h.b16 %v1892
    %v7676 = vunpack.c.l.b16 %v1893
    %v7677 = vunpack.c.h.b16 %v1893
    %v7678 = vunpack.c.l.b16 %v1894
    %v7679 = vunpack.c.h.b16 %v1894
    %v7680 = vunpack.c.l.b16 %v1895
    %v7681 = vunpack.c.h.b16 %v1895
    %v7682 = vunpack.c.l.b16 %v1896
    %v7683 = vunpack.c.h.b16 %v1896
    %v7684 = vunpack.c.l.b16 %v1897
    %v7685 = vunpack.c.h.b16 %v1897
    %v7686 = vunpack.c.l.b16 %v1898
    %v7687 = vunpack.c.h.b16 %v1898
    %v7688 = vunpack.c.l.b16 %v1899
    %v7689 = vunpack.c.h.b16 %v1899
    %v7690 = vunpack.c.l.b16 %v1900
    %v7691 = vunpack.c.h.b16 %v1900
    %v7692 = vunpack.c.l.b16 %v1901
    %v7693 = vunpack.c.h.b16 %v1901
    %v7694 = vunpack.c.l.b16 %v1902
    %v7695 = vunpack.c.h.b16 %v1902
    %v7696 = vunpack.c.l.b16 %v1903
    %v7697 = vunpack.c.h.b16 %v1903
    %v7698 = vunpack.c.l.b16 %v1904
    %v7699 = vunpack.c.h.b16 %v1904
    %v7700 = vunpack.c.l.b16 %v1905
    %v7701 = vunpack.c.h.b16 %v1905
    %v7702 = vunpack.c.l.b16 %v1906
    %v7703 = vunpack.c.h.b16 %v1906
    %v7704 = vunpack.c.l.b16 %v1907
    %v7705 = vunpack.c.h.b16 %v1907
    %v7706 = vunpack.c.l.b16 %v1908
    %v7707 = vunpack.c.h.b16 %v1908
    %v7708 = vunpack.c.l.b16 %v1909
    %v7709 = vunpack.c.h.b16 %v1909
    %v7710 = vunpack.c.l.b16 %v1910
    %v7711 = vunpack.c.h.b16 %v1910
    %v7712 = vunpack.c.l.b16 %v1911
    %v7713 = vunpack.c.h.b16 %v1911
    %v7714 = vunpack.c.l.b16 %v1912
    %v7715 = vunpack.c.h.b16 %v1912
    %v7716 = vunpack.c.l.b16 %v1913
    %v7717 = vunpack.c.h.b16 %v1913
    %v7718 = vunpack.c.l.b16 %v1914
    %v7719 = vunpack.c.h.b16 %v1914
    %v7720 = vunpack.c.l.b16 %v1915
    %v7721 = vunpack.c.h.b16 %v1915
    %v7722 = vunpack.c.l.b16 %v1916
    %v7723 = vunpack.c.h.b16 %v1916
    %v7724 = vunpack.c.l.b16 %v1917
    %v7725 = vunpack.c.h.b16 %v1917
    %v7726 = vunpack.c.l.b16 %v1918
    %v7727 = vunpack.c.h.b16 %v1918
    %v7728 = vunpack.c.l.b16 %v1919
    %v7729 = vunpack.c.h.b16 %v1919
    %v7730 = vunpack.c.l.b16 %v1920
    %v7731 = vunpack.c.h.b16 %v1920
    %v7732 = vunpack.c.l.b16 %v1921
    %v7733 = vunpack.c.h.b16 %v1921
    %v7734 = vunpack.c.l.b16 %v1922
    %v7735 = vunpack.c.h.b16 %v1922
    %v7736 = vunpack.c.l.b16 %v1923
    %v7737 = vunpack.c.h.b16 %v1923
    %v7738 = vunpack.c.l.b16 %v1924
    %v7739 = vunpack.c.h.b16 %v1924
    %v7740 = vunpack.c.l.b16 %v1925
    %v7741 = vunpack.c.h.b16 %v1925
    %v7742 = vunpack.c.l.b16 %v1926
    %v7743 = vunpack.c.h.b16 %v1926
    %v7744 = vunpack.c.l.b16 %v1927
    %v7745 = vunpack.c.h.b16 %v1927
    %v7746 = vunpack.c.l.b16 %v1928
    %v7747 = vunpack.c.h.b16 %v1928
    %v7748 = vunpack.c.l.b16 %v1929
    %v7749 = vunpack.c.h.b16 %v1929
    %v7750 = vunpack.c.l.b16 %v1930
    %v7751 = vunpack.c.h.b16 %v1930
    %v7752 = vunpack.c.l.b16 %v1931
    %v7753 = vunpack.c.h.b16 %v1931
    %v7754 = vunpack.c.l.b16 %v1932
    %v7755 = vunpack.c.h.b16 %v1932
    %v7756 = vunpack.c.l.b16 %v1933
    %v7757 = vunpack.c.h.b16 %v1933
    %v7758 = vunpack.c.l.b16 %v1934
    %v7759 = vunpack.c.h.b16 %v1934
    %v7760 = vunpack.c.l.b16 %v1935
    %v7761 = vunpack.c.h.b16 %v1935
    %v7762 = vunpack.c.l.b16 %v1936
    %v7763 = vunpack.c.h.b16 %v1936
    %v7764 = vunpack.c.l.b16 %v1937
    %v7765 = vunpack.c.h.b16 %v1937
    %v7766 = vunpack.c.l.b16 %v1938
    %v7767 = vunpack.c.h.b16 %v1938
    %v7768 = vunpack.c.l.b16 %v1939
    %v7769 = vunpack.c.h.b16 %v1939
    %v7770 = vunpack.c.l.b16 %v1940
    %v7771 = vunpack.c.h.b16 %v1940
    %v7772 = vunpack.c.l.b16 %v1941
    %v7773 = vunpack.c.h.b16 %v1941
    %v7774 = vunpack.c.l.b16 %v1942
    %v7775 = vunpack.c.h.b16 %v1942
    %v7776 = vunpack.c.l.b16 %v1943
    %v7777 = vunpack.c.h.b16 %v1943
    %v7778 = vunpack.c.l.b16 %v1944
    %v7779 = vunpack.c.h.b16 %v1944
    %v7780 = vunpack.c.l.b16 %v1945
    %v7781 = vunpack.c.h.b16 %v1945
    %v7782 = vunpack.c.l.b16 %v1946
    %v7783 = vunpack.c.h.b16 %v1946
    %v7784 = vunpack.c.l.b16 %v1947
    %v7785 = vunpack.c.h.b16 %v1947
    %v7786 = vunpack.c.l.b16 %v1948
    %v7787 = vunpack.c.h.b16 %v1948
    %v7788 = vunpack.c.l.b16 %v1949
    %v7789 = vunpack.c.h.b16 %v1949
    %v7790 = vunpack.c.l.b16 %v1950
    %v7791 = vunpack.c.h.b16 %v1950
    %v7792 = vunpack.c.l.b16 %v1951
    %v7793 = vunpack.c.h.b16 %v1951
    %v7794 = vunpack.c.l.b16 %v1952
    %v7795 = vunpack.c.h.b16 %v1952
    %v7796 = vunpack.c.l.b16 %v1953
    %v7797 = vunpack.c.h.b16 %v1953
    %v7798 = vunpack.c.l.b16 %v1954
    %v7799 = vunpack.c.h.b16 %v1954
    %v7800 = vunpack.c.l.b16 %v1955
    %v7801 = vunpack.c.h.b16 %v1955
    %v7802 = vunpack.c.l.b16 %v1956
    %v7803 = vunpack.c.h.b16 %v1956
    %v7804 = vunpack.c.l.b16 %v1957
    %v7805 = vunpack.c.h.b16 %v1957
    %v7806 = vunpack.c.l.b16 %v1958
    %v7807 = vunpack.c.h.b16 %v1958
    %v7808 = vunpack.c.l.b16 %v1959
    %v7809 = vunpack.c.h.b16 %v1959
    %v7810 = vunpack.c.l.b16 %v1960
    %v7811 = vunpack.c.h.b16 %v1960
    %v7812 = vunpack.c.l.b16 %v1961
    %v7813 = vunpack.c.h.b16 %v1961
    %v7814 = vunpack.c.l.b16 %v1962
    %v7815 = vunpack.c.h.b16 %v1962
    %v7816 = vunpack.c.l.b16 %v1963
    %v7817 = vunpack.c.h.b16 %v1963
    %v7818 = vunpack.c.l.b16 %v1964
    %v7819 = vunpack.c.h.b16 %v1964
    %v7820 = vunpack.c.l.b16 %v1965
    %v7821 = vunpack.c.h.b16 %v1965
    %v7822 = vunpack.c.l.b16 %v1966
    %v7823 = vunpack.c.h.b16 %v1966
    %v7824 = vunpack.c.l.b16 %v1967
    %v7825 = vunpack.c.h.b16 %v1967
    %v7826 = vunpack.c.l.b16 %v1968
    %v7827 = vunpack.c.h.b16 %v1968
    %v7828 = vunpack.c.l.b16 %v1969
    %v7829 = vunpack.c.h.b16 %v1969
    %v7830 = vunpack.c.l.b16 %v1970
    %v7831 = vunpack.c.h.b16 %v1970
    %v7832 = vunpack.c.l.b16 %v1971
    %v7833 = vunpack.c.h.b16 %v1971
    %v7834 = vpack.c.b16 %v4004, %v3994
    %v7835 = vpack.c.b16 %v4005, %v3995
    %v7836 = vpack.c.b16 %v4006, %v3996
    %v7837 = vpack.c.b16 %v4007, %v3997
    %v7838 = vpack.c.b16 %v4008, %v3998
    %v7839 = vpack.c.b16 %v4009, %v3999
    %v7840 = vpack.c.b16 %v4010, %v4000
    %v7841 = vpack.c.b16 %v4011, %v4001
    %v7842 = vpack.c.b16 %v4012, %v4002
    %v7843 = vpack.c.b16 %v4013, %v4003
    %v7844 = vpack.c.b16 %v4024, %v4014
    %v7845 = vpack.c.b16 %v4025, %v4015
    %v7846 = vpack.c.b16 %v4026, %v4016
    %v7847 = vpack.c.b16 %v4027, %v4017
    %v7848 = vpack.c.b16 %v4028, %v4018
    %v7849 = vpack.c.b16 %v4029, %v4019
    %v7850 = vpack.c.b16 %v4030, %v4020
    %v7851 = vpack.c.b16 %v4031, %v4021
    %v7852 = vpack.c.b16 %v4032, %v4022
    %v7853 = vpack.c.b16 %v4033, %v4023
    %v7854 = vpack.c.b16 %v4044, %v4034
    %v7855 = vpack.c.b16 %v4045, %v4035
    %v7856 = vpack.c.b16 %v4046, %v4036
    %v7857 = vpack.c.b16 %v4047, %v4037
    %v7858 = vpack.c.b16 %v4048, %v4038
    %v7859 = vpack.c.b16 %v4049, %v4039
    %v7860 = vpack.c.b16 %v4050, %v4040
    %v7861 = vpack.c.b16 %v4051, %v4041
    %v7862 = vpack.c.b16 %v4052, %v4042
    %v7863 = vpack.c.b16 %v4053, %v4043
    %v7864 = vpack.c.b16 %v4064, %v4054
    %v7865 = vpack.c.b16 %v4065, %v4055
    %v7866 = vpack.c.b16 %v4066, %v4056
    %v7867 = vpack.c.b16 %v4067, %v4057
    %v7868 = vpack.c.b16 %v4068, %v4058
    %v7869 = vpack.c.b16 %v4069, %v4059
    %v7870 = vpack.c.b16 %v4070, %v4060
    %v7871 = vpack.c.b16 %v4071, %v4061
    %v7872 = vpack.c.b16 %v4072, %v4062
    %v7873 = vpack.c.b16 %v4073, %v4063
    %v7874 = vpack.c.b16 %v4084, %v4074
    %v7875 = vpack.c.b16 %v4085, %v4075
    %v7876 = vpack.c.b16 %v4086, %v4076
    %v7877 = vpack.c.b16 %v4087, %v4077
    %v7878 = vpack.c.b16 %v4088, %v4078
    %v7879 = vpack.c.b16 %v4089, %v4079
    %v7880 = vpack.c.b16 %v4090, %v4080
    %v7881 = vpack.c.b16 %v4091, %v4081
    %v7882 = vpack.c.b16 %v4092, %v4082
    %v7883 = vpack.c.b16 %v4093, %v4083
    %v7884 = vpack.c.b16 %v4104, %v4094
    %v7885 = vpack.c.b16 %v4105, %v4095
    %v7886 = vpack.c.b16 %v4106, %v4096
    %v7887 = vpack.c.b16 %v4107, %v4097
    %v7888 = vpack.c.b16 %v4108, %v4098
    %v7889 = vpack.c.b16 %v4109, %v4099
    %v7890 = vpack.c.b16 %v4110, %v4100
    %v7891 = vpack.c.b16 %v4111, %v4101
    %v7892 = vpack.c.b16 %v4112, %v4102
    %v7893 = vpack.c.b16 %v4113, %v4103
    %v7894 = vpack.c.b16 %v4124, %v4114
    %v7895 = vpack.c.b16 %v4125, %v4115
    %v7896 = vpack.c.b16 %v4126, %v4116
    %v7897 = vpack.c.b16 %v4127, %v4117
    %v7898 = vpack.c.b16 %v4128, %v4118
    %v7899 = vpack.c.b16 %v4129, %v4119
    %v7900 = vpack.c.b16 %v4130, %v4120
    %v7901 = vpack.c.b16 %v4131, %v4121
    %v7902 = vpack.c.b16 %v4132, %v4122
    %v7903 = vpack.c.b16 %v4133, %v4123
    %v7904 = vpack.c.b16 %v4144, %v4134
    %v7905 = vpack.c.b16 %v4145, %v4135
    %v7906 = vpack.c.b16 %v4146, %v4136
    %v7907 = vpack.c.b16 %v4147, %v4137
    %v7908 = vpack.c.b16 %v4148, %v4138
    %v7909 = vpack.c.b16 %v4149, %v4139
    %v7910 = vpack.c.b16 %v4150, %v4140
    %v7911 = vpack.c.b16 %v4151, %v4141
    %v7912 = vpack.c.b16 %v4152, %v4142
    %v7913 = vpack.c.b16 %v4153, %v4143
    %v7914 = vpack.c.b16 %v4164, %v4154
    %v7915 = vpack.c.b16 %v4165, %v4155
    %v7916 = vpack.c.b16 %v4166, %v4156
    %v7917 = vpack.c.b16 %v4167, %v4157
    %v7918 = vpack.c.b16 %v4168, %v4158
    %v7919 = vpack.c.b16 %v4169, %v4159
    %v7920 = vpack.c.b16 %v4170, %v4160
    %v7921 = vpack.c.b16 %v4171, %v4161
    %v7922 = vpack.c.b16 %v4172, %v4162
    %v7923 = vpack.c.b16 %v4173, %v4163
    %v7924 = vpack.c.b16 %v4184, %v4174
    %v7925 = vpack.c.b16 %v4185, %v4175
    %v7926 = vpack.c.b16 %v4186, %v4176
    %v7927 = vpack.c.b16 %v4187, %v4177
    %v7928 = vpack.c.b16 %v4188, %v4178
    %v7929 = vpack.c.b16 %v4189, %v4179
    %v7930 = vpack.c.b16 %v4190, %v4180
    %v7931 = vpack.c.b16 %v4191, %v4181
    %v7932 = vpack.c.b16 %v4192, %v4182
    %v7933 = vpack.c.b16 %v4193, %v4183
    %v7934 = vpack.c.b16 %v4204, %v4194
    %v7935 = vpack.c.b16 %v4205, %v4195
    %v7936 = vpack.c.b16 %v4206, %v4196
    %v7937 = vpack.c.b16 %v4207, %v4197
    %v7938 = vpack.c.b16 %v4208, %v4198
    %v7939 = vpack.c.b16 %v4209, %v4199
    %v7940 = vpack.c.b16 %v4210, %v4200
    %v7941 = vpack.c.b16 %v4211, %v4201
    %v7942 = vpack.c.b16 %v4212, %v4202
    %v7943 = vpack.c.b16 %v4213, %v4203
    %v7944 = vpack.c.b16 %v4224, %v4214
    %v7945 = vpack.c.b16 %v4225, %v4215
    %v7946 = vpack.c.b16 %v4226, %v4216
    %v7947 = vpack.c.b16 %v4227, %v4217
    %v7948 = vpack.c.b16 %v4228, %v4218
    %v7949 = vpack.c.b16 %v4229, %v4219
    %v7950 = vpack.c.b16 %v4230, %v4220
    %v7951 = vpack.c.b16 %v4231, %v4221
    %v7952 = vpack.c.b16 %v4232, %v4222
    %v7953 = vpack.c.b16 %v4233, %v4223
    %v7954 = vpack.c.b16 %v4244, %v4234
    %v7955 = vpack.c.b16 %v4245, %v4235
    %v7956 = vpack.c.b16 %v4246, %v4236
    %v7957 = vpack.c.b16 %v4247, %v4237
    %v7958 = vpack.c.b16 %v4248, %v4238
    %v7959 = vpack.c.b16 %v4249, %v4239
    %v7960 = vpack.c.b16 %v4250, %v4240
    %v7961 = vpack.c.b16 %v4251, %v4241
    %v7962 = vpack.c.b16 %v4252, %v4242
    %v7963 = vpack.c.b16 %v4253, %v4243
    %v7964 = vpack.c.b16 %v4264, %v4254
    %v7965 = vpack.c.b16 %v4265, %v4255
    %v7966 = vpack.c.b16 %v4266, %v4256
    %v7967 = vpack.c.b16 %v4267, %v4257
    %v7968 = vpack.c.b16 %v4268, %v4258
    %v7969 = vpack.c.b16 %v4269, %v4259
    %v7970 = vpack.c.b16 %v4270, %v4260
    %v7971 = vpack.c.b16 %v4271, %v4261
    %v7972 = vpack.c.b16 %v4272, %v4262
    %v7973 = vpack.c.b16 %v4273, %v4263
    %v7974 = vpack.c.b16 %v4284, %v4274
    %v7975 = vpack.c.b16 %v4285, %v4275
    %v7976 = vpack.c.b16 %v4286, %v4276
    %v7977 = vpack.c.b16 %v4287, %v4277
    %v7978 = vpack.c.b16 %v4288, %v4278
    %v7979 = vpack.c.b16 %v4289, %v4279
    %v7980 = vpack.c.b16 %v4290, %v4280
    %v7981 = vpack.c.b16 %v4291, %v4281
    %v7982 = vpack.c.b16 %v4292, %v4282
    %v7983 = vpack.c.b16 %v4293, %v4283
    %v7984 = vpack.c.b16 %v4304, %v4294
    %v7985 = vpack.c.b16 %v4305, %v4295
    %v7986 = vpack.c.b16 %v4306, %v4296
    %v7987 = vpack.c.b16 %v4307, %v4297
    %v7988 = vpack.c.b16 %v4308, %v4298
    %v7989 = vpack.c.b16 %v4309, %v4299
    %v7990 = vpack.c.b16 %v4310, %v4300
    %v7991 = vpack.c.b16 %v4311, %v4301
    %v7992 = vpack.c.b16 %v4312, %v4302
    %v7993 = vpack.c.b16 %v4313, %v4303
    %v7994 = vpack.c.b16 %v4324, %v4314
    %v7995 = vpack.c.b16 %v4325, %v4315
    %v7996 = vpack.c.b16 %v4326, %v4316
    %v7997 = vpack.c.b16 %v4327, %v4317
    %v7998 = vpack.c.b16 %v4328, %v4318
    %v7999 = vpack.c.b16 %v4329, %v4319
    %v8000 = vpack.c.b16 %v4330, %v4320
    %v8001 = vpack.c.b16 %v4331, %v4321
    %v8002 = vpack.c.b16 %v4332, %v4322
    %v8003 = vpack.c.b16 %v4333, %v4323
    %v8004 = vpack.c.b16 %v4344, %v4334
    %v8005 = vpack.c.b16 %v4345, %v4335
    %v8006 = vpack.c.b16 %v4346, %v4336
    %v8007 = vpack.c.b16 %v4347, %v4337
    %v8008 = vpack.c.b16 %v4348, %v4338
    %v8009 = vpack.c.b16 %v4349, %v4339
    %v8010 = vpack.c.b16 %v4350, %v4340
    %v8011 = vpack.c.b16 %v4351, %v4341
    %v8012 = vpack.c.b16 %v4352, %v4342
    %v8013 = vpack.c.b16 %v4353, %v4343
    %v8014 = vpack.c.b16 %v4364, %v4354
    %v8015 = vpack.c.b16 %v4365, %v4355
    %v8016 = vpack.c.b16 %v4366, %v4356
    %v8017 = vpack.c.b16 %v4367, %v4357
    %v8018 = vpack.c.b16 %v4368, %v4358
    %v8019 = vpack.c.b16 %v4369, %v4359
    %v8020 = vpack.c.b16 %v4370, %v4360
    %v8021 = vpack.c.b16 %v4371, %v4361
    %v8022 = vpack.c.b16 %v4372, %v4362
    %v8023 = vpack.c.b16 %v4373, %v4363
    %v8024 = vpack.c.b16 %v4384, %v4374
    %v8025 = vpack.c.b16 %v4385, %v4375
    %v8026 = vpack.c.b16 %v4386, %v4376
    %v8027 = vpack.c.b16 %v4387, %v4377
    %v8028 = vpack.c.b16 %v4388, %v4378
    %v8029 = vpack.c.b16 %v4389, %v4379
    %v8030 = vpack.c.b16 %v4390, %v4380
    %v8031 = vpack.c.b16 %v4391, %v4381
    %v8032 = vpack.c.b16 %v4392, %v4382
    %v8033 = vpack.c.b16 %v4393, %v4383
    %v8034 = vpack.c.b16 %v4404, %v4394
    %v8035 = vpack.c.b16 %v4405, %v4395
    %v8036 = vpack.c.b16 %v4406, %v4396
    %v8037 = vpack.c.b16 %v4407, %v4397
    %v8038 = vpack.c.b16 %v4408, %v4398
    %v8039 = vpack.c.b16 %v4409, %v4399
    %v8040 = vpack.c.b16 %v4410, %v4400
    %v8041 = vpack.c.b16 %v4411, %v4401
    %v8042 = vpack.c.b16 %v4412, %v4402
    %v8043 = vpack.c.b16 %v4413, %v4403
    %v8044 = vpack.c.b16 %v4424, %v4414
    %v8045 = vpack.c.b16 %v4425, %v4415
    %v8046 = vpack.c.b16 %v4426, %v4416
    %v8047 = vpack.c.b16 %v4427, %v4417
    %v8048 = vpack.c.b16 %v4428, %v4418
    %v8049 = vpack.c.b16 %v4429, %v4419
    %v8050 = vpack.c.b16 %v4430, %v4420
    %v8051 = vpack.c.b16 %v4431, %v4421
    %v8052 = vpack.c.b16 %v4432, %v4422
    %v8053 = vpack.c.b16 %v4433, %v4423
    %v8054 = vpack.c.b16 %v4444, %v4434
    %v8055 = vpack.c.b16 %v4445, %v4435
    %v8056 = vpack.c.b16 %v4446, %v4436
    %v8057 = vpack.c.b16 %v4447, %v4437
    %v8058 = vpack.c.b16 %v4448, %v4438
    %v8059 = vpack.c.b16 %v4449, %v4439
    %v8060 = vpack.c.b16 %v4450, %v4440
    %v8061 = vpack.c.b16 %v4451, %v4441
    %v8062 = vpack.c.b16 %v4452, %v4442
    %v8063 = vpack.c.b16 %v4453, %v4443
    %v8064 = vpack.c.b16 %v4464, %v4454
    %v8065 = vpack.c.b16 %v4465, %v4455
    %v8066 = vpack.c.b16 %v4466, %v4456
    %v8067 = vpack.c.b16 %v4467, %v4457
    %v8068 = vpack.c.b16 %v4468, %v4458
    %v8069 = vpack.c.b16 %v4469, %v4459
    %v8070 = vpack.c.b16 %v4470, %v4460
    %v8071 = vpack.c.b16 %v4471, %v4461
    %v8072 = vpack.c.b16 %v4472, %v4462
    %v8073 = vpack.c.b16 %v4473, %v4463
    %v8074 = vpack.c.b16 %v4484, %v4474
    %v8075 = vpack.c.b16 %v4485, %v4475
    %v8076 = vpack.c.b16 %v4486, %v4476
    %v8077 = vpack.c.b16 %v4487, %v4477
    %v8078 = vpack.c.b16 %v4488, %v4478
    %v8079 = vpack.c.b16 %v4489, %v4479
    %v8080 = vpack.c.b16 %v4490, %v4480
    %v8081 = vpack.c.b16 %v4491, %v4481
    %v8082 = vpack.c.b16 %v4492, %v4482
    %v8083 = vpack.c.b16 %v4493, %v4483
    %v8084 = vpack.c.b16 %v4504, %v4494
    %v8085 = vpack.c.b16 %v4505, %v4495
    %v8086 = vpack.c.b16 %v4506, %v4496
    %v8087 = vpack.c.b16 %v4507, %v4497
    %v8088 = vpack.c.b16 %v4508, %v4498
    %v8089 = vpack.c.b16 %v4509, %v4499
    %v8090 = vpack.c.b16 %v4510, %v4500
    %v8091 = vpack.c.b16 %v4511, %v4501
    %v8092 = vpack.c.b16 %v4512, %v4502
    %v8093 = vpack.c.b16 %v4513, %v4503
    %v8094 = vpack.c.b16 %v4524, %v4514
    %v8095 = vpack.c.b16 %v4525, %v4515
    %v8096 = vpack.c.b16 %v4526, %v4516
    %v8097 = vpack.c.b16 %v4527, %v4517
    %v8098 = vpack.c.b16 %v4528, %v4518
    %v8099 = vpack.c.b16 %v4529, %v4519
    %v8100 = vpack.c.b16 %v4530, %v4520
    %v8101 = vpack.c.b16 %v4531, %v4521
    %v8102 = vpack.c.b16 %v4532, %v4522
    %v8103 = vpack.c.b16 %v4533, %v4523
    %v8104 = vpack.c.b16 %v4544, %v4534
    %v8105 = vpack.c.b16 %v4545, %v4535
    %v8106 = vpack.c.b16 %v4546, %v4536
    %v8107 = vpack.c.b16 %v4547, %v4537
    %v8108 = vpack.c.b16 %v4548, %v4538
    %v8109 = vpack.c.b16 %v4549, %v4539
    %v8110 = vpack.c.b16 %v4550, %v4540
    %v8111 = vpack.c.b16 %v4551, %v4541
    %v8112 = vpack.c.b16 %v4552, %v4542
    %v8113 = vpack.c.b16 %v4553, %v4543
    %v8114 = vpack.c.b16 %v4564, %v4554
    %v8115 = vpack.c.b16 %v4565, %v4555
    %v8116 = vpack.c.b16 %v4566, %v4556
    %v8117 = vpack.c.b16 %v4567, %v4557
    %v8118 = vpack.c.b16 %v4568, %v4558
    %v8119 = vpack.c.b16 %v4569, %v4559
    %v8120 = vpack.c.b16 %v4570, %v4560
    %v8121 = vpack.c.b16 %v4571, %v4561
    %v8122 = vpack.c.b16 %v4572, %v4562
    %v8123 = vpack.c.b16 %v4573, %v4563
    %v8124 = vpack.c.b16 %v4584, %v4574
    %v8125 = vpack.c.b16 %v4585, %v4575
    %v8126 = vpack.c.b16 %v4586, %v4576
    %v8127 = vpack.c.b16 %v4587, %v4577
    %v8128 = vpack.c.b16 %v4588, %v4578
    %v8129 = vpack.c.b16 %v4589, %v4579
    %v8130 = vpack.c.b16 %v4590, %v4580
    %v8131 = vpack.c.b16 %v4591, %v4581
    %v8132 = vpack.c.b16 %v4592, %v4582
    %v8133 = vpack.c.b16 %v4593, %v4583
    %v8134 = vpack.c.b16 %v4604, %v4594
    %v8135 = vpack.c.b16 %v4605, %v4595
    %v8136 = vpack.c.b16 %v4606, %v4596
    %v8137 = vpack.c.b16 %v4607, %v4597
    %v8138 = vpack.c.b16 %v4608, %v4598
    %v8139 = vpack.c.b16 %v4609, %v4599
    %v8140 = vpack.c.b16 %v4610, %v4600
    %v8141 = vpack.c.b16 %v4611, %v4601
    %v8142 = vpack.c.b16 %v4612, %v4602
    %v8143 = vpack.c.b16 %v4613, %v4603
    %v8144 = vpack.c.b16 %v4624, %v4614
    %v8145 = vpack.c.b16 %v4625, %v4615
    %v8146 = vpack.c.b16 %v4626, %v4616
    %v8147 = vpack.c.b16 %v4627, %v4617
    %v8148 = vpack.c.b16 %v4628, %v4618
    %v8149 = vpack.c.b16 %v4629, %v4619
    %v8150 = vpack.c.b16 %v4630, %v4620
    %v8151 = vpack.c.b16 %v4631, %v4621
    %v8152 = vpack.c.b16 %v4632, %v4622
    %v8153 = vpack.c.b16 %v4633, %v4623
    %v8154 = vpack.c.b16 %v4644, %v4634
    %v8155 = vpack.c.b16 %v4645, %v4635
    %v8156 = vpack.c.b16 %v4646, %v4636
    %v8157 = vpack.c.b16 %v4647, %v4637
    %v8158 = vpack.c.b16 %v4648, %v4638
    %v8159 = vpack.c.b16 %v4649, %v4639
    %v8160 = vpack.c.b16 %v4650, %v4640
    %v8161 = vpack.c.b16 %v4651, %v4641
    %v8162 = vpack.c.b16 %v4652, %v4642
    %v8163 = vpack.c.b16 %v4653, %v4643
    %v8164 = vpack.c.b16 %v4664, %v4654
    %v8165 = vpack.c.b16 %v4665, %v4655
    %v8166 = vpack.c.b16 %v4666, %v4656
    %v8167 = vpack.c.b16 %v4667, %v4657
    %v8168 = vpack.c.b16 %v4668, %v4658
    %v8169 = vpack.c.b16 %v4669, %v4659
    %v8170 = vpack.c.b16 %v4670, %v4660
    %v8171 = vpack.c.b16 %v4671, %v4661
    %v8172 = vpack.c.b16 %v4672, %v4662
    %v8173 = vpack.c.b16 %v4673, %v4663
    %v8174 = vpack.c.b16 %v4684, %v4674
    %v8175 = vpack.c.b16 %v4685, %v4675
    %v8176 = vpack.c.b16 %v4686, %v4676
    %v8177 = vpack.c.b16 %v4687, %v4677
    %v8178 = vpack.c.b16 %v4688, %v4678
    %v8179 = vpack.c.b16 %v4689, %v4679
    %v8180 = vpack.c.b16 %v4690, %v4680
    %v8181 = vpack.c.b16 %v4691, %v4681
    %v8182 = vpack.c.b16 %v4692, %v4682
    %v8183 = vpack.c.b16 %v4693, %v4683
    %v8184 = vpack.c.b16 %v4704, %v4694
    %v8185 = vpack.c.b16 %v4705, %v4695
    %v8186 = vpack.c.b16 %v4706, %v4696
    %v8187 = vpack.c.b16 %v4707, %v4697
    %v8188 = vpack.c.b16 %v4708, %v4698
    %v8189 = vpack.c.b16 %v4709, %v4699
    %v8190 = vpack.c.b16 %v4710, %v4700
    %v8191 = vpack.c.b16 %v4711, %v4701
    %v8192 = vpack.c.b16 %v4712, %v4702
    %v8193 = vpack.c.b16 %v4713, %v4703
    %v8194 = vpack.c.b16 %v4724, %v4714
    %v8195 = vpack.c.b16 %v4725, %v4715
    %v8196 = vpack.c.b16 %v4726, %v4716
    %v8197 = vpack.c.b16 %v4727, %v4717
    %v8198 = vpack.c.b16 %v4728, %v4718
    %v8199 = vpack.c.b16 %v4729, %v4719
    %v8200 = vpack.c.b16 %v4730, %v4720
    %v8201 = vpack.c.b16 %v4731, %v4721
    %v8202 = vpack.c.b16 %v4732, %v4722
    %v8203 = vpack.c.b16 %v4733, %v4723
    %v8204 = vpack.c.b16 %v4744, %v4734
    %v8205 = vpack.c.b16 %v4745, %v4735
    %v8206 = vpack.c.b16 %v4746, %v4736
    %v8207 = vpack.c.b16 %v4747, %v4737
    %v8208 = vpack.c.b16 %v4748, %v4738
    %v8209 = vpack.c.b16 %v4749, %v4739
    %v8210 = vpack.c.b16 %v4750, %v4740
    %v8211 = vpack.c.b16 %v4751, %v4741
    %v8212 = vpack.c.b16 %v4752, %v4742
    %v8213 = vpack.c.b16 %v4753, %v4743
    %v8214 = vpack.c.b16 %v4764, %v4754
    %v8215 = vpack.c.b16 %v4765, %v4755
    %v8216 = vpack.c.b16 %v4766, %v4756
    %v8217 = vpack.c.b16 %v4767, %v4757
    %v8218 = vpack.c.b16 %v4768, %v4758
    %v8219 = vpack.c.b16 %v4769, %v4759
    %v8220 = vpack.c.b16 %v4770, %v4760
    %v8221 = vpack.c.b16 %v4771, %v4761
    %v8222 = vpack.c.b16 %v4772, %v4762
    %v8223 = vpack.c.b16 %v4773, %v4763
    %v8224 = vpack.c.b16 %v4784, %v4774
    %v8225 = vpack.c.b16 %v4785, %v4775
    %v8226 = vpack.c.b16 %v4786, %v4776
    %v8227 = vpack.c.b16 %v4787, %v4777
    %v8228 = vpack.c.b16 %v4788, %v4778
    %v8229 = vpack.c.b16 %v4789, %v4779
    %v8230 = vpack.c.b16 %v4790, %v4780
    %v8231 = vpack.c.b16 %v4791, %v4781
    %v8232 = vpack.c.b16 %v4792, %v4782
    %v8233 = vpack.c.b16 %v4793, %v4783
    %v8234 = vpack.c.b16 %v4804, %v4794
    %v8235 = vpack.c.b16 %v4805, %v4795
    %v8236 = vpack.c.b16 %v4806, %v4796
    %v8237 = vpack.c.b16 %v4807, %v4797
    %v8238 = vpack.c.b16 %v4808, %v4798
    %v8239 = vpack.c.b16 %v4809, %v4799
    %v8240 = vpack.c.b16 %v4810, %v4800
    %v8241 = vpack.c.b16 %v4811, %v4801
    %v8242 = vpack.c.b16 %v4812, %v4802
    %v8243 = vpack.c.b16 %v4813, %v4803
    %v8244 = vpack.c.b16 %v4824, %v4814
    %v8245 = vpack.c.b16 %v4825, %v4815
    %v8246 = vpack.c.b16 %v4826, %v4816
    %v8247 = vpack.c.b16 %v4827, %v4817
    %v8248 = vpack.c.b16 %v4828, %v4818
    %v8249 = vpack.c.b16 %v4829, %v4819
    %v8250 = vpack.c.b16 %v4830, %v4820
    %v8251 = vpack.c.b16 %v4831, %v4821
    %v8252 = vpack.c.b16 %v4832, %v4822
    %v8253 = vpack.c.b16 %v4833, %v4823
    %v8254 = vpack.c.b16 %v4844, %v4834
    %v8255 = vpack.c.b16 %v4845, %v4835
    %v8256 = vpack.c.b16 %v4846, %v4836
    %v8257 = vpack.c.b16 %v4847, %v4837
    %v8258 = vpack.c.b16 %v4848, %v4838
    %v8259 = vpack.c.b16 %v4849, %v4839
    %v8260 = vpack.c.b16 %v4850, %v4840
    %v8261 = vpack.c.b16 %v4851, %v4841
    %v8262 = vpack.c.b16 %v4852, %v4842
    %v8263 = vpack.c.b16 %v4853, %v4843
    %v8264 = vpack.c.b16 %v4864, %v4854
    %v8265 = vpack.c.b16 %v4865, %v4855
    %v8266 = vpack.c.b16 %v4866, %v4856
    %v8267 = vpack.c.b16 %v4867, %v4857
    %v8268 = vpack.c.b16 %v4868, %v4858
    %v8269 = vpack.c.b16 %v4869, %v4859
    %v8270 = vpack.c.b16 %v4870, %v4860
    %v8271 = vpack.c.b16 %v4871, %v4861
    %v8272 = vpack.c.b16 %v4872, %v4862
    %v8273 = vpack.c.b16 %v4873, %v4863
    %v8274 = vpack.c.b16 %v4884, %v4874
    %v8275 = vpack.c.b16 %v4885, %v4875
    %v8276 = vpack.c.b16 %v4886, %v4876
    %v8277 = vpack.c.b16 %v4887, %v4877
    %v8278 = vpack.c.b16 %v4888, %v4878
    %v8279 = vpack.c.b16 %v4889, %v4879
    %v8280 = vpack.c.b16 %v4890, %v4880
    %v8281 = vpack.c.b16 %v4891, %v4881
    %v8282 = vpack.c.b16 %v4892, %v4882
    %v8283 = vpack.c.b16 %v4893, %v4883
    %v8284 = vpack.c.b16 %v4904, %v4894
    %v8285 = vpack.c.b16 %v4905, %v4895
    %v8286 = vpack.c.b16 %v4906, %v4896
    %v8287 = vpack.c.b16 %v4907, %v4897
    %v8288 = vpack.c.b16 %v4908, %v4898
    %v8289 = vpack.c.b16 %v4909, %v4899
    %v8290 = vpack.c.b16 %v4910, %v4900
    %v8291 = vpack.c.b16 %v4911, %v4901
    %v8292 = vpack.c.b16 %v4912, %v4902
    %v8293 = vpack.c.b16 %v4913, %v4903
    %v8294 = vpack.c.b16 %v4924, %v4914
    %v8295 = vpack.c.b16 %v4925, %v4915
    %v8296 = vpack.c.b16 %v4926, %v4916
    %v8297 = vpack.c.b16 %v4927, %v4917
    %v8298 = vpack.c.b16 %v4928, %v4918
    %v8299 = vpack.c.b16 %v4929, %v4919
    %v8300 = vpack.c.b16 %v4930, %v4920
    %v8301 = vpack.c.b16 %v4931, %v4921
    %v8302 = vpack.c.b16 %v4932, %v4922
    %v8303 = vpack.c.b16 %v4933, %v4923
    %v8304 = vpack.c.b16 %v4944, %v4934
    %v8305 = vpack.c.b16 %v4945, %v4935
    %v8306 = vpack.c.b16 %v4946, %v4936
    %v8307 = vpack.c.b16 %v4947, %v4937
    %v8308 = vpack.c.b16 %v4948, %v4938
    %v8309 = vpack.c.b16 %v4949, %v4939
    %v8310 = vpack.c.b16 %v4950, %v4940
    %v8311 = vpack.c.b16 %v4951, %v4941
    %v8312 = vpack.c.b16 %v4952, %v4942
    %v8313 = vpack.c.b16 %v4953, %v4943
    %v8314 = vpack.c.b16 %v4964, %v4954
    %v8315 = vpack.c.b16 %v4965, %v4955
    %v8316 = vpack.c.b16 %v4966, %v4956
    %v8317 = vpack.c.b16 %v4967, %v4957
    %v8318 = vpack.c.b16 %v4968, %v4958
    %v8319 = vpack.c.b16 %v4969, %v4959
    %v8320 = vpack.c.b16 %v4970, %v4960
    %v8321 = vpack.c.b16 %v4971, %v4961
    %v8322 = vpack.c.b16 %v4972, %v4962
    %v8323 = vpack.c.b16 %v4973, %v4963
    %v8324 = vpack.c.b16 %v4984, %v4974
    %v8325 = vpack.c.b16 %v4985, %v4975
    %v8326 = vpack.c.b16 %v4986, %v4976
    %v8327 = vpack.c.b16 %v4987, %v4977
    %v8328 = vpack.c.b16 %v4988, %v4978
    %v8329 = vpack.c.b16 %v4989, %v4979
    %v8330 = vpack.c.b16 %v4990, %v4980
    %v8331 = vpack.c.b16 %v4991, %v4981
    %v8332 = vpack.c.b16 %v4992, %v4982
    %v8333 = vpack.c.b16 %v4993, %v4983
    %v8334 = vpack.c.b16 %v5004, %v4994
    %v8335 = vpack.c.b16 %v5005, %v4995
    %v8336 = vpack.c.b16 %v5006, %v4996
    %v8337 = vpack.c.b16 %v5007, %v4997
    %v8338 = vpack.c.b16 %v5008, %v4998
    %v8339 = vpack.c.b16 %v5009, %v4999
    %v8340 = vpack.c.b16 %v5010, %v5000
    %v8341 = vpack.c.b16 %v5011, %v5001
    %v8342 = vpack.c.b16 %v5012, %v5002
    %v8343 = vpack.c.b16 %v5013, %v5003
    %v8344 = vpack.c.b16 %v5024, %v5014
    %v8345 = vpack.c.b16 %v5025, %v5015
    %v8346 = vpack.c.b16 %v5026, %v5016
    %v8347 = vpack.c.b16 %v5027, %v5017
    %v8348 = vpack.c.b16 %v5028, %v5018
    %v8349 = vpack.c.b16 %v5029, %v5019
    %v8350 = vpack.c.b16 %v5030, %v5020
    %v8351 = vpack.c.b16 %v5031, %v5021
    %v8352 = vpack.c.b16 %v5032, %v5022
    %v8353 = vpack.c.b16 %v5033, %v5023
    %v8354 = vpack.c.b16 %v5044, %v5034
    %v8355 = vpack.c.b16 %v5045, %v5035
    %v8356 = vpack.c.b16 %v5046, %v5036
    %v8357 = vpack.c.b16 %v5047, %v5037
    %v8358 = vpack.c.b16 %v5048, %v5038
    %v8359 = vpack.c.b16 %v5049, %v5039
    %v8360 = vpack.c.b16 %v5050, %v5040
    %v8361 = vpack.c.b16 %v5051, %v5041
    %v8362 = vpack.c.b16 %v5052, %v5042
    %v8363 = vpack.c.b16 %v5053, %v5043
    %v8364 = vpack.c.b16 %v5064, %v5054
    %v8365 = vpack.c.b16 %v5065, %v5055
    %v8366 = vpack.c.b16 %v5066, %v5056
    %v8367 = vpack.c.b16 %v5067, %v5057
    %v8368 = vpack.c.b16 %v5068, %v5058
    %v8369 = vpack.c.b16 %v5069, %v5059
    %v8370 = vpack.c.b16 %v5070, %v5060
    %v8371 = vpack.c.b16 %v5071, %v5061
    %v8372 = vpack.c.b16 %v5072, %v5062
    %v8373 = vpack.c.b16 %v5073, %v5063
    %v8374 = vpack.c.b16 %v5084, %v5074
    %v8375 = vpack.c.b16 %v5085, %v5075
    %v8376 = vpack.c.b16 %v5086, %v5076
    %v8377 = vpack.c.b16 %v5087, %v5077
    %v8378 = vpack.c.b16 %v5088, %v5078
    %v8379 = vpack.c.b16 %v5089, %v5079
    %v8380 = vpack.c.b16 %v5090, %v5080
    %v8381 = vpack.c.b16 %v5091, %v5081
    %v8382 = vpack.c.b16 %v5092, %v5082
    %v8383 = vpack.c.b16 %v5093, %v5083
    %v8384 = vpack.c.b16 %v5104, %v5094
    %v8385 = vpack.c.b16 %v5105, %v5095
    %v8386 = vpack.c.b16 %v5106, %v5096
    %v8387 = vpack.c.b16 %v5107, %v5097
    %v8388 = vpack.c.b16 %v5108, %v5098
    %v8389 = vpack.c.b16 %v5109, %v5099
    %v8390 = vpack.c.b16 %v5110, %v5100
    %v8391 = vpack.c.b16 %v5111, %v5101
    %v8392 = vpack.c.b16 %v5112, %v5102
    %v8393 = vpack.c.b16 %v5113, %v5103
    %v8394 = vpack.c.b16 %v5124, %v5114
    %v8395 = vpack.c.b16 %v5125, %v5115
    %v8396 = vpack.c.b16 %v5126, %v5116
    %v8397 = vpack.c.b16 %v5127, %v5117
    %v8398 = vpack.c.b16 %v5128, %v5118
    %v8399 = vpack.c.b16 %v5129, %v5119
    %v8400 = vpack.c.b16 %v5130, %v5120
    %v8401 = vpack.c.b16 %v5131, %v5121
    %v8402 = vpack.c.b16 %v5132, %v5122
    %v8403 = vpack.c.b16 %v5133, %v5123
    %v8404 = vpack.c.b16 %v5144, %v5134
    %v8405 = vpack.c.b16 %v5145, %v5135
    %v8406 = vpack.c.b16 %v5146, %v5136
    %v8407 = vpack.c.b16 %v5147, %v5137
    %v8408 = vpack.c.b16 %v5148, %v5138
    %v8409 = vpack.c.b16 %v5149, %v5139
    %v8410 = vpack.c.b16 %v5150, %v5140
    %v8411 = vpack.c.b16 %v5151, %v5141
    %v8412 = vpack.c.b16 %v5152, %v5142
    %v8413 = vpack.c.b16 %v5153, %v5143
    %v8414 = vpack.c.b16 %v5164, %v5154
    %v8415 = vpack.c.b16 %v5165, %v5155
    %v8416 = vpack.c.b16 %v5166, %v5156
    %v8417 = vpack.c.b16 %v5167, %v5157
    %v8418 = vpack.c.b16 %v5168, %v5158
    %v8419 = vpack.c.b16 %v5169, %v5159
    %v8420 = vpack.c.b16 %v5170, %v5160
    %v8421 = vpack.c.b16 %v5171, %v5161
    %v8422 = vpack.c.b16 %v5172, %v5162
    %v8423 = vpack.c.b16 %v5173, %v5163
    %v8424 = vpack.c.b16 %v5184, %v5174
    %v8425 = vpack.c.b16 %v5185, %v5175
    %v8426 = vpack.c.b16 %v5186, %v5176
    %v8427 = vpack.c.b16 %v5187, %v5177
    %v8428 = vpack.c.b16 %v5188, %v5178
    %v8429 = vpack.c.b16 %v5189, %v5179
    %v8430 = vpack.c.b16 %v5190, %v5180
    %v8431 = vpack.c.b16 %v5191, %v5181
    %v8432 = vpack.c.b16 %v5192, %v5182
    %v8433 = vpack.c.b16 %v5193, %v5183
    %v8434 = vpack.c.b16 %v5204, %v5194
    %v8435 = vpack.c.b16 %v5205, %v5195
    %v8436 = vpack.c.b16 %v5206, %v5196
    %v8437 = vpack.c.b16 %v5207, %v5197
    %v8438 = vpack.c.b16 %v5208, %v5198
    %v8439 = vpack.c.b16 %v5209, %v5199
    %v8440 = vpack.c.b16 %v5210, %v5200
    %v8441 = vpack.c.b16 %v5211, %v5201
    %v8442 = vpack.c.b16 %v5212, %v5202
    %v8443 = vpack.c.b16 %v5213, %v5203
    %v8444 = vpack.c.b16 %v5224, %v5214
    %v8445 = vpack.c.b16 %v5225, %v5215
    %v8446 = vpack.c.b16 %v5226, %v5216
    %v8447 = vpack.c.b16 %v5227, %v5217
    %v8448 = vpack.c.b16 %v5228, %v5218
    %v8449 = vpack.c.b16 %v5229, %v5219
    %v8450 = vpack.c.b16 %v5230, %v5220
    %v8451 = vpack.c.b16 %v5231, %v5221
    %v8452 = vpack.c.b16 %v5232, %v5222
    %v8453 = vpack.c.b16 %v5233, %v5223
    %v8454 = vpack.c.b16 %v5244, %v5234
    %v8455 = vpack.c.b16 %v5245, %v5235
    %v8456 = vpack.c.b16 %v5246, %v5236
    %v8457 = vpack.c.b16 %v5247, %v5237
    %v8458 = vpack.c.b16 %v5248, %v5238
    %v8459 = vpack.c.b16 %v5249, %v5239
    %v8460 = vpack.c.b16 %v5250, %v5240
    %v8461 = vpack.c.b16 %v5251, %v5241
    %v8462 = vpack.c.b16 %v5252, %v5242
    %v8463 = vpack.c.b16 %v5253, %v5243
    %v8464 = vpack.c.b16 %v5264, %v5254
    %v8465 = vpack.c.b16 %v5265, %v5255
    %v8466 = vpack.c.b16 %v5266, %v5256
    %v8467 = vpack.c.b16 %v5267, %v5257
    %v8468 = vpack.c.b16 %v5268, %v5258
    %v8469 = vpack.c.b16 %v5269, %v5259
    %v8470 = vpack.c.b16 %v5270, %v5260
    %v8471 = vpack.c.b16 %v5271, %v5261
    %v8472 = vpack.c.b16 %v5272, %v5262
    %v8473 = vpack.c.b16 %v5273, %v5263
    %v8474 = vpack.c.b16 %v5284, %v5274
    %v8475 = vpack.c.b16 %v5285, %v5275
    %v8476 = vpack.c.b16 %v5286, %v5276
    %v8477 = vpack.c.b16 %v5287, %v5277
    %v8478 = vpack.c.b16 %v5288, %v5278
    %v8479 = vpack.c.b16 %v5289, %v5279
    %v8480 = vpack.c.b16 %v5290, %v5280
    %v8481 = vpack.c.b16 %v5291, %v5281
    %v8482 = vpack.c.b16 %v5292, %v5282
    %v8483 = vpack.c.b16 %v5293, %v5283
    %v8484 = vpack.c.b16 %v5304, %v5294
    %v8485 = vpack.c.b16 %v5305, %v5295
    %v8486 = vpack.c.b16 %v5306, %v5296
    %v8487 = vpack.c.b16 %v5307, %v5297
    %v8488 = vpack.c.b16 %v5308, %v5298
    %v8489 = vpack.c.b16 %v5309, %v5299
    %v8490 = vpack.c.b16 %v5310, %v5300
    %v8491 = vpack.c.b16 %v5311, %v5301
    %v8492 = vpack.c.b16 %v5312, %v5302
    %v8493 = vpack.c.b16 %v5313, %v5303
    %v8494 = vpack.c.b16 %v5324, %v5314
    %v8495 = vpack.c.b16 %v5325, %v5315
    %v8496 = vpack.c.b16 %v5326, %v5316
    %v8497 = vpack.c.b16 %v5327, %v5317
    %v8498 = vpack.c.b16 %v5328, %v5318
    %v8499 = vpack.c.b16 %v5329, %v5319
    %v8500 = vpack.c.b16 %v5330, %v5320
    %v8501 = vpack.c.b16 %v5331, %v5321
    %v8502 = vpack.c.b16 %v5332, %v5322
    %v8503 = vpack.c.b16 %v5333, %v5323
    %v8504 = vpack.c.b16 %v5344, %v5334
    %v8505 = vpack.c.b16 %v5345, %v5335
    %v8506 = vpack.c.b16 %v5346, %v5336
    %v8507 = vpack.c.b16 %v5347, %v5337
    %v8508 = vpack.c.b16 %v5348, %v5338
    %v8509 = vpack.c.b16 %v5349, %v5339
    %v8510 = vpack.c.b16 %v5350, %v5340
    %v8511 = vpack.c.b16 %v5351, %v5341
    %v8512 = vpack.c.b16 %v5352, %v5342
    %v8513 = vpack.c.b16 %v5353, %v5343
    %v8514 = vpack.c.b16 %v5364, %v5354
    %v8515 = vpack.c.b16 %v5365, %v5355
    %v8516 = vpack.c.b16 %v5366, %v5356
    %v8517 = vpack.c.b16 %v5367, %v5357
    %v8518 = vpack.c.b16 %v5368, %v5358
    %v8519 = vpack.c.b16 %v5369, %v5359
    %v8520 = vpack.c.b16 %v5370, %v5360
    %v8521 = vpack.c.b16 %v5371, %v5361
    %v8522 = vpack.c.b16 %v5372, %v5362
    %v8523 = vpack.c.b16 %v5373, %v5363
    %v8524 = vpack.c.b16 %v5384, %v5374
    %v8525 = vpack.c.b16 %v5385, %v5375
    %v8526 = vpack.c.b16 %v5386, %v5376
    %v8527 = vpack.c.b16 %v5387, %v5377
    %v8528 = vpack.c.b16 %v5388, %v5378
    %v8529 = vpack.c.b16 %v5389, %v5379
    %v8530 = vpack.c.b16 %v5390, %v5380
    %v8531 = vpack.c.b16 %v5391, %v5381
    %v8532 = vpack.c.b16 %v5392, %v5382
    %v8533 = vpack.c.b16 %v5393, %v5383
    %v8534 = vpack.c.b16 %v5404, %v5394
    %v8535 = vpack.c.b16 %v5405, %v5395
    %v8536 = vpack.c.b16 %v5406, %v5396
    %v8537 = vpack.c.b16 %v5407, %v5397
    %v8538 = vpack.c.b16 %v5408, %v5398
    %v8539 = vpack.c.b16 %v5409, %v5399
    %v8540 = vpack.c.b16 %v5410, %v5400
    %v8541 = vpack.c.b16 %v5411, %v5401
    %v8542 = vpack.c.b16 %v5412, %v5402
    %v8543 = vpack.c.b16 %v5413, %v5403
    %v8544 = vpack.c.b16 %v5424, %v5414
    %v8545 = vpack.c.b16 %v5425, %v5415
    %v8546 = vpack.c.b16 %v5426, %v5416
    %v8547 = vpack.c.b16 %v5427, %v5417
    %v8548 = vpack.c.b16 %v5428, %v5418
    %v8549 = vpack.c.b16 %v5429, %v5419
    %v8550 = vpack.c.b16 %v5430, %v5420
    %v8551 = vpack.c.b16 %v5431, %v5421
    %v8552 = vpack.c.b16 %v5432, %v5422
    %v8553 = vpack.c.b16 %v5433, %v5423
    %v8554 = vpack.c.b16 %v5444, %v5434
    %v8555 = vpack.c.b16 %v5445, %v5435
    %v8556 = vpack.c.b16 %v5446, %v5436
    %v8557 = vpack.c.b16 %v5447, %v5437
    %v8558 = vpack.c.b16 %v5448, %v5438
    %v8559 = vpack.c.b16 %v5449, %v5439
    %v8560 = vpack.c.b16 %v5450, %v5440
    %v8561 = vpack.c.b16 %v5451, %v5441
    %v8562 = vpack.c.b16 %v5452, %v5442
    %v8563 = vpack.c.b16 %v5453, %v5443
    %v8564 = vpack.c.b16 %v5464, %v5454
    %v8565 = vpack.c.b16 %v5465, %v5455
    %v8566 = vpack.c.b16 %v5466, %v5456
    %v8567 = vpack.c.b16 %v5467, %v5457
    %v8568 = vpack.c.b16 %v5468, %v5458
    %v8569 = vpack.c.b16 %v5469, %v5459
    %v8570 = vpack.c.b16 %v5470, %v5460
    %v8571 = vpack.c.b16 %v5471, %v5461
    %v8572 = vpack.c.b16 %v5472, %v5462
    %v8573 = vpack.c.b16 %v5473, %v5463
    %v8574 = vpack.c.b16 %v5484, %v5474
    %v8575 = vpack.c.b16 %v5485, %v5475
    %v8576 = vpack.c.b16 %v5486, %v5476
    %v8577 = vpack.c.b16 %v5487, %v5477
    %v8578 = vpack.c.b16 %v5488, %v5478
    %v8579 = vpack.c.b16 %v5489, %v5479
    %v8580 = vpack.c.b16 %v5490, %v5480
    %v8581 = vpack.c.b16 %v5491, %v5481
    %v8582 = vpack.c.b16 %v5492, %v5482
    %v8583 = vpack.c.b16 %v5493, %v5483
    %v8584 = vpack.c.b16 %v5504, %v5494
    %v8585 = vpack.c.b16 %v5505, %v5495
    %v8586 = vpack.c.b16 %v5506, %v5496
    %v8587 = vpack.c.b16 %v5507, %v5497
    %v8588 = vpack.c.b16 %v5508, %v5498
    %v8589 = vpack.c.b16 %v5509, %v5499
    %v8590 = vpack.c.b16 %v5510, %v5500
    %v8591 = vpack.c.b16 %v5511, %v5501
    %v8592 = vpack.c.b16 %v5512, %v5502
    %v8593 = vpack.c.b16 %v5513, %v5503
    %v8594 = vpack.c.b16 %v5524, %v5514
    %v8595 = vpack.c.b16 %v5525, %v5515
    %v8596 = vpack.c.b16 %v5526, %v5516
    %v8597 = vpack.c.b16 %v5527, %v5517
    %v8598 = vpack.c.b16 %v5528, %v5518
    %v8599 = vpack.c.b16 %v5529, %v5519
    %v8600 = vpack.c.b16 %v5530, %v5520
    %v8601 = vpack.c.b16 %v5531, %v5521
    %v8602 = vpack.c.b16 %v5532, %v5522
    %v8603 = vpack.c.b16 %v5533, %v5523
    %v8604 = vpack.c.b16 %v5544, %v5534
    %v8605 = vpack.c.b16 %v5545, %v5535
    %v8606 = vpack.c.b16 %v5546, %v5536
    %v8607 = vpack.c.b16 %v5547, %v5537
    %v8608 = vpack.c.b16 %v5548, %v5538
    %v8609 = vpack.c.b16 %v5549, %v5539
    %v8610 = vpack.c.b16 %v5550, %v5540
    %v8611 = vpack.c.b16 %v5551, %v5541
    %v8612 = vpack.c.b16 %v5552, %v5542
    %v8613 = vpack.c.b16 %v5553, %v5543
    %v8614 = vpack.c.b16 %v5564, %v5554
    %v8615 = vpack.c.b16 %v5565, %v5555
    %v8616 = vpack.c.b16 %v5566, %v5556
    %v8617 = vpack.c.b16 %v5567, %v5557
    %v8618 = vpack.c.b16 %v5568, %v5558
    %v8619 = vpack.c.b16 %v5569, %v5559
    %v8620 = vpack.c.b16 %v5570, %v5560
    %v8621 = vpack.c.b16 %v5571, %v5561
    %v8622 = vpack.c.b16 %v5572, %v5562
    %v8623 = vpack.c.b16 %v5573, %v5563
    %v8624 = vpack.c.b16 %v5584, %v5574
    %v8625 = vpack.c.b16 %v5585, %v5575
    %v8626 = vpack.c.b16 %v5586, %v5576
    %v8627 = vpack.c.b16 %v5587, %v5577
    %v8628 = vpack.c.b16 %v5588, %v5578
    %v8629 = vpack.c.b16 %v5589, %v5579
    %v8630 = vpack.c.b16 %v5590, %v5580
    %v8631 = vpack.c.b16 %v5591, %v5581
    %v8632 = vpack.c.b16 %v5592, %v5582
    %v8633 = vpack.c.b16 %v5593, %v5583
    %v8634 = vpack.c.b16 %v5604, %v5594
    %v8635 = vpack.c.b16 %v5605, %v5595
    %v8636 = vpack.c.b16 %v5606, %v5596
    %v8637 = vpack.c.b16 %v5607, %v5597
    %v8638 = vpack.c.b16 %v5608, %v5598
    %v8639 = vpack.c.b16 %v5609, %v5599
    %v8640 = vpack.c.b16 %v5610, %v5600
    %v8641 = vpack.c.b16 %v5611, %v5601
    %v8642 = vpack.c.b16 %v5612, %v5602
    %v8643 = vpack.c.b16 %v5613, %v5603
    %v8644 = vpack.c.b16 %v5624, %v5614
    %v8645 = vpack.c.b16 %v5625, %v5615
    %v8646 = vpack.c.b16 %v5626, %v5616
    %v8647 = vpack.c.b16 %v5627, %v5617
    %v8648 = vpack.c.b16 %v5628, %v5618
    %v8649 = vpack.c.b16 %v5629, %v5619
    %v8650 = vpack.c.b16 %v5630, %v5620
    %v8651 = vpack.c.b16 %v5631, %v5621
    %v8652 = vpack.c.b16 %v5632, %v5622
    %v8653 = vpack.c.b16 %v5633, %v5623
    %v8654 = vpack.c.b16 %v5644, %v5634
    %v8655 = vpack.c.b16 %v5645, %v5635
    %v8656 = vpack.c.b16 %v5646, %v5636
    %v8657 = vpack.c.b16 %v5647, %v5637
    %v8658 = vpack.c.b16 %v5648, %v5638
    %v8659 = vpack.c.b16 %v5649, %v5639
    %v8660 = vpack.c.b16 %v5650, %v5640
    %v8661 = vpack.c.b16 %v5651, %v5641
    %v8662 = vpack.c.b16 %v5652, %v5642
    %v8663 = vpack.c.b16 %v5653, %v5643
    %v8664 = vpack.c.b16 %v5664, %v5654
    %v8665 = vpack.c.b16 %v5665, %v5655
    %v8666 = vpack.c.b16 %v5666, %v5656
    %v8667 = vpack.c.b16 %v5667, %v5657
    %v8668 = vpack.c.b16 %v5668, %v5658
    %v8669 = vpack.c.b16 %v5669, %v5659
    %v8670 = vpack.c.b16 %v5670, %v5660
    %v8671 = vpack.c.b16 %v5671, %v5661
    %v8672 = vpack.c.b16 %v5672, %v5662
    %v8673 = vpack.c.b16 %v5673, %v5663
    %v8674 = vpack.c.b16 %v5684, %v5674
    %v8675 = vpack.c.b16 %v5685, %v5675
    %v8676 = vpack.c.b16 %v5686, %v5676
    %v8677 = vpack.c.b16 %v5687, %v5677
    %v8678 = vpack.c.b16 %v5688, %v5678
    %v8679 = vpack.c.b16 %v5689, %v5679
    %v8680 = vpack.c.b16 %v5690, %v5680
    %v8681 = vpack.c.b16 %v5691, %v5681
    %v8682 = vpack.c.b16 %v5692, %v5682
    %v8683 = vpack.c.b16 %v5693, %v5683
    %v8684 = vpack.c.b16 %v5704, %v5694
    %v8685 = vpack.c.b16 %v5705, %v5695
    %v8686 = vpack.c.b16 %v5706, %v5696
    %v8687 = vpack.c.b16 %v5707, %v5697
    %v8688 = vpack.c.b16 %v5708, %v5698
    %v8689 = vpack.c.b16 %v5709, %v5699
    %v8690 = vpack.c.b16 %v5710, %v5700
    %v8691 = vpack.c.b16 %v5711, %v5701
    %v8692 = vpack.c.b16 %v5712, %v5702
    %v8693 = vpack.c.b16 %v5713, %v5703
    %v8694 = vpack.c.b16 %v5724, %v5714
    %v8695 = vpack.c.b16 %v5725, %v5715
    %v8696 = vpack.c.b16 %v5726, %v5716
    %v8697 = vpack.c.b16 %v5727, %v5717
    %v8698 = vpack.c.b16 %v5728, %v5718
    %v8699 = vpack.c.b16 %v5729, %v5719
    %v8700 = vpack.c.b16 %v5730, %v5720
    %v8701 = vpack.c.b16 %v5731, %v5721
    %v8702 = vpack.c.b16 %v5732, %v5722
    %v8703 = vpack.c.b16 %v5733, %v5723
    %v8704 = vpack.c.b16 %v5744, %v5734
    %v8705 = vpack.c.b16 %v5745, %v5735
    %v8706 = vpack.c.b16 %v5746, %v5736
    %v8707 = vpack.c.b16 %v5747, %v5737
    %v8708 = vpack.c.b16 %v5748, %v5738
    %v8709 = vpack.c.b16 %v5749, %v5739
    %v8710 = vpack.c.b16 %v5750, %v5740
    %v8711 = vpack.c.b16 %v5751, %v5741
    %v8712 = vpack.c.b16 %v5752, %v5742
    %v8713 = vpack.c.b16 %v5753, %v5743
    %v8714 = vpack.c.b16 %v5764, %v5754
    %v8715 = vpack.c.b16 %v5765, %v5755
    %v8716 = vpack.c.b16 %v5766, %v5756
    %v8717 = vpack.c.b16 %v5767, %v5757
    %v8718 = vpack.c.b16 %v5768, %v5758
    %v8719 = vpack.c.b16 %v5769, %v5759
    %v8720 = vpack.c.b16 %v5770, %v5760
    %v8721 = vpack.c.b16 %v5771, %v5761
    %v8722 = vpack.c.b16 %v5772, %v5762
    %v8723 = vpack.c.b16 %v5773, %v5763
    %v8724 = vpack.c.b16 %v5784, %v5774
    %v8725 = vpack.c.b16 %v5785, %v5775
    %v8726 = vpack.c.b16 %v5786, %v5776
    %v8727 = vpack.c.b16 %v5787, %v5777
    %v8728 = vpack.c.b16 %v5788, %v5778
    %v8729 = vpack.c.b16 %v5789, %v5779
    %v8730 = vpack.c.b16 %v5790, %v5780
    %v8731 = vpack.c.b16 %v5791, %v5781
    %v8732 = vpack.c.b16 %v5792, %v5782
    %v8733 = vpack.c.b16 %v5793, %v5783
    %v8734 = vpack.c.b16 %v5804, %v5794
    %v8735 = vpack.c.b16 %v5805, %v5795
    %v8736 = vpack.c.b16 %v5806, %v5796
    %v8737 = vpack.c.b16 %v5807, %v5797
    %v8738 = vpack.c.b16 %v5808, %v5798
    %v8739 = vpack.c.b16 %v5809, %v5799
    %v8740 = vpack.c.b16 %v5810, %v5800
    %v8741 = vpack.c.b16 %v5811, %v5801
    %v8742 = vpack.c.b16 %v5812, %v5802
    %v8743 = vpack.c.b16 %v5813, %v5803
    %v8744 = vpack.c.b16 %v5824, %v5814
    %v8745 = vpack.c.b16 %v5825, %v5815
    %v8746 = vpack.c.b16 %v5826, %v5816
    %v8747 = vpack.c.b16 %v5827, %v5817
    %v8748 = vpack.c.b16 %v5828, %v5818
    %v8749 = vpack.c.b16 %v5829, %v5819
    %v8750 = vpack.c.b16 %v5830, %v5820
    %v8751 = vpack.c.b16 %v5831, %v5821
    %v8752 = vpack.c.b16 %v5832, %v5822
    %v8753 = vpack.c.b16 %v5833, %v5823
    %v8754 = vpack.c.b16 %v5844, %v5834
    %v8755 = vpack.c.b16 %v5845, %v5835
    %v8756 = vpack.c.b16 %v5846, %v5836
    %v8757 = vpack.c.b16 %v5847, %v5837
    %v8758 = vpack.c.b16 %v5848, %v5838
    %v8759 = vpack.c.b16 %v5849, %v5839
    %v8760 = vpack.c.b16 %v5850, %v5840
    %v8761 = vpack.c.b16 %v5851, %v5841
    %v8762 = vpack.c.b16 %v5852, %v5842
    %v8763 = vpack.c.b16 %v5853, %v5843
    %v8764 = vpack.c.b16 %v5864, %v5854
    %v8765 = vpack.c.b16 %v5865, %v5855
    %v8766 = vpack.c.b16 %v5866, %v5856
    %v8767 = vpack.c.b16 %v5867, %v5857
    %v8768 = vpack.c.b16 %v5868, %v5858
    %v8769 = vpack.c.b16 %v5869, %v5859
    %v8770 = vpack.c.b16 %v5870, %v5860
    %v8771 = vpack.c.b16 %v5871, %v5861
    %v8772 = vpack.c.b16 %v5872, %v5862
    %v8773 = vpack.c.b16 %v5873, %v5863
    %v8774 = vpack.c.b16 %v5884, %v5874
    %v8775 = vpack.c.b16 %v5885, %v5875
    %v8776 = vpack.c.b16 %v5886, %v5876
    %v8777 = vpack.c.b16 %v5887, %v5877
    %v8778 = vpack.c.b16 %v5888, %v5878
    %v8779 = vpack.c.b16 %v5889, %v5879
    %v8780 = vpack.c.b16 %v5890, %v5880
    %v8781 = vpack.c.b16 %v5891, %v5881
    %v8782 = vpack.c.b16 %v5892, %v5882
    %v8783 = vpack.c.b16 %v5893, %v5883
    %v8784 = vpack.c.b16 %v5904, %v5894
    %v8785 = vpack.c.b16 %v5905, %v5895
    %v8786 = vpack.c.b16 %v5906, %v5896
    %v8787 = vpack.c.b16 %v5907, %v5897
    %v8788 = vpack.c.b16 %v5908, %v5898
    %v8789 = vpack.c.b16 %v5909, %v5899
    %v8790 = vpack.c.b16 %v5910, %v5900
    %v8791 = vpack.c.b16 %v5911, %v5901
    %v8792 = vpack.c.b16 %v5912, %v5902
    %v8793 = vpack.c.b16 %v5913, %v5903
    %v8794 = vpack.c.b16 %v5924, %v5914
    %v8795 = vpack.c.b16 %v5925, %v5915
    %v8796 = vpack.c.b16 %v5926, %v5916
    %v8797 = vpack.c.b16 %v5927, %v5917
    %v8798 = vpack.c.b16 %v5928, %v5918
    %v8799 = vpack.c.b16 %v5929, %v5919
    %v8800 = vpack.c.b16 %v5930, %v5920
    %v8801 = vpack.c.b16 %v5931, %v5921
    %v8802 = vpack.c.b16 %v5932, %v5922
    %v8803 = vpack.c.b16 %v5933, %v5923
    %v8804 = vpack.c.b16 %v5944, %v5934
    %v8805 = vpack.c.b16 %v5945, %v5935
    %v8806 = vpack.c.b16 %v5946, %v5936
    %v8807 = vpack.c.b16 %v5947, %v5937
    %v8808 = vpack.c.b16 %v5948, %v5938
    %v8809 = vpack.c.b16 %v5949, %v5939
    %v8810 = vpack.c.b16 %v5950, %v5940
    %v8811 = vpack.c.b16 %v5951, %v5941
    %v8812 = vpack.c.b16 %v5952, %v5942
    %v8813 = vpack.c.b16 %v5953, %v5943
    %v8814 = vpack.c.b16 %v5964, %v5954
    %v8815 = vpack.c.b16 %v5965, %v5955
    %v8816 = vpack.c.b16 %v5966, %v5956
    %v8817 = vpack.c.b16 %v5967, %v5957
    %v8818 = vpack.c.b16 %v5968, %v5958
    %v8819 = vpack.c.b16 %v5969, %v5959
    %v8820 = vpack.c.b16 %v5970, %v5960
    %v8821 = vpack.c.b16 %v5971, %v5961
    %v8822 = vpack.c.b16 %v5972, %v5962
    %v8823 = vpack.c.b16 %v5973, %v5963
    %v8824 = vpack.c.b16 %v5984, %v5974
    %v8825 = vpack.c.b16 %v5985, %v5975
    %v8826 = vpack.c.b16 %v5986, %v5976
    %v8827 = vpack.c.b16 %v5987, %v5977
    %v8828 = vpack.c.b16 %v5988, %v5978
    %v8829 = vpack.c.b16 %v5989, %v5979
    %v8830 = vpack.c.b16 %v5990, %v5980
    %v8831 = vpack.c.b16 %v5991, %v5981
    %v8832 = vpack.c.b16 %v5992, %v5982
    %v8833 = vpack.c.b16 %v5993, %v5983
    %v8834 = vpack.c.b16 %v6004, %v5994
    %v8835 = vpack.c.b16 %v6005, %v5995
    %v8836 = vpack.c.b16 %v6006, %v5996
    %v8837 = vpack.c.b16 %v6007, %v5997
    %v8838 = vpack.c.b16 %v6008, %v5998
    %v8839 = vpack.c.b16 %v6009, %v5999
    %v8840 = vpack.c.b16 %v6010, %v6000
    %v8841 = vpack.c.b16 %v6011, %v6001
    %v8842 = vpack.c.b16 %v6012, %v6002
    %v8843 = vpack.c.b16 %v6013, %v6003
    %v8844 = vpack.c.b16 %v6024, %v6014
    %v8845 = vpack.c.b16 %v6025, %v6015
    %v8846 = vpack.c.b16 %v6026, %v6016
    %v8847 = vpack.c.b16 %v6027, %v6017
    %v8848 = vpack.c.b16 %v6028, %v6018
    %v8849 = vpack.c.b16 %v6029, %v6019
    %v8850 = vpack.c.b16 %v6030, %v6020
    %v8851 = vpack.c.b16 %v6031, %v6021
    %v8852 = vpack.c.b16 %v6032, %v6022
    %v8853 = vpack.c.b16 %v6033, %v6023
    %v8854 = vpack.c.b16 %v6044, %v6034
    %v8855 = vpack.c.b16 %v6045, %v6035
    %v8856 = vpack.c.b16 %v6046, %v6036
    %v8857 = vpack.c.b16 %v6047, %v6037
    %v8858 = vpack.c.b16 %v6048, %v6038
    %v8859 = vpack.c.b16 %v6049, %v6039
    %v8860 = vpack.c.b16 %v6050, %v6040
    %v8861 = vpack.c.b16 %v6051, %v6041
    %v8862 = vpack.c.b16 %v6052, %v6042
    %v8863 = vpack.c.b16 %v6053, %v6043
    %v8864 = vpack.c.b16 %v6064, %v6054
    %v8865 = vpack.c.b16 %v6065, %v6055
    %v8866 = vpack.c.b16 %v6066, %v6056
    %v8867 = vpack.c.b16 %v6067, %v6057
    %v8868 = vpack.c.b16 %v6068, %v6058
    %v8869 = vpack.c.b16 %v6069, %v6059
    %v8870 = vpack.c.b16 %v6070, %v6060
    %v8871 = vpack.c.b16 %v6071, %v6061
    %v8872 = vpack.c.b16 %v6072, %v6062
    %v8873 = vpack.c.b16 %v6073, %v6063
    %v8874 = vpack.c.b16 %v6084, %v6074
    %v8875 = vpack.c.b16 %v6085, %v6075
    %v8876 = vpack.c.b16 %v6086, %v6076
    %v8877 = vpack.c.b16 %v6087, %v6077
    %v8878 = vpack.c.b16 %v6088, %v6078
    %v8879 = vpack.c.b16 %v6089, %v6079
    %v8880 = vpack.c.b16 %v6090, %v6080
    %v8881 = vpack.c.b16 %v6091, %v6081
    %v8882 = vpack.c.b16 %v6092, %v6082
    %v8883 = vpack.c.b16 %v6093, %v6083
    %v8884 = vpack.c.b16 %v6104, %v6094
    %v8885 = vpack.c.b16 %v6105, %v6095
    %v8886 = vpack.c.b16 %v6106, %v6096
    %v8887 = vpack.c.b16 %v6107, %v6097
    %v8888 = vpack.c.b16 %v6108, %v6098
    %v8889 = vpack.c.b16 %v6109, %v6099
    %v8890 = vpack.c.b16 %v6110, %v6100
    %v8891 = vpack.c.b16 %v6111, %v6101
    %v8892 = vpack.c.b16 %v6112, %v6102
    %v8893 = vpack.c.b16 %v6113, %v6103
    %v8894 = vpack.c.b16 %v6124, %v6114
    %v8895 = vpack.c.b16 %v6125, %v6115
    %v8896 = vpack.c.b16 %v6126, %v6116
    %v8897 = vpack.c.b16 %v6127, %v6117
    %v8898 = vpack.c.b16 %v6128, %v6118
    %v8899 = vpack.c.b16 %v6129, %v6119
    %v8900 = vpack.c.b16 %v6130, %v6120
    %v8901 = vpack.c.b16 %v6131, %v6121
    %v8902 = vpack.c.b16 %v6132, %v6122
    %v8903 = vpack.c.b16 %v6133, %v6123
    %v8904 = vpack.c.b16 %v6144, %v6134
    %v8905 = vpack.c.b16 %v6145, %v6135
    %v8906 = vpack.c.b16 %v6146, %v6136
    %v8907 = vpack.c.b16 %v6147, %v6137
    %v8908 = vpack.c.b16 %v6148, %v6138
    %v8909 = vpack.c.b16 %v6149, %v6139
    %v8910 = vpack.c.b16 %v6150, %v6140
    %v8911 = vpack.c.b16 %v6151, %v6141
    %v8912 = vpack.c.b16 %v6152, %v6142
    %v8913 = vpack.c.b16 %v6153, %v6143
    %v8914 = vpack.c.b16 %v6164, %v6154
    %v8915 = vpack.c.b16 %v6165, %v6155
    %v8916 = vpack.c.b16 %v6166, %v6156
    %v8917 = vpack.c.b16 %v6167, %v6157
    %v8918 = vpack.c.b16 %v6168, %v6158
    %v8919 = vpack.c.b16 %v6169, %v6159
    %v8920 = vpack.c.b16 %v6170, %v6160
    %v8921 = vpack.c.b16 %v6171, %v6161
    %v8922 = vpack.c.b16 %v6172, %v6162
    %v8923 = vpack.c.b16 %v6173, %v6163
    %v8924 = vpack.c.b16 %v6184, %v6174
    %v8925 = vpack.c.b16 %v6185, %v6175
    %v8926 = vpack.c.b16 %v6186, %v6176
    %v8927 = vpack.c.b16 %v6187, %v6177
    %v8928 = vpack.c.b16 %v6188, %v6178
    %v8929 = vpack.c.b16 %v6189, %v6179
    %v8930 = vpack.c.b16 %v6190, %v6180
    %v8931 = vpack.c.b16 %v6191, %v6181
    %v8932 = vpack.c.b16 %v6192, %v6182
    %v8933 = vpack.c.b16 %v6193, %v6183
    %v8934 = vpack.c.b16 %v6204, %v6194
    %v8935 = vpack.c.b16 %v6205, %v6195
    %v8936 = vpack.c.b16 %v6206, %v6196
    %v8937 = vpack.c.b16 %v6207, %v6197
    %v8938 = vpack.c.b16 %v6208, %v6198
    %v8939 = vpack.c.b16 %v6209, %v6199
    %v8940 = vpack.c.b16 %v6210, %v6200
    %v8941 = vpack.c.b16 %v6211, %v6201
    %v8942 = vpack.c.b16 %v6212, %v6202
    %v8943 = vpack.c.b16 %v6213, %v6203
    %v8944 = vpack.c.b16 %v6224, %v6214
    %v8945 = vpack.c.b16 %v6225, %v6215
    %v8946 = vpack.c.b16 %v6226, %v6216
    %v8947 = vpack.c.b16 %v6227, %v6217
    %v8948 = vpack.c.b16 %v6228, %v6218
    %v8949 = vpack.c.b16 %v6229, %v6219
    %v8950 = vpack.c.b16 %v6230, %v6220
    %v8951 = vpack.c.b16 %v6231, %v6221
    %v8952 = vpack.c.b16 %v6232, %v6222
    %v8953 = vpack.c.b16 %v6233, %v6223
    %v8954 = vpack.c.b16 %v6244, %v6234
    %v8955 = vpack.c.b16 %v6245, %v6235
    %v8956 = vpack.c.b16 %v6246, %v6236
    %v8957 = vpack.c.b16 %v6247, %v6237
    %v8958 = vpack.c.b16 %v6248, %v6238
    %v8959 = vpack.c.b16 %v6249, %v6239
    %v8960 = vpack.c.b16 %v6250, %v6240
    %v8961 = vpack.c.b16 %v6251, %v6241
    %v8962 = vpack.c.b16 %v6252, %v6242
    %v8963 = vpack.c.b16 %v6253, %v6243
    %v8964 = vpack.c.b16 %v6264, %v6254
    %v8965 = vpack.c.b16 %v6265, %v6255
    %v8966 = vpack.c.b16 %v6266, %v6256
    %v8967 = vpack.c.b16 %v6267, %v6257
    %v8968 = vpack.c.b16 %v6268, %v6258
    %v8969 = vpack.c.b16 %v6269, %v6259
    %v8970 = vpack.c.b16 %v6270, %v6260
    %v8971 = vpack.c.b16 %v6271, %v6261
    %v8972 = vpack.c.b16 %v6272, %v6262
    %v8973 = vpack.c.b16 %v6273, %v6263
    %v8974 = vpack.c.b16 %v6284, %v6274
    %v8975 = vpack.c.b16 %v6285, %v6275
    %v8976 = vpack.c.b16 %v6286, %v6276
    %v8977 = vpack.c.b16 %v6287, %v6277
    %v8978 = vpack.c.b16 %v6288, %v6278
    %v8979 = vpack.c.b16 %v6289, %v6279
    %v8980 = vpack.c.b16 %v6290, %v6280
    %v8981 = vpack.c.b16 %v6291, %v6281
    %v8982 = vpack.c.b16 %v6292, %v6282
    %v8983 = vpack.c.b16 %v6293, %v6283
    %v8984 = vpack.c.b16 %v6304, %v6294
    %v8985 = vpack.c.b16 %v6305, %v6295
    %v8986 = vpack.c.b16 %v6306, %v6296
    %v8987 = vpack.c.b16 %v6307, %v6297
    %v8988 = vpack.c.b16 %v6308, %v6298
    %v8989 = vpack.c.b16 %v6309, %v6299
    %v8990 = vpack.c.b16 %v6310, %v6300
    %v8991 = vpack.c.b16 %v6311, %v6301
    %v8992 = vpack.c.b16 %v6312, %v6302
    %v8993 = vpack.c.b16 %v6313, %v6303
    %v8994 = vpack.c.b16 %v6324, %v6314
    %v8995 = vpack.c.b16 %v6325, %v6315
    %v8996 = vpack.c.b16 %v6326, %v6316
    %v8997 = vpack.c.b16 %v6327, %v6317
    %v8998 = vpack.c.b16 %v6328, %v6318
    %v8999 = vpack.c.b16 %v6329, %v6319
    %v9000 = vpack.c.b16 %v6330, %v6320
    %v9001 = vpack.c.b16 %v6331, %v6321
    %v9002 = vpack.c.b16 %v6332, %v6322
    %v9003 = vpack.c.b16 %v6333, %v6323
    %v9004 = vpack.c.b16 %v6344, %v6334
    %v9005 = vpack.c.b16 %v6345, %v6335
    %v9006 = vpack.c.b16 %v6346, %v6336
    %v9007 = vpack.c.b16 %v6347, %v6337
    %v9008 = vpack.c.b16 %v6348, %v6338
    %v9009 = vpack.c.b16 %v6349, %v6339
    %v9010 = vpack.c.b16 %v6350, %v6340
    %v9011 = vpack.c.b16 %v6351, %v6341
    %v9012 = vpack.c.b16 %v6352, %v6342
    %v9013 = vpack.c.b16 %v6353, %v6343
    %v9014 = vpack.c.b16 %v6364, %v6354
    %v9015 = vpack.c.b16 %v6365, %v6355
    %v9016 = vpack.c.b16 %v6366, %v6356
    %v9017 = vpack.c.b16 %v6367, %v6357
    %v9018 = vpack.c.b16 %v6368, %v6358
    %v9019 = vpack.c.b16 %v6369, %v6359
    %v9020 = vpack.c.b16 %v6370, %v6360
    %v9021 = vpack.c.b16 %v6371, %v6361
    %v9022 = vpack.c.b16 %v6372, %v6362
    %v9023 = vpack.c.b16 %v6373, %v6363
    %v9024 = vpack.c.b16 %v6384, %v6374
    %v9025 = vpack.c.b16 %v6385, %v6375
    %v9026 = vpack.c.b16 %v6386, %v6376
    %v9027 = vpack.c.b16 %v6387, %v6377
    %v9028 = vpack.c.b16 %v6388, %v6378
    %v9029 = vpack.c.b16 %v6389, %v6379
    %v9030 = vpack.c.b16 %v6390, %v6380
    %v9031 = vpack.c.b16 %v6391, %v6381
    %v9032 = vpack.c.b16 %v6392, %v6382
    %v9033 = vpack.c.b16 %v6393, %v6383
    %v9034 = vpack.c.b16 %v6404, %v6394
    %v9035 = vpack.c.b16 %v6405, %v6395
    %v9036 = vpack.c.b16 %v6406, %v6396
    %v9037 = vpack.c.b16 %v6407, %v6397
    %v9038 = vpack.c.b16 %v6408, %v6398
    %v9039 = vpack.c.b16 %v6409, %v6399
    %v9040 = vpack.c.b16 %v6410, %v6400
    %v9041 = vpack.c.b16 %v6411, %v6401
    %v9042 = vpack.c.b16 %v6412, %v6402
    %v9043 = vpack.c.b16 %v6413, %v6403
    %v9044 = vpack.c.b16 %v6424, %v6414
    %v9045 = vpack.c.b16 %v6425, %v6415
    %v9046 = vpack.c.b16 %v6426, %v6416
    %v9047 = vpack.c.b16 %v6427, %v6417
    %v9048 = vpack.c.b16 %v6428, %v6418
    %v9049 = vpack.c.b16 %v6429, %v6419
    %v9050 = vpack.c.b16 %v6430, %v6420
    %v9051 = vpack.c.b16 %v6431, %v6421
    %v9052 = vpack.c.b16 %v6432, %v6422
    %v9053 = vpack.c.b16 %v6433, %v6423
    %v9054 = vpack.c.b16 %v6444, %v6434
    %v9055 = vpack.c.b16 %v6445, %v6435
    %v9056 = vpack.c.b16 %v6446, %v6436
    %v9057 = vpack.c.b16 %v6447, %v6437
    %v9058 = vpack.c.b16 %v6448, %v6438
    %v9059 = vpack.c.b16 %v6449, %v6439
    %v9060 = vpack.c.b16 %v6450, %v6440
    %v9061 = vpack.c.b16 %v6451, %v6441
    %v9062 = vpack.c.b16 %v6452, %v6442
    %v9063 = vpack.c.b16 %v6453, %v6443
    %v9064 = vpack.c.b16 %v6464, %v6454
    %v9065 = vpack.c.b16 %v6465, %v6455
    %v9066 = vpack.c.b16 %v6466, %v6456
    %v9067 = vpack.c.b16 %v6467, %v6457
    %v9068 = vpack.c.b16 %v6468, %v6458
    %v9069 = vpack.c.b16 %v6469, %v6459
    %v9070 = vpack.c.b16 %v6470, %v6460
    %v9071 = vpack.c.b16 %v6471, %v6461
    %v9072 = vpack.c.b16 %v6472, %v6462
    %v9073 = vpack.c.b16 %v6473, %v6463
    %v9074 = vpack.c.b16 %v6484, %v6474
    %v9075 = vpack.c.b16 %v6485, %v6475
    %v9076 = vpack.c.b16 %v6486, %v6476
    %v9077 = vpack.c.b16 %v6487, %v6477
    %v9078 = vpack.c.b16 %v6488, %v6478
    %v9079 = vpack.c.b16 %v6489, %v6479
    %v9080 = vpack.c.b16 %v6490, %v6480
    %v9081 = vpack.c.b16 %v6491, %v6481
    %v9082 = vpack.c.b16 %v6492, %v6482
    %v9083 = vpack.c.b16 %v6493, %v6483
    %v9084 = vpack.c.b16 %v6504, %v6494
    %v9085 = vpack.c.b16 %v6505, %v6495
    %v9086 = vpack.c.b16 %v6506, %v6496
    %v9087 = vpack.c.b16 %v6507, %v6497
    %v9088 = vpack.c.b16 %v6508, %v6498
    %v9089 = vpack.c.b16 %v6509, %v6499
    %v9090 = vpack.c.b16 %v6510, %v6500
    %v9091 = vpack.c.b16 %v6511, %v6501
    %v9092 = vpack.c.b16 %v6512, %v6502
    %v9093 = vpack.c.b16 %v6513, %v6503
    %v9094 = vpack.c.b16 %v6524, %v6514
    %v9095 = vpack.c.b16 %v6525, %v6515
    %v9096 = vpack.c.b16 %v6526, %v6516
    %v9097 = vpack.c.b16 %v6527, %v6517
    %v9098 = vpack.c.b16 %v6528, %v6518
    %v9099 = vpack.c.b16 %v6529, %v6519
    %v9100 = vpack.c.b16 %v6530, %v6520
    %v9101 = vpack.c.b16 %v6531, %v6521
    %v9102 = vpack.c.b16 %v6532, %v6522
    %v9103 = vpack.c.b16 %v6533, %v6523
    %v9104 = vpack.c.b16 %v6544, %v6534
    %v9105 = vpack.c.b16 %v6545, %v6535
    %v9106 = vpack.c.b16 %v6546, %v6536
    %v9107 = vpack.c.b16 %v6547, %v6537
    %v9108 = vpack.c.b16 %v6548, %v6538
    %v9109 = vpack.c.b16 %v6549, %v6539
    %v9110 = vpack.c.b16 %v6550, %v6540
    %v9111 = vpack.c.b16 %v6551, %v6541
    %v9112 = vpack.c.b16 %v6552, %v6542
    %v9113 = vpack.c.b16 %v6553, %v6543
    %v9114 = vpack.c.b16 %v6564, %v6554
    %v9115 = vpack.c.b16 %v6565, %v6555
    %v9116 = vpack.c.b16 %v6566, %v6556
    %v9117 = vpack.c.b16 %v6567, %v6557
    %v9118 = vpack.c.b16 %v6568, %v6558
    %v9119 = vpack.c.b16 %v6569, %v6559
    %v9120 = vpack.c.b16 %v6570, %v6560
    %v9121 = vpack.c.b16 %v6571, %v6561
    %v9122 = vpack.c.b16 %v6572, %v6562
    %v9123 = vpack.c.b16 %v6573, %v6563
    %v9124 = vpack.c.b16 %v6584, %v6574
    %v9125 = vpack.c.b16 %v6585, %v6575
    %v9126 = vpack.c.b16 %v6586, %v6576
    %v9127 = vpack.c.b16 %v6587, %v6577
    %v9128 = vpack.c.b16 %v6588, %v6578
    %v9129 = vpack.c.b16 %v6589, %v6579
    %v9130 = vpack.c.b16 %v6590, %v6580
    %v9131 = vpack.c.b16 %v6591, %v6581
    %v9132 = vpack.c.b16 %v6592, %v6582
    %v9133 = vpack.c.b16 %v6593, %v6583
    %v9134 = vpack.c.b16 %v6604, %v6594
    %v9135 = vpack.c.b16 %v6605, %v6595
    %v9136 = vpack.c.b16 %v6606, %v6596
    %v9137 = vpack.c.b16 %v6607, %v6597
    %v9138 = vpack.c.b16 %v6608, %v6598
    %v9139 = vpack.c.b16 %v6609, %v6599
    %v9140 = vpack.c.b16 %v6610, %v6600
    %v9141 = vpack.c.b16 %v6611, %v6601
    %v9142 = vpack.c.b16 %v6612, %v6602
    %v9143 = vpack.c.b16 %v6613, %v6603
    %v9144 = vpack.c.b16 %v6624, %v6614
    %v9145 = vpack.c.b16 %v6625, %v6615
    %v9146 = vpack.c.b16 %v6626, %v6616
    %v9147 = vpack.c.b16 %v6627, %v6617
    %v9148 = vpack.c.b16 %v6628, %v6618
    %v9149 = vpack.c.b16 %v6629, %v6619
    %v9150 = vpack.c.b16 %v6630, %v6620
    %v9151 = vpack.c.b16 %v6631, %v6621
    %v9152 = vpack.c.b16 %v6632, %v6622
    %v9153 = vpack.c.b16 %v6633, %v6623
    %v9154 = vpack.c.b16 %v6644, %v6634
    %v9155 = vpack.c.b16 %v6645, %v6635
    %v9156 = vpack.c.b16 %v6646, %v6636
    %v9157 = vpack.c.b16 %v6647, %v6637
    %v9158 = vpack.c.b16 %v6648, %v6638
    %v9159 = vpack.c.b16 %v6649, %v6639
    %v9160 = vpack.c.b16 %v6650, %v6640
    %v9161 = vpack.c.b16 %v6651, %v6641
    %v9162 = vpack.c.b16 %v6652, %v6642
    %v9163 = vpack.c.b16 %v6653, %v6643
    %v9164 = vpack.c.b16 %v6664, %v6654
    %v9165 = vpack.c.b16 %v6665, %v6655
    %v9166 = vpack.c.b16 %v6666, %v6656
    %v9167 = vpack.c.b16 %v6667, %v6657
    %v9168 = vpack.c.b16 %v6668, %v6658
    %v9169 = vpack.c.b16 %v6669, %v6659
    %v9170 = vpack.c.b16 %v6670, %v6660
    %v9171 = vpack.c.b16 %v6671, %v6661
    %v9172 = vpack.c.b16 %v6672, %v6662
    %v9173 = vpack.c.b16 %v6673, %v6663
    %v9174 = vpack.c.b16 %v6684, %v6674
    %v9175 = vpack.c.b16 %v6685, %v6675
    %v9176 = vpack.c.b16 %v6686, %v6676
    %v9177 = vpack.c.b16 %v6687, %v6677
    %v9178 = vpack.c.b16 %v6688, %v6678
    %v9179 = vpack.c.b16 %v6689, %v6679
    %v9180 = vpack.c.b16 %v6690, %v6680
    %v9181 = vpack.c.b16 %v6691, %v6681
    %v9182 = vpack.c.b16 %v6692, %v6682
    %v9183 = vpack.c.b16 %v6693, %v6683
    %v9184 = vpack.c.b16 %v6704, %v6694
    %v9185 = vpack.c.b16 %v6705, %v6695
    %v9186 = vpack.c.b16 %v6706, %v6696
    %v9187 = vpack.c.b16 %v6707, %v6697
    %v9188 = vpack.c.b16 %v6708, %v6698
    %v9189 = vpack.c.b16 %v6709, %v6699
    %v9190 = vpack.c.b16 %v6710, %v6700
    %v9191 = vpack.c.b16 %v6711, %v6701
    %v9192 = vpack.c.b16 %v6712, %v6702
    %v9193 = vpack.c.b16 %v6713, %v6703
    %v9194 = vpack.c.b16 %v6724, %v6714
    %v9195 = vpack.c.b16 %v6725, %v6715
    %v9196 = vpack.c.b16 %v6726, %v6716
    %v9197 = vpack.c.b16 %v6727, %v6717
    %v9198 = vpack.c.b16 %v6728, %v6718
    %v9199 = vpack.c.b16 %v6729, %v6719
    %v9200 = vpack.c.b16 %v6730, %v6720
    %v9201 = vpack.c.b16 %v6731, %v6721
    %v9202 = vpack.c.b16 %v6732, %v6722
    %v9203 = vpack.c.b16 %v6733, %v6723
    %v9204 = vpack.c.b16 %v6744, %v6734
    %v9205 = vpack.c.b16 %v6745, %v6735
    %v9206 = vpack.c.b16 %v6746, %v6736
    %v9207 = vpack.c.b16 %v6747, %v6737
    %v9208 = vpack.c.b16 %v6748, %v6738
    %v9209 = vpack.c.b16 %v6749, %v6739
    %v9210 = vpack.c.b16 %v6750, %v6740
    %v9211 = vpack.c.b16 %v6751, %v6741
    %v9212 = vpack.c.b16 %v6752, %v6742
    %v9213 = vpack.c.b16 %v6753, %v6743
    %v9214 = vpack.c.b16 %v6764, %v6754
    %v9215 = vpack.c.b16 %v6765, %v6755
    %v9216 = vpack.c.b16 %v6766, %v6756
    %v9217 = vpack.c.b16 %v6767, %v6757
    %v9218 = vpack.c.b16 %v6768, %v6758
    %v9219 = vpack.c.b16 %v6769, %v6759
    %v9220 = vpack.c.b16 %v6770, %v6760
    %v9221 = vpack.c.b16 %v6771, %v6761
    %v9222 = vpack.c.b16 %v6772, %v6762
    %v9223 = vpack.c.b16 %v6773, %v6763
    %v9224 = vpack.c.b16 %v6784, %v6774
    %v9225 = vpack.c.b16 %v6785, %v6775
    %v9226 = vpack.c.b16 %v6786, %v6776
    %v9227 = vpack.c.b16 %v6787, %v6777
    %v9228 = vpack.c.b16 %v6788, %v6778
    %v9229 = vpack.c.b16 %v6789, %v6779
    %v9230 = vpack.c.b16 %v6790, %v6780
    %v9231 = vpack.c.b16 %v6791, %v6781
    %v9232 = vpack.c.b16 %v6792, %v6782
    %v9233 = vpack.c.b16 %v6793, %v6783
    %v9234 = vpack.c.b16 %v6804, %v6794
    %v9235 = vpack.c.b16 %v6805, %v6795
    %v9236 = vpack.c.b16 %v6806, %v6796
    %v9237 = vpack.c.b16 %v6807, %v6797
    %v9238 = vpack.c.b16 %v6808, %v6798
    %v9239 = vpack.c.b16 %v6809, %v6799
    %v9240 = vpack.c.b16 %v6810, %v6800
    %v9241 = vpack.c.b16 %v6811, %v6801
    %v9242 = vpack.c.b16 %v6812, %v6802
    %v9243 = vpack.c.b16 %v6813, %v6803
    %v9244 = vpack.c.b16 %v6824, %v6814
    %v9245 = vpack.c.b16 %v6825, %v6815
    %v9246 = vpack.c.b16 %v6826, %v6816
    %v9247 = vpack.c.b16 %v6827, %v6817
    %v9248 = vpack.c.b16 %v6828, %v6818
    %v9249 = vpack.c.b16 %v6829, %v6819
    %v9250 = vpack.c.b16 %v6830, %v6820
    %v9251 = vpack.c.b16 %v6831, %v6821
    %v9252 = vpack.c.b16 %v6832, %v6822
    %v9253 = vpack.c.b16 %v6833, %v6823
    %v9254 = vpack.c.b16 %v6844, %v6834
    %v9255 = vpack.c.b16 %v6845, %v6835
    %v9256 = vpack.c.b16 %v6846, %v6836
    %v9257 = vpack.c.b16 %v6847, %v6837
    %v9258 = vpack.c.b16 %v6848, %v6838
    %v9259 = vpack.c.b16 %v6849, %v6839
    %v9260 = vpack.c.b16 %v6850, %v6840
    %v9261 = vpack.c.b16 %v6851, %v6841
    %v9262 = vpack.c.b16 %v6852, %v6842
    %v9263 = vpack.c.b16 %v6853, %v6843
    %v9264 = vpack.c.b16 %v6864, %v6854
    %v9265 = vpack.c.b16 %v6865, %v6855
    %v9266 = vpack.c.b16 %v6866, %v6856
    %v9267 = vpack.c.b16 %v6867, %v6857
    %v9268 = vpack.c.b16 %v6868, %v6858
    %v9269 = vpack.c.b16 %v6869, %v6859
    %v9270 = vpack.c.b16 %v6870, %v6860
    %v9271 = vpack.c.b16 %v6871, %v6861
    %v9272 = vpack.c.b16 %v6872, %v6862
    %v9273 = vpack.c.b16 %v6873, %v6863
    %v9274 = vpack.c.b16 %v6884, %v6874
    %v9275 = vpack.c.b16 %v6885, %v6875
    %v9276 = vpack.c.b16 %v6886, %v6876
    %v9277 = vpack.c.b16 %v6887, %v6877
    %v9278 = vpack.c.b16 %v6888, %v6878
    %v9279 = vpack.c.b16 %v6889, %v6879
    %v9280 = vpack.c.b16 %v6890, %v6880
    %v9281 = vpack.c.b16 %v6891, %v6881
    %v9282 = vpack.c.b16 %v6892, %v6882
    %v9283 = vpack.c.b16 %v6893, %v6883
    %v9284 = vpack.c.b16 %v6904, %v6894
    %v9285 = vpack.c.b16 %v6905, %v6895
    %v9286 = vpack.c.b16 %v6906, %v6896
    %v9287 = vpack.c.b16 %v6907, %v6897
    %v9288 = vpack.c.b16 %v6908, %v6898
    %v9289 = vpack.c.b16 %v6909, %v6899
    %v9290 = vpack.c.b16 %v6910, %v6900
    %v9291 = vpack.c.b16 %v6911, %v6901
    %v9292 = vpack.c.b16 %v6912, %v6902
    %v9293 = vpack.c.b16 %v6913, %v6903
    %v9294 = vpack.c.b16 %v6924, %v6914
    %v9295 = vpack.c.b16 %v6925, %v6915
    %v9296 = vpack.c.b16 %v6926, %v6916
    %v9297 = vpack.c.b16 %v6927, %v6917
    %v9298 = vpack.c.b16 %v6928, %v6918
    %v9299 = vpack.c.b16 %v6929, %v6919
    %v9300 = vpack.c.b16 %v6930, %v6920
    %v9301 = vpack.c.b16 %v6931, %v6921
    %v9302 = vpack.c.b16 %v6932, %v6922
    %v9303 = vpack.c.b16 %v6933, %v6923
    %v9304 = vpack.c.b16 %v6944, %v6934
    %v9305 = vpack.c.b16 %v6945, %v6935
    %v9306 = vpack.c.b16 %v6946, %v6936
    %v9307 = vpack.c.b16 %v6947, %v6937
    %v9308 = vpack.c.b16 %v6948, %v6938
    %v9309 = vpack.c.b16 %v6949, %v6939
    %v9310 = vpack.c.b16 %v6950, %v6940
    %v9311 = vpack.c.b16 %v6951, %v6941
    %v9312 = vpack.c.b16 %v6952, %v6942
    %v9313 = vpack.c.b16 %v6953, %v6943
    %v9314 = vpack.c.b16 %v6964, %v6954
    %v9315 = vpack.c.b16 %v6965, %v6955
    %v9316 = vpack.c.b16 %v6966, %v6956
    %v9317 = vpack.c.b16 %v6967, %v6957
    %v9318 = vpack.c.b16 %v6968, %v6958
    %v9319 = vpack.c.b16 %v6969, %v6959
    %v9320 = vpack.c.b16 %v6970, %v6960
    %v9321 = vpack.c.b16 %v6971, %v6961
    %v9322 = vpack.c.b16 %v6972, %v6962
    %v9323 = vpack.c.b16 %v6973, %v6963
    %v9324 = vpack.c.b16 %v6984, %v6974
    %v9325 = vpack.c.b16 %v6985, %v6975
    %v9326 = vpack.c.b16 %v6986, %v6976
    %v9327 = vpack.c.b16 %v6987, %v6977
    %v9328 = vpack.c.b16 %v6988, %v6978
    %v9329 = vpack.c.b16 %v6989, %v6979
    %v9330 = vpack.c.b16 %v6990, %v6980
    %v9331 = vpack.c.b16 %v6991, %v6981
    %v9332 = vpack.c.b16 %v6992, %v6982
    %v9333 = vpack.c.b16 %v6993, %v6983
    %v9334 = vpack.c.b16 %v7004, %v6994
    %v9335 = vpack.c.b16 %v7005, %v6995
    %v9336 = vpack.c.b16 %v7006, %v6996
    %v9337 = vpack.c.b16 %v7007, %v6997
    %v9338 = vpack.c.b16 %v7008, %v6998
    %v9339 = vpack.c.b16 %v7009, %v6999
    %v9340 = vpack.c.b16 %v7010, %v7000
    %v9341 = vpack.c.b16 %v7011, %v7001
    %v9342 = vpack.c.b16 %v7012, %v7002
    %v9343 = vpack.c.b16 %v7013, %v7003
    %v9344 = vpack.c.b16 %v7024, %v7014
    %v9345 = vpack.c.b16 %v7025, %v7015
    %v9346 = vpack.c.b16 %v7026, %v7016
    %v9347 = vpack.c.b16 %v7027, %v7017
    %v9348 = vpack.c.b16 %v7028, %v7018
    %v9349 = vpack.c.b16 %v7029, %v7019
    %v9350 = vpack.c.b16 %v7030, %v7020
    %v9351 = vpack.c.b16 %v7031, %v7021
    %v9352 = vpack.c.b16 %v7032, %v7022
    %v9353 = vpack.c.b16 %v7033, %v7023
    %v9354 = vpack.c.b16 %v7044, %v7034
    %v9355 = vpack.c.b16 %v7045, %v7035
    %v9356 = vpack.c.b16 %v7046, %v7036
    %v9357 = vpack.c.b16 %v7047, %v7037
    %v9358 = vpack.c.b16 %v7048, %v7038
    %v9359 = vpack.c.b16 %v7049, %v7039
    %v9360 = vpack.c.b16 %v7050, %v7040
    %v9361 = vpack.c.b16 %v7051, %v7041
    %v9362 = vpack.c.b16 %v7052, %v7042
    %v9363 = vpack.c.b16 %v7053, %v7043
    %v9364 = vpack.c.b16 %v7064, %v7054
    %v9365 = vpack.c.b16 %v7065, %v7055
    %v9366 = vpack.c.b16 %v7066, %v7056
    %v9367 = vpack.c.b16 %v7067, %v7057
    %v9368 = vpack.c.b16 %v7068, %v7058
    %v9369 = vpack.c.b16 %v7069, %v7059
    %v9370 = vpack.c.b16 %v7070, %v7060
    %v9371 = vpack.c.b16 %v7071, %v7061
    %v9372 = vpack.c.b16 %v7072, %v7062
    %v9373 = vpack.c.b16 %v7073, %v7063
    %v9374 = vpack.c.b16 %v7084, %v7074
    %v9375 = vpack.c.b16 %v7085, %v7075
    %v9376 = vpack.c.b16 %v7086, %v7076
    %v9377 = vpack.c.b16 %v7087, %v7077
    %v9378 = vpack.c.b16 %v7088, %v7078
    %v9379 = vpack.c.b16 %v7089, %v7079
    %v9380 = vpack.c.b16 %v7090, %v7080
    %v9381 = vpack.c.b16 %v7091, %v7081
    %v9382 = vpack.c.b16 %v7092, %v7082
    %v9383 = vpack.c.b16 %v7093, %v7083
    %v9384 = vpack.c.b16 %v7104, %v7094
    %v9385 = vpack.c.b16 %v7105, %v7095
    %v9386 = vpack.c.b16 %v7106, %v7096
    %v9387 = vpack.c.b16 %v7107, %v7097
    %v9388 = vpack.c.b16 %v7108, %v7098
    %v9389 = vpack.c.b16 %v7109, %v7099
    %v9390 = vpack.c.b16 %v7110, %v7100
    %v9391 = vpack.c.b16 %v7111, %v7101
    %v9392 = vpack.c.b16 %v7112, %v7102
    %v9393 = vpack.c.b16 %v7113, %v7103
    %v9394 = vpack.c.b16 %v7124, %v7114
    %v9395 = vpack.c.b16 %v7125, %v7115
    %v9396 = vpack.c.b16 %v7126, %v7116
    %v9397 = vpack.c.b16 %v7127, %v7117
    %v9398 = vpack.c.b16 %v7128, %v7118
    %v9399 = vpack.c.b16 %v7129, %v7119
    %v9400 = vpack.c.b16 %v7130, %v7120
    %v9401 = vpack.c.b16 %v7131, %v7121
    %v9402 = vpack.c.b16 %v7132, %v7122
    %v9403 = vpack.c.b16 %v7133, %v7123
    %v9404 = vpack.c.b16 %v7144, %v7134
    %v9405 = vpack.c.b16 %v7145, %v7135
    %v9406 = vpack.c.b16 %v7146, %v7136
    %v9407 = vpack.c.b16 %v7147, %v7137
    %v9408 = vpack.c.b16 %v7148, %v7138
    %v9409 = vpack.c.b16 %v7149, %v7139
    %v9410 = vpack.c.b16 %v7150, %v7140
    %v9411 = vpack.c.b16 %v7151, %v7141
    %v9412 = vpack.c.b16 %v7152, %v7142
    %v9413 = vpack.c.b16 %v7153, %v7143
    %v9414 = vpack.c.b16 %v7164, %v7154
    %v9415 = vpack.c.b16 %v7165, %v7155
    %v9416 = vpack.c.b16 %v7166, %v7156
    %v9417 = vpack.c.b16 %v7167, %v7157
    %v9418 = vpack.c.b16 %v7168, %v7158
    %v9419 = vpack.c.b16 %v7169, %v7159
    %v9420 = vpack.c.b16 %v7170, %v7160
    %v9421 = vpack.c.b16 %v7171, %v7161
    %v9422 = vpack.c.b16 %v7172, %v7162
    %v9423 = vpack.c.b16 %v7173, %v7163
    %v9424 = vpack.c.b16 %v7184, %v7174
    %v9425 = vpack.c.b16 %v7185, %v7175
    %v9426 = vpack.c.b16 %v7186, %v7176
    %v9427 = vpack.c.b16 %v7187, %v7177
    %v9428 = vpack.c.b16 %v7188, %v7178
    %v9429 = vpack.c.b16 %v7189, %v7179
    %v9430 = vpack.c.b16 %v7190, %v7180
    %v9431 = vpack.c.b16 %v7191, %v7181
    %v9432 = vpack.c.b16 %v7192, %v7182
    %v9433 = vpack.c.b16 %v7193, %v7183
    %v9434 = vpack.c.b16 %v7204, %v7194
    %v9435 = vpack.c.b16 %v7205, %v7195
    %v9436 = vpack.c.b16 %v7206, %v7196
    %v9437 = vpack.c.b16 %v7207, %v7197
    %v9438 = vpack.c.b16 %v7208, %v7198
    %v9439 = vpack.c.b16 %v7209, %v7199
    %v9440 = vpack.c.b16 %v7210, %v7200
    %v9441 = vpack.c.b16 %v7211, %v7201
    %v9442 = vpack.c.b16 %v7212, %v7202
    %v9443 = vpack.c.b16 %v7213, %v7203
    %v9444 = vpack.c.b16 %v7224, %v7214
    %v9445 = vpack.c.b16 %v7225, %v7215
    %v9446 = vpack.c.b16 %v7226, %v7216
    %v9447 = vpack.c.b16 %v7227, %v7217
    %v9448 = vpack.c.b16 %v7228, %v7218
    %v9449 = vpack.c.b16 %v7229, %v7219
    %v9450 = vpack.c.b16 %v7230, %v7220
    %v9451 = vpack.c.b16 %v7231, %v7221
    %v9452 = vpack.c.b16 %v7232, %v7222
    %v9453 = vpack.c.b16 %v7233, %v7223
    %v9454 = vpack.c.b16 %v7244, %v7234
    %v9455 = vpack.c.b16 %v7245, %v7235
    %v9456 = vpack.c.b16 %v7246, %v7236
    %v9457 = vpack.c.b16 %v7247, %v7237
    %v9458 = vpack.c.b16 %v7248, %v7238
    %v9459 = vpack.c.b16 %v7249, %v7239
    %v9460 = vpack.c.b16 %v7250, %v7240
    %v9461 = vpack.c.b16 %v7251, %v7241
    %v9462 = vpack.c.b16 %v7252, %v7242
    %v9463 = vpack.c.b16 %v7253, %v7243
    %v9464 = vpack.c.b16 %v7264, %v7254
    %v9465 = vpack.c.b16 %v7265, %v7255
    %v9466 = vpack.c.b16 %v7266, %v7256
    %v9467 = vpack.c.b16 %v7267, %v7257
    %v9468 = vpack.c.b16 %v7268, %v7258
    %v9469 = vpack.c.b16 %v7269, %v7259
    %v9470 = vpack.c.b16 %v7270, %v7260
    %v9471 = vpack.c.b16 %v7271, %v7261
    %v9472 = vpack.c.b16 %v7272, %v7262
    %v9473 = vpack.c.b16 %v7273, %v7263
    %v9474 = vpack.c.b16 %v7284, %v7274
    %v9475 = vpack.c.b16 %v7285, %v7275
    %v9476 = vpack.c.b16 %v7286, %v7276
    %v9477 = vpack.c.b16 %v7287, %v7277
    %v9478 = vpack.c.b16 %v7288, %v7278
    %v9479 = vpack.c.b16 %v7289, %v7279
    %v9480 = vpack.c.b16 %v7290, %v7280
    %v9481 = vpack.c.b16 %v7291, %v7281
    %v9482 = vpack.c.b16 %v7292, %v7282
    %v9483 = vpack.c.b16 %v7293, %v7283
    %v9484 = vpack.c.b16 %v7304, %v7294
    %v9485 = vpack.c.b16 %v7305, %v7295
    %v9486 = vpack.c.b16 %v7306, %v7296
    %v9487 = vpack.c.b16 %v7307, %v7297
    %v9488 = vpack.c.b16 %v7308, %v7298
    %v9489 = vpack.c.b16 %v7309, %v7299
    %v9490 = vpack.c.b16 %v7310, %v7300
    %v9491 = vpack.c.b16 %v7311, %v7301
    %v9492 = vpack.c.b16 %v7312, %v7302
    %v9493 = vpack.c.b16 %v7313, %v7303
    %v9494 = vpack.c.b16 %v7324, %v7314
    %v9495 = vpack.c.b16 %v7325, %v7315
    %v9496 = vpack.c.b16 %v7326, %v7316
    %v9497 = vpack.c.b16 %v7327, %v7317
    %v9498 = vpack.c.b16 %v7328, %v7318
    %v9499 = vpack.c.b16 %v7329, %v7319
    %v9500 = vpack.c.b16 %v7330, %v7320
    %v9501 = vpack.c.b16 %v7331, %v7321
    %v9502 = vpack.c.b16 %v7332, %v7322
    %v9503 = vpack.c.b16 %v7333, %v7323
    %v9504 = vpack.c.b16 %v7344, %v7334
    %v9505 = vpack.c.b16 %v7345, %v7335
    %v9506 = vpack.c.b16 %v7346, %v7336
    %v9507 = vpack.c.b16 %v7347, %v7337
    %v9508 = vpack.c.b16 %v7348, %v7338
    %v9509 = vpack.c.b16 %v7349, %v7339
    %v9510 = vpack.c.b16 %v7350, %v7340
    %v9511 = vpack.c.b16 %v7351, %v7341
    %v9512 = vpack.c.b16 %v7352, %v7342
    %v9513 = vpack.c.b16 %v7353, %v7343
    %v9514 = vpack.c.b16 %v7364, %v7354
    %v9515 = vpack.c.b16 %v7365, %v7355
    %v9516 = vpack.c.b16 %v7366, %v7356
    %v9517 = vpack.c.b16 %v7367, %v7357
    %v9518 = vpack.c.b16 %v7368, %v7358
    %v9519 = vpack.c.b16 %v7369, %v7359
    %v9520 = vpack.c.b16 %v7370, %v7360
    %v9521 = vpack.c.b16 %v7371, %v7361
    %v9522 = vpack.c.b16 %v7372, %v7362
    %v9523 = vpack.c.b16 %v7373, %v7363
    %v9524 = vpack.c.b16 %v7384, %v7374
    %v9525 = vpack.c.b16 %v7385, %v7375
    %v9526 = vpack.c.b16 %v7386, %v7376
    %v9527 = vpack.c.b16 %v7387, %v7377
    %v9528 = vpack.c.b16 %v7388, %v7378
    %v9529 = vpack.c.b16 %v7389, %v7379
    %v9530 = vpack.c.b16 %v7390, %v7380
    %v9531 = vpack.c.b16 %v7391, %v7381
    %v9532 = vpack.c.b16 %v7392, %v7382
    %v9533 = vpack.c.b16 %v7393, %v7383
    %v9534 = vpack.c.b16 %v7404, %v7394
    %v9535 = vpack.c.b16 %v7405, %v7395
    %v9536 = vpack.c.b16 %v7406, %v7396
    %v9537 = vpack.c.b16 %v7407, %v7397
    %v9538 = vpack.c.b16 %v7408, %v7398
    %v9539 = vpack.c.b16 %v7409, %v7399
    %v9540 = vpack.c.b16 %v7410, %v7400
    %v9541 = vpack.c.b16 %v7411, %v7401
    %v9542 = vpack.c.b16 %v7412, %v7402
    %v9543 = vpack.c.b16 %v7413, %v7403
    %v9544 = vpack.c.b16 %v7424, %v7414
    %v9545 = vpack.c.b16 %v7425, %v7415
    %v9546 = vpack.c.b16 %v7426, %v7416
    %v9547 = vpack.c.b16 %v7427, %v7417
    %v9548 = vpack.c.b16 %v7428, %v7418
    %v9549 = vpack.c.b16 %v7429, %v7419
    %v9550 = vpack.c.b16 %v7430, %v7420
    %v9551 = vpack.c.b16 %v7431, %v7421
    %v9552 = vpack.c.b16 %v7432, %v7422
    %v9553 = vpack.c.b16 %v7433, %v7423
    %v9554 = vpack.c.b16 %v7444, %v7434
    %v9555 = vpack.c.b16 %v7445, %v7435
    %v9556 = vpack.c.b16 %v7446, %v7436
    %v9557 = vpack.c.b16 %v7447, %v7437
    %v9558 = vpack.c.b16 %v7448, %v7438
    %v9559 = vpack.c.b16 %v7449, %v7439
    %v9560 = vpack.c.b16 %v7450, %v7440
    %v9561 = vpack.c.b16 %v7451, %v7441
    %v9562 = vpack.c.b16 %v7452, %v7442
    %v9563 = vpack.c.b16 %v7453, %v7443
    %v9564 = vpack.c.b16 %v7464, %v7454
    %v9565 = vpack.c.b16 %v7465, %v7455
    %v9566 = vpack.c.b16 %v7466, %v7456
    %v9567 = vpack.c.b16 %v7467, %v7457
    %v9568 = vpack.c.b16 %v7468, %v7458
    %v9569 = vpack.c.b16 %v7469, %v7459
    %v9570 = vpack.c.b16 %v7470, %v7460
    %v9571 = vpack.c.b16 %v7471, %v7461
    %v9572 = vpack.c.b16 %v7472, %v7462
    %v9573 = vpack.c.b16 %v7473, %v7463
    %v9574 = vpack.c.b16 %v7484, %v7474
    %v9575 = vpack.c.b16 %v7485, %v7475
    %v9576 = vpack.c.b16 %v7486, %v7476
    %v9577 = vpack.c.b16 %v7487, %v7477
    %v9578 = vpack.c.b16 %v7488, %v7478
    %v9579 = vpack.c.b16 %v7489, %v7479
    %v9580 = vpack.c.b16 %v7490, %v7480
    %v9581 = vpack.c.b16 %v7491, %v7481
    %v9582 = vpack.c.b16 %v7492, %v7482
    %v9583 = vpack.c.b16 %v7493, %v7483
    %v9584 = vpack.c.b16 %v7504, %v7494
    %v9585 = vpack.c.b16 %v7505, %v7495
    %v9586 = vpack.c.b16 %v7506, %v7496
    %v9587 = vpack.c.b16 %v7507, %v7497
    %v9588 = vpack.c.b16 %v7508, %v7498
    %v9589 = vpack.c.b16 %v7509, %v7499
    %v9590 = vpack.c.b16 %v7510, %v7500
    %v9591 = vpack.c.b16 %v7511, %v7501
    %v9592 = vpack.c.b16 %v7512, %v7502
    %v9593 = vpack.c.b16 %v7513, %v7503
    %v9594 = vpack.c.b16 %v7524, %v7514
    %v9595 = vpack.c.b16 %v7525, %v7515
    %v9596 = vpack.c.b16 %v7526, %v7516
    %v9597 = vpack.c.b16 %v7527, %v7517
    %v9598 = vpack.c.b16 %v7528, %v7518
    %v9599 = vpack.c.b16 %v7529, %v7519
    %v9600 = vpack.c.b16 %v7530, %v7520
    %v9601 = vpack.c.b16 %v7531, %v7521
    %v9602 = vpack.c.b16 %v7532, %v7522
    %v9603 = vpack.c.b16 %v7533, %v7523
    %v9604 = vpack.c.b16 %v7544, %v7534
    %v9605 = vpack.c.b16 %v7545, %v7535
    %v9606 = vpack.c.b16 %v7546, %v7536
    %v9607 = vpack.c.b16 %v7547, %v7537
    %v9608 = vpack.c.b16 %v7548, %v7538
    %v9609 = vpack.c.b16 %v7549, %v7539
    %v9610 = vpack.c.b16 %v7550, %v7540
    %v9611 = vpack.c.b16 %v7551, %v7541
    %v9612 = vpack.c.b16 %v7552, %v7542
    %v9613 = vpack.c.b16 %v7553, %v7543
    %v9614 = vpack.c.b16 %v7564, %v7554
    %v9615 = vpack.c.b16 %v7565, %v7555
    %v9616 = vpack.c.b16 %v7566, %v7556
    %v9617 = vpack.c.b16 %v7567, %v7557
    %v9618 = vpack.c.b16 %v7568, %v7558
    %v9619 = vpack.c.b16 %v7569, %v7559
    %v9620 = vpack.c.b16 %v7570, %v7560
    %v9621 = vpack.c.b16 %v7571, %v7561
    %v9622 = vpack.c.b16 %v7572, %v7562
    %v9623 = vpack.c.b16 %v7573, %v7563
    %v9624 = vpack.c.b16 %v7584, %v7574
    %v9625 = vpack.c.b16 %v7585, %v7575
    %v9626 = vpack.c.b16 %v7586, %v7576
    %v9627 = vpack.c.b16 %v7587, %v7577
    %v9628 = vpack.c.b16 %v7588, %v7578
    %v9629 = vpack.c.b16 %v7589, %v7579
    %v9630 = vpack.c.b16 %v7590, %v7580
    %v9631 = vpack.c.b16 %v7591, %v7581
    %v9632 = vpack.c.b16 %v7592, %v7582
    %v9633 = vpack.c.b16 %v7593, %v7583
    %v9634 = vpack.c.b16 %v7604, %v7594
    %v9635 = vpack.c.b16 %v7605, %v7595
    %v9636 = vpack.c.b16 %v7606, %v7596
    %v9637 = vpack.c.b16 %v7607, %v7597
    %v9638 = vpack.c.b16 %v7608, %v7598
    %v9639 = vpack.c.b16 %v7609, %v7599
    %v9640 = vpack.c.b16 %v7610, %v7600
    %v9641 = vpack.c.b16 %v7611, %v7601
    %v9642 = vpack.c.b16 %v7612, %v7602
    %v9643 = vpack.c.b16 %v7613, %v7603
    %v9644 = vpack.c.b16 %v7624, %v7614
    %v9645 = vpack.c.b16 %v7625, %v7615
    %v9646 = vpack.c.b16 %v7626, %v7616
    %v9647 = vpack.c.b16 %v7627, %v7617
    %v9648 = vpack.c.b16 %v7628, %v7618
    %v9649 = vpack.c.b16 %v7629, %v7619
    %v9650 = vpack.c.b16 %v7630, %v7620
    %v9651 = vpack.c.b16 %v7631, %v7621
    %v9652 = vpack.c.b16 %v7632, %v7622
    %v9653 = vpack.c.b16 %v7633, %v7623
    %v9654 = vpack.c.b16 %v7644, %v7634
    %v9655 = vpack.c.b16 %v7645, %v7635
    %v9656 = vpack.c.b16 %v7646, %v7636
    %v9657 = vpack.c.b16 %v7647, %v7637
    %v9658 = vpack.c.b16 %v7648, %v7638
    %v9659 = vpack.c.b16 %v7649, %v7639
    %v9660 = vpack.c.b16 %v7650, %v7640
    %v9661 = vpack.c.b16 %v7651, %v7641
    %v9662 = vpack.c.b16 %v7652, %v7642
    %v9663 = vpack.c.b16 %v7653, %v7643
    %v9664 = vpack.c.b16 %v7664, %v7654
    %v9665 = vpack.c.b16 %v7665, %v7655
    %v9666 = vpack.c.b16 %v7666, %v7656
    %v9667 = vpack.c.b16 %v7667, %v7657
    %v9668 = vpack.c.b16 %v7668, %v7658
    %v9669 = vpack.c.b16 %v7669, %v7659
    %v9670 = vpack.c.b16 %v7670, %v7660
    %v9671 = vpack.c.b16 %v7671, %v7661
    %v9672 = vpack.c.b16 %v7672, %v7662
    %v9673 = vpack.c.b16 %v7673, %v7663
    %v9674 = vpack.c.b16 %v7684, %v7674
    %v9675 = vpack.c.b16 %v7685, %v7675
    %v9676 = vpack.c.b16 %v7686, %v7676
    %v9677 = vpack.c.b16 %v7687, %v7677
    %v9678 = vpack.c.b16 %v7688, %v7678
    %v9679 = vpack.c.b16 %v7689, %v7679
    %v9680 = vpack.c.b16 %v7690, %v7680
    %v9681 = vpack.c.b16 %v7691, %v7681
    %v9682 = vpack.c.b16 %v7692, %v7682
    %v9683 = vpack.c.b16 %v7693, %v7683
    %v9684 = vpack.c.b16 %v7704, %v7694
    %v9685 = vpack.c.b16 %v7705, %v7695
    %v9686 = vpack.c.b16 %v7706, %v7696
    %v9687 = vpack.c.b16 %v7707, %v7697
    %v9688 = vpack.c.b16 %v7708, %v7698
    %v9689 = vpack.c.b16 %v7709, %v7699
    %v9690 = vpack.c.b16 %v7710, %v7700
    %v9691 = vpack.c.b16 %v7711, %v7701
    %v9692 = vpack.c.b16 %v7712, %v7702
    %v9693 = vpack.c.b16 %v7713, %v7703
    %v9694 = vpack.c.b16 %v7724, %v7714
    %v9695 = vpack.c.b16 %v7725, %v7715
    %v9696 = vpack.c.b16 %v7726, %v7716
    %v9697 = vpack.c.b16 %v7727, %v7717
    %v9698 = vpack.c.b16 %v7728, %v7718
    %v9699 = vpack.c.b16 %v7729, %v7719
    %v9700 = vpack.c.b16 %v7730, %v7720
    %v9701 = vpack.c.b16 %v7731, %v7721
    %v9702 = vpack.c.b16 %v7732, %v7722
    %v9703 = vpack.c.b16 %v7733, %v7723
    %v9704 = vpack.c.b16 %v7744, %v7734
    %v9705 = vpack.c.b16 %v7745, %v7735
    %v9706 = vpack.c.b16 %v7746, %v7736
    %v9707 = vpack.c.b16 %v7747, %v7737
    %v9708 = vpack.c.b16 %v7748, %v7738
    %v9709 = vpack.c.b16 %v7749, %v7739
    %v9710 = vpack.c.b16 %v7750, %v7740
    %v9711 = vpack.c.b16 %v7751, %v7741
    %v9712 = vpack.c.b16 %v7752, %v7742
    %v9713 = vpack.c.b16 %v7753, %v7743
    %v9714 = vpack.c.b16 %v7764, %v7754
    %v9715 = vpack.c.b16 %v7765, %v7755
    %v9716 = vpack.c.b16 %v7766, %v7756
    %v9717 = vpack.c.b16 %v7767, %v7757
    %v9718 = vpack.c.b16 %v7768, %v7758
    %v9719 = vpack.c.b16 %v7769, %v7759
    %v9720 = vpack.c.b16 %v7770, %v7760
    %v9721 = vpack.c.b16 %v7771, %v7761
    %v9722 = vpack.c.b16 %v7772, %v7762
    %v9723 = vpack.c.b16 %v7773, %v7763
    %v9724 = vpack.c.b16 %v7784, %v7774
    %v9725 = vpack.c.b16 %v7785, %v7775
    %v9726 = vpack.c.b16 %v7786, %v7776
    %v9727 = vpack.c.b16 %v7787, %v7777
    %v9728 = vpack.c.b16 %v7788, %v7778
    %v9729 = vpack.c.b16 %v7789, %v7779
    %v9730 = vpack.c.b16 %v7790, %v7780
    %v9731 = vpack.c.b16 %v7791, %v7781
    %v9732 = vpack.c.b16 %v7792, %v7782
    %v9733 = vpack.c.b16 %v7793, %v7783
    %v9734 = vpack.c.b16 %v7804, %v7794
    %v9735 = vpack.c.b16 %v7805, %v7795
    %v9736 = vpack.c.b16 %v7806, %v7796
    %v9737 = vpack.c.b16 %v7807, %v7797
    %v9738 = vpack.c.b16 %v7808, %v7798
    %v9739 = vpack.c.b16 %v7809, %v7799
    %v9740 = vpack.c.b16 %v7810, %v7800
    %v9741 = vpack.c.b16 %v7811, %v7801
    %v9742 = vpack.c.b16 %v7812, %v7802
    %v9743 = vpack.c.b16 %v7813, %v7803
    %v9744 = vpack.c.b16 %v7824, %v7814
    %v9745 = vpack.c.b16 %v7825, %v7815
    %v9746 = vpack.c.b16 %v7826, %v7816
    %v9747 = vpack.c.b16 %v7827, %v7817
    %v9748 = vpack.c.b16 %v7828, %v7818
    %v9749 = vpack.c.b16 %v7829, %v7819
    %v9750 = vpack.c.b16 %v7830, %v7820
    %v9751 = vpack.c.b16 %v7831, %v7821
    %v9752 = vpack.c.b16 %v7832, %v7822
    %v9753 = vpack.c.b16 %v7833, %v7823
    %11674 = vmatprep.subr.bf16.mxu0 %v7835
    %11675 = vmatpush1.bf16.msra.mxu0 %v7834
    %11676 = vmatprep.subr.bf16.mxu0 %v7845
    %11677 = vmatpush1.bf16.msra.mxu0 %v7844
    %11678 = vmatprep.subr.bf16.mxu0 %v7855
    %11679 = vmatpush1.bf16.msra.mxu0 %v7854
    %11680 = vmatprep.subr.bf16.mxu0 %v7865
    %11681 = vmatpush1.bf16.msra.mxu0 %v7864
    %11682 = vmatprep.subr.bf16.mxu0 %v7875
    %11683 = vmatpush1.bf16.msra.mxu0 %v7874
    %11684 = vmatprep.subr.bf16.mxu0 %v7885
    %11685 = vmatpush1.bf16.msra.mxu0 %v7884
    %11686 = vmatprep.subr.bf16.mxu0 %v7895
    %11687 = vmatpush1.bf16.msra.mxu0 %v7894
    %11688 = vmatprep.subr.bf16.mxu0 %v7905
    %11689 = vmatpush1.bf16.msra.mxu0 %v7904
    %11690 = vmatprep.subr.bf16.mxu0 %v7915
    %11691 = vmatpush1.bf16.msra.mxu0 %v7914
    %11692 = vmatprep.subr.bf16.mxu0 %v7925
    %11693 = vmatpush1.bf16.msra.mxu0 %v7924
    %11694 = vmatprep.subr.bf16.mxu0 %v7935
    %11695 = vmatpush1.bf16.msra.mxu0 %v7934
    %11696 = vmatprep.subr.bf16.mxu0 %v7945
    %11697 = vmatpush1.bf16.msra.mxu0 %v7944
    %11698 = vmatprep.subr.bf16.mxu0 %v7955
    %11699 = vmatpush1.bf16.msra.mxu0 %v7954
    %11700 = vmatprep.subr.bf16.mxu0 %v7965
    %11701 = vmatpush1.bf16.msra.mxu0 %v7964
    %11702 = vmatprep.subr.bf16.mxu0 %v7975
    %11703 = vmatpush1.bf16.msra.mxu0 %v7974
    %11704 = vmatprep.subr.bf16.mxu0 %v7985
    %11705 = vmatpush1.bf16.msra.mxu0 %v7984
    %11706 = vmatprep.mubr.bf16.mxu0 %v1997
    %11707 = vmatmul.mubr.bf16.gmra.mrb[0].mxu0 %v1996
    %v11708 = vpop.f32.mrb[0].mxu0
    %v11709 = vadd.f32 %v2027, %v11708
    %v11710 = vpop.f32.mrb[0].mxu0
    %v11711 = vadd.f32 %v2031, %v11710
    %v11712 = vpop.f32.mrb[0].mxu0
    %v11713 = vpop.f32.mrb[0].mxu0
    %11714 = vdwg.mxu0
    %11715 = vmatprep.subr.bf16.mxu0 %v7995
    %11716 = vmatpush1.bf16.msra.mxu0 %v7994
    %11717 = vmatprep.subr.bf16.mxu0 %v8005
    %11718 = vmatpush1.bf16.msra.mxu0 %v8004
    %11719 = vmatprep.subr.bf16.mxu0 %v8015
    %11720 = vmatpush1.bf16.msra.mxu0 %v8014
    %11721 = vmatprep.subr.bf16.mxu0 %v8025
    %11722 = vmatpush1.bf16.msra.mxu0 %v8024
    %11723 = vmatprep.subr.bf16.mxu0 %v8035
    %11724 = vmatpush1.bf16.msra.mxu0 %v8034
    %11725 = vmatprep.subr.bf16.mxu0 %v8045
    %11726 = vmatpush1.bf16.msra.mxu0 %v8044
    %11727 = vmatprep.subr.bf16.mxu0 %v8055
    %11728 = vmatpush1.bf16.msra.mxu0 %v8054
    %11729 = vmatprep.subr.bf16.mxu0 %v8065
    %11730 = vmatpush1.bf16.msra.mxu0 %v8064
    %11731 = vmatprep.subr.bf16.mxu0 %v8075
    %11732 = vmatpush1.bf16.msra.mxu0 %v8074
    %11733 = vmatprep.subr.bf16.mxu0 %v8085
    %11734 = vmatpush1.bf16.msra.mxu0 %v8084
    %11735 = vmatprep.subr.bf16.mxu0 %v8095
    %11736 = vmatpush1.bf16.msra.mxu0 %v8094
    %11737 = vmatprep.subr.bf16.mxu0 %v8105
    %11738 = vmatpush1.bf16.msra.mxu0 %v8104
    %11739 = vmatprep.subr.bf16.mxu0 %v8115
    %11740 = vmatpush1.bf16.msra.mxu0 %v8114
    %11741 = vmatprep.subr.bf16.mxu0 %v8125
    %11742 = vmatpush1.bf16.msra.mxu0 %v8124
    %11743 = vmatprep.subr.bf16.mxu0 %v8135
    %11744 = vmatpush1.bf16.msra.mxu0 %v8134
    %11745 = vmatprep.subr.bf16.mxu0 %v8145
    %11746 = vmatpush1.bf16.msra.mxu0 %v8144
    %11747 = vmatprep.mubr.bf16.mxu0 %v1999
    %11748 = vmatmul.mubr.bf16.gmra.mrb[0].mxu0 %v1998
    %v11749 = vpop.f32.mrb[0].mxu0
    %v11750 = vadd.f32 %v11709, %v11749
    %v11751 = vpop.f32.mrb[0].mxu0
    %v11752 = vadd.f32 %v11711, %v11751
    %v11753 = vpop.f32.mrb[0].mxu0
    %v11754 = vpop.f32.mrb[0].mxu0
    %11755 = vdwg.mxu0
    %11756 = vmatprep.subr.bf16.mxu0 %v8155
    %11757 = vmatpush1.bf16.msra.mxu0 %v8154
    %11758 = vmatprep.subr.bf16.mxu0 %v8165
    %11759 = vmatpush1.bf16.msra.mxu0 %v8164
    %11760 = vmatprep.subr.bf16.mxu0 %v8175
    %11761 = vmatpush1.bf16.msra.mxu0 %v8174
    %11762 = vmatprep.subr.bf16.mxu0 %v8185
    %11763 = vmatpush1.bf16.msra.mxu0 %v8184
    %11764 = vmatprep.subr.bf16.mxu0 %v8195
    %11765 = vmatpush1.bf16.msra.mxu0 %v8194
    %11766 = vmatprep.subr.bf16.mxu0 %v8205
    %11767 = vmatpush1.bf16.msra.mxu0 %v8204
    %11768 = vmatprep.subr.bf16.mxu0 %v8215
    %11769 = vmatpush1.bf16.msra.mxu0 %v8214
    %11770 = vmatprep.subr.bf16.mxu0 %v8225
    %11771 = vmatpush1.bf16.msra.mxu0 %v8224
    %11772 = vmatprep.subr.bf16.mxu0 %v8235
    %11773 = vmatpush1.bf16.msra.mxu0 %v8234
    %11774 = vmatprep.subr.bf16.mxu0 %v8245
    %11775 = vmatpush1.bf16.msra.mxu0 %v8244
    %11776 = vmatprep.subr.bf16.mxu0 %v8255
    %11777 = vmatpush1.bf16.msra.mxu0 %v8254
    %11778 = vmatprep.subr.bf16.mxu0 %v8265
    %11779 = vmatpush1.bf16.msra.mxu0 %v8264
    %11780 = vmatprep.subr.bf16.mxu0 %v8275
    %11781 = vmatpush1.bf16.msra.mxu0 %v8274
    %11782 = vmatprep.subr.bf16.mxu0 %v8285
    %11783 = vmatpush1.bf16.msra.mxu0 %v8284
    %11784 = vmatprep.subr.bf16.mxu0 %v8295
    %11785 = vmatpush1.bf16.msra.mxu0 %v8294
    %11786 = vmatprep.subr.bf16.mxu0 %v8305
    %11787 = vmatpush1.bf16.msra.mxu0 %v8304
    %11788 = vmatprep.mubr.bf16.mxu0 %v2001
    %11789 = vmatmul.mubr.bf16.gmra.mrb[0].mxu0 %v2000
    %v11790 = vpop.f32.mrb[0].mxu0
    %v11791 = vadd.f32 %v11750, %v11790
    %v11792 = vpop.f32.mrb[0].mxu0
    %v11793 = vadd.f32 %v11752, %v11792
    %v11794 = vpop.f32.mrb[0].mxu0
    %v11795 = vpop.f32.mrb[0].mxu0
    %11796 = vdwg.mxu0
    %11797 = vmatprep.subr.bf16.mxu0 %v8315
    %11798 = vmatpush1.bf16.msra.mxu0 %v8314
    %11799 = vmatprep.subr.bf16.mxu0 %v8325
    %11800 = vmatpush1.bf16.msra.mxu0 %v8324
    %11801 = vmatprep.subr.bf16.mxu0 %v8335
    %11802 = vmatpush1.bf16.msra.mxu0 %v8334
    %11803 = vmatprep.subr.bf16.mxu0 %v8345
    %11804 = vmatpush1.bf16.msra.mxu0 %v8344
    %11805 = vmatprep.subr.bf16.mxu0 %v8355
    %11806 = vmatpush1.bf16.msra.mxu0 %v8354
    %11807 = vmatprep.subr.bf16.mxu0 %v8365
    %11808 = vmatpush1.bf16.msra.mxu0 %v8364
    %11809 = vmatprep.subr.bf16.mxu0 %v8375
    %11810 = vmatpush1.bf16.msra.mxu0 %v8374
    %11811 = vmatprep.subr.bf16.mxu0 %v8385
    %11812 = vmatpush1.bf16.msra.mxu0 %v8384
    %11813 = vmatprep.subr.bf16.mxu0 %v8395
    %11814 = vmatpush1.bf16.msra.mxu0 %v8394
    %11815 = vmatprep.subr.bf16.mxu0 %v8405
    %11816 = vmatpush1.bf16.msra.mxu0 %v8404
    %11817 = vmatprep.subr.bf16.mxu0 %v8415
    %11818 = vmatpush1.bf16.msra.mxu0 %v8414
    %11819 = vmatprep.subr.bf16.mxu0 %v8425
    %11820 = vmatpush1.bf16.msra.mxu0 %v8424
    %11821 = vmatprep.subr.bf16.mxu0 %v8435
    %11822 = vmatpush1.bf16.msra.mxu0 %v8434
    %11823 = vmatprep.subr.bf16.mxu0 %v8445
    %11824 = vmatpush1.bf16.msra.mxu0 %v8444
    %11825 = vmatprep.subr.bf16.mxu0 %v8455
    %11826 = vmatpush1.bf16.msra.mxu0 %v8454
    %11827 = vmatprep.subr.bf16.mxu0 %v8465
    %11828 = vmatpush1.bf16.msra.mxu0 %v8464
    %11829 = vmatprep.mubr.bf16.mxu0 %v2003
    %11830 = vmatmul.mubr.bf16.gmra.mrb[0].mxu0 %v2002
    %v11831 = vpop.f32.mrb[0].mxu0
    %v11832 = vadd.f32 %v11791, %v11831
    %v11833 = vpop.f32.mrb[0].mxu0
    %v11834 = vadd.f32 %v11793, %v11833
    %v11835 = vpop.f32.mrb[0].mxu0
    %v11836 = vpop.f32.mrb[0].mxu0
    %11837 = vdwg.mxu0
    %11838 = vmatprep.subr.bf16.mxu0 %v8475
    %11839 = vmatpush1.bf16.msra.mxu0 %v8474
    %11840 = vmatprep.subr.bf16.mxu0 %v8485
    %11841 = vmatpush1.bf16.msra.mxu0 %v8484
    %11842 = vmatprep.subr.bf16.mxu0 %v8495
    %11843 = vmatpush1.bf16.msra.mxu0 %v8494
    %11844 = vmatprep.subr.bf16.mxu0 %v8505
    %11845 = vmatpush1.bf16.msra.mxu0 %v8504
    %11846 = vmatprep.subr.bf16.mxu0 %v8515
    %11847 = vmatpush1.bf16.msra.mxu0 %v8514
    %11848 = vmatprep.subr.bf16.mxu0 %v8525
    %11849 = vmatpush1.bf16.msra.mxu0 %v8524
    %11850 = vmatprep.subr.bf16.mxu0 %v8535
    %11851 = vmatpush1.bf16.msra.mxu0 %v8534
    %11852 = vmatprep.subr.bf16.mxu0 %v8545
    %11853 = vmatpush1.bf16.msra.mxu0 %v8544
    %11854 = vmatprep.subr.bf16.mxu0 %v8555
    %11855 = vmatpush1.bf16.msra.mxu0 %v8554
    %11856 = vmatprep.subr.bf16.mxu0 %v8565
    %11857 = vmatpush1.bf16.msra.mxu0 %v8564
    %11858 = vmatprep.subr.bf16.mxu0 %v8575
    %11859 = vmatpush1.bf16.msra.mxu0 %v8574
    %11860 = vmatprep.subr.bf16.mxu0 %v8585
    %11861 = vmatpush1.bf16.msra.mxu0 %v8584
    %11862 = vmatprep.subr.bf16.mxu0 %v8595
    %11863 = vmatpush1.bf16.msra.mxu0 %v8594
    %11864 = vmatprep.subr.bf16.mxu0 %v8605
    %11865 = vmatpush1.bf16.msra.mxu0 %v8604
    %11866 = vmatprep.subr.bf16.mxu0 %v8615
    %11867 = vmatpush1.bf16.msra.mxu0 %v8614
    %11868 = vmatprep.subr.bf16.mxu0 %v8625
    %11869 = vmatpush1.bf16.msra.mxu0 %v8624
    %11870 = vmatprep.mubr.bf16.mxu0 %v2005
    %11871 = vmatmul.mubr.bf16.gmra.mrb[0].mxu0 %v2004
    %v11872 = vpop.f32.mrb[0].mxu0
    %v11873 = vadd.f32 %v11832, %v11872
    %v11874 = vpop.f32.mrb[0].mxu0
    %v11875 = vadd.f32 %v11834, %v11874
    %v11876 = vpop.f32.mrb[0].mxu0
    %v11877 = vpop.f32.mrb[0].mxu0
    %11878 = vdwg.mxu0
    %11879 = vmatprep.subr.bf16.mxu0 %v8635
    %11880 = vmatpush1.bf16.msra.mxu0 %v8634
    %11881 = vmatprep.subr.bf16.mxu0 %v8645
    %11882 = vmatpush1.bf16.msra.mxu0 %v8644
    %11883 = vmatprep.subr.bf16.mxu0 %v8655
    %11884 = vmatpush1.bf16.msra.mxu0 %v8654
    %11885 = vmatprep.subr.bf16.mxu0 %v8665
    %11886 = vmatpush1.bf16.msra.mxu0 %v8664
    %11887 = vmatprep.subr.bf16.mxu0 %v8675
    %11888 = vmatpush1.bf16.msra.mxu0 %v8674
    %11889 = vmatprep.subr.bf16.mxu0 %v8685
    %11890 = vmatpush1.bf16.msra.mxu0 %v8684
    %11891 = vmatprep.subr.bf16.mxu0 %v8695
    %11892 = vmatpush1.bf16.msra.mxu0 %v8694
    %11893 = vmatprep.subr.bf16.mxu0 %v8705
    %11894 = vmatpush1.bf16.msra.mxu0 %v8704
    %11895 = vmatprep.subr.bf16.mxu0 %v8715
    %11896 = vmatpush1.bf16.msra.mxu0 %v8714
    %11897 = vmatprep.subr.bf16.mxu0 %v8725
    %11898 = vmatpush1.bf16.msra.mxu0 %v8724
    %11899 = vmatprep.subr.bf16.mxu0 %v8735
    %11900 = vmatpush1.bf16.msra.mxu0 %v8734
    %11901 = vmatprep.subr.bf16.mxu0 %v8745
    %11902 = vmatpush1.bf16.msra.mxu0 %v8744
    %11903 = vmatprep.subr.bf16.mxu0 %v8755
    %11904 = vmatpush1.bf16.msra.mxu0 %v8754
    %11905 = vmatprep.subr.bf16.mxu0 %v8765
    %11906 = vmatpush1.bf16.msra.mxu0 %v8764
    %11907 = vmatprep.subr.bf16.mxu0 %v8775
    %11908 = vmatpush1.bf16.msra.mxu0 %v8774
    %11909 = vmatprep.subr.bf16.mxu0 %v8785
    %11910 = vmatpush1.bf16.msra.mxu0 %v8784
    %11911 = vmatprep.mubr.bf16.mxu0 %v2007
    %11912 = vmatmul.mubr.bf16.gmra.mrb[0].mxu0 %v2006
    %v11913 = vpop.f32.mrb[0].mxu0
    %v11914 = vadd.f32 %v11873, %v11913
    %v11915 = vpop.f32.mrb[0].mxu0
    %v11916 = vadd.f32 %v11875, %v11915
    %v11917 = vpop.f32.mrb[0].mxu0
    %v11918 = vpop.f32.mrb[0].mxu0
    %11919 = vdwg.mxu0
    %11920 = vmatprep.subr.bf16.mxu0 %v8795
    %11921 = vmatpush1.bf16.msra.mxu0 %v8794
    %11922 = vmatprep.subr.bf16.mxu0 %v8805
    %11923 = vmatpush1.bf16.msra.mxu0 %v8804
    %11924 = vmatprep.subr.bf16.mxu0 %v8815
    %11925 = vmatpush1.bf16.msra.mxu0 %v8814
    %11926 = vmatprep.subr.bf16.mxu0 %v8825
    %11927 = vmatpush1.bf16.msra.mxu0 %v8824
    %11928 = vmatprep.subr.bf16.mxu0 %v8835
    %11929 = vmatpush1.bf16.msra.mxu0 %v8834
    %11930 = vmatprep.subr.bf16.mxu0 %v8845
    %11931 = vmatpush1.bf16.msra.mxu0 %v8844
    %11932 = vmatprep.subr.bf16.mxu0 %v8855
    %11933 = vmatpush1.bf16.msra.mxu0 %v8854
    %11934 = vmatprep.subr.bf16.mxu0 %v8865
    %11935 = vmatpush1.bf16.msra.mxu0 %v8864
    %11936 = vmatprep.subr.bf16.mxu0 %v8875
    %11937 = vmatpush1.bf16.msra.mxu0 %v8874
    %11938 = vmatprep.subr.bf16.mxu0 %v8885
    %11939 = vmatpush1.bf16.msra.mxu0 %v8884
    %11940 = vmatprep.subr.bf16.mxu0 %v8895
    %11941 = vmatpush1.bf16.msra.mxu0 %v8894
    %11942 = vmatprep.subr.bf16.mxu0 %v8905
    %11943 = vmatpush1.bf16.msra.mxu0 %v8904
    %11944 = vmatprep.subr.bf16.mxu0 %v8915
    %11945 = vmatpush1.bf16.msra.mxu0 %v8914
    %11946 = vmatprep.subr.bf16.mxu0 %v8925
    %11947 = vmatpush1.bf16.msra.mxu0 %v8924
    %11948 = vmatprep.subr.bf16.mxu0 %v8935
    %11949 = vmatpush1.bf16.msra.mxu0 %v8934
    %11950 = vmatprep.subr.bf16.mxu0 %v8945
    %11951 = vmatpush1.bf16.msra.mxu0 %v8944
    %11952 = vmatprep.mubr.bf16.mxu0 %v2009
    %11953 = vmatmul.mubr.bf16.gmra.mrb[0].mxu0 %v2008
    %v11954 = vpop.f32.mrb[0].mxu0
    %v11955 = vadd.f32 %v11914, %v11954
    %v11956 = vpop.f32.mrb[0].mxu0
    %v11957 = vadd.f32 %v11916, %v11956
    %v11958 = vpop.f32.mrb[0].mxu0
    %v11959 = vpop.f32.mrb[0].mxu0
    %11960 = vdwg.mxu0
    %11961 = vmatprep.subr.bf16.mxu0 %v8955
    %11962 = vmatpush1.bf16.msra.mxu0 %v8954
    %11963 = vmatprep.subr.bf16.mxu0 %v8965
    %11964 = vmatpush1.bf16.msra.mxu0 %v8964
    %11965 = vmatprep.subr.bf16.mxu0 %v8975
    %11966 = vmatpush1.bf16.msra.mxu0 %v8974
    %11967 = vmatprep.subr.bf16.mxu0 %v8985
    %11968 = vmatpush1.bf16.msra.mxu0 %v8984
    %11969 = vmatprep.subr.bf16.mxu0 %v8995
    %11970 = vmatpush1.bf16.msra.mxu0 %v8994
    %11971 = vmatprep.subr.bf16.mxu0 %v9005
    %11972 = vmatpush1.bf16.msra.mxu0 %v9004
    %11973 = vmatprep.subr.bf16.mxu0 %v9015
    %11974 = vmatpush1.bf16.msra.mxu0 %v9014
    %11975 = vmatprep.subr.bf16.mxu0 %v9025
    %11976 = vmatpush1.bf16.msra.mxu0 %v9024
    %11977 = vmatprep.subr.bf16.mxu0 %v9035
    %11978 = vmatpush1.bf16.msra.mxu0 %v9034
    %11979 = vmatprep.subr.bf16.mxu0 %v9045
    %11980 = vmatpush1.bf16.msra.mxu0 %v9044
    %11981 = vmatprep.subr.bf16.mxu0 %v9055
    %11982 = vmatpush1.bf16.msra.mxu0 %v9054
    %11983 = vmatprep.subr.bf16.mxu0 %v9065
    %11984 = vmatpush1.bf16.msra.mxu0 %v9064
    %11985 = vmatprep.subr.bf16.mxu0 %v9075
    %11986 = vmatpush1.bf16.msra.mxu0 %v9074
    %11987 = vmatprep.subr.bf16.mxu0 %v9085
    %11988 = vmatpush1.bf16.msra.mxu0 %v9084
    %11989 = vmatprep.subr.bf16.mxu0 %v9095
    %11990 = vmatpush1.bf16.msra.mxu0 %v9094
    %11991 = vmatprep.subr.bf16.mxu0 %v9105
    %11992 = vmatpush1.bf16.msra.mxu0 %v9104
    %11993 = vmatprep.mubr.bf16.mxu0 %v2011
    %11994 = vmatmul.mubr.bf16.gmra.mrb[0].mxu0 %v2010
    %v11995 = vpop.f32.mrb[0].mxu0
    %v11996 = vadd.f32 %v11955, %v11995
    %v11997 = vpop.f32.mrb[0].mxu0
    %v11998 = vadd.f32 %v11957, %v11997
    %v11999 = vpop.f32.mrb[0].mxu0
    %v12000 = vpop.f32.mrb[0].mxu0
    %12001 = vdwg.mxu0
    %12002 = vmatprep.subr.bf16.mxu0 %v9115
    %12003 = vmatpush1.bf16.msra.mxu0 %v9114
    %12004 = vmatprep.subr.bf16.mxu0 %v9125
    %12005 = vmatpush1.bf16.msra.mxu0 %v9124
    %12006 = vmatprep.subr.bf16.mxu0 %v9135
    %12007 = vmatpush1.bf16.msra.mxu0 %v9134
    %12008 = vmatprep.subr.bf16.mxu0 %v9145
    %12009 = vmatpush1.bf16.msra.mxu0 %v9144
    %12010 = vmatprep.subr.bf16.mxu0 %v9155
    %12011 = vmatpush1.bf16.msra.mxu0 %v9154
    %12012 = vmatprep.subr.bf16.mxu0 %v9165
    %12013 = vmatpush1.bf16.msra.mxu0 %v9164
    %12014 = vmatprep.subr.bf16.mxu0 %v9175
    %12015 = vmatpush1.bf16.msra.mxu0 %v9174
    %12016 = vmatprep.subr.bf16.mxu0 %v9185
    %12017 = vmatpush1.bf16.msra.mxu0 %v9184
    %12018 = vmatprep.subr.bf16.mxu0 %v9195
    %12019 = vmatpush1.bf16.msra.mxu0 %v9194
    %12020 = vmatprep.subr.bf16.mxu0 %v9205
    %12021 = vmatpush1.bf16.msra.mxu0 %v9204
    %12022 = vmatprep.subr.bf16.mxu0 %v9215
    %12023 = vmatpush1.bf16.msra.mxu0 %v9214
    %12024 = vmatprep.subr.bf16.mxu0 %v9225
    %12025 = vmatpush1.bf16.msra.mxu0 %v9224
    %12026 = vmatprep.subr.bf16.mxu0 %v9235
    %12027 = vmatpush1.bf16.msra.mxu0 %v9234
    %12028 = vmatprep.subr.bf16.mxu0 %v9245
    %12029 = vmatpush1.bf16.msra.mxu0 %v9244
    %12030 = vmatprep.subr.bf16.mxu0 %v9255
    %12031 = vmatpush1.bf16.msra.mxu0 %v9254
    %12032 = vmatprep.subr.bf16.mxu0 %v9265
    %12033 = vmatpush1.bf16.msra.mxu0 %v9264
    %12034 = vmatprep.mubr.bf16.mxu0 %v2013
    %12035 = vmatmul.mubr.bf16.gmra.mrb[0].mxu0 %v2012
    %v12036 = vpop.f32.mrb[0].mxu0
    %v12037 = vadd.f32 %v11996, %v12036
    %v12038 = vpop.f32.mrb[0].mxu0
    %v12039 = vadd.f32 %v11998, %v12038
    %v12040 = vpop.f32.mrb[0].mxu0
    %v12041 = vpop.f32.mrb[0].mxu0
    %12042 = vdwg.mxu0
    %12043 = vmatprep.subr.bf16.mxu0 %v9275
    %12044 = vmatpush1.bf16.msra.mxu0 %v9274
    %12045 = vmatprep.subr.bf16.mxu0 %v9285
    %12046 = vmatpush1.bf16.msra.mxu0 %v9284
    %12047 = vmatprep.subr.bf16.mxu0 %v9295
    %12048 = vmatpush1.bf16.msra.mxu0 %v9294
    %12049 = vmatprep.subr.bf16.mxu0 %v9305
    %12050 = vmatpush1.bf16.msra.mxu0 %v9304
    %12051 = vmatprep.subr.bf16.mxu0 %v9315
    %12052 = vmatpush1.bf16.msra.mxu0 %v9314
    %12053 = vmatprep.subr.bf16.mxu0 %v9325
    %12054 = vmatpush1.bf16.msra.mxu0 %v9324
    %12055 = vmatprep.subr.bf16.mxu0 %v9335
    %12056 = vmatpush1.bf16.msra.mxu0 %v9334
    %12057 = vmatprep.subr.bf16.mxu0 %v9345
    %12058 = vmatpush1.bf16.msra.mxu0 %v9344
    %12059 = vmatprep.subr.bf16.mxu0 %v9355
    %12060 = vmatpush1.bf16.msra.mxu0 %v9354
    %12061 = vmatprep.subr.bf16.mxu0 %v9365
    %12062 = vmatpush1.bf16.msra.mxu0 %v9364
    %12063 = vmatprep.subr.bf16.mxu0 %v9375
    %12064 = vmatpush1.bf16.msra.mxu0 %v9374
    %12065 = vmatprep.subr.bf16.mxu0 %v9385
    %12066 = vmatpush1.bf16.msra.mxu0 %v9384
    %12067 = vmatprep.subr.bf16.mxu0 %v9395
    %12068 = vmatpush1.bf16.msra.mxu0 %v9394
    %12069 = vmatprep.subr.bf16.mxu0 %v9405
    %12070 = vmatpush1.bf16.msra.mxu0 %v9404
    %12071 = vmatprep.subr.bf16.mxu0 %v9415
    %12072 = vmatpush1.bf16.msra.mxu0 %v9414
    %12073 = vmatprep.subr.bf16.mxu0 %v9425
    %12074 = vmatpush1.bf16.msra.mxu0 %v9424
    %12075 = vmatprep.mubr.bf16.mxu0 %v2015
    %12076 = vmatmul.mubr.bf16.gmra.mrb[0].mxu0 %v2014
    %v12077 = vpop.f32.mrb[0].mxu0
    %v12078 = vadd.f32 %v12037, %v12077
    %v12079 = vpop.f32.mrb[0].mxu0
    %v12080 = vadd.f32 %v12039, %v12079
    %v12081 = vpop.f32.mrb[0].mxu0
    %v12082 = vpop.f32.mrb[0].mxu0
    %12083 = vdwg.mxu0
    %12084 = vmatprep.subr.bf16.mxu0 %v9435
    %12085 = vmatpush1.bf16.msra.mxu0 %v9434
    %12086 = vmatprep.subr.bf16.mxu0 %v9445
    %12087 = vmatpush1.bf16.msra.mxu0 %v9444
    %12088 = vmatprep.subr.bf16.mxu0 %v9455
    %12089 = vmatpush1.bf16.msra.mxu0 %v9454
    %12090 = vmatprep.subr.bf16.mxu0 %v9465
    %12091 = vmatpush1.bf16.msra.mxu0 %v9464
    %12092 = vmatprep.subr.bf16.mxu0 %v9475
    %12093 = vmatpush1.bf16.msra.mxu0 %v9474
    %12094 = vmatprep.subr.bf16.mxu0 %v9485
    %12095 = vmatpush1.bf16.msra.mxu0 %v9484
    %12096 = vmatprep.subr.bf16.mxu0 %v9495
    %12097 = vmatpush1.bf16.msra.mxu0 %v9494
    %12098 = vmatprep.subr.bf16.mxu0 %v9505
    %12099 = vmatpush1.bf16.msra.mxu0 %v9504
    %12100 = vmatprep.subr.bf16.mxu0 %v9515
    %12101 = vmatpush1.bf16.msra.mxu0 %v9514
    %12102 = vmatprep.subr.bf16.mxu0 %v9525
    %12103 = vmatpush1.bf16.msra.mxu0 %v9524
    %12104 = vmatprep.subr.bf16.mxu0 %v9535
    %12105 = vmatpush1.bf16.msra.mxu0 %v9534
    %12106 = vmatprep.subr.bf16.mxu0 %v9545
    %12107 = vmatpush1.bf16.msra.mxu0 %v9544
    %12108 = vmatprep.subr.bf16.mxu0 %v9555
    %12109 = vmatpush1.bf16.msra.mxu0 %v9554
    %12110 = vmatprep.subr.bf16.mxu0 %v9565
    %12111 = vmatpush1.bf16.msra.mxu0 %v9564
    %12112 = vmatprep.subr.bf16.mxu0 %v9575
    %12113 = vmatpush1.bf16.msra.mxu0 %v9574
    %12114 = vmatprep.subr.bf16.mxu0 %v9585
    %12115 = vmatpush1.bf16.msra.mxu0 %v9584
    %12116 = vmatprep.mubr.bf16.mxu0 %v2017
    %12117 = vmatmul.mubr.bf16.gmra.mrb[0].mxu0 %v2016
    %v12118 = vpop.f32.mrb[0].mxu0
    %v12119 = vadd.f32 %v12078, %v12118
    %v12120 = vpop.f32.mrb[0].mxu0
    %v12121 = vadd.f32 %v12080, %v12120
    %v12122 = vpop.f32.mrb[0].mxu0
    %v12123 = vpop.f32.mrb[0].mxu0
    %12124 = vdwg.mxu0
    %12125 = vmatprep.subr.bf16.mxu0 %v9595
    %12126 = vmatpush1.bf16.msra.mxu0 %v9594
    %12127 = vmatprep.subr.bf16.mxu0 %v9605
    %12128 = vmatpush1.bf16.msra.mxu0 %v9604
    %12129 = vmatprep.subr.bf16.mxu0 %v9615
    %12130 = vmatpush1.bf16.msra.mxu0 %v9614
    %12131 = vmatprep.subr.bf16.mxu0 %v9625
    %12132 = vmatpush1.bf16.msra.mxu0 %v9624
    %12133 = vmatprep.subr.bf16.mxu0 %v9635
    %12134 = vmatpush1.bf16.msra.mxu0 %v9634
    %12135 = vmatprep.subr.bf16.mxu0 %v9645
    %12136 = vmatpush1.bf16.msra.mxu0 %v9644
    %12137 = vmatprep.subr.bf16.mxu0 %v9655
    %12138 = vmatpush1.bf16.msra.mxu0 %v9654
    %12139 = vmatprep.subr.bf16.mxu0 %v9665
    %12140 = vmatpush1.bf16.msra.mxu0 %v9664
    %12141 = vmatprep.subr.bf16.mxu0 %v9675
    %12142 = vmatpush1.bf16.msra.mxu0 %v9674
    %12143 = vmatprep.subr.bf16.mxu0 %v9685
    %12144 = vmatpush1.bf16.msra.mxu0 %v9684
    %12145 = vmatprep.subr.bf16.mxu0 %v9695
    %12146 = vmatpush1.bf16.msra.mxu0 %v9694
    %12147 = vmatprep.subr.bf16.mxu0 %v9705
    %12148 = vmatpush1.bf16.msra.mxu0 %v9704
    %12149 = vmatprep.subr.bf16.mxu0 %v9715
    %12150 = vmatpush1.bf16.msra.mxu0 %v9714
    %12151 = vmatprep.subr.bf16.mxu0 %v9725
    %12152 = vmatpush1.bf16.msra.mxu0 %v9724
    %12153 = vmatprep.subr.bf16.mxu0 %v9735
    %12154 = vmatpush1.bf16.msra.mxu0 %v9734
    %12155 = vmatprep.subr.bf16.mxu0 %v9745
    %12156 = vmatpush1.bf16.msra.mxu0 %v9744
    %12157 = vmatprep.mubr.bf16.mxu0 %v2019
    %12158 = vmatmul.mubr.bf16.gmra.mrb[0].mxu0 %v2018
    %v12159 = vpop.f32.mrb[0].mxu0
    %v12160 = vadd.f32 %v12119, %v12159
    %v12161 = vpop.f32.mrb[0].mxu0
    %v12162 = vadd.f32 %v12121, %v12161
    %v12163 = vpop.f32.mrb[0].mxu0
    %v12164 = vpop.f32.mrb[0].mxu0
    %12165 = vdwg.mxu0
    %12166 = vmatprep.subr.bf16.mxu0 %v7837
    %12167 = vmatpush1.bf16.msra.mxu0 %v7836
    %12168 = vmatprep.subr.bf16.mxu0 %v7847
    %12169 = vmatpush1.bf16.msra.mxu0 %v7846
    %12170 = vmatprep.subr.bf16.mxu0 %v7857
    %12171 = vmatpush1.bf16.msra.mxu0 %v7856
    %12172 = vmatprep.subr.bf16.mxu0 %v7867
    %12173 = vmatpush1.bf16.msra.mxu0 %v7866
    %12174 = vmatprep.subr.bf16.mxu0 %v7877
    %12175 = vmatpush1.bf16.msra.mxu0 %v7876
    %12176 = vmatprep.subr.bf16.mxu0 %v7887
    %12177 = vmatpush1.bf16.msra.mxu0 %v7886
    %12178 = vmatprep.subr.bf16.mxu0 %v7897
    %12179 = vmatpush1.bf16.msra.mxu0 %v7896
    %12180 = vmatprep.subr.bf16.mxu0 %v7907
    %12181 = vmatpush1.bf16.msra.mxu0 %v7906
    %12182 = vmatprep.subr.bf16.mxu0 %v7917
    %12183 = vmatpush1.bf16.msra.mxu0 %v7916
    %12184 = vmatprep.subr.bf16.mxu0 %v7927
    %12185 = vmatpush1.bf16.msra.mxu0 %v7926
    %12186 = vmatprep.subr.bf16.mxu0 %v7937
    %12187 = vmatpush1.bf16.msra.mxu0 %v7936
    %12188 = vmatprep.subr.bf16.mxu0 %v7947
    %12189 = vmatpush1.bf16.msra.mxu0 %v7946
    %12190 = vmatprep.subr.bf16.mxu0 %v7957
    %12191 = vmatpush1.bf16.msra.mxu0 %v7956
    %12192 = vmatprep.subr.bf16.mxu0 %v7967
    %12193 = vmatpush1.bf16.msra.mxu0 %v7966
    %12194 = vmatprep.subr.bf16.mxu0 %v7977
    %12195 = vmatpush1.bf16.msra.mxu0 %v7976
    %12196 = vmatprep.subr.bf16.mxu0 %v7987
    %12197 = vmatpush1.bf16.msra.mxu0 %v7986
    %12198 = vmatprep.mubr.bf16.mxu0 %v1997
    %12199 = vmatmul.mubr.bf16.gmra.mrb[0].mxu0 %v1996
    %v12200 = vpop.f32.mrb[0].mxu0
    %v12201 = vadd.f32 %v2035, %v12200
    %v12202 = vpop.f32.mrb[0].mxu0
    %v12203 = vadd.f32 %v2039, %v12202
    %v12204 = vpop.f32.mrb[0].mxu0
    %v12205 = vpop.f32.mrb[0].mxu0
    %12206 = vdwg.mxu0
    %12207 = vmatprep.subr.bf16.mxu0 %v7997
    %12208 = vmatpush1.bf16.msra.mxu0 %v7996
    %12209 = vmatprep.subr.bf16.mxu0 %v8007
    %12210 = vmatpush1.bf16.msra.mxu0 %v8006
    %12211 = vmatprep.subr.bf16.mxu0 %v8017
    %12212 = vmatpush1.bf16.msra.mxu0 %v8016
    %12213 = vmatprep.subr.bf16.mxu0 %v8027
    %12214 = vmatpush1.bf16.msra.mxu0 %v8026
    %12215 = vmatprep.subr.bf16.mxu0 %v8037
    %12216 = vmatpush1.bf16.msra.mxu0 %v8036
    %12217 = vmatprep.subr.bf16.mxu0 %v8047
    %12218 = vmatpush1.bf16.msra.mxu0 %v8046
    %12219 = vmatprep.subr.bf16.mxu0 %v8057
    %12220 = vmatpush1.bf16.msra.mxu0 %v8056
    %12221 = vmatprep.subr.bf16.mxu0 %v8067
    %12222 = vmatpush1.bf16.msra.mxu0 %v8066
    %12223 = vmatprep.subr.bf16.mxu0 %v8077
    %12224 = vmatpush1.bf16.msra.mxu0 %v8076
    %12225 = vmatprep.subr.bf16.mxu0 %v8087
    %12226 = vmatpush1.bf16.msra.mxu0 %v8086
    %12227 = vmatprep.subr.bf16.mxu0 %v8097
    %12228 = vmatpush1.bf16.msra.mxu0 %v8096
    %12229 = vmatprep.subr.bf16.mxu0 %v8107
    %12230 = vmatpush1.bf16.msra.mxu0 %v8106
    %12231 = vmatprep.subr.bf16.mxu0 %v8117
    %12232 = vmatpush1.bf16.msra.mxu0 %v8116
    %12233 = vmatprep.subr.bf16.mxu0 %v8127
    %12234 = vmatpush1.bf16.msra.mxu0 %v8126
    %12235 = vmatprep.subr.bf16.mxu0 %v8137
    %12236 = vmatpush1.bf16.msra.mxu0 %v8136
    %12237 = vmatprep.subr.bf16.mxu0 %v8147
    %12238 = vmatpush1.bf16.msra.mxu0 %v8146
    %12239 = vmatprep.mubr.bf16.mxu0 %v1999
    %12240 = vmatmul.mubr.bf16.gmra.mrb[0].mxu0 %v1998
    %v12241 = vpop.f32.mrb[0].mxu0
    %v12242 = vadd.f32 %v12201, %v12241
    %v12243 = vpop.f32.mrb[0].mxu0
    %v12244 = vadd.f32 %v12203, %v12243
    %v12245 = vpop.f32.mrb[0].mxu0
    %v12246 = vpop.f32.mrb[0].mxu0
    %12247 = vdwg.mxu0
    %12248 = vmatprep.subr.bf16.mxu0 %v8157
    %12249 = vmatpush1.bf16.msra.mxu0 %v8156
    %12250 = vmatprep.subr.bf16.mxu0 %v8167
    %12251 = vmatpush1.bf16.msra.mxu0 %v8166
    %12252 = vmatprep.subr.bf16.mxu0 %v8177
    %12253 = vmatpush1.bf16.msra.mxu0 %v8176
    %12254 = vmatprep.subr.bf16.mxu0 %v8187
    %12255 = vmatpush1.bf16.msra.mxu0 %v8186
    %12256 = vmatprep.subr.bf16.mxu0 %v8197
    %12257 = vmatpush1.bf16.msra.mxu0 %v8196
    %12258 = vmatprep.subr.bf16.mxu0 %v8207
    %12259 = vmatpush1.bf16.msra.mxu0 %v8206
    %12260 = vmatprep.subr.bf16.mxu0 %v8217
    %12261 = vmatpush1.bf16.msra.mxu0 %v8216
    %12262 = vmatprep.subr.bf16.mxu0 %v8227
    %12263 = vmatpush1.bf16.msra.mxu0 %v8226
    %12264 = vmatprep.subr.bf16.mxu0 %v8237
    %12265 = vmatpush1.bf16.msra.mxu0 %v8236
    %12266 = vmatprep.subr.bf16.mxu0 %v8247
    %12267 = vmatpush1.bf16.msra.mxu0 %v8246
    %12268 = vmatprep.subr.bf16.mxu0 %v8257
    %12269 = vmatpush1.bf16.msra.mxu0 %v8256
    %12270 = vmatprep.subr.bf16.mxu0 %v8267
    %12271 = vmatpush1.bf16.msra.mxu0 %v8266
    %12272 = vmatprep.subr.bf16.mxu0 %v8277
    %12273 = vmatpush1.bf16.msra.mxu0 %v8276
    %12274 = vmatprep.subr.bf16.mxu0 %v8287
    %12275 = vmatpush1.bf16.msra.mxu0 %v8286
    %12276 = vmatprep.subr.bf16.mxu0 %v8297
    %12277 = vmatpush1.bf16.msra.mxu0 %v8296
    %12278 = vmatprep.subr.bf16.mxu0 %v8307
    %12279 = vmatpush1.bf16.msra.mxu0 %v8306
    %12280 = vmatprep.mubr.bf16.mxu0 %v2001
    %12281 = vmatmul.mubr.bf16.gmra.mrb[0].mxu0 %v2000
    %v12282 = vpop.f32.mrb[0].mxu0
    %v12283 = vadd.f32 %v12242, %v12282
    %v12284 = vpop.f32.mrb[0].mxu0
    %v12285 = vadd.f32 %v12244, %v12284
    %v12286 = vpop.f32.mrb[0].mxu0
    %v12287 = vpop.f32.mrb[0].mxu0
    %12288 = vdwg.mxu0
    %12289 = vmatprep.subr.bf16.mxu0 %v8317
    %12290 = vmatpush1.bf16.msra.mxu0 %v8316
    %12291 = vmatprep.subr.bf16.mxu0 %v8327
    %12292 = vmatpush1.bf16.msra.mxu0 %v8326
    %12293 = vmatprep.subr.bf16.mxu0 %v8337
    %12294 = vmatpush1.bf16.msra.mxu0 %v8336
    %12295 = vmatprep.subr.bf16.mxu0 %v8347
    %12296 = vmatpush1.bf16.msra.mxu0 %v8346
    %12297 = vmatprep.subr.bf16.mxu0 %v8357
    %12298 = vmatpush1.bf16.msra.mxu0 %v8356
    %12299 = vmatprep.subr.bf16.mxu0 %v8367
    %12300 = vmatpush1.bf16.msra.mxu0 %v8366
    %12301 = vmatprep.subr.bf16.mxu0 %v8377
    %12302 = vmatpush1.bf16.msra.mxu0 %v8376
    %12303 = vmatprep.subr.bf16.mxu0 %v8387
    %12304 = vmatpush1.bf16.msra.mxu0 %v8386
    %12305 = vmatprep.subr.bf16.mxu0 %v8397
    %12306 = vmatpush1.bf16.msra.mxu0 %v8396
    %12307 = vmatprep.subr.bf16.mxu0 %v8407
    %12308 = vmatpush1.bf16.msra.mxu0 %v8406
    %12309 = vmatprep.subr.bf16.mxu0 %v8417
    %12310 = vmatpush1.bf16.msra.mxu0 %v8416
    %12311 = vmatprep.subr.bf16.mxu0 %v8427
    %12312 = vmatpush1.bf16.msra.mxu0 %v8426
    %12313 = vmatprep.subr.bf16.mxu0 %v8437
    %12314 = vmatpush1.bf16.msra.mxu0 %v8436
    %12315 = vmatprep.subr.bf16.mxu0 %v8447
    %12316 = vmatpush1.bf16.msra.mxu0 %v8446
    %12317 = vmatprep.subr.bf16.mxu0 %v8457
    %12318 = vmatpush1.bf16.msra.mxu0 %v8456
    %12319 = vmatprep.subr.bf16.mxu0 %v8467
    %12320 = vmatpush1.bf16.msra.mxu0 %v8466
    %12321 = vmatprep.mubr.bf16.mxu0 %v2003
    %12322 = vmatmul.mubr.bf16.gmra.mrb[0].mxu0 %v2002
    %v12323 = vpop.f32.mrb[0].mxu0
    %v12324 = vadd.f32 %v12283, %v12323
    %v12325 = vpop.f32.mrb[0].mxu0
    %v12326 = vadd.f32 %v12285, %v12325
    %v12327 = vpop.f32.mrb[0].mxu0
    %v12328 = vpop.f32.mrb[0].mxu0
    %12329 = vdwg.mxu0
    %12330 = vmatprep.subr.bf16.mxu0 %v8477
    %12331 = vmatpush1.bf16.msra.mxu0 %v8476
    %12332 = vmatprep.subr.bf16.mxu0 %v8487
    %12333 = vmatpush1.bf16.msra.mxu0 %v8486
    %12334 = vmatprep.subr.bf16.mxu0 %v8497
    %12335 = vmatpush1.bf16.msra.mxu0 %v8496
    %12336 = vmatprep.subr.bf16.mxu0 %v8507
    %12337 = vmatpush1.bf16.msra.mxu0 %v8506
    %12338 = vmatprep.subr.bf16.mxu0 %v8517
    %12339 = vmatpush1.bf16.msra.mxu0 %v8516
    %12340 = vmatprep.subr.bf16.mxu0 %v8527
    %12341 = vmatpush1.bf16.msra.mxu0 %v8526
    %12342 = vmatprep.subr.bf16.mxu0 %v8537
    %12343 = vmatpush1.bf16.msra.mxu0 %v8536
    %12344 = vmatprep.subr.bf16.mxu0 %v8547
    %12345 = vmatpush1.bf16.msra.mxu0 %v8546
    %12346 = vmatprep.subr.bf16.mxu0 %v8557
    %12347 = vmatpush1.bf16.msra.mxu0 %v8556
    %12348 = vmatprep.subr.bf16.mxu0 %v8567
    %12349 = vmatpush1.bf16.msra.mxu0 %v8566
    %12350 = vmatprep.subr.bf16.mxu0 %v8577
    %12351 = vmatpush1.bf16.msra.mxu0 %v8576
    %12352 = vmatprep.subr.bf16.mxu0 %v8587
    %12353 = vmatpush1.bf16.msra.mxu0 %v8586
    %12354 = vmatprep.subr.bf16.mxu0 %v8597
    %12355 = vmatpush1.bf16.msra.mxu0 %v8596
    %12356 = vmatprep.subr.bf16.mxu0 %v8607
    %12357 = vmatpush1.bf16.msra.mxu0 %v8606
    %12358 = vmatprep.subr.bf16.mxu0 %v8617
    %12359 = vmatpush1.bf16.msra.mxu0 %v8616
    %12360 = vmatprep.subr.bf16.mxu0 %v8627
    %12361 = vmatpush1.bf16.msra.mxu0 %v8626
    %12362 = vmatprep.mubr.bf16.mxu0 %v2005
    %12363 = vmatmul.mubr.bf16.gmra.mrb[0].mxu0 %v2004
    %v12364 = vpop.f32.mrb[0].mxu0
    %v12365 = vadd.f32 %v12324, %v12364
    %v12366 = vpop.f32.mrb[0].mxu0
    %v12367 = vadd.f32 %v12326, %v12366
    %v12368 = vpop.f32.mrb[0].mxu0
    %v12369 = vpop.f32.mrb[0].mxu0
    %12370 = vdwg.mxu0
    %12371 = vmatprep.subr.bf16.mxu0 %v8637
    %12372 = vmatpush1.bf16.msra.mxu0 %v8636
    %12373 = vmatprep.subr.bf16.mxu0 %v8647
    %12374 = vmatpush1.bf16.msra.mxu0 %v8646
    %12375 = vmatprep.subr.bf16.mxu0 %v8657
    %12376 = vmatpush1.bf16.msra.mxu0 %v8656
    %12377 = vmatprep.subr.bf16.mxu0 %v8667
    %12378 = vmatpush1.bf16.msra.mxu0 %v8666
    %12379 = vmatprep.subr.bf16.mxu0 %v8677
    %12380 = vmatpush1.bf16.msra.mxu0 %v8676
    %12381 = vmatprep.subr.bf16.mxu0 %v8687
    %12382 = vmatpush1.bf16.msra.mxu0 %v8686
    %12383 = vmatprep.subr.bf16.mxu0 %v8697
    %12384 = vmatpush1.bf16.msra.mxu0 %v8696
    %12385 = vmatprep.subr.bf16.mxu0 %v8707
    %12386 = vmatpush1.bf16.msra.mxu0 %v8706
    %12387 = vmatprep.subr.bf16.mxu0 %v8717
    %12388 = vmatpush1.bf16.msra.mxu0 %v8716
    %12389 = vmatprep.subr.bf16.mxu0 %v8727
    %12390 = vmatpush1.bf16.msra.mxu0 %v8726
    %12391 = vmatprep.subr.bf16.mxu0 %v8737
    %12392 = vmatpush1.bf16.msra.mxu0 %v8736
    %12393 = vmatprep.subr.bf16.mxu0 %v8747
    %12394 = vmatpush1.bf16.msra.mxu0 %v8746
    %12395 = vmatprep.subr.bf16.mxu0 %v8757
    %12396 = vmatpush1.bf16.msra.mxu0 %v8756
    %12397 = vmatprep.subr.bf16.mxu0 %v8767
    %12398 = vmatpush1.bf16.msra.mxu0 %v8766
    %12399 = vmatprep.subr.bf16.mxu0 %v8777
    %12400 = vmatpush1.bf16.msra.mxu0 %v8776
    %12401 = vmatprep.subr.bf16.mxu0 %v8787
    %12402 = vmatpush1.bf16.msra.mxu0 %v8786
    %12403 = vmatprep.mubr.bf16.mxu0 %v2007
    %12404 = vmatmul.mubr.bf16.gmra.mrb[0].mxu0 %v2006
    %v12405 = vpop.f32.mrb[0].mxu0
    %v12406 = vadd.f32 %v12365, %v12405
    %v12407 = vpop.f32.mrb[0].mxu0
    %v12408 = vadd.f32 %v12367, %v12407
    %v12409 = vpop.f32.mrb[0].mxu0
    %v12410 = vpop.f32.mrb[0].mxu0
    %12411 = vdwg.mxu0
    %12412 = vmatprep.subr.bf16.mxu0 %v8797
    %12413 = vmatpush1.bf16.msra.mxu0 %v8796
    %12414 = vmatprep.subr.bf16.mxu0 %v8807
    %12415 = vmatpush1.bf16.msra.mxu0 %v8806
    %12416 = vmatprep.subr.bf16.mxu0 %v8817
    %12417 = vmatpush1.bf16.msra.mxu0 %v8816
    %12418 = vmatprep.subr.bf16.mxu0 %v8827
    %12419 = vmatpush1.bf16.msra.mxu0 %v8826
    %12420 = vmatprep.subr.bf16.mxu0 %v8837
    %12421 = vmatpush1.bf16.msra.mxu0 %v8836
    %12422 = vmatprep.subr.bf16.mxu0 %v8847
    %12423 = vmatpush1.bf16.msra.mxu0 %v8846
    %12424 = vmatprep.subr.bf16.mxu0 %v8857
    %12425 = vmatpush1.bf16.msra.mxu0 %v8856
    %12426 = vmatprep.subr.bf16.mxu0 %v8867
    %12427 = vmatpush1.bf16.msra.mxu0 %v8866
    %12428 = vmatprep.subr.bf16.mxu0 %v8877
    %12429 = vmatpush1.bf16.msra.mxu0 %v8876
    %12430 = vmatprep.subr.bf16.mxu0 %v8887
    %12431 = vmatpush1.bf16.msra.mxu0 %v8886
    %12432 = vmatprep.subr.bf16.mxu0 %v8897
    %12433 = vmatpush1.bf16.msra.mxu0 %v8896
    %12434 = vmatprep.subr.bf16.mxu0 %v8907
    %12435 = vmatpush1.bf16.msra.mxu0 %v8906
    %12436 = vmatprep.subr.bf16.mxu0 %v8917
    %12437 = vmatpush1.bf16.msra.mxu0 %v8916
    %12438 = vmatprep.subr.bf16.mxu0 %v8927
    %12439 = vmatpush1.bf16.msra.mxu0 %v8926
    %12440 = vmatprep.subr.bf16.mxu0 %v8937
    %12441 = vmatpush1.bf16.msra.mxu0 %v8936
    %12442 = vmatprep.subr.bf16.mxu0 %v8947
    %12443 = vmatpush1.bf16.msra.mxu0 %v8946
    %12444 = vmatprep.mubr.bf16.mxu0 %v2009
    %12445 = vmatmul.mubr.bf16.gmra.mrb[0].mxu0 %v2008
    %v12446 = vpop.f32.mrb[0].mxu0
    %v12447 = vadd.f32 %v12406, %v12446
    %v12448 = vpop.f32.mrb[0].mxu0
    %v12449 = vadd.f32 %v12408, %v12448
    %v12450 = vpop.f32.mrb[0].mxu0
    %v12451 = vpop.f32.mrb[0].mxu0
    %12452 = vdwg.mxu0
    %12453 = vmatprep.subr.bf16.mxu0 %v8957
    %12454 = vmatpush1.bf16.msra.mxu0 %v8956
    %12455 = vmatprep.subr.bf16.mxu0 %v8967
    %12456 = vmatpush1.bf16.msra.mxu0 %v8966
    %12457 = vmatprep.subr.bf16.mxu0 %v8977
    %12458 = vmatpush1.bf16.msra.mxu0 %v8976
    %12459 = vmatprep.subr.bf16.mxu0 %v8987
    %12460 = vmatpush1.bf16.msra.mxu0 %v8986
    %12461 = vmatprep.subr.bf16.mxu0 %v8997
    %12462 = vmatpush1.bf16.msra.mxu0 %v8996
    %12463 = vmatprep.subr.bf16.mxu0 %v9007
    %12464 = vmatpush1.bf16.msra.mxu0 %v9006
    %12465 = vmatprep.subr.bf16.mxu0 %v9017
    %12466 = vmatpush1.bf16.msra.mxu0 %v9016
    %12467 = vmatprep.subr.bf16.mxu0 %v9027
    %12468 = vmatpush1.bf16.msra.mxu0 %v9026
    %12469 = vmatprep.subr.bf16.mxu0 %v9037
    %12470 = vmatpush1.bf16.msra.mxu0 %v9036
    %12471 = vmatprep.subr.bf16.mxu0 %v9047
    %12472 = vmatpush1.bf16.msra.mxu0 %v9046
    %12473 = vmatprep.subr.bf16.mxu0 %v9057
    %12474 = vmatpush1.bf16.msra.mxu0 %v9056
    %12475 = vmatprep.subr.bf16.mxu0 %v9067
    %12476 = vmatpush1.bf16.msra.mxu0 %v9066
    %12477 = vmatprep.subr.bf16.mxu0 %v9077
    %12478 = vmatpush1.bf16.msra.mxu0 %v9076
    %12479 = vmatprep.subr.bf16.mxu0 %v9087
    %12480 = vmatpush1.bf16.msra.mxu0 %v9086
    %12481 = vmatprep.subr.bf16.mxu0 %v9097
    %12482 = vmatpush1.bf16.msra.mxu0 %v9096
    %12483 = vmatprep.subr.bf16.mxu0 %v9107
    %12484 = vmatpush1.bf16.msra.mxu0 %v9106
    %12485 = vmatprep.mubr.bf16.mxu0 %v2011
    %12486 = vmatmul.mubr.bf16.gmra.mrb[0].mxu0 %v2010
    %v12487 = vpop.f32.mrb[0].mxu0
    %v12488 = vadd.f32 %v12447, %v12487
    %v12489 = vpop.f32.mrb[0].mxu0
    %v12490 = vadd.f32 %v12449, %v12489
    %v12491 = vpop.f32.mrb[0].mxu0
    %v12492 = vpop.f32.mrb[0].mxu0
    %12493 = vdwg.mxu0
    %12494 = vmatprep.subr.bf16.mxu0 %v9117
    %12495 = vmatpush1.bf16.msra.mxu0 %v9116
    %12496 = vmatprep.subr.bf16.mxu0 %v9127
    %12497 = vmatpush1.bf16.msra.mxu0 %v9126
    %12498 = vmatprep.subr.bf16.mxu0 %v9137
    %12499 = vmatpush1.bf16.msra.mxu0 %v9136
    %12500 = vmatprep.subr.bf16.mxu0 %v9147
    %12501 = vmatpush1.bf16.msra.mxu0 %v9146
    %12502 = vmatprep.subr.bf16.mxu0 %v9157
    %12503 = vmatpush1.bf16.msra.mxu0 %v9156
    %12504 = vmatprep.subr.bf16.mxu0 %v9167
    %12505 = vmatpush1.bf16.msra.mxu0 %v9166
    %12506 = vmatprep.subr.bf16.mxu0 %v9177
    %12507 = vmatpush1.bf16.msra.mxu0 %v9176
    %12508 = vmatprep.subr.bf16.mxu0 %v9187
    %12509 = vmatpush1.bf16.msra.mxu0 %v9186
    %12510 = vmatprep.subr.bf16.mxu0 %v9197
    %12511 = vmatpush1.bf16.msra.mxu0 %v9196
    %12512 = vmatprep.subr.bf16.mxu0 %v9207
    %12513 = vmatpush1.bf16.msra.mxu0 %v9206
    %12514 = vmatprep.subr.bf16.mxu0 %v9217
    %12515 = vmatpush1.bf16.msra.mxu0 %v9216
    %12516 = vmatprep.subr.bf16.mxu0 %v9227
    %12517 = vmatpush1.bf16.msra.mxu0 %v9226
    %12518 = vmatprep.subr.bf16.mxu0 %v9237
    %12519 = vmatpush1.bf16.msra.mxu0 %v9236
    %12520 = vmatprep.subr.bf16.mxu0 %v9247
    %12521 = vmatpush1.bf16.msra.mxu0 %v9246
    %12522 = vmatprep.subr.bf16.mxu0 %v9257
    %12523 = vmatpush1.bf16.msra.mxu0 %v9256
    %12524 = vmatprep.subr.bf16.mxu0 %v9267
    %12525 = vmatpush1.bf16.msra.mxu0 %v9266
    %12526 = vmatprep.mubr.bf16.mxu0 %v2013
    %12527 = vmatmul.mubr.bf16.gmra.mrb[0].mxu0 %v2012
    %v12528 = vpop.f32.mrb[0].mxu0
    %v12529 = vadd.f32 %v12488, %v12528
    %v12530 = vpop.f32.mrb[0].mxu0
    %v12531 = vadd.f32 %v12490, %v12530
    %v12532 = vpop.f32.mrb[0].mxu0
    %v12533 = vpop.f32.mrb[0].mxu0
    %12534 = vdwg.mxu0
    %12535 = vmatprep.subr.bf16.mxu0 %v9277
    %12536 = vmatpush1.bf16.msra.mxu0 %v9276
    %12537 = vmatprep.subr.bf16.mxu0 %v9287
    %12538 = vmatpush1.bf16.msra.mxu0 %v9286
    %12539 = vmatprep.subr.bf16.mxu0 %v9297
    %12540 = vmatpush1.bf16.msra.mxu0 %v9296
    %12541 = vmatprep.subr.bf16.mxu0 %v9307
    %12542 = vmatpush1.bf16.msra.mxu0 %v9306
    %12543 = vmatprep.subr.bf16.mxu0 %v9317
    %12544 = vmatpush1.bf16.msra.mxu0 %v9316
    %12545 = vmatprep.subr.bf16.mxu0 %v9327
    %12546 = vmatpush1.bf16.msra.mxu0 %v9326
    %12547 = vmatprep.subr.bf16.mxu0 %v9337
    %12548 = vmatpush1.bf16.msra.mxu0 %v9336
    %12549 = vmatprep.subr.bf16.mxu0 %v9347
    %12550 = vmatpush1.bf16.msra.mxu0 %v9346
    %12551 = vmatprep.subr.bf16.mxu0 %v9357
    %12552 = vmatpush1.bf16.msra.mxu0 %v9356
    %12553 = vmatprep.subr.bf16.mxu0 %v9367
    %12554 = vmatpush1.bf16.msra.mxu0 %v9366
    %12555 = vmatprep.subr.bf16.mxu0 %v9377
    %12556 = vmatpush1.bf16.msra.mxu0 %v9376
    %12557 = vmatprep.subr.bf16.mxu0 %v9387
    %12558 = vmatpush1.bf16.msra.mxu0 %v9386
    %12559 = vmatprep.subr.bf16.mxu0 %v9397
    %12560 = vmatpush1.bf16.msra.mxu0 %v9396
    %12561 = vmatprep.subr.bf16.mxu0 %v9407
    %12562 = vmatpush1.bf16.msra.mxu0 %v9406
    %12563 = vmatprep.subr.bf16.mxu0 %v9417
    %12564 = vmatpush1.bf16.msra.mxu0 %v9416
    %12565 = vmatprep.subr.bf16.mxu0 %v9427
    %12566 = vmatpush1.bf16.msra.mxu0 %v9426
    %12567 = vmatprep.mubr.bf16.mxu0 %v2015
    %12568 = vmatmul.mubr.bf16.gmra.mrb[0].mxu0 %v2014
    %v12569 = vpop.f32.mrb[0].mxu0
    %v12570 = vadd.f32 %v12529, %v12569
    %v12571 = vpop.f32.mrb[0].mxu0
    %v12572 = vadd.f32 %v12531, %v12571
    %v12573 = vpop.f32.mrb[0].mxu0
    %v12574 = vpop.f32.mrb[0].mxu0
    %12575 = vdwg.mxu0
    %12576 = vmatprep.subr.bf16.mxu0 %v9437
    %12577 = vmatpush1.bf16.msra.mxu0 %v9436
    %12578 = vmatprep.subr.bf16.mxu0 %v9447
    %12579 = vmatpush1.bf16.msra.mxu0 %v9446
    %12580 = vmatprep.subr.bf16.mxu0 %v9457
    %12581 = vmatpush1.bf16.msra.mxu0 %v9456
    %12582 = vmatprep.subr.bf16.mxu0 %v9467
    %12583 = vmatpush1.bf16.msra.mxu0 %v9466
    %12584 = vmatprep.subr.bf16.mxu0 %v9477
    %12585 = vmatpush1.bf16.msra.mxu0 %v9476
    %12586 = vmatprep.subr.bf16.mxu0 %v9487
    %12587 = vmatpush1.bf16.msra.mxu0 %v9486
    %12588 = vmatprep.subr.bf16.mxu0 %v9497
    %12589 = vmatpush1.bf16.msra.mxu0 %v9496
    %12590 = vmatprep.subr.bf16.mxu0 %v9507
    %12591 = vmatpush1.bf16.msra.mxu0 %v9506
    %12592 = vmatprep.subr.bf16.mxu0 %v9517
    %12593 = vmatpush1.bf16.msra.mxu0 %v9516
    %12594 = vmatprep.subr.bf16.mxu0 %v9527
    %12595 = vmatpush1.bf16.msra.mxu0 %v9526
    %12596 = vmatprep.subr.bf16.mxu0 %v9537
    %12597 = vmatpush1.bf16.msra.mxu0 %v9536
    %12598 = vmatprep.subr.bf16.mxu0 %v9547
    %12599 = vmatpush1.bf16.msra.mxu0 %v9546
    %12600 = vmatprep.subr.bf16.mxu0 %v9557
    %12601 = vmatpush1.bf16.msra.mxu0 %v9556
    %12602 = vmatprep.subr.bf16.mxu0 %v9567
    %12603 = vmatpush1.bf16.msra.mxu0 %v9566
    %12604 = vmatprep.subr.bf16.mxu0 %v9577
    %12605 = vmatpush1.bf16.msra.mxu0 %v9576
    %12606 = vmatprep.subr.bf16.mxu0 %v9587
    %12607 = vmatpush1.bf16.msra.mxu0 %v9586
    %12608 = vmatprep.mubr.bf16.mxu0 %v2017
    %12609 = vmatmul.mubr.bf16.gmra.mrb[0].mxu0 %v2016
    %v12610 = vpop.f32.mrb[0].mxu0
    %v12611 = vadd.f32 %v12570, %v12610
    %v12612 = vpop.f32.mrb[0].mxu0
    %v12613 = vadd.f32 %v12572, %v12612
    %v12614 = vpop.f32.mrb[0].mxu0
    %v12615 = vpop.f32.mrb[0].mxu0
    %12616 = vdwg.mxu0
    %12617 = vmatprep.subr.bf16.mxu0 %v9597
    %12618 = vmatpush1.bf16.msra.mxu0 %v9596
    %12619 = vmatprep.subr.bf16.mxu0 %v9607
    %12620 = vmatpush1.bf16.msra.mxu0 %v9606
    %12621 = vmatprep.subr.bf16.mxu0 %v9617
    %12622 = vmatpush1.bf16.msra.mxu0 %v9616
    %12623 = vmatprep.subr.bf16.mxu0 %v9627
    %12624 = vmatpush1.bf16.msra.mxu0 %v9626
    %12625 = vmatprep.subr.bf16.mxu0 %v9637
    %12626 = vmatpush1.bf16.msra.mxu0 %v9636
    %12627 = vmatprep.subr.bf16.mxu0 %v9647
    %12628 = vmatpush1.bf16.msra.mxu0 %v9646
    %12629 = vmatprep.subr.bf16.mxu0 %v9657
    %12630 = vmatpush1.bf16.msra.mxu0 %v9656
    %12631 = vmatprep.subr.bf16.mxu0 %v9667
    %12632 = vmatpush1.bf16.msra.mxu0 %v9666
    %12633 = vmatprep.subr.bf16.mxu0 %v9677
    %12634 = vmatpush1.bf16.msra.mxu0 %v9676
    %12635 = vmatprep.subr.bf16.mxu0 %v9687
    %12636 = vmatpush1.bf16.msra.mxu0 %v9686
    %12637 = vmatprep.subr.bf16.mxu0 %v9697
    %12638 = vmatpush1.bf16.msra.mxu0 %v9696
    %12639 = vmatprep.subr.bf16.mxu0 %v9707
    %12640 = vmatpush1.bf16.msra.mxu0 %v9706
    %12641 = vmatprep.subr.bf16.mxu0 %v9717
    %12642 = vmatpush1.bf16.msra.mxu0 %v9716
    %12643 = vmatprep.subr.bf16.mxu0 %v9727
    %12644 = vmatpush1.bf16.msra.mxu0 %v9726
    %12645 = vmatprep.subr.bf16.mxu0 %v9737
    %12646 = vmatpush1.bf16.msra.mxu0 %v9736
    %12647 = vmatprep.subr.bf16.mxu0 %v9747
    %12648 = vmatpush1.bf16.msra.mxu0 %v9746
    %12649 = vmatprep.mubr.bf16.mxu0 %v2019
    %12650 = vmatmul.mubr.bf16.gmra.mrb[0].mxu0 %v2018
    %v12651 = vpop.f32.mrb[0].mxu0
    %v12652 = vadd.f32 %v12611, %v12651
    %v12653 = vpop.f32.mrb[0].mxu0
    %v12654 = vadd.f32 %v12613, %v12653
    %v12655 = vpop.f32.mrb[0].mxu0
    %v12656 = vpop.f32.mrb[0].mxu0
    %12657 = vdwg.mxu0
    %12658 = vmatprep.subr.bf16.mxu0 %v7839
    %12659 = vmatpush1.bf16.msra.mxu0 %v7838
    %12660 = vmatprep.subr.bf16.mxu0 %v7849
    %12661 = vmatpush1.bf16.msra.mxu0 %v7848
    %12662 = vmatprep.subr.bf16.mxu0 %v7859
    %12663 = vmatpush1.bf16.msra.mxu0 %v7858
    %12664 = vmatprep.subr.bf16.mxu0 %v7869
    %12665 = vmatpush1.bf16.msra.mxu0 %v7868
    %12666 = vmatprep.subr.bf16.mxu0 %v7879
    %12667 = vmatpush1.bf16.msra.mxu0 %v7878
    %12668 = vmatprep.subr.bf16.mxu0 %v7889
    %12669 = vmatpush1.bf16.msra.mxu0 %v7888
    %12670 = vmatprep.subr.bf16.mxu0 %v7899
    %12671 = vmatpush1.bf16.msra.mxu0 %v7898
    %12672 = vmatprep.subr.bf16.mxu0 %v7909
    %12673 = vmatpush1.bf16.msra.mxu0 %v7908
    %12674 = vmatprep.subr.bf16.mxu0 %v7919
    %12675 = vmatpush1.bf16.msra.mxu0 %v7918
    %12676 = vmatprep.subr.bf16.mxu0 %v7929
    %12677 = vmatpush1.bf16.msra.mxu0 %v7928
    %12678 = vmatprep.subr.bf16.mxu0 %v7939
    %12679 = vmatpush1.bf16.msra.mxu0 %v7938
    %12680 = vmatprep.subr.bf16.mxu0 %v7949
    %12681 = vmatpush1.bf16.msra.mxu0 %v7948
    %12682 = vmatprep.subr.bf16.mxu0 %v7959
    %12683 = vmatpush1.bf16.msra.mxu0 %v7958
    %12684 = vmatprep.subr.bf16.mxu0 %v7969
    %12685 = vmatpush1.bf16.msra.mxu0 %v7968
    %12686 = vmatprep.subr.bf16.mxu0 %v7979
    %12687 = vmatpush1.bf16.msra.mxu0 %v7978
    %12688 = vmatprep.subr.bf16.mxu0 %v7989
    %12689 = vmatpush1.bf16.msra.mxu0 %v7988
    %12690 = vmatprep.mubr.bf16.mxu0 %v1997
    %12691 = vmatmul.mubr.bf16.gmra.mrb[0].mxu0 %v1996
    %v12692 = vpop.f32.mrb[0].mxu0
    %v12693 = vadd.f32 %v2043, %v12692
    %v12694 = vpop.f32.mrb[0].mxu0
    %v12695 = vadd.f32 %v2047, %v12694
    %v12696 = vpop.f32.mrb[0].mxu0
    %v12697 = vpop.f32.mrb[0].mxu0
    %12698 = vdwg.mxu0
    %12699 = vmatprep.subr.bf16.mxu0 %v7999
    %12700 = vmatpush1.bf16.msra.mxu0 %v7998
    %12701 = vmatprep.subr.bf16.mxu0 %v8009
    %12702 = vmatpush1.bf16.msra.mxu0 %v8008
    %12703 = vmatprep.subr.bf16.mxu0 %v8019
    %12704 = vmatpush1.bf16.msra.mxu0 %v8018
    %12705 = vmatprep.subr.bf16.mxu0 %v8029
    %12706 = vmatpush1.bf16.msra.mxu0 %v8028
    %12707 = vmatprep.subr.bf16.mxu0 %v8039
    %12708 = vmatpush1.bf16.msra.mxu0 %v8038
    %12709 = vmatprep.subr.bf16.mxu0 %v8049
    %12710 = vmatpush1.bf16.msra.mxu0 %v8048
    %12711 = vmatprep.subr.bf16.mxu0 %v8059
    %12712 = vmatpush1.bf16.msra.mxu0 %v8058
    %12713 = vmatprep.subr.bf16.mxu0 %v8069
    %12714 = vmatpush1.bf16.msra.mxu0 %v8068
    %12715 = vmatprep.subr.bf16.mxu0 %v8079
    %12716 = vmatpush1.bf16.msra.mxu0 %v8078
    %12717 = vmatprep.subr.bf16.mxu0 %v8089
    %12718 = vmatpush1.bf16.msra.mxu0 %v8088
    %12719 = vmatprep.subr.bf16.mxu0 %v8099
    %12720 = vmatpush1.bf16.msra.mxu0 %v8098
    %12721 = vmatprep.subr.bf16.mxu0 %v8109
    %12722 = vmatpush1.bf16.msra.mxu0 %v8108
    %12723 = vmatprep.subr.bf16.mxu0 %v8119
    %12724 = vmatpush1.bf16.msra.mxu0 %v8118
    %12725 = vmatprep.subr.bf16.mxu0 %v8129
    %12726 = vmatpush1.bf16.msra.mxu0 %v8128
    %12727 = vmatprep.subr.bf16.mxu0 %v8139
    %12728 = vmatpush1.bf16.msra.mxu0 %v8138
    %12729 = vmatprep.subr.bf16.mxu0 %v8149
    %12730 = vmatpush1.bf16.msra.mxu0 %v8148
    %12731 = vmatprep.mubr.bf16.mxu0 %v1999
    %12732 = vmatmul.mubr.bf16.gmra.mrb[0].mxu0 %v1998
    %v12733 = vpop.f32.mrb[0].mxu0
    %v12734 = vadd.f32 %v12693, %v12733
    %v12735 = vpop.f32.mrb[0].mxu0
    %v12736 = vadd.f32 %v12695, %v12735
    %v12737 = vpop.f32.mrb[0].mxu0
    %v12738 = vpop.f32.mrb[0].mxu0
    %12739 = vdwg.mxu0
    %12740 = vmatprep.subr.bf16.mxu0 %v8159
    %12741 = vmatpush1.bf16.msra.mxu0 %v8158
    %12742 = vmatprep.subr.bf16.mxu0 %v8169
    %12743 = vmatpush1.bf16.msra.mxu0 %v8168
    %12744 = vmatprep.subr.bf16.mxu0 %v8179
    %12745 = vmatpush1.bf16.msra.mxu0 %v8178
    %12746 = vmatprep.subr.bf16.mxu0 %v8189
    %12747 = vmatpush1.bf16.msra.mxu0 %v8188
    %12748 = vmatprep.subr.bf16.mxu0 %v8199
    %12749 = vmatpush1.bf16.msra.mxu0 %v8198
    %12750 = vmatprep.subr.bf16.mxu0 %v8209
    %12751 = vmatpush1.bf16.msra.mxu0 %v8208
    %12752 = vmatprep.subr.bf16.mxu0 %v8219
    %12753 = vmatpush1.bf16.msra.mxu0 %v8218
    %12754 = vmatprep.subr.bf16.mxu0 %v8229
    %12755 = vmatpush1.bf16.msra.mxu0 %v8228
    %12756 = vmatprep.subr.bf16.mxu0 %v8239
    %12757 = vmatpush1.bf16.msra.mxu0 %v8238
    %12758 = vmatprep.subr.bf16.mxu0 %v8249
    %12759 = vmatpush1.bf16.msra.mxu0 %v8248
    %12760 = vmatprep.subr.bf16.mxu0 %v8259
    %12761 = vmatpush1.bf16.msra.mxu0 %v8258
    %12762 = vmatprep.subr.bf16.mxu0 %v8269
    %12763 = vmatpush1.bf16.msra.mxu0 %v8268
    %12764 = vmatprep.subr.bf16.mxu0 %v8279
    %12765 = vmatpush1.bf16.msra.mxu0 %v8278
    %12766 = vmatprep.subr.bf16.mxu0 %v8289
    %12767 = vmatpush1.bf16.msra.mxu0 %v8288
    %12768 = vmatprep.subr.bf16.mxu0 %v8299
    %12769 = vmatpush1.bf16.msra.mxu0 %v8298
    %12770 = vmatprep.subr.bf16.mxu0 %v8309
    %12771 = vmatpush1.bf16.msra.mxu0 %v8308
    %12772 = vmatprep.mubr.bf16.mxu0 %v2001
    %12773 = vmatmul.mubr.bf16.gmra.mrb[0].mxu0 %v2000
    %v12774 = vpop.f32.mrb[0].mxu0
    %v12775 = vadd.f32 %v12734, %v12774
    %v12776 = vpop.f32.mrb[0].mxu0
    %v12777 = vadd.f32 %v12736, %v12776
    %v12778 = vpop.f32.mrb[0].mxu0
    %v12779 = vpop.f32.mrb[0].mxu0
    %12780 = vdwg.mxu0
    %12781 = vmatprep.subr.bf16.mxu0 %v8319
    %12782 = vmatpush1.bf16.msra.mxu0 %v8318
    %12783 = vmatprep.subr.bf16.mxu0 %v8329
    %12784 = vmatpush1.bf16.msra.mxu0 %v8328
    %12785 = vmatprep.subr.bf16.mxu0 %v8339
    %12786 = vmatpush1.bf16.msra.mxu0 %v8338
    %12787 = vmatprep.subr.bf16.mxu0 %v8349
    %12788 = vmatpush1.bf16.msra.mxu0 %v8348
    %12789 = vmatprep.subr.bf16.mxu0 %v8359
    %12790 = vmatpush1.bf16.msra.mxu0 %v8358
    %12791 = vmatprep.subr.bf16.mxu0 %v8369
    %12792 = vmatpush1.bf16.msra.mxu0 %v8368
    %12793 = vmatprep.subr.bf16.mxu0 %v8379
    %12794 = vmatpush1.bf16.msra.mxu0 %v8378
    %12795 = vmatprep.subr.bf16.mxu0 %v8389
    %12796 = vmatpush1.bf16.msra.mxu0 %v8388
    %12797 = vmatprep.subr.bf16.mxu0 %v8399
    %12798 = vmatpush1.bf16.msra.mxu0 %v8398
    %12799 = vmatprep.subr.bf16.mxu0 %v8409
    %12800 = vmatpush1.bf16.msra.mxu0 %v8408
    %12801 = vmatprep.subr.bf16.mxu0 %v8419
    %12802 = vmatpush1.bf16.msra.mxu0 %v8418
    %12803 = vmatprep.subr.bf16.mxu0 %v8429
    %12804 = vmatpush1.bf16.msra.mxu0 %v8428
    %12805 = vmatprep.subr.bf16.mxu0 %v8439
    %12806 = vmatpush1.bf16.msra.mxu0 %v8438
    %12807 = vmatprep.subr.bf16.mxu0 %v8449
    %12808 = vmatpush1.bf16.msra.mxu0 %v8448
    %12809 = vmatprep.subr.bf16.mxu0 %v8459
    %12810 = vmatpush1.bf16.msra.mxu0 %v8458
    %12811 = vmatprep.subr.bf16.mxu0 %v8469
    %12812 = vmatpush1.bf16.msra.mxu0 %v8468
    %12813 = vmatprep.mubr.bf16.mxu0 %v2003
    %12814 = vmatmul.mubr.bf16.gmra.mrb[0].mxu0 %v2002
    %v12815 = vpop.f32.mrb[0].mxu0
    %v12816 = vadd.f32 %v12775, %v12815
    %v12817 = vpop.f32.mrb[0].mxu0
    %v12818 = vadd.f32 %v12777, %v12817
    %v12819 = vpop.f32.mrb[0].mxu0
    %v12820 = vpop.f32.mrb[0].mxu0
    %12821 = vdwg.mxu0
    %12822 = vmatprep.subr.bf16.mxu0 %v8479
    %12823 = vmatpush1.bf16.msra.mxu0 %v8478
    %12824 = vmatprep.subr.bf16.mxu0 %v8489
    %12825 = vmatpush1.bf16.msra.mxu0 %v8488
    %12826 = vmatprep.subr.bf16.mxu0 %v8499
    %12827 = vmatpush1.bf16.msra.mxu0 %v8498
    %12828 = vmatprep.subr.bf16.mxu0 %v8509
    %12829 = vmatpush1.bf16.msra.mxu0 %v8508
    %12830 = vmatprep.subr.bf16.mxu0 %v8519
    %12831 = vmatpush1.bf16.msra.mxu0 %v8518
    %12832 = vmatprep.subr.bf16.mxu0 %v8529
    %12833 = vmatpush1.bf16.msra.mxu0 %v8528
    %12834 = vmatprep.subr.bf16.mxu0 %v8539
    %12835 = vmatpush1.bf16.msra.mxu0 %v8538
    %12836 = vmatprep.subr.bf16.mxu0 %v8549
    %12837 = vmatpush1.bf16.msra.mxu0 %v8548
    %12838 = vmatprep.subr.bf16.mxu0 %v8559
    %12839 = vmatpush1.bf16.msra.mxu0 %v8558
    %12840 = vmatprep.subr.bf16.mxu0 %v8569
    %12841 = vmatpush1.bf16.msra.mxu0 %v8568
    %12842 = vmatprep.subr.bf16.mxu0 %v8579
    %12843 = vmatpush1.bf16.msra.mxu0 %v8578
    %12844 = vmatprep.subr.bf16.mxu0 %v8589
    %12845 = vmatpush1.bf16.msra.mxu0 %v8588
    %12846 = vmatprep.subr.bf16.mxu0 %v8599
    %12847 = vmatpush1.bf16.msra.mxu0 %v8598
    %12848 = vmatprep.subr.bf16.mxu0 %v8609
    %12849 = vmatpush1.bf16.msra.mxu0 %v8608
    %12850 = vmatprep.subr.bf16.mxu0 %v8619
    %12851 = vmatpush1.bf16.msra.mxu0 %v8618
    %12852 = vmatprep.subr.bf16.mxu0 %v8629
    %12853 = vmatpush1.bf16.msra.mxu0 %v8628
    %12854 = vmatprep.mubr.bf16.mxu0 %v2005
    %12855 = vmatmul.mubr.bf16.gmra.mrb[0].mxu0 %v2004
    %v12856 = vpop.f32.mrb[0].mxu0
    %v12857 = vadd.f32 %v12816, %v12856
    %v12858 = vpop.f32.mrb[0].mxu0
    %v12859 = vadd.f32 %v12818, %v12858
    %v12860 = vpop.f32.mrb[0].mxu0
    %v12861 = vpop.f32.mrb[0].mxu0
    %12862 = vdwg.mxu0
    %12863 = vmatprep.subr.bf16.mxu0 %v8639
    %12864 = vmatpush1.bf16.msra.mxu0 %v8638
    %12865 = vmatprep.subr.bf16.mxu0 %v8649
    %12866 = vmatpush1.bf16.msra.mxu0 %v8648
    %12867 = vmatprep.subr.bf16.mxu0 %v8659
    %12868 = vmatpush1.bf16.msra.mxu0 %v8658
    %12869 = vmatprep.subr.bf16.mxu0 %v8669
    %12870 = vmatpush1.bf16.msra.mxu0 %v8668
    %12871 = vmatprep.subr.bf16.mxu0 %v8679
    %12872 = vmatpush1.bf16.msra.mxu0 %v8678
    %12873 = vmatprep.subr.bf16.mxu0 %v8689
    %12874 = vmatpush1.bf16.msra.mxu0 %v8688
    %12875 = vmatprep.subr.bf16.mxu0 %v8699
    %12876 = vmatpush1.bf16.msra.mxu0 %v8698
    %12877 = vmatprep.subr.bf16.mxu0 %v8709
    %12878 = vmatpush1.bf16.msra.mxu0 %v8708
    %12879 = vmatprep.subr.bf16.mxu0 %v8719
    %12880 = vmatpush1.bf16.msra.mxu0 %v8718
    %12881 = vmatprep.subr.bf16.mxu0 %v8729
    %12882 = vmatpush1.bf16.msra.mxu0 %v8728
    %12883 = vmatprep.subr.bf16.mxu0 %v8739
    %12884 = vmatpush1.bf16.msra.mxu0 %v8738
    %12885 = vmatprep.subr.bf16.mxu0 %v8749
    %12886 = vmatpush1.bf16.msra.mxu0 %v8748
    %12887 = vmatprep.subr.bf16.mxu0 %v8759
    %12888 = vmatpush1.bf16.msra.mxu0 %v8758
    %12889 = vmatprep.subr.bf16.mxu0 %v8769
    %12890 = vmatpush1.bf16.msra.mxu0 %v8768
    %12891 = vmatprep.subr.bf16.mxu0 %v8779
    %12892 = vmatpush1.bf16.msra.mxu0 %v8778
    %12893 = vmatprep.subr.bf16.mxu0 %v8789
    %12894 = vmatpush1.bf16.msra.mxu0 %v8788
    %12895 = vmatprep.mubr.bf16.mxu0 %v2007
    %12896 = vmatmul.mubr.bf16.gmra.mrb[0].mxu0 %v2006
    %v12897 = vpop.f32.mrb[0].mxu0
    %v12898 = vadd.f32 %v12857, %v12897
    %v12899 = vpop.f32.mrb[0].mxu0
    %v12900 = vadd.f32 %v12859, %v12899
    %v12901 = vpop.f32.mrb[0].mxu0
    %v12902 = vpop.f32.mrb[0].mxu0
    %12903 = vdwg.mxu0
    %12904 = vmatprep.subr.bf16.mxu0 %v8799
    %12905 = vmatpush1.bf16.msra.mxu0 %v8798
    %12906 = vmatprep.subr.bf16.mxu0 %v8809
    %12907 = vmatpush1.bf16.msra.mxu0 %v8808
    %12908 = vmatprep.subr.bf16.mxu0 %v8819
    %12909 = vmatpush1.bf16.msra.mxu0 %v8818
    %12910 = vmatprep.subr.bf16.mxu0 %v8829
    %12911 = vmatpush1.bf16.msra.mxu0 %v8828
    %12912 = vmatprep.subr.bf16.mxu0 %v8839
    %12913 = vmatpush1.bf16.msra.mxu0 %v8838
    %12914 = vmatprep.subr.bf16.mxu0 %v8849
    %12915 = vmatpush1.bf16.msra.mxu0 %v8848
    %12916 = vmatprep.subr.bf16.mxu0 %v8859
    %12917 = vmatpush1.bf16.msra.mxu0 %v8858
    %12918 = vmatprep.subr.bf16.mxu0 %v8869
    %12919 = vmatpush1.bf16.msra.mxu0 %v8868
    %12920 = vmatprep.subr.bf16.mxu0 %v8879
    %12921 = vmatpush1.bf16.msra.mxu0 %v8878
    %12922 = vmatprep.subr.bf16.mxu0 %v8889
    %12923 = vmatpush1.bf16.msra.mxu0 %v8888
    %12924 = vmatprep.subr.bf16.mxu0 %v8899
    %12925 = vmatpush1.bf16.msra.mxu0 %v8898
    %12926 = vmatprep.subr.bf16.mxu0 %v8909
    %12927 = vmatpush1.bf16.msra.mxu0 %v8908
    %12928 = vmatprep.subr.bf16.mxu0 %v8919
    %12929 = vmatpush1.bf16.msra.mxu0 %v8918
    %12930 = vmatprep.subr.bf16.mxu0 %v8929
    %12931 = vmatpush1.bf16.msra.mxu0 %v8928
    %12932 = vmatprep.subr.bf16.mxu0 %v8939
    %12933 = vmatpush1.bf16.msra.mxu0 %v8938
    %12934 = vmatprep.subr.bf16.mxu0 %v8949
    %12935 = vmatpush1.bf16.msra.mxu0 %v8948
    %12936 = vmatprep.mubr.bf16.mxu0 %v2009
    %12937 = vmatmul.mubr.bf16.gmra.mrb[0].mxu0 %v2008
    %v12938 = vpop.f32.mrb[0].mxu0
    %v12939 = vadd.f32 %v12898, %v12938
    %v12940 = vpop.f32.mrb[0].mxu0
    %v12941 = vadd.f32 %v12900, %v12940
    %v12942 = vpop.f32.mrb[0].mxu0
    %v12943 = vpop.f32.mrb[0].mxu0
    %12944 = vdwg.mxu0
    %12945 = vmatprep.subr.bf16.mxu0 %v8959
    %12946 = vmatpush1.bf16.msra.mxu0 %v8958
    %12947 = vmatprep.subr.bf16.mxu0 %v8969
    %12948 = vmatpush1.bf16.msra.mxu0 %v8968
    %12949 = vmatprep.subr.bf16.mxu0 %v8979
    %12950 = vmatpush1.bf16.msra.mxu0 %v8978
    %12951 = vmatprep.subr.bf16.mxu0 %v8989
    %12952 = vmatpush1.bf16.msra.mxu0 %v8988
    %12953 = vmatprep.subr.bf16.mxu0 %v8999
    %12954 = vmatpush1.bf16.msra.mxu0 %v8998
    %12955 = vmatprep.subr.bf16.mxu0 %v9009
    %12956 = vmatpush1.bf16.msra.mxu0 %v9008
    %12957 = vmatprep.subr.bf16.mxu0 %v9019
    %12958 = vmatpush1.bf16.msra.mxu0 %v9018
    %12959 = vmatprep.subr.bf16.mxu0 %v9029
    %12960 = vmatpush1.bf16.msra.mxu0 %v9028
    %12961 = vmatprep.subr.bf16.mxu0 %v9039
    %12962 = vmatpush1.bf16.msra.mxu0 %v9038
    %12963 = vmatprep.subr.bf16.mxu0 %v9049
    %12964 = vmatpush1.bf16.msra.mxu0 %v9048
    %12965 = vmatprep.subr.bf16.mxu0 %v9059
    %12966 = vmatpush1.bf16.msra.mxu0 %v9058
    %12967 = vmatprep.subr.bf16.mxu0 %v9069
    %12968 = vmatpush1.bf16.msra.mxu0 %v9068
    %12969 = vmatprep.subr.bf16.mxu0 %v9079
    %12970 = vmatpush1.bf16.msra.mxu0 %v9078
    %12971 = vmatprep.subr.bf16.mxu0 %v9089
    %12972 = vmatpush1.bf16.msra.mxu0 %v9088
    %12973 = vmatprep.subr.bf16.mxu0 %v9099
    %12974 = vmatpush1.bf16.msra.mxu0 %v9098
    %12975 = vmatprep.subr.bf16.mxu0 %v9109
    %12976 = vmatpush1.bf16.msra.mxu0 %v9108
    %12977 = vmatprep.mubr.bf16.mxu0 %v2011
    %12978 = vmatmul.mubr.bf16.gmra.mrb[0].mxu0 %v2010
    %v12979 = vpop.f32.mrb[0].mxu0
    %v12980 = vadd.f32 %v12939, %v12979
    %v12981 = vpop.f32.mrb[0].mxu0
    %v12982 = vadd.f32 %v12941, %v12981
    %v12983 = vpop.f32.mrb[0].mxu0
    %v12984 = vpop.f32.mrb[0].mxu0
    %12985 = vdwg.mxu0
    %12986 = vmatprep.subr.bf16.mxu0 %v9119
    %12987 = vmatpush1.bf16.msra.mxu0 %v9118
    %12988 = vmatprep.subr.bf16.mxu0 %v9129
    %12989 = vmatpush1.bf16.msra.mxu0 %v9128
    %12990 = vmatprep.subr.bf16.mxu0 %v9139
    %12991 = vmatpush1.bf16.msra.mxu0 %v9138
    %12992 = vmatprep.subr.bf16.mxu0 %v9149
    %12993 = vmatpush1.bf16.msra.mxu0 %v9148
    %12994 = vmatprep.subr.bf16.mxu0 %v9159
    %12995 = vmatpush1.bf16.msra.mxu0 %v9158
    %12996 = vmatprep.subr.bf16.mxu0 %v9169
    %12997 = vmatpush1.bf16.msra.mxu0 %v9168
    %12998 = vmatprep.subr.bf16.mxu0 %v9179
    %12999 = vmatpush1.bf16.msra.mxu0 %v9178
    %13000 = vmatprep.subr.bf16.mxu0 %v9189
    %13001 = vmatpush1.bf16.msra.mxu0 %v9188
    %13002 = vmatprep.subr.bf16.mxu0 %v9199
    %13003 = vmatpush1.bf16.msra.mxu0 %v9198
    %13004 = vmatprep.subr.bf16.mxu0 %v9209
    %13005 = vmatpush1.bf16.msra.mxu0 %v9208
    %13006 = vmatprep.subr.bf16.mxu0 %v9219
    %13007 = vmatpush1.bf16.msra.mxu0 %v9218
    %13008 = vmatprep.subr.bf16.mxu0 %v9229
    %13009 = vmatpush1.bf16.msra.mxu0 %v9228
    %13010 = vmatprep.subr.bf16.mxu0 %v9239
    %13011 = vmatpush1.bf16.msra.mxu0 %v9238
    %13012 = vmatprep.subr.bf16.mxu0 %v9249
    %13013 = vmatpush1.bf16.msra.mxu0 %v9248
    %13014 = vmatprep.subr.bf16.mxu0 %v9259
    %13015 = vmatpush1.bf16.msra.mxu0 %v9258
    %13016 = vmatprep.subr.bf16.mxu0 %v9269
    %13017 = vmatpush1.bf16.msra.mxu0 %v9268
    %13018 = vmatprep.mubr.bf16.mxu0 %v2013
    %13019 = vmatmul.mubr.bf16.gmra.mrb[0].mxu0 %v2012
    %v13020 = vpop.f32.mrb[0].mxu0
    %v13021 = vadd.f32 %v12980, %v13020
    %v13022 = vpop.f32.mrb[0].mxu0
    %v13023 = vadd.f32 %v12982, %v13022
    %v13024 = vpop.f32.mrb[0].mxu0
    %v13025 = vpop.f32.mrb[0].mxu0
    %13026 = vdwg.mxu0
    %13027 = vmatprep.subr.bf16.mxu0 %v9279
    %13028 = vmatpush1.bf16.msra.mxu0 %v9278
    %13029 = vmatprep.subr.bf16.mxu0 %v9289
    %13030 = vmatpush1.bf16.msra.mxu0 %v9288
    %13031 = vmatprep.subr.bf16.mxu0 %v9299
    %13032 = vmatpush1.bf16.msra.mxu0 %v9298
    %13033 = vmatprep.subr.bf16.mxu0 %v9309
    %13034 = vmatpush1.bf16.msra.mxu0 %v9308
    %13035 = vmatprep.subr.bf16.mxu0 %v9319
    %13036 = vmatpush1.bf16.msra.mxu0 %v9318
    %13037 = vmatprep.subr.bf16.mxu0 %v9329
    %13038 = vmatpush1.bf16.msra.mxu0 %v9328
    %13039 = vmatprep.subr.bf16.mxu0 %v9339
    %13040 = vmatpush1.bf16.msra.mxu0 %v9338
    %13041 = vmatprep.subr.bf16.mxu0 %v9349
    %13042 = vmatpush1.bf16.msra.mxu0 %v9348
    %13043 = vmatprep.subr.bf16.mxu0 %v9359
    %13044 = vmatpush1.bf16.msra.mxu0 %v9358
    %13045 = vmatprep.subr.bf16.mxu0 %v9369
    %13046 = vmatpush1.bf16.msra.mxu0 %v9368
    %13047 = vmatprep.subr.bf16.mxu0 %v9379
    %13048 = vmatpush1.bf16.msra.mxu0 %v9378
    %13049 = vmatprep.subr.bf16.mxu0 %v9389
    %13050 = vmatpush1.bf16.msra.mxu0 %v9388
    %13051 = vmatprep.subr.bf16.mxu0 %v9399
    %13052 = vmatpush1.bf16.msra.mxu0 %v9398
    %13053 = vmatprep.subr.bf16.mxu0 %v9409
    %13054 = vmatpush1.bf16.msra.mxu0 %v9408
    %13055 = vmatprep.subr.bf16.mxu0 %v9419
    %13056 = vmatpush1.bf16.msra.mxu0 %v9418
    %13057 = vmatprep.subr.bf16.mxu0 %v9429
    %13058 = vmatpush1.bf16.msra.mxu0 %v9428
    %13059 = vmatprep.mubr.bf16.mxu0 %v2015
    %13060 = vmatmul.mubr.bf16.gmra.mrb[0].mxu0 %v2014
    %v13061 = vpop.f32.mrb[0].mxu0
    %v13062 = vadd.f32 %v13021, %v13061
    %v13063 = vpop.f32.mrb[0].mxu0
    %v13064 = vadd.f32 %v13023, %v13063
    %v13065 = vpop.f32.mrb[0].mxu0
    %v13066 = vpop.f32.mrb[0].mxu0
    %13067 = vdwg.mxu0
    %13068 = vmatprep.subr.bf16.mxu0 %v9439
    %13069 = vmatpush1.bf16.msra.mxu0 %v9438
    %13070 = vmatprep.subr.bf16.mxu0 %v9449
    %13071 = vmatpush1.bf16.msra.mxu0 %v9448
    %13072 = vmatprep.subr.bf16.mxu0 %v9459
    %13073 = vmatpush1.bf16.msra.mxu0 %v9458
    %13074 = vmatprep.subr.bf16.mxu0 %v9469
    %13075 = vmatpush1.bf16.msra.mxu0 %v9468
    %13076 = vmatprep.subr.bf16.mxu0 %v9479
    %13077 = vmatpush1.bf16.msra.mxu0 %v9478
    %13078 = vmatprep.subr.bf16.mxu0 %v9489
    %13079 = vmatpush1.bf16.msra.mxu0 %v9488
    %13080 = vmatprep.subr.bf16.mxu0 %v9499
    %13081 = vmatpush1.bf16.msra.mxu0 %v9498
    %13082 = vmatprep.subr.bf16.mxu0 %v9509
    %13083 = vmatpush1.bf16.msra.mxu0 %v9508
    %13084 = vmatprep.subr.bf16.mxu0 %v9519
    %13085 = vmatpush1.bf16.msra.mxu0 %v9518
    %13086 = vmatprep.subr.bf16.mxu0 %v9529
    %13087 = vmatpush1.bf16.msra.mxu0 %v9528
    %13088 = vmatprep.subr.bf16.mxu0 %v9539
    %13089 = vmatpush1.bf16.msra.mxu0 %v9538
    %13090 = vmatprep.subr.bf16.mxu0 %v9549
    %13091 = vmatpush1.bf16.msra.mxu0 %v9548
    %13092 = vmatprep.subr.bf16.mxu0 %v9559
    %13093 = vmatpush1.bf16.msra.mxu0 %v9558
    %13094 = vmatprep.subr.bf16.mxu0 %v9569
    %13095 = vmatpush1.bf16.msra.mxu0 %v9568
    %13096 = vmatprep.subr.bf16.mxu0 %v9579
    %13097 = vmatpush1.bf16.msra.mxu0 %v9578
    %13098 = vmatprep.subr.bf16.mxu0 %v9589
    %13099 = vmatpush1.bf16.msra.mxu0 %v9588
    %13100 = vmatprep.mubr.bf16.mxu0 %v2017
    %13101 = vmatmul.mubr.bf16.gmra.mrb[0].mxu0 %v2016
    %v13102 = vpop.f32.mrb[0].mxu0
    %v13103 = vadd.f32 %v13062, %v13102
    %v13104 = vpop.f32.mrb[0].mxu0
    %v13105 = vadd.f32 %v13064, %v13104
    %v13106 = vpop.f32.mrb[0].mxu0
    %v13107 = vpop.f32.mrb[0].mxu0
    %13108 = vdwg.mxu0
    %13109 = vmatprep.subr.bf16.mxu0 %v9599
    %13110 = vmatpush1.bf16.msra.mxu0 %v9598
    %13111 = vmatprep.subr.bf16.mxu0 %v9609
    %13112 = vmatpush1.bf16.msra.mxu0 %v9608
    %13113 = vmatprep.subr.bf16.mxu0 %v9619
    %13114 = vmatpush1.bf16.msra.mxu0 %v9618
    %13115 = vmatprep.subr.bf16.mxu0 %v9629
    %13116 = vmatpush1.bf16.msra.mxu0 %v9628
    %13117 = vmatprep.subr.bf16.mxu0 %v9639
    %13118 = vmatpush1.bf16.msra.mxu0 %v9638
    %13119 = vmatprep.subr.bf16.mxu0 %v9649
    %13120 = vmatpush1.bf16.msra.mxu0 %v9648
    %13121 = vmatprep.subr.bf16.mxu0 %v9659
    %13122 = vmatpush1.bf16.msra.mxu0 %v9658
    %13123 = vmatprep.subr.bf16.mxu0 %v9669
    %13124 = vmatpush1.bf16.msra.mxu0 %v9668
    %13125 = vmatprep.subr.bf16.mxu0 %v9679
    %13126 = vmatpush1.bf16.msra.mxu0 %v9678
    %13127 = vmatprep.subr.bf16.mxu0 %v9689
    %13128 = vmatpush1.bf16.msra.mxu0 %v9688
    %13129 = vmatprep.subr.bf16.mxu0 %v9699
    %13130 = vmatpush1.bf16.msra.mxu0 %v9698
    %13131 = vmatprep.subr.bf16.mxu0 %v9709
    %13132 = vmatpush1.bf16.msra.mxu0 %v9708
    %13133 = vmatprep.subr.bf16.mxu0 %v9719
    %13134 = vmatpush1.bf16.msra.mxu0 %v9718
    %13135 = vmatprep.subr.bf16.mxu0 %v9729
    %13136 = vmatpush1.bf16.msra.mxu0 %v9728
    %13137 = vmatprep.subr.bf16.mxu0 %v9739
    %13138 = vmatpush1.bf16.msra.mxu0 %v9738
    %13139 = vmatprep.subr.bf16.mxu0 %v9749
    %13140 = vmatpush1.bf16.msra.mxu0 %v9748
    %13141 = vmatprep.mubr.bf16.mxu0 %v2019
    %13142 = vmatmul.mubr.bf16.gmra.mrb[0].mxu0 %v2018
    %v13143 = vpop.f32.mrb[0].mxu0
    %v13144 = vadd.f32 %v13103, %v13143
    %v13145 = vpop.f32.mrb[0].mxu0
    %v13146 = vadd.f32 %v13105, %v13145
    %v13147 = vpop.f32.mrb[0].mxu0
    %v13148 = vpop.f32.mrb[0].mxu0
    %13149 = vdwg.mxu0
    %13150 = vmatprep.subr.bf16.mxu0 %v7841
    %13151 = vmatpush1.bf16.msra.mxu0 %v7840
    %13152 = vmatprep.subr.bf16.mxu0 %v7851
    %13153 = vmatpush1.bf16.msra.mxu0 %v7850
    %13154 = vmatprep.subr.bf16.mxu0 %v7861
    %13155 = vmatpush1.bf16.msra.mxu0 %v7860
    %13156 = vmatprep.subr.bf16.mxu0 %v7871
    %13157 = vmatpush1.bf16.msra.mxu0 %v7870
    %13158 = vmatprep.subr.bf16.mxu0 %v7881
    %13159 = vmatpush1.bf16.msra.mxu0 %v7880
    %13160 = vmatprep.subr.bf16.mxu0 %v7891
    %13161 = vmatpush1.bf16.msra.mxu0 %v7890
    %13162 = vmatprep.subr.bf16.mxu0 %v7901
    %13163 = vmatpush1.bf16.msra.mxu0 %v7900
    %13164 = vmatprep.subr.bf16.mxu0 %v7911
    %13165 = vmatpush1.bf16.msra.mxu0 %v7910
    %13166 = vmatprep.subr.bf16.mxu0 %v7921
    %13167 = vmatpush1.bf16.msra.mxu0 %v7920
    %13168 = vmatprep.subr.bf16.mxu0 %v7931
    %13169 = vmatpush1.bf16.msra.mxu0 %v7930
    %13170 = vmatprep.subr.bf16.mxu0 %v7941
    %13171 = vmatpush1.bf16.msra.mxu0 %v7940
    %13172 = vmatprep.subr.bf16.mxu0 %v7951
    %13173 = vmatpush1.bf16.msra.mxu0 %v7950
    %13174 = vmatprep.subr.bf16.mxu0 %v7961
    %13175 = vmatpush1.bf16.msra.mxu0 %v7960
    %13176 = vmatprep.subr.bf16.mxu0 %v7971
    %13177 = vmatpush1.bf16.msra.mxu0 %v7970
    %13178 = vmatprep.subr.bf16.mxu0 %v7981
    %13179 = vmatpush1.bf16.msra.mxu0 %v7980
    %13180 = vmatprep.subr.bf16.mxu0 %v7991
    %13181 = vmatpush1.bf16.msra.mxu0 %v7990
    %13182 = vmatprep.mubr.bf16.mxu0 %v1997
    %13183 = vmatmul.mubr.bf16.gmra.mrb[0].mxu0 %v1996
    %v13184 = vpop.f32.mrb[0].mxu0
    %v13185 = vadd.f32 %v2051, %v13184
    %v13186 = vpop.f32.mrb[0].mxu0
    %v13187 = vadd.f32 %v2055, %v13186
    %v13188 = vpop.f32.mrb[0].mxu0
    %v13189 = vpop.f32.mrb[0].mxu0
    %13190 = vdwg.mxu0
    %13191 = vmatprep.subr.bf16.mxu0 %v8001
    %13192 = vmatpush1.bf16.msra.mxu0 %v8000
    %13193 = vmatprep.subr.bf16.mxu0 %v8011
    %13194 = vmatpush1.bf16.msra.mxu0 %v8010
    %13195 = vmatprep.subr.bf16.mxu0 %v8021
    %13196 = vmatpush1.bf16.msra.mxu0 %v8020
    %13197 = vmatprep.subr.bf16.mxu0 %v8031
    %13198 = vmatpush1.bf16.msra.mxu0 %v8030
    %13199 = vmatprep.subr.bf16.mxu0 %v8041
    %13200 = vmatpush1.bf16.msra.mxu0 %v8040
    %13201 = vmatprep.subr.bf16.mxu0 %v8051
    %13202 = vmatpush1.bf16.msra.mxu0 %v8050
    %13203 = vmatprep.subr.bf16.mxu0 %v8061
    %13204 = vmatpush1.bf16.msra.mxu0 %v8060
    %13205 = vmatprep.subr.bf16.mxu0 %v8071
    %13206 = vmatpush1.bf16.msra.mxu0 %v8070
    %13207 = vmatprep.subr.bf16.mxu0 %v8081
    %13208 = vmatpush1.bf16.msra.mxu0 %v8080
    %13209 = vmatprep.subr.bf16.mxu0 %v8091
    %13210 = vmatpush1.bf16.msra.mxu0 %v8090
    %13211 = vmatprep.subr.bf16.mxu0 %v8101
    %13212 = vmatpush1.bf16.msra.mxu0 %v8100
    %13213 = vmatprep.subr.bf16.mxu0 %v8111
    %13214 = vmatpush1.bf16.msra.mxu0 %v8110
    %13215 = vmatprep.subr.bf16.mxu0 %v8121
    %13216 = vmatpush1.bf16.msra.mxu0 %v8120
    %13217 = vmatprep.subr.bf16.mxu0 %v8131
    %13218 = vmatpush1.bf16.msra.mxu0 %v8130
    %13219 = vmatprep.subr.bf16.mxu0 %v8141
    %13220 = vmatpush1.bf16.msra.mxu0 %v8140
    %13221 = vmatprep.subr.bf16.mxu0 %v8151
    %13222 = vmatpush1.bf16.msra.mxu0 %v8150
    %13223 = vmatprep.mubr.bf16.mxu0 %v1999
    %13224 = vmatmul.mubr.bf16.gmra.mrb[0].mxu0 %v1998
    %v13225 = vpop.f32.mrb[0].mxu0
    %v13226 = vadd.f32 %v13185, %v13225
    %v13227 = vpop.f32.mrb[0].mxu0
    %v13228 = vadd.f32 %v13187, %v13227
    %v13229 = vpop.f32.mrb[0].mxu0
    %v13230 = vpop.f32.mrb[0].mxu0
    %13231 = vdwg.mxu0
    %13232 = vmatprep.subr.bf16.mxu0 %v8161
    %13233 = vmatpush1.bf16.msra.mxu0 %v8160
    %13234 = vmatprep.subr.bf16.mxu0 %v8171
    %13235 = vmatpush1.bf16.msra.mxu0 %v8170
    %13236 = vmatprep.subr.bf16.mxu0 %v8181
    %13237 = vmatpush1.bf16.msra.mxu0 %v8180
    %13238 = vmatprep.subr.bf16.mxu0 %v8191
    %13239 = vmatpush1.bf16.msra.mxu0 %v8190
    %13240 = vmatprep.subr.bf16.mxu0 %v8201
    %13241 = vmatpush1.bf16.msra.mxu0 %v8200
    %13242 = vmatprep.subr.bf16.mxu0 %v8211
    %13243 = vmatpush1.bf16.msra.mxu0 %v8210
    %13244 = vmatprep.subr.bf16.mxu0 %v8221
    %13245 = vmatpush1.bf16.msra.mxu0 %v8220
    %13246 = vmatprep.subr.bf16.mxu0 %v8231
    %13247 = vmatpush1.bf16.msra.mxu0 %v8230
    %13248 = vmatprep.subr.bf16.mxu0 %v8241
    %13249 = vmatpush1.bf16.msra.mxu0 %v8240
    %13250 = vmatprep.subr.bf16.mxu0 %v8251
    %13251 = vmatpush1.bf16.msra.mxu0 %v8250
    %13252 = vmatprep.subr.bf16.mxu0 %v8261
    %13253 = vmatpush1.bf16.msra.mxu0 %v8260
    %13254 = vmatprep.subr.bf16.mxu0 %v8271
    %13255 = vmatpush1.bf16.msra.mxu0 %v8270
    %13256 = vmatprep.subr.bf16.mxu0 %v8281
    %13257 = vmatpush1.bf16.msra.mxu0 %v8280
    %13258 = vmatprep.subr.bf16.mxu0 %v8291
    %13259 = vmatpush1.bf16.msra.mxu0 %v8290
    %13260 = vmatprep.subr.bf16.mxu0 %v8301
    %13261 = vmatpush1.bf16.msra.mxu0 %v8300
    %13262 = vmatprep.subr.bf16.mxu0 %v8311
    %13263 = vmatpush1.bf16.msra.mxu0 %v8310
    %13264 = vmatprep.mubr.bf16.mxu0 %v2001
    %13265 = vmatmul.mubr.bf16.gmra.mrb[0].mxu0 %v2000
    %v13266 = vpop.f32.mrb[0].mxu0
    %v13267 = vadd.f32 %v13226, %v13266
    %v13268 = vpop.f32.mrb[0].mxu0
    %v13269 = vadd.f32 %v13228, %v13268
    %v13270 = vpop.f32.mrb[0].mxu0
    %v13271 = vpop.f32.mrb[0].mxu0
    %13272 = vdwg.mxu0
    %13273 = vmatprep.subr.bf16.mxu0 %v8321
    %13274 = vmatpush1.bf16.msra.mxu0 %v8320
    %13275 = vmatprep.subr.bf16.mxu0 %v8331
    %13276 = vmatpush1.bf16.msra.mxu0 %v8330
    %13277 = vmatprep.subr.bf16.mxu0 %v8341
    %13278 = vmatpush1.bf16.msra.mxu0 %v8340
    %13279 = vmatprep.subr.bf16.mxu0 %v8351
    %13280 = vmatpush1.bf16.msra.mxu0 %v8350
    %13281 = vmatprep.subr.bf16.mxu0 %v8361
    %13282 = vmatpush1.bf16.msra.mxu0 %v8360
    %13283 = vmatprep.subr.bf16.mxu0 %v8371
    %13284 = vmatpush1.bf16.msra.mxu0 %v8370
    %13285 = vmatprep.subr.bf16.mxu0 %v8381
    %13286 = vmatpush1.bf16.msra.mxu0 %v8380
    %13287 = vmatprep.subr.bf16.mxu0 %v8391
    %13288 = vmatpush1.bf16.msra.mxu0 %v8390
    %13289 = vmatprep.subr.bf16.mxu0 %v8401
    %13290 = vmatpush1.bf16.msra.mxu0 %v8400
    %13291 = vmatprep.subr.bf16.mxu0 %v8411
    %13292 = vmatpush1.bf16.msra.mxu0 %v8410
    %13293 = vmatprep.subr.bf16.mxu0 %v8421
    %13294 = vmatpush1.bf16.msra.mxu0 %v8420
    %13295 = vmatprep.subr.bf16.mxu0 %v8431
    %13296 = vmatpush1.bf16.msra.mxu0 %v8430
    %13297 = vmatprep.subr.bf16.mxu0 %v8441
    %13298 = vmatpush1.bf16.msra.mxu0 %v8440
    %13299 = vmatprep.subr.bf16.mxu0 %v8451
    %13300 = vmatpush1.bf16.msra.mxu0 %v8450
    %13301 = vmatprep.subr.bf16.mxu0 %v8461
    %13302 = vmatpush1.bf16.msra.mxu0 %v8460
    %13303 = vmatprep.subr.bf16.mxu0 %v8471
    %13304 = vmatpush1.bf16.msra.mxu0 %v8470
    %13305 = vmatprep.mubr.bf16.mxu0 %v2003
    %13306 = vmatmul.mubr.bf16.gmra.mrb[0].mxu0 %v2002
    %v13307 = vpop.f32.mrb[0].mxu0
    %v13308 = vadd.f32 %v13267, %v13307
    %v13309 = vpop.f32.mrb[0].mxu0
    %v13310 = vadd.f32 %v13269, %v13309
    %v13311 = vpop.f32.mrb[0].mxu0
    %v13312 = vpop.f32.mrb[0].mxu0
    %13313 = vdwg.mxu0
    %13314 = vmatprep.subr.bf16.mxu0 %v8481
    %13315 = vmatpush1.bf16.msra.mxu0 %v8480
    %13316 = vmatprep.subr.bf16.mxu0 %v8491
    %13317 = vmatpush1.bf16.msra.mxu0 %v8490
    %13318 = vmatprep.subr.bf16.mxu0 %v8501
    %13319 = vmatpush1.bf16.msra.mxu0 %v8500
    %13320 = vmatprep.subr.bf16.mxu0 %v8511
    %13321 = vmatpush1.bf16.msra.mxu0 %v8510
    %13322 = vmatprep.subr.bf16.mxu0 %v8521
    %13323 = vmatpush1.bf16.msra.mxu0 %v8520
    %13324 = vmatprep.subr.bf16.mxu0 %v8531
    %13325 = vmatpush1.bf16.msra.mxu0 %v8530
    %13326 = vmatprep.subr.bf16.mxu0 %v8541
    %13327 = vmatpush1.bf16.msra.mxu0 %v8540
    %13328 = vmatprep.subr.bf16.mxu0 %v8551
    %13329 = vmatpush1.bf16.msra.mxu0 %v8550
    %13330 = vmatprep.subr.bf16.mxu0 %v8561
    %13331 = vmatpush1.bf16.msra.mxu0 %v8560
    %13332 = vmatprep.subr.bf16.mxu0 %v8571
    %13333 = vmatpush1.bf16.msra.mxu0 %v8570
    %13334 = vmatprep.subr.bf16.mxu0 %v8581
    %13335 = vmatpush1.bf16.msra.mxu0 %v8580
    %13336 = vmatprep.subr.bf16.mxu0 %v8591
    %13337 = vmatpush1.bf16.msra.mxu0 %v8590
    %13338 = vmatprep.subr.bf16.mxu0 %v8601
    %13339 = vmatpush1.bf16.msra.mxu0 %v8600
    %13340 = vmatprep.subr.bf16.mxu0 %v8611
    %13341 = vmatpush1.bf16.msra.mxu0 %v8610
    %13342 = vmatprep.subr.bf16.mxu0 %v8621
    %13343 = vmatpush1.bf16.msra.mxu0 %v8620
    %13344 = vmatprep.subr.bf16.mxu0 %v8631
    %13345 = vmatpush1.bf16.msra.mxu0 %v8630
    %13346 = vmatprep.mubr.bf16.mxu0 %v2005
    %13347 = vmatmul.mubr.bf16.gmra.mrb[0].mxu0 %v2004
    %v13348 = vpop.f32.mrb[0].mxu0
    %v13349 = vadd.f32 %v13308, %v13348
    %v13350 = vpop.f32.mrb[0].mxu0
    %v13351 = vadd.f32 %v13310, %v13350
    %v13352 = vpop.f32.mrb[0].mxu0
    %v13353 = vpop.f32.mrb[0].mxu0
    %13354 = vdwg.mxu0
    %13355 = vmatprep.subr.bf16.mxu0 %v8641
    %13356 = vmatpush1.bf16.msra.mxu0 %v8640
    %13357 = vmatprep.subr.bf16.mxu0 %v8651
    %13358 = vmatpush1.bf16.msra.mxu0 %v8650
    %13359 = vmatprep.subr.bf16.mxu0 %v8661
    %13360 = vmatpush1.bf16.msra.mxu0 %v8660
    %13361 = vmatprep.subr.bf16.mxu0 %v8671
    %13362 = vmatpush1.bf16.msra.mxu0 %v8670
    %13363 = vmatprep.subr.bf16.mxu0 %v8681
    %13364 = vmatpush1.bf16.msra.mxu0 %v8680
    %13365 = vmatprep.subr.bf16.mxu0 %v8691
    %13366 = vmatpush1.bf16.msra.mxu0 %v8690
    %13367 = vmatprep.subr.bf16.mxu0 %v8701
    %13368 = vmatpush1.bf16.msra.mxu0 %v8700
    %13369 = vmatprep.subr.bf16.mxu0 %v8711
    %13370 = vmatpush1.bf16.msra.mxu0 %v8710
    %13371 = vmatprep.subr.bf16.mxu0 %v8721
    %13372 = vmatpush1.bf16.msra.mxu0 %v8720
    %13373 = vmatprep.subr.bf16.mxu0 %v8731
    %13374 = vmatpush1.bf16.msra.mxu0 %v8730
    %13375 = vmatprep.subr.bf16.mxu0 %v8741
    %13376 = vmatpush1.bf16.msra.mxu0 %v8740
    %13377 = vmatprep.subr.bf16.mxu0 %v8751
    %13378 = vmatpush1.bf16.msra.mxu0 %v8750
    %13379 = vmatprep.subr.bf16.mxu0 %v8761
    %13380 = vmatpush1.bf16.msra.mxu0 %v8760
    %13381 = vmatprep.subr.bf16.mxu0 %v8771
    %13382 = vmatpush1.bf16.msra.mxu0 %v8770
    %13383 = vmatprep.subr.bf16.mxu0 %v8781
    %13384 = vmatpush1.bf16.msra.mxu0 %v8780
    %13385 = vmatprep.subr.bf16.mxu0 %v8791
    %13386 = vmatpush1.bf16.msra.mxu0 %v8790
    %13387 = vmatprep.mubr.bf16.mxu0 %v2007
    %13388 = vmatmul.mubr.bf16.gmra.mrb[0].mxu0 %v2006
    %v13389 = vpop.f32.mrb[0].mxu0
    %v13390 = vadd.f32 %v13349, %v13389
    %v13391 = vpop.f32.mrb[0].mxu0
    %v13392 = vadd.f32 %v13351, %v13391
    %v13393 = vpop.f32.mrb[0].mxu0
    %v13394 = vpop.f32.mrb[0].mxu0
    %13395 = vdwg.mxu0
    %13396 = vmatprep.subr.bf16.mxu0 %v8801
    %13397 = vmatpush1.bf16.msra.mxu0 %v8800
    %13398 = vmatprep.subr.bf16.mxu0 %v8811
    %13399 = vmatpush1.bf16.msra.mxu0 %v8810
    %13400 = vmatprep.subr.bf16.mxu0 %v8821
    %13401 = vmatpush1.bf16.msra.mxu0 %v8820
    %13402 = vmatprep.subr.bf16.mxu0 %v8831
    %13403 = vmatpush1.bf16.msra.mxu0 %v8830
    %13404 = vmatprep.subr.bf16.mxu0 %v8841
    %13405 = vmatpush1.bf16.msra.mxu0 %v8840
    %13406 = vmatprep.subr.bf16.mxu0 %v8851
    %13407 = vmatpush1.bf16.msra.mxu0 %v8850
    %13408 = vmatprep.subr.bf16.mxu0 %v8861
    %13409 = vmatpush1.bf16.msra.mxu0 %v8860
    %13410 = vmatprep.subr.bf16.mxu0 %v8871
    %13411 = vmatpush1.bf16.msra.mxu0 %v8870
    %13412 = vmatprep.subr.bf16.mxu0 %v8881
    %13413 = vmatpush1.bf16.msra.mxu0 %v8880
    %13414 = vmatprep.subr.bf16.mxu0 %v8891
    %13415 = vmatpush1.bf16.msra.mxu0 %v8890
    %13416 = vmatprep.subr.bf16.mxu0 %v8901
    %13417 = vmatpush1.bf16.msra.mxu0 %v8900
    %13418 = vmatprep.subr.bf16.mxu0 %v8911
    %13419 = vmatpush1.bf16.msra.mxu0 %v8910
    %13420 = vmatprep.subr.bf16.mxu0 %v8921
    %13421 = vmatpush1.bf16.msra.mxu0 %v8920
    %13422 = vmatprep.subr.bf16.mxu0 %v8931
    %13423 = vmatpush1.bf16.msra.mxu0 %v8930
    %13424 = vmatprep.subr.bf16.mxu0 %v8941
    %13425 = vmatpush1.bf16.msra.mxu0 %v8940
    %13426 = vmatprep.subr.bf16.mxu0 %v8951
    %13427 = vmatpush1.bf16.msra.mxu0 %v8950
    %13428 = vmatprep.mubr.bf16.mxu0 %v2009
    %13429 = vmatmul.mubr.bf16.gmra.mrb[0].mxu0 %v2008
    %v13430 = vpop.f32.mrb[0].mxu0
    %v13431 = vadd.f32 %v13390, %v13430
    %v13432 = vpop.f32.mrb[0].mxu0
    %v13433 = vadd.f32 %v13392, %v13432
    %v13434 = vpop.f32.mrb[0].mxu0
    %v13435 = vpop.f32.mrb[0].mxu0
    %13436 = vdwg.mxu0
    %13437 = vmatprep.subr.bf16.mxu0 %v8961
    %13438 = vmatpush1.bf16.msra.mxu0 %v8960
    %13439 = vmatprep.subr.bf16.mxu0 %v8971
    %13440 = vmatpush1.bf16.msra.mxu0 %v8970
    %13441 = vmatprep.subr.bf16.mxu0 %v8981
    %13442 = vmatpush1.bf16.msra.mxu0 %v8980
    %13443 = vmatprep.subr.bf16.mxu0 %v8991
    %13444 = vmatpush1.bf16.msra.mxu0 %v8990
    %13445 = vmatprep.subr.bf16.mxu0 %v9001
    %13446 = vmatpush1.bf16.msra.mxu0 %v9000
    %13447 = vmatprep.subr.bf16.mxu0 %v9011
    %13448 = vmatpush1.bf16.msra.mxu0 %v9010
    %13449 = vmatprep.subr.bf16.mxu0 %v9021
    %13450 = vmatpush1.bf16.msra.mxu0 %v9020
    %13451 = vmatprep.subr.bf16.mxu0 %v9031
    %13452 = vmatpush1.bf16.msra.mxu0 %v9030
    %13453 = vmatprep.subr.bf16.mxu0 %v9041
    %13454 = vmatpush1.bf16.msra.mxu0 %v9040
    %13455 = vmatprep.subr.bf16.mxu0 %v9051
    %13456 = vmatpush1.bf16.msra.mxu0 %v9050
    %13457 = vmatprep.subr.bf16.mxu0 %v9061
    %13458 = vmatpush1.bf16.msra.mxu0 %v9060
    %13459 = vmatprep.subr.bf16.mxu0 %v9071
    %13460 = vmatpush1.bf16.msra.mxu0 %v9070
    %13461 = vmatprep.subr.bf16.mxu0 %v9081
    %13462 = vmatpush1.bf16.msra.mxu0 %v9080
    %13463 = vmatprep.subr.bf16.mxu0 %v9091
    %13464 = vmatpush1.bf16.msra.mxu0 %v9090
    %13465 = vmatprep.subr.bf16.mxu0 %v9101
    %13466 = vmatpush1.bf16.msra.mxu0 %v9100
    %13467 = vmatprep.subr.bf16.mxu0 %v9111
    %13468 = vmatpush1.bf16.msra.mxu0 %v9110
    %13469 = vmatprep.mubr.bf16.mxu0 %v2011
    %13470 = vmatmul.mubr.bf16.gmra.mrb[0].mxu0 %v2010
    %v13471 = vpop.f32.mrb[0].mxu0
    %v13472 = vadd.f32 %v13431, %v13471
    %v13473 = vpop.f32.mrb[0].mxu0
    %v13474 = vadd.f32 %v13433, %v13473
    %v13475 = vpop.f32.mrb[0].mxu0
    %v13476 = vpop.f32.mrb[0].mxu0
    %13477 = vdwg.mxu0
    %13478 = vmatprep.subr.bf16.mxu0 %v9121
    %13479 = vmatpush1.bf16.msra.mxu0 %v9120
    %13480 = vmatprep.subr.bf16.mxu0 %v9131
    %13481 = vmatpush1.bf16.msra.mxu0 %v9130
    %13482 = vmatprep.subr.bf16.mxu0 %v9141
    %13483 = vmatpush1.bf16.msra.mxu0 %v9140
    %13484 = vmatprep.subr.bf16.mxu0 %v9151
    %13485 = vmatpush1.bf16.msra.mxu0 %v9150
    %13486 = vmatprep.subr.bf16.mxu0 %v9161
    %13487 = vmatpush1.bf16.msra.mxu0 %v9160
    %13488 = vmatprep.subr.bf16.mxu0 %v9171
    %13489 = vmatpush1.bf16.msra.mxu0 %v9170
    %13490 = vmatprep.subr.bf16.mxu0 %v9181
    %13491 = vmatpush1.bf16.msra.mxu0 %v9180
    %13492 = vmatprep.subr.bf16.mxu0 %v9191
    %13493 = vmatpush1.bf16.msra.mxu0 %v9190
    %13494 = vmatprep.subr.bf16.mxu0 %v9201
    %13495 = vmatpush1.bf16.msra.mxu0 %v9200
    %13496 = vmatprep.subr.bf16.mxu0 %v9211
    %13497 = vmatpush1.bf16.msra.mxu0 %v9210
    %13498 = vmatprep.subr.bf16.mxu0 %v9221
    %13499 = vmatpush1.bf16.msra.mxu0 %v9220
    %13500 = vmatprep.subr.bf16.mxu0 %v9231
    %13501 = vmatpush1.bf16.msra.mxu0 %v9230
    %13502 = vmatprep.subr.bf16.mxu0 %v9241
    %13503 = vmatpush1.bf16.msra.mxu0 %v9240
    %13504 = vmatprep.subr.bf16.mxu0 %v9251
    %13505 = vmatpush1.bf16.msra.mxu0 %v9250
    %13506 = vmatprep.subr.bf16.mxu0 %v9261
    %13507 = vmatpush1.bf16.msra.mxu0 %v9260
    %13508 = vmatprep.subr.bf16.mxu0 %v9271
    %13509 = vmatpush1.bf16.msra.mxu0 %v9270
    %13510 = vmatprep.mubr.bf16.mxu0 %v2013
    %13511 = vmatmul.mubr.bf16.gmra.mrb[0].mxu0 %v2012
    %v13512 = vpop.f32.mrb[0].mxu0
    %v13513 = vadd.f32 %v13472, %v13512
    %v13514 = vpop.f32.mrb[0].mxu0
    %v13515 = vadd.f32 %v13474, %v13514
    %v13516 = vpop.f32.mrb[0].mxu0
    %v13517 = vpop.f32.mrb[0].mxu0
    %13518 = vdwg.mxu0
    %13519 = vmatprep.subr.bf16.mxu0 %v9281
    %13520 = vmatpush1.bf16.msra.mxu0 %v9280
    %13521 = vmatprep.subr.bf16.mxu0 %v9291
    %13522 = vmatpush1.bf16.msra.mxu0 %v9290
    %13523 = vmatprep.subr.bf16.mxu0 %v9301
    %13524 = vmatpush1.bf16.msra.mxu0 %v9300
    %13525 = vmatprep.subr.bf16.mxu0 %v9311
    %13526 = vmatpush1.bf16.msra.mxu0 %v9310
    %13527 = vmatprep.subr.bf16.mxu0 %v9321
    %13528 = vmatpush1.bf16.msra.mxu0 %v9320
    %13529 = vmatprep.subr.bf16.mxu0 %v9331
    %13530 = vmatpush1.bf16.msra.mxu0 %v9330
    %13531 = vmatprep.subr.bf16.mxu0 %v9341
    %13532 = vmatpush1.bf16.msra.mxu0 %v9340
    %13533 = vmatprep.subr.bf16.mxu0 %v9351
    %13534 = vmatpush1.bf16.msra.mxu0 %v9350
    %13535 = vmatprep.subr.bf16.mxu0 %v9361
    %13536 = vmatpush1.bf16.msra.mxu0 %v9360
    %13537 = vmatprep.subr.bf16.mxu0 %v9371
    %13538 = vmatpush1.bf16.msra.mxu0 %v9370
    %13539 = vmatprep.subr.bf16.mxu0 %v9381
    %13540 = vmatpush1.bf16.msra.mxu0 %v9380
    %13541 = vmatprep.subr.bf16.mxu0 %v9391
    %13542 = vmatpush1.bf16.msra.mxu0 %v9390
    %13543 = vmatprep.subr.bf16.mxu0 %v9401
    %13544 = vmatpush1.bf16.msra.mxu0 %v9400
    %13545 = vmatprep.subr.bf16.mxu0 %v9411
    %13546 = vmatpush1.bf16.msra.mxu0 %v9410
    %13547 = vmatprep.subr.bf16.mxu0 %v9421
    %13548 = vmatpush1.bf16.msra.mxu0 %v9420
    %13549 = vmatprep.subr.bf16.mxu0 %v9431
    %13550 = vmatpush1.bf16.msra.mxu0 %v9430
    %13551 = vmatprep.mubr.bf16.mxu0 %v2015
    %13552 = vmatmul.mubr.bf16.gmra.mrb[0].mxu0 %v2014
    %v13553 = vpop.f32.mrb[0].mxu0
    %v13554 = vadd.f32 %v13513, %v13553
    %v13555 = vpop.f32.mrb[0].mxu0
    %v13556 = vadd.f32 %v13515, %v13555
    %v13557 = vpop.f32.mrb[0].mxu0
    %v13558 = vpop.f32.mrb[0].mxu0
    %13559 = vdwg.mxu0
    %13560 = vmatprep.subr.bf16.mxu0 %v9441
    %13561 = vmatpush1.bf16.msra.mxu0 %v9440
    %13562 = vmatprep.subr.bf16.mxu0 %v9451
    %13563 = vmatpush1.bf16.msra.mxu0 %v9450
    %13564 = vmatprep.subr.bf16.mxu0 %v9461
    %13565 = vmatpush1.bf16.msra.mxu0 %v9460
    %13566 = vmatprep.subr.bf16.mxu0 %v9471
    %13567 = vmatpush1.bf16.msra.mxu0 %v9470
    %13568 = vmatprep.subr.bf16.mxu0 %v9481
    %13569 = vmatpush1.bf16.msra.mxu0 %v9480
    %13570 = vmatprep.subr.bf16.mxu0 %v9491
    %13571 = vmatpush1.bf16.msra.mxu0 %v9490
    %13572 = vmatprep.subr.bf16.mxu0 %v9501
    %13573 = vmatpush1.bf16.msra.mxu0 %v9500
    %13574 = vmatprep.subr.bf16.mxu0 %v9511
    %13575 = vmatpush1.bf16.msra.mxu0 %v9510
    %13576 = vmatprep.subr.bf16.mxu0 %v9521
    %13577 = vmatpush1.bf16.msra.mxu0 %v9520
    %13578 = vmatprep.subr.bf16.mxu0 %v9531
    %13579 = vmatpush1.bf16.msra.mxu0 %v9530
    %13580 = vmatprep.subr.bf16.mxu0 %v9541
    %13581 = vmatpush1.bf16.msra.mxu0 %v9540
    %13582 = vmatprep.subr.bf16.mxu0 %v9551
    %13583 = vmatpush1.bf16.msra.mxu0 %v9550
    %13584 = vmatprep.subr.bf16.mxu0 %v9561
    %13585 = vmatpush1.bf16.msra.mxu0 %v9560
    %13586 = vmatprep.subr.bf16.mxu0 %v9571
    %13587 = vmatpush1.bf16.msra.mxu0 %v9570
    %13588 = vmatprep.subr.bf16.mxu0 %v9581
    %13589 = vmatpush1.bf16.msra.mxu0 %v9580
    %13590 = vmatprep.subr.bf16.mxu0 %v9591
    %13591 = vmatpush1.bf16.msra.mxu0 %v9590
    %13592 = vmatprep.mubr.bf16.mxu0 %v2017
    %13593 = vmatmul.mubr.bf16.gmra.mrb[0].mxu0 %v2016
    %v13594 = vpop.f32.mrb[0].mxu0
    %v13595 = vadd.f32 %v13554, %v13594
    %v13596 = vpop.f32.mrb[0].mxu0
    %v13597 = vadd.f32 %v13556, %v13596
    %v13598 = vpop.f32.mrb[0].mxu0
    %v13599 = vpop.f32.mrb[0].mxu0
    %13600 = vdwg.mxu0
    %13601 = vmatprep.subr.bf16.mxu0 %v9601
    %13602 = vmatpush1.bf16.msra.mxu0 %v9600
    %13603 = vmatprep.subr.bf16.mxu0 %v9611
    %13604 = vmatpush1.bf16.msra.mxu0 %v9610
    %13605 = vmatprep.subr.bf16.mxu0 %v9621
    %13606 = vmatpush1.bf16.msra.mxu0 %v9620
    %13607 = vmatprep.subr.bf16.mxu0 %v9631
    %13608 = vmatpush1.bf16.msra.mxu0 %v9630
    %13609 = vmatprep.subr.bf16.mxu0 %v9641
    %13610 = vmatpush1.bf16.msra.mxu0 %v9640
    %13611 = vmatprep.subr.bf16.mxu0 %v9651
    %13612 = vmatpush1.bf16.msra.mxu0 %v9650
    %13613 = vmatprep.subr.bf16.mxu0 %v9661
    %13614 = vmatpush1.bf16.msra.mxu0 %v9660
    %13615 = vmatprep.subr.bf16.mxu0 %v9671
    %13616 = vmatpush1.bf16.msra.mxu0 %v9670
    %13617 = vmatprep.subr.bf16.mxu0 %v9681
    %13618 = vmatpush1.bf16.msra.mxu0 %v9680
    %13619 = vmatprep.subr.bf16.mxu0 %v9691
    %13620 = vmatpush1.bf16.msra.mxu0 %v9690
    %13621 = vmatprep.subr.bf16.mxu0 %v9701
    %13622 = vmatpush1.bf16.msra.mxu0 %v9700
    %13623 = vmatprep.subr.bf16.mxu0 %v9711
    %13624 = vmatpush1.bf16.msra.mxu0 %v9710
    %13625 = vmatprep.subr.bf16.mxu0 %v9721
    %13626 = vmatpush1.bf16.msra.mxu0 %v9720
    %13627 = vmatprep.subr.bf16.mxu0 %v9731
    %13628 = vmatpush1.bf16.msra.mxu0 %v9730
    %13629 = vmatprep.subr.bf16.mxu0 %v9741
    %13630 = vmatpush1.bf16.msra.mxu0 %v9740
    %13631 = vmatprep.subr.bf16.mxu0 %v9751
    %13632 = vmatpush1.bf16.msra.mxu0 %v9750
    %13633 = vmatprep.mubr.bf16.mxu0 %v2019
    %13634 = vmatmul.mubr.bf16.gmra.mrb[0].mxu0 %v2018
    %v13635 = vpop.f32.mrb[0].mxu0
    %v13636 = vadd.f32 %v13595, %v13635
    %v13637 = vpop.f32.mrb[0].mxu0
    %v13638 = vadd.f32 %v13597, %v13637
    %v13639 = vpop.f32.mrb[0].mxu0
    %v13640 = vpop.f32.mrb[0].mxu0
    %13641 = vdwg.mxu0
    %13642 = vmatprep.subr.bf16.mxu0 %v7843
    %13643 = vmatpush1.bf16.msra.mxu0 %v7842
    %13644 = vmatprep.subr.bf16.mxu0 %v7853
    %13645 = vmatpush1.bf16.msra.mxu0 %v7852
    %13646 = vmatprep.subr.bf16.mxu0 %v7863
    %13647 = vmatpush1.bf16.msra.mxu0 %v7862
    %13648 = vmatprep.subr.bf16.mxu0 %v7873
    %13649 = vmatpush1.bf16.msra.mxu0 %v7872
    %13650 = vmatprep.subr.bf16.mxu0 %v7883
    %13651 = vmatpush1.bf16.msra.mxu0 %v7882
    %13652 = vmatprep.subr.bf16.mxu0 %v7893
    %13653 = vmatpush1.bf16.msra.mxu0 %v7892
    %13654 = vmatprep.subr.bf16.mxu0 %v7903
    %13655 = vmatpush1.bf16.msra.mxu0 %v7902
    %13656 = vmatprep.subr.bf16.mxu0 %v7913
    %13657 = vmatpush1.bf16.msra.mxu0 %v7912
    %13658 = vmatprep.subr.bf16.mxu0 %v7923
    %13659 = vmatpush1.bf16.msra.mxu0 %v7922
    %13660 = vmatprep.subr.bf16.mxu0 %v7933
    %13661 = vmatpush1.bf16.msra.mxu0 %v7932
    %13662 = vmatprep.subr.bf16.mxu0 %v7943
    %13663 = vmatpush1.bf16.msra.mxu0 %v7942
    %13664 = vmatprep.subr.bf16.mxu0 %v7953
    %13665 = vmatpush1.bf16.msra.mxu0 %v7952
    %13666 = vmatprep.subr.bf16.mxu0 %v7963
    %13667 = vmatpush1.bf16.msra.mxu0 %v7962
    %13668 = vmatprep.subr.bf16.mxu0 %v7973
    %13669 = vmatpush1.bf16.msra.mxu0 %v7972
    %13670 = vmatprep.subr.bf16.mxu0 %v7983
    %13671 = vmatpush1.bf16.msra.mxu0 %v7982
    %13672 = vmatprep.subr.bf16.mxu0 %v7993
    %13673 = vmatpush1.bf16.msra.mxu0 %v7992
    %13674 = vmatprep.mubr.bf16.mxu0 %v1997
    %13675 = vmatmul.mubr.bf16.gmra.mrb[0].mxu0 %v1996
    %v13676 = vpop.f32.mrb[0].mxu0
    %v13677 = vadd.f32 %v2059, %v13676
    %v13678 = vpop.f32.mrb[0].mxu0
    %v13679 = vadd.f32 %v2063, %v13678
    %v13680 = vpop.f32.mrb[0].mxu0
    %v13681 = vpop.f32.mrb[0].mxu0
    %13682 = vdwg.mxu0
    %13683 = vmatprep.subr.bf16.mxu0 %v8003
    %13684 = vmatpush1.bf16.msra.mxu0 %v8002
    %13685 = vmatprep.subr.bf16.mxu0 %v8013
    %13686 = vmatpush1.bf16.msra.mxu0 %v8012
    %13687 = vmatprep.subr.bf16.mxu0 %v8023
    %13688 = vmatpush1.bf16.msra.mxu0 %v8022
    %13689 = vmatprep.subr.bf16.mxu0 %v8033
    %13690 = vmatpush1.bf16.msra.mxu0 %v8032
    %13691 = vmatprep.subr.bf16.mxu0 %v8043
    %13692 = vmatpush1.bf16.msra.mxu0 %v8042
    %13693 = vmatprep.subr.bf16.mxu0 %v8053
    %13694 = vmatpush1.bf16.msra.mxu0 %v8052
    %13695 = vmatprep.subr.bf16.mxu0 %v8063
    %13696 = vmatpush1.bf16.msra.mxu0 %v8062
    %13697 = vmatprep.subr.bf16.mxu0 %v8073
    %13698 = vmatpush1.bf16.msra.mxu0 %v8072
    %13699 = vmatprep.subr.bf16.mxu0 %v8083
    %13700 = vmatpush1.bf16.msra.mxu0 %v8082
    %13701 = vmatprep.subr.bf16.mxu0 %v8093
    %13702 = vmatpush1.bf16.msra.mxu0 %v8092
    %13703 = vmatprep.subr.bf16.mxu0 %v8103
    %13704 = vmatpush1.bf16.msra.mxu0 %v8102
    %13705 = vmatprep.subr.bf16.mxu0 %v8113
    %13706 = vmatpush1.bf16.msra.mxu0 %v8112
    %13707 = vmatprep.subr.bf16.mxu0 %v8123
    %13708 = vmatpush1.bf16.msra.mxu0 %v8122
    %13709 = vmatprep.subr.bf16.mxu0 %v8133
    %13710 = vmatpush1.bf16.msra.mxu0 %v8132
    %13711 = vmatprep.subr.bf16.mxu0 %v8143
    %13712 = vmatpush1.bf16.msra.mxu0 %v8142
    %13713 = vmatprep.subr.bf16.mxu0 %v8153
    %13714 = vmatpush1.bf16.msra.mxu0 %v8152
    %13715 = vmatprep.mubr.bf16.mxu0 %v1999
    %13716 = vmatmul.mubr.bf16.gmra.mrb[0].mxu0 %v1998
    %v13717 = vpop.f32.mrb[0].mxu0
    %v13718 = vadd.f32 %v13677, %v13717
    %v13719 = vpop.f32.mrb[0].mxu0
    %v13720 = vadd.f32 %v13679, %v13719
    %v13721 = vpop.f32.mrb[0].mxu0
    %v13722 = vpop.f32.mrb[0].mxu0
    %13723 = vdwg.mxu0
    %13724 = vmatprep.subr.bf16.mxu0 %v8163
    %13725 = vmatpush1.bf16.msra.mxu0 %v8162
    %13726 = vmatprep.subr.bf16.mxu0 %v8173
    %13727 = vmatpush1.bf16.msra.mxu0 %v8172
    %13728 = vmatprep.subr.bf16.mxu0 %v8183
    %13729 = vmatpush1.bf16.msra.mxu0 %v8182
    %13730 = vmatprep.subr.bf16.mxu0 %v8193
    %13731 = vmatpush1.bf16.msra.mxu0 %v8192
    %13732 = vmatprep.subr.bf16.mxu0 %v8203
    %13733 = vmatpush1.bf16.msra.mxu0 %v8202
    %13734 = vmatprep.subr.bf16.mxu0 %v8213
    %13735 = vmatpush1.bf16.msra.mxu0 %v8212
    %13736 = vmatprep.subr.bf16.mxu0 %v8223
    %13737 = vmatpush1.bf16.msra.mxu0 %v8222
    %13738 = vmatprep.subr.bf16.mxu0 %v8233
    %13739 = vmatpush1.bf16.msra.mxu0 %v8232
    %13740 = vmatprep.subr.bf16.mxu0 %v8243
    %13741 = vmatpush1.bf16.msra.mxu0 %v8242
    %13742 = vmatprep.subr.bf16.mxu0 %v8253
    %13743 = vmatpush1.bf16.msra.mxu0 %v8252
    %13744 = vmatprep.subr.bf16.mxu0 %v8263
    %13745 = vmatpush1.bf16.msra.mxu0 %v8262
    %13746 = vmatprep.subr.bf16.mxu0 %v8273
    %13747 = vmatpush1.bf16.msra.mxu0 %v8272
    %13748 = vmatprep.subr.bf16.mxu0 %v8283
    %13749 = vmatpush1.bf16.msra.mxu0 %v8282
    %13750 = vmatprep.subr.bf16.mxu0 %v8293
    %13751 = vmatpush1.bf16.msra.mxu0 %v8292
    %13752 = vmatprep.subr.bf16.mxu0 %v8303
    %13753 = vmatpush1.bf16.msra.mxu0 %v8302
    %13754 = vmatprep.subr.bf16.mxu0 %v8313
    %13755 = vmatpush1.bf16.msra.mxu0 %v8312
    %13756 = vmatprep.mubr.bf16.mxu0 %v2001
    %13757 = vmatmul.mubr.bf16.gmra.mrb[0].mxu0 %v2000
    %v13758 = vpop.f32.mrb[0].mxu0
    %v13759 = vadd.f32 %v13718, %v13758
    %v13760 = vpop.f32.mrb[0].mxu0
    %v13761 = vadd.f32 %v13720, %v13760
    %v13762 = vpop.f32.mrb[0].mxu0
    %v13763 = vpop.f32.mrb[0].mxu0
    %13764 = vdwg.mxu0
    %13765 = vmatprep.subr.bf16.mxu0 %v8323
    %13766 = vmatpush1.bf16.msra.mxu0 %v8322
    %13767 = vmatprep.subr.bf16.mxu0 %v8333
    %13768 = vmatpush1.bf16.msra.mxu0 %v8332
    %13769 = vmatprep.subr.bf16.mxu0 %v8343
    %13770 = vmatpush1.bf16.msra.mxu0 %v8342
    %13771 = vmatprep.subr.bf16.mxu0 %v8353
    %13772 = vmatpush1.bf16.msra.mxu0 %v8352
    %13773 = vmatprep.subr.bf16.mxu0 %v8363
    %13774 = vmatpush1.bf16.msra.mxu0 %v8362
    %13775 = vmatprep.subr.bf16.mxu0 %v8373
    %13776 = vmatpush1.bf16.msra.mxu0 %v8372
    %13777 = vmatprep.subr.bf16.mxu0 %v8383
    %13778 = vmatpush1.bf16.msra.mxu0 %v8382
    %13779 = vmatprep.subr.bf16.mxu0 %v8393
    %13780 = vmatpush1.bf16.msra.mxu0 %v8392
    %13781 = vmatprep.subr.bf16.mxu0 %v8403
    %13782 = vmatpush1.bf16.msra.mxu0 %v8402
    %13783 = vmatprep.subr.bf16.mxu0 %v8413
    %13784 = vmatpush1.bf16.msra.mxu0 %v8412
    %13785 = vmatprep.subr.bf16.mxu0 %v8423
    %13786 = vmatpush1.bf16.msra.mxu0 %v8422
    %13787 = vmatprep.subr.bf16.mxu0 %v8433
    %13788 = vmatpush1.bf16.msra.mxu0 %v8432
    %13789 = vmatprep.subr.bf16.mxu0 %v8443
    %13790 = vmatpush1.bf16.msra.mxu0 %v8442
    %13791 = vmatprep.subr.bf16.mxu0 %v8453
    %13792 = vmatpush1.bf16.msra.mxu0 %v8452
    %13793 = vmatprep.subr.bf16.mxu0 %v8463
    %13794 = vmatpush1.bf16.msra.mxu0 %v8462
    %13795 = vmatprep.subr.bf16.mxu0 %v8473
    %13796 = vmatpush1.bf16.msra.mxu0 %v8472
    %13797 = vmatprep.mubr.bf16.mxu0 %v2003
    %13798 = vmatmul.mubr.bf16.gmra.mrb[0].mxu0 %v2002
    %v13799 = vpop.f32.mrb[0].mxu0
    %v13800 = vadd.f32 %v13759, %v13799
    %v13801 = vpop.f32.mrb[0].mxu0
    %v13802 = vadd.f32 %v13761, %v13801
    %v13803 = vpop.f32.mrb[0].mxu0
    %v13804 = vpop.f32.mrb[0].mxu0
    %13805 = vdwg.mxu0
    %13806 = vmatprep.subr.bf16.mxu0 %v8483
    %13807 = vmatpush1.bf16.msra.mxu0 %v8482
    %13808 = vmatprep.subr.bf16.mxu0 %v8493
    %13809 = vmatpush1.bf16.msra.mxu0 %v8492
    %13810 = vmatprep.subr.bf16.mxu0 %v8503
    %13811 = vmatpush1.bf16.msra.mxu0 %v8502
    %13812 = vmatprep.subr.bf16.mxu0 %v8513
    %13813 = vmatpush1.bf16.msra.mxu0 %v8512
    %13814 = vmatprep.subr.bf16.mxu0 %v8523
    %13815 = vmatpush1.bf16.msra.mxu0 %v8522
    %13816 = vmatprep.subr.bf16.mxu0 %v8533
    %13817 = vmatpush1.bf16.msra.mxu0 %v8532
    %13818 = vmatprep.subr.bf16.mxu0 %v8543
    %13819 = vmatpush1.bf16.msra.mxu0 %v8542
    %13820 = vmatprep.subr.bf16.mxu0 %v8553
    %13821 = vmatpush1.bf16.msra.mxu0 %v8552
    %13822 = vmatprep.subr.bf16.mxu0 %v8563
    %13823 = vmatpush1.bf16.msra.mxu0 %v8562
    %13824 = vmatprep.subr.bf16.mxu0 %v8573
    %13825 = vmatpush1.bf16.msra.mxu0 %v8572
    %13826 = vmatprep.subr.bf16.mxu0 %v8583
    %13827 = vmatpush1.bf16.msra.mxu0 %v8582
    %13828 = vmatprep.subr.bf16.mxu0 %v8593
    %13829 = vmatpush1.bf16.msra.mxu0 %v8592
    %13830 = vmatprep.subr.bf16.mxu0 %v8603
    %13831 = vmatpush1.bf16.msra.mxu0 %v8602
    %13832 = vmatprep.subr.bf16.mxu0 %v8613
    %13833 = vmatpush1.bf16.msra.mxu0 %v8612
    %13834 = vmatprep.subr.bf16.mxu0 %v8623
    %13835 = vmatpush1.bf16.msra.mxu0 %v8622
    %13836 = vmatprep.subr.bf16.mxu0 %v8633
    %13837 = vmatpush1.bf16.msra.mxu0 %v8632
    %13838 = vmatprep.mubr.bf16.mxu0 %v2005
    %13839 = vmatmul.mubr.bf16.gmra.mrb[0].mxu0 %v2004
    %v13840 = vpop.f32.mrb[0].mxu0
    %v13841 = vadd.f32 %v13800, %v13840
    %v13842 = vpop.f32.mrb[0].mxu0
    %v13843 = vadd.f32 %v13802, %v13842
    %v13844 = vpop.f32.mrb[0].mxu0
    %v13845 = vpop.f32.mrb[0].mxu0
    %13846 = vdwg.mxu0
    %13847 = vmatprep.subr.bf16.mxu0 %v8643
    %13848 = vmatpush1.bf16.msra.mxu0 %v8642
    %13849 = vmatprep.subr.bf16.mxu0 %v8653
    %13850 = vmatpush1.bf16.msra.mxu0 %v8652
    %13851 = vmatprep.subr.bf16.mxu0 %v8663
    %13852 = vmatpush1.bf16.msra.mxu0 %v8662
    %13853 = vmatprep.subr.bf16.mxu0 %v8673
    %13854 = vmatpush1.bf16.msra.mxu0 %v8672
    %13855 = vmatprep.subr.bf16.mxu0 %v8683
    %13856 = vmatpush1.bf16.msra.mxu0 %v8682
    %13857 = vmatprep.subr.bf16.mxu0 %v8693
    %13858 = vmatpush1.bf16.msra.mxu0 %v8692
    %13859 = vmatprep.subr.bf16.mxu0 %v8703
    %13860 = vmatpush1.bf16.msra.mxu0 %v8702
    %13861 = vmatprep.subr.bf16.mxu0 %v8713
    %13862 = vmatpush1.bf16.msra.mxu0 %v8712
    %13863 = vmatprep.subr.bf16.mxu0 %v8723
    %13864 = vmatpush1.bf16.msra.mxu0 %v8722
    %13865 = vmatprep.subr.bf16.mxu0 %v8733
    %13866 = vmatpush1.bf16.msra.mxu0 %v8732
    %13867 = vmatprep.subr.bf16.mxu0 %v8743
    %13868 = vmatpush1.bf16.msra.mxu0 %v8742
    %13869 = vmatprep.subr.bf16.mxu0 %v8753
    %13870 = vmatpush1.bf16.msra.mxu0 %v8752
    %13871 = vmatprep.subr.bf16.mxu0 %v8763
    %13872 = vmatpush1.bf16.msra.mxu0 %v8762
    %13873 = vmatprep.subr.bf16.mxu0 %v8773
    %13874 = vmatpush1.bf16.msra.mxu0 %v8772
    %13875 = vmatprep.subr.bf16.mxu0 %v8783
    %13876 = vmatpush1.bf16.msra.mxu0 %v8782
    %13877 = vmatprep.subr.bf16.mxu0 %v8793
    %13878 = vmatpush1.bf16.msra.mxu0 %v8792
    %13879 = vmatprep.mubr.bf16.mxu0 %v2007
    %13880 = vmatmul.mubr.bf16.gmra.mrb[0].mxu0 %v2006
    %v13881 = vpop.f32.mrb[0].mxu0
    %v13882 = vadd.f32 %v13841, %v13881
    %v13883 = vpop.f32.mrb[0].mxu0
    %v13884 = vadd.f32 %v13843, %v13883
    %v13885 = vpop.f32.mrb[0].mxu0
    %v13886 = vpop.f32.mrb[0].mxu0
    %13887 = vdwg.mxu0
    %13888 = vmatprep.subr.bf16.mxu0 %v8803
    %13889 = vmatpush1.bf16.msra.mxu0 %v8802
    %13890 = vmatprep.subr.bf16.mxu0 %v8813
    %13891 = vmatpush1.bf16.msra.mxu0 %v8812
    %13892 = vmatprep.subr.bf16.mxu0 %v8823
    %13893 = vmatpush1.bf16.msra.mxu0 %v8822
    %13894 = vmatprep.subr.bf16.mxu0 %v8833
    %13895 = vmatpush1.bf16.msra.mxu0 %v8832
    %13896 = vmatprep.subr.bf16.mxu0 %v8843
    %13897 = vmatpush1.bf16.msra.mxu0 %v8842
    %13898 = vmatprep.subr.bf16.mxu0 %v8853
    %13899 = vmatpush1.bf16.msra.mxu0 %v8852
    %13900 = vmatprep.subr.bf16.mxu0 %v8863
    %13901 = vmatpush1.bf16.msra.mxu0 %v8862
    %13902 = vmatprep.subr.bf16.mxu0 %v8873
    %13903 = vmatpush1.bf16.msra.mxu0 %v8872
    %13904 = vmatprep.subr.bf16.mxu0 %v8883
    %13905 = vmatpush1.bf16.msra.mxu0 %v8882
    %13906 = vmatprep.subr.bf16.mxu0 %v8893
    %13907 = vmatpush1.bf16.msra.mxu0 %v8892
    %13908 = vmatprep.subr.bf16.mxu0 %v8903
    %13909 = vmatpush1.bf16.msra.mxu0 %v8902
    %13910 = vmatprep.subr.bf16.mxu0 %v8913
    %13911 = vmatpush1.bf16.msra.mxu0 %v8912
    %13912 = vmatprep.subr.bf16.mxu0 %v8923
    %13913 = vmatpush1.bf16.msra.mxu0 %v8922
    %13914 = vmatprep.subr.bf16.mxu0 %v8933
    %13915 = vmatpush1.bf16.msra.mxu0 %v8932
    %13916 = vmatprep.subr.bf16.mxu0 %v8943
    %13917 = vmatpush1.bf16.msra.mxu0 %v8942
    %13918 = vmatprep.subr.bf16.mxu0 %v8953
    %13919 = vmatpush1.bf16.msra.mxu0 %v8952
    %13920 = vmatprep.mubr.bf16.mxu0 %v2009
    %13921 = vmatmul.mubr.bf16.gmra.mrb[0].mxu0 %v2008
    %v13922 = vpop.f32.mrb[0].mxu0
    %v13923 = vadd.f32 %v13882, %v13922
    %v13924 = vpop.f32.mrb[0].mxu0
    %v13925 = vadd.f32 %v13884, %v13924
    %v13926 = vpop.f32.mrb[0].mxu0
    %v13927 = vpop.f32.mrb[0].mxu0
    %13928 = vdwg.mxu0
    %13929 = vmatprep.subr.bf16.mxu0 %v8963
    %13930 = vmatpush1.bf16.msra.mxu0 %v8962
    %13931 = vmatprep.subr.bf16.mxu0 %v8973
    %13932 = vmatpush1.bf16.msra.mxu0 %v8972
    %13933 = vmatprep.subr.bf16.mxu0 %v8983
    %13934 = vmatpush1.bf16.msra.mxu0 %v8982
    %13935 = vmatprep.subr.bf16.mxu0 %v8993
    %13936 = vmatpush1.bf16.msra.mxu0 %v8992
    %13937 = vmatprep.subr.bf16.mxu0 %v9003
    %13938 = vmatpush1.bf16.msra.mxu0 %v9002
    %13939 = vmatprep.subr.bf16.mxu0 %v9013
    %13940 = vmatpush1.bf16.msra.mxu0 %v9012
    %13941 = vmatprep.subr.bf16.mxu0 %v9023
    %13942 = vmatpush1.bf16.msra.mxu0 %v9022
    %13943 = vmatprep.subr.bf16.mxu0 %v9033
    %13944 = vmatpush1.bf16.msra.mxu0 %v9032
    %13945 = vmatprep.subr.bf16.mxu0 %v9043
    %13946 = vmatpush1.bf16.msra.mxu0 %v9042
    %13947 = vmatprep.subr.bf16.mxu0 %v9053
    %13948 = vmatpush1.bf16.msra.mxu0 %v9052
    %13949 = vmatprep.subr.bf16.mxu0 %v9063
    %13950 = vmatpush1.bf16.msra.mxu0 %v9062
    %13951 = vmatprep.subr.bf16.mxu0 %v9073
    %13952 = vmatpush1.bf16.msra.mxu0 %v9072
    %13953 = vmatprep.subr.bf16.mxu0 %v9083
    %13954 = vmatpush1.bf16.msra.mxu0 %v9082
    %13955 = vmatprep.subr.bf16.mxu0 %v9093
    %13956 = vmatpush1.bf16.msra.mxu0 %v9092
    %13957 = vmatprep.subr.bf16.mxu0 %v9103
    %13958 = vmatpush1.bf16.msra.mxu0 %v9102
    %13959 = vmatprep.subr.bf16.mxu0 %v9113
    %13960 = vmatpush1.bf16.msra.mxu0 %v9112
    %13961 = vmatprep.mubr.bf16.mxu0 %v2011
    %13962 = vmatmul.mubr.bf16.gmra.mrb[0].mxu0 %v2010
    %v13963 = vpop.f32.mrb[0].mxu0
    %v13964 = vadd.f32 %v13923, %v13963
    %v13965 = vpop.f32.mrb[0].mxu0
    %v13966 = vadd.f32 %v13925, %v13965
    %v13967 = vpop.f32.mrb[0].mxu0
    %v13968 = vpop.f32.mrb[0].mxu0
    %13969 = vdwg.mxu0
    %13970 = vmatprep.subr.bf16.mxu0 %v9123
    %13971 = vmatpush1.bf16.msra.mxu0 %v9122
    %13972 = vmatprep.subr.bf16.mxu0 %v9133
    %13973 = vmatpush1.bf16.msra.mxu0 %v9132
    %13974 = vmatprep.subr.bf16.mxu0 %v9143
    %13975 = vmatpush1.bf16.msra.mxu0 %v9142
    %13976 = vmatprep.subr.bf16.mxu0 %v9153
    %13977 = vmatpush1.bf16.msra.mxu0 %v9152
    %13978 = vmatprep.subr.bf16.mxu0 %v9163
    %13979 = vmatpush1.bf16.msra.mxu0 %v9162
    %13980 = vmatprep.subr.bf16.mxu0 %v9173
    %13981 = vmatpush1.bf16.msra.mxu0 %v9172
    %13982 = vmatprep.subr.bf16.mxu0 %v9183
    %13983 = vmatpush1.bf16.msra.mxu0 %v9182
    %13984 = vmatprep.subr.bf16.mxu0 %v9193
    %13985 = vmatpush1.bf16.msra.mxu0 %v9192
    %13986 = vmatprep.subr.bf16.mxu0 %v9203
    %13987 = vmatpush1.bf16.msra.mxu0 %v9202
    %13988 = vmatprep.subr.bf16.mxu0 %v9213
    %13989 = vmatpush1.bf16.msra.mxu0 %v9212
    %13990 = vmatprep.subr.bf16.mxu0 %v9223
    %13991 = vmatpush1.bf16.msra.mxu0 %v9222
    %13992 = vmatprep.subr.bf16.mxu0 %v9233
    %13993 = vmatpush1.bf16.msra.mxu0 %v9232
    %13994 = vmatprep.subr.bf16.mxu0 %v9243
    %13995 = vmatpush1.bf16.msra.mxu0 %v9242
    %13996 = vmatprep.subr.bf16.mxu0 %v9253
    %13997 = vmatpush1.bf16.msra.mxu0 %v9252
    %13998 = vmatprep.subr.bf16.mxu0 %v9263
    %13999 = vmatpush1.bf16.msra.mxu0 %v9262
    %14000 = vmatprep.subr.bf16.mxu0 %v9273
    %14001 = vmatpush1.bf16.msra.mxu0 %v9272
    %14002 = vmatprep.mubr.bf16.mxu0 %v2013
    %14003 = vmatmul.mubr.bf16.gmra.mrb[0].mxu0 %v2012
    %v14004 = vpop.f32.mrb[0].mxu0
    %v14005 = vadd.f32 %v13964, %v14004
    %v14006 = vpop.f32.mrb[0].mxu0
    %v14007 = vadd.f32 %v13966, %v14006
    %v14008 = vpop.f32.mrb[0].mxu0
    %v14009 = vpop.f32.mrb[0].mxu0
    %14010 = vdwg.mxu0
    %14011 = vmatprep.subr.bf16.mxu0 %v9283
    %14012 = vmatpush1.bf16.msra.mxu0 %v9282
    %14013 = vmatprep.subr.bf16.mxu0 %v9293
    %14014 = vmatpush1.bf16.msra.mxu0 %v9292
    %14015 = vmatprep.subr.bf16.mxu0 %v9303
    %14016 = vmatpush1.bf16.msra.mxu0 %v9302
    %14017 = vmatprep.subr.bf16.mxu0 %v9313
    %14018 = vmatpush1.bf16.msra.mxu0 %v9312
    %14019 = vmatprep.subr.bf16.mxu0 %v9323
    %14020 = vmatpush1.bf16.msra.mxu0 %v9322
    %14021 = vmatprep.subr.bf16.mxu0 %v9333
    %14022 = vmatpush1.bf16.msra.mxu0 %v9332
    %14023 = vmatprep.subr.bf16.mxu0 %v9343
    %14024 = vmatpush1.bf16.msra.mxu0 %v9342
    %14025 = vmatprep.subr.bf16.mxu0 %v9353
    %14026 = vmatpush1.bf16.msra.mxu0 %v9352
    %14027 = vmatprep.subr.bf16.mxu0 %v9363
    %14028 = vmatpush1.bf16.msra.mxu0 %v9362
    %14029 = vmatprep.subr.bf16.mxu0 %v9373
    %14030 = vmatpush1.bf16.msra.mxu0 %v9372
    %14031 = vmatprep.subr.bf16.mxu0 %v9383
    %14032 = vmatpush1.bf16.msra.mxu0 %v9382
    %14033 = vmatprep.subr.bf16.mxu0 %v9393
    %14034 = vmatpush1.bf16.msra.mxu0 %v9392
    %14035 = vmatprep.subr.bf16.mxu0 %v9403
    %14036 = vmatpush1.bf16.msra.mxu0 %v9402
    %14037 = vmatprep.subr.bf16.mxu0 %v9413
    %14038 = vmatpush1.bf16.msra.mxu0 %v9412
    %14039 = vmatprep.subr.bf16.mxu0 %v9423
    %14040 = vmatpush1.bf16.msra.mxu0 %v9422
    %14041 = vmatprep.subr.bf16.mxu0 %v9433
    %14042 = vmatpush1.bf16.msra.mxu0 %v9432
    %14043 = vmatprep.mubr.bf16.mxu0 %v2015
    %14044 = vmatmul.mubr.bf16.gmra.mrb[0].mxu0 %v2014
    %v14045 = vpop.f32.mrb[0].mxu0
    %v14046 = vadd.f32 %v14005, %v14045
    %v14047 = vpop.f32.mrb[0].mxu0
    %v14048 = vadd.f32 %v14007, %v14047
    %v14049 = vpop.f32.mrb[0].mxu0
    %v14050 = vpop.f32.mrb[0].mxu0
    %14051 = vdwg.mxu0
    %14052 = vmatprep.subr.bf16.mxu0 %v9443
    %14053 = vmatpush1.bf16.msra.mxu0 %v9442
    %14054 = vmatprep.subr.bf16.mxu0 %v9453
    %14055 = vmatpush1.bf16.msra.mxu0 %v9452
    %14056 = vmatprep.subr.bf16.mxu0 %v9463
    %14057 = vmatpush1.bf16.msra.mxu0 %v9462
    %14058 = vmatprep.subr.bf16.mxu0 %v9473
    %14059 = vmatpush1.bf16.msra.mxu0 %v9472
    %14060 = vmatprep.subr.bf16.mxu0 %v9483
    %14061 = vmatpush1.bf16.msra.mxu0 %v9482
    %14062 = vmatprep.subr.bf16.mxu0 %v9493
    %14063 = vmatpush1.bf16.msra.mxu0 %v9492
    %14064 = vmatprep.subr.bf16.mxu0 %v9503
    %14065 = vmatpush1.bf16.msra.mxu0 %v9502
    %14066 = vmatprep.subr.bf16.mxu0 %v9513
    %14067 = vmatpush1.bf16.msra.mxu0 %v9512
    %14068 = vmatprep.subr.bf16.mxu0 %v9523
    %14069 = vmatpush1.bf16.msra.mxu0 %v9522
    %14070 = vmatprep.subr.bf16.mxu0 %v9533
    %14071 = vmatpush1.bf16.msra.mxu0 %v9532
    %14072 = vmatprep.subr.bf16.mxu0 %v9543
    %14073 = vmatpush1.bf16.msra.mxu0 %v9542
    %14074 = vmatprep.subr.bf16.mxu0 %v9553
    %14075 = vmatpush1.bf16.msra.mxu0 %v9552
    %14076 = vmatprep.subr.bf16.mxu0 %v9563
    %14077 = vmatpush1.bf16.msra.mxu0 %v9562
    %14078 = vmatprep.subr.bf16.mxu0 %v9573
    %14079 = vmatpush1.bf16.msra.mxu0 %v9572
    %14080 = vmatprep.subr.bf16.mxu0 %v9583
    %14081 = vmatpush1.bf16.msra.mxu0 %v9582
    %14082 = vmatprep.subr.bf16.mxu0 %v9593
    %14083 = vmatpush1.bf16.msra.mxu0 %v9592
    %14084 = vmatprep.mubr.bf16.mxu0 %v2017
    %14085 = vmatmul.mubr.bf16.gmra.mrb[0].mxu0 %v2016
    %v14086 = vpop.f32.mrb[0].mxu0
    %v14087 = vadd.f32 %v14046, %v14086
    %v14088 = vpop.f32.mrb[0].mxu0
    %v14089 = vadd.f32 %v14048, %v14088
    %v14090 = vpop.f32.mrb[0].mxu0
    %v14091 = vpop.f32.mrb[0].mxu0
    %14092 = vdwg.mxu0
    %14093 = vmatprep.subr.bf16.mxu0 %v9603
    %14094 = vmatpush1.bf16.msra.mxu0 %v9602
    %14095 = vmatprep.subr.bf16.mxu0 %v9613
    %14096 = vmatpush1.bf16.msra.mxu0 %v9612
    %14097 = vmatprep.subr.bf16.mxu0 %v9623
    %14098 = vmatpush1.bf16.msra.mxu0 %v9622
    %14099 = vmatprep.subr.bf16.mxu0 %v9633
    %14100 = vmatpush1.bf16.msra.mxu0 %v9632
    %14101 = vmatprep.subr.bf16.mxu0 %v9643
    %14102 = vmatpush1.bf16.msra.mxu0 %v9642
    %14103 = vmatprep.subr.bf16.mxu0 %v9653
    %14104 = vmatpush1.bf16.msra.mxu0 %v9652
    %14105 = vmatprep.subr.bf16.mxu0 %v9663
    %14106 = vmatpush1.bf16.msra.mxu0 %v9662
    %14107 = vmatprep.subr.bf16.mxu0 %v9673
    %14108 = vmatpush1.bf16.msra.mxu0 %v9672
    %14109 = vmatprep.subr.bf16.mxu0 %v9683
    %14110 = vmatpush1.bf16.msra.mxu0 %v9682
    %14111 = vmatprep.subr.bf16.mxu0 %v9693
    %14112 = vmatpush1.bf16.msra.mxu0 %v9692
    %14113 = vmatprep.subr.bf16.mxu0 %v9703
    %14114 = vmatpush1.bf16.msra.mxu0 %v9702
    %14115 = vmatprep.subr.bf16.mxu0 %v9713
    %14116 = vmatpush1.bf16.msra.mxu0 %v9712
    %14117 = vmatprep.subr.bf16.mxu0 %v9723
    %14118 = vmatpush1.bf16.msra.mxu0 %v9722
    %14119 = vmatprep.subr.bf16.mxu0 %v9733
    %14120 = vmatpush1.bf16.msra.mxu0 %v9732
    %14121 = vmatprep.subr.bf16.mxu0 %v9743
    %14122 = vmatpush1.bf16.msra.mxu0 %v9742
    %14123 = vmatprep.subr.bf16.mxu0 %v9753
    %14124 = vmatpush1.bf16.msra.mxu0 %v9752
    %14125 = vmatprep.mubr.bf16.mxu0 %v2019
    %14126 = vmatmul.mubr.bf16.gmra.mrb[0].mxu0 %v2018
    %v14127 = vpop.f32.mrb[0].mxu0
    %v14128 = vadd.f32 %v14087, %v14127
    %v14129 = vpop.f32.mrb[0].mxu0
    %v14130 = vadd.f32 %v14089, %v14129
    %v14131 = vpop.f32.mrb[0].mxu0
    %v14132 = vpop.f32.mrb[0].mxu0
    %14133 = vdwg.mxu0
    %v14134 = vxor.u32 %v12160, 2147483648
    %v14135 = vxor.u32 %v12162, 2147483648
    %v14136 = vxor.u32 %v12652, 2147483648
    %v14137 = vxor.u32 %v12654, 2147483648
    %v14138 = vxor.u32 %v13144, 2147483648
    %v14139 = vxor.u32 %v13146, 2147483648
    %v14140 = vxor.u32 %v13636, 2147483648
    %v14141 = vxor.u32 %v13638, 2147483648
    %v14142 = vxor.u32 %v14128, 2147483648
    %v14143 = vxor.u32 %v14130, 2147483648
    %v14144 = vmul.f32 %v14134, 1.442695
    %v14145 = vpow.pop %v14144
    %v14146 = vmul.f32 %v14135, 1.442695
    %v14147 = vpow.pop %v14146
    %v14148 = vmul.f32 %v14136, 1.442695
    %v14149 = vpow.pop %v14148
    %v14150 = vmul.f32 %v14137, 1.442695
    %v14151 = vpow.pop %v14150
    %v14152 = vmul.f32 %v14138, 1.442695
    %v14153 = vpow.pop %v14152
    %v14154 = vmul.f32 %v14139, 1.442695
    %v14155 = vpow.pop %v14154
    %v14156 = vmul.f32 %v14140, 1.442695
    %v14157 = vpow.pop %v14156
    %v14158 = vmul.f32 %v14141, 1.442695
    %v14159 = vpow.pop %v14158
    %v14160 = vmul.f32 %v14142, 1.442695
    %v14161 = vpow.pop %v14160
    %v14162 = vmul.f32 %v14143, 1.442695
    %v14163 = vpow.pop %v14162
    %v14164 = vadd.f32 %v14145, 1.0
    %v14165 = vadd.f32 %v14147, 1.0
    %v14166 = vadd.f32 %v14149, 1.0
    %v14167 = vadd.f32 %v14151, 1.0
    %v14168 = vadd.f32 %v14153, 1.0
    %v14169 = vadd.f32 %v14155, 1.0
    %v14170 = vadd.f32 %v14157, 1.0
    %v14171 = vadd.f32 %v14159, 1.0
    %v14172 = vadd.f32 %v14161, 1.0
    %v14173 = vadd.f32 %v14163, 1.0
    %v14174 = vrcp.pop %v14164
    %v14175 = vmul.f32 1.0, %v14174
    %v14176 = vrcp.pop %v14165
    %v14177 = vmul.f32 1.0, %v14176
    %v14178 = vrcp.pop %v14166
    %v14179 = vmul.f32 1.0, %v14178
    %v14180 = vrcp.pop %v14167
    %v14181 = vmul.f32 1.0, %v14180
    %v14182 = vrcp.pop %v14168
    %v14183 = vmul.f32 1.0, %v14182
    %v14184 = vrcp.pop %v14169
    %v14185 = vmul.f32 1.0, %v14184
    %v14186 = vrcp.pop %v14170
    %v14187 = vmul.f32 1.0, %v14186
    %v14188 = vrcp.pop %v14171
    %v14189 = vmul.f32 1.0, %v14188
    %v14190 = vrcp.pop %v14172
    %v14191 = vmul.f32 1.0, %v14190
    %v14192 = vrcp.pop %v14173
    %v14193 = vmul.f32 1.0, %v14192
    %v14194 = vmul.f32 %v12160, %v14175
    %v14195 = vmul.f32 %v12162, %v14177
    %v14196 = vmul.f32 %v12652, %v14179
    %v14197 = vmul.f32 %v12654, %v14181
    %v14198 = vmul.f32 %v13144, %v14183
    %v14199 = vmul.f32 %v13146, %v14185
    %v14200 = vmul.f32 %v13636, %v14187
    %v14201 = vmul.f32 %v13638, %v14189
    %v14202 = vmul.f32 %v14128, %v14191
    %v14203 = vmul.f32 %v14130, %v14193
    %14204 = vst [vmem:[#allocation8] sm:$0xff] %v14194
    %14205 = vst [vmem:[#allocation8 + $0x8] sm:$0xff] %v14195
    %14206 = vst [vmem:[#allocation8 + $0x10] sm:$0xff] %v14196
    %14207 = vst [vmem:[#allocation8 + $0x18] sm:$0xff] %v14197
    %14208 = vst [vmem:[#allocation8 + $0x20] sm:$0xff] %v14198
    %14209 = vst [vmem:[#allocation8 + $0x28] sm:$0xff] %v14199
    %14210 = vst [vmem:[#allocation8 + $0x30] sm:$0xff] %v14200
    %14211 = vst [vmem:[#allocation8 + $0x38] sm:$0xff] %v14201
    %14212 = vst [vmem:[#allocation8 + $0x40] sm:$0xff] %v14202
    %14213 = vst [vmem:[#allocation8 + $0x48] sm:$0xff] %v14203
    // Predicated region
    $region26: #{tpu_custom_call.1} parent=1 // pred_check
      _
    $region27: #{tpu_custom_call.1} parent=1 // pred_check_branch
      %14215 = sbr.rel (0) target = $region29
    $region28: #{tpu_custom_call.1} parent=1 // pred_region
      %s14217 = ssub.s32 1280, 1280
      %14218 = vsyncadd [#allocation4], %s14217
      %s14220 = sshll.u32 [#allocation8], 4
      %s14221 = int_to_ptr.vmem [resolvable:$true] %s14220
      %14223 = dma.vmem_to_hbm [thread:$0]  %s14221, 1280, %s3, [#allocation4]
    $region29: #{tpu_custom_call.1} parent=1 // pred_fallthru
      _
    // Predicated region
    $region30: #{tpu_custom_call.1} parent=1 // pred_check
      _
    $region31: #{tpu_custom_call.1} parent=1 // pred_check_branch
      %14225 = sbr.rel (0) target = $region33
    $region32: #{tpu_custom_call.1} parent=1 // pred_region
      %14226 = dma.done [#allocation4], 1280
    $region33: #{tpu_custom_call.1} parent=1 // pred_fallthru
      _
    %14227 = vsyncpa [#allocation3], 1
    %14228 = vsyncpa [#allocation6], 1
    %14229 = vsyncpa [#allocation4], 1

</llo_original>
